<compile_context>
chip_gen: v5e
topology: v5e:2x2
jax: 0.10.0
libtpu: 0.0.40
codegen_flags: <defaults>
</compile_context>

<pallas_src>
import functools

import jax
import jax.numpy as jnp
from jax.experimental import pallas as pl
from jax.experimental.pallas import tpu as pltpu

_LANES = 128
_BN_EPS = 1e-5


def _round_up(x, m):
    return (x + m - 1) // m * m


_VMEM_CACHE = {}


def _vmem_limit_bytes():
    """Generation-aware scoped-VMEM budget (~half of physical VMEM)."""
    if "limit" not in _VMEM_CACHE:
        cap = 64 * 1024 * 1024
        try:
            info = pltpu.get_tpu_info()
            cap = int(getattr(info, "vmem_capacity_bytes", cap) or cap)
        except Exception:
            pass
        _VMEM_CACHE["limit"] = int(min(max(cap // 2, 32 * 1024 * 1024),
                                       96 * 1024 * 1024))
    return _VMEM_CACHE["limit"]


# --------------------------------------------------------------------------
# Canonical padded-flat (CPF) layout helpers.
# Row r = n*(Hv+2)*(Wv+2) + h*(Wv+2) + w holds activation[n, h-1, w-1] for
# 1<=h<=Hv, 1<=w<=Wv and exact zeros elsewhere (this IS the conv zero pad).
# --------------------------------------------------------------------------
def _cpf_geometry(n, hv, wv, tm):
    hp, wp = hv + 2, wv + 2
    r_grid = n * hp * wp
    n_tiles = -(-r_grid // tm)
    return hp, wp, r_grid, n_tiles, n_tiles * tm


def _pick_tm(n, hv, wv, block_rows):
    wp = wv + 2
    r_grid = n * (hv + 2) * wp
    tm = min(_round_up(block_rows, 8), _round_up(r_grid, 8))
    return max(tm, _round_up(wp + 2, 8))


def _pick_halo(tm, wp):
    need = wp + 2
    for d in range(8, tm + 1, 8):
        if tm % d == 0 and d >= need:
            return d
    return tm


def _pick_tm2(rows, tm, target=2048):
    """Pass-2 has no K dim: use a bigger row tile that still divides `rows`."""
    n = rows // tm
    k = 1
    for c in range(1, n + 1):
        if n % c == 0 and tm * c <= max(target, tm):
            k = c
    return tm * k


def _cpf_pack(x_nhwc, tm):
    n, hv, wv, c = x_nhwc.shape
    _, _, r_grid, _, r_rows = _cpf_geometry(n, hv, wv, tm)
    xp = jnp.pad(x_nhwc.astype(jnp.bfloat16), ((0, 0), (1, 1), (1, 1), (0, 0)))
    xp = xp.reshape(r_grid, c)
    return jnp.pad(xp, ((0, r_rows - r_grid), (0, 0)))


def _cpf_mask(n, hv, wv, tm):
    _, _, r_grid, _, r_rows = _cpf_geometry(n, hv, wv, tm)
    m = jnp.pad(jnp.ones((n, hv, wv, 1), jnp.float32),
                ((0, 0), (1, 1), (1, 1), (0, 0)))
    return jnp.pad(m.reshape(r_grid, 1), ((0, r_rows - r_grid), (0, 0)))


def _cpf_unpack(y_cpf, n, hv, wv, cout):
    hp, wp = hv + 2, wv + 2
    y = y_cpf[: n * hp * wp].reshape(n, hp, wp, -1)
    return y[:, 1:hv + 1, 1:wv + 1, :cout]


# --------------------------------------------------------------------------
# Pass-1 kernels: matmul on the MXU + masked per-tile BN partial sums.
# --------------------------------------------------------------------------
def _cpf_conv_stats_kernel(wp, has_sc, *refs):
    """9-tap 3x3 (stride 1) conv over a halo'd row tile of the CPF activation."""
    if has_sc:
        (p_ref, a_ref, b_ref, w_ref, m_ref, xs_ref, wsc_ref,
         y_ref, s1_ref, s2_ref, ysc_ref, t1_ref, t2_ref) = refs
    else:
        (p_ref, a_ref, b_ref, w_ref, m_ref,
         y_ref, s1_ref, s2_ref) = refs
    tm = a_ref.shape[0]
    halo = p_ref.shape[0]

    # Halo'd slab (prev-tail | current | next-head).  Kept f32 so the nine
    # statically row-shifted (sublane-misaligned) slices stay on the plain
    # 32-bit relayout path; slices are cast back to bf16 for the MXU.
    xcat = jnp.concatenate(
        [p_ref[...], a_ref[...], b_ref[...]], axis=0).astype(jnp.float32)

    acc = jnp.zeros(y_ref.shape, jnp.float32)
    for t in range(9):
        dy, dx = divmod(t, 3)
        start = halo + (dy - 1) * wp + (dx - 1)
        tap = xcat[start:start + tm, :].astype(jnp.bfloat16)
        acc = acc + jnp.dot(tap, w_ref[t], preferred_element_type=jnp.float32)

    valid = m_ref[...] > 0.0                       # (tm, 1)
    accm = jnp.where(valid, acc, 0.0)              # zero out border / tail rows
    y_ref[...] = acc.astype(y_ref.dtype)
    s1_ref[...] = jnp.sum(accm, axis=0, keepdims=True).reshape(s1_ref.shape)
    s2_ref[...] = jnp.sum(accm * accm, axis=0, keepdims=True).reshape(s2_ref.shape)

    if has_sc:
        # Fused 1x1 projection shortcut (rides the same M tile).
        sacc = jnp.dot(xs_ref[...], wsc_ref[...],
                       preferred_element_type=jnp.float32)
        saccm = jnp.where(valid, sacc, 0.0)
        ysc_ref[...] = sacc.astype(ysc_ref.dtype)
        t1_ref[...] = jnp.sum(saccm, axis=0, keepdims=True).reshape(t1_ref.shape)
        t2_ref[...] = jnp.sum(saccm * saccm, axis=0,
                              keepdims=True).reshape(t2_ref.shape)


def _matmul_stats_kernel(x_ref, w_ref, m_ref, y_ref, s1_ref, s2_ref):
    """Plain tiled matmul + masked per-tile stats (stride-2 im2col fallback)."""
    acc = jnp.dot(x_ref[...], w_ref[...], preferred_element_type=jnp.float32)
    valid = m_ref[...] > 0.0
    accm = jnp.where(valid, acc, 0.0)
    y_ref[...] = acc.astype(y_ref.dtype)
    s1_ref[...] = jnp.sum(accm, axis=0, keepdims=True).reshape(s1_ref.shape)
    s2_ref[...] = jnp.sum(accm * accm, axis=0, keepdims=True).reshape(s2_ref.shape)


# --------------------------------------------------------------------------
# Pass-2 kernel: folded scale/shift (+ fused shortcut / residual) (+ relu).
# --------------------------------------------------------------------------
def _bn_affine_kernel(relu, res_mode, *refs):
    if res_mode == "proj":
        y_ref, sc_ref, sh_ref, m_ref, ysc_ref, scs_ref, shs_ref, o_ref = refs
    elif res_mode == "add":
        y_ref, sc_ref, sh_ref, m_ref, r_ref, o_ref = refs
    else:
        y_ref, sc_ref, sh_ref, m_ref, o_ref = refs

    v = y_ref[...].astype(jnp.float32) * sc_ref[...] + sh_ref[...]
    if res_mode == "proj":
        v = v + (ysc_ref[...].astype(jnp.float32) * scs_ref[...] + shs_ref[...])
    elif res_mode == "add":
        r = r_ref[...].astype(jnp.float32)
        pad_c = v.shape[1] - r.shape[1]
        if pad_c:
            r = jnp.concatenate(
                [r, jnp.zeros((r.shape[0], pad_c), jnp.float32)], axis=1)
        v = v + r
    if relu:
        v = jnp.maximum(v, 0.0)
    # Border / tail rows forced to exact zero so the output is a valid CPF
    # (zero-padded) activation for the next conv.
    o_ref[...] = jnp.where(m_ref[...] > 0.0, v, 0.0).astype(o_ref.dtype)


def _fold_bn(s1_parts, s2_parts, gamma_pad, beta_pad, count, eps):
    # Single f32 tree-reduction of per-tile partials, then fold into an affine.
    s1 = jnp.sum(s1_parts, axis=(0, 1))
    s2 = jnp.sum(s2_parts, axis=(0, 1))
    mean = s1 / count
    var = jnp.maximum(s2 / count - mean * mean, 0.0)      # biased variance
    scale = gamma_pad * jax.lax.rsqrt(var + eps)
    shift = beta_pad - mean * scale
    return scale.reshape(1, -1), shift.reshape(1, -1)


def _bn_affine(y, scale, shift, mask, residual, relu, tm2, out_dtype):
    rows, cpad = y.shape
    n2 = rows // tm2
    res_mode = residual[0] if residual is not None else None

    in_specs = [pl.BlockSpec((tm2, cpad), lambda i: (i, 0)),
                pl.BlockSpec((1, cpad), lambda i: (0, 0)),
                pl.BlockSpec((1, cpad), lambda i: (0, 0)),
                pl.BlockSpec((tm2, 1), lambda i: (i, 0))]
    inputs = [y, scale, shift, mask]
    extra_bytes = 0
    if res_mode == "proj":
        _, ysc, scale_sc, shift_sc = residual
        in_specs += [pl.BlockSpec((tm2, cpad), lambda i: (i, 0)),
                     pl.BlockSpec((1, cpad), lambda i: (0, 0)),
                     pl.BlockSpec((1, cpad), lambda i: (0, 0))]
        inputs += [ysc, scale_sc, shift_sc]
        extra_bytes = 2 * rows * cpad
    elif res_mode == "add":
        _, res = residual
        in_specs += [pl.BlockSpec((tm2, res.shape[1]), lambda i: (i, 0))]
        inputs += [res]
        extra_bytes = int(res.size) * res.dtype.itemsize

    bytes_accessed = (2 * rows * cpad
                      + rows * cpad * jnp.dtype(out_dtype).itemsize
                      + 4 * rows + 16 * cpad + extra_bytes)
    return pl.pallas_call(
        functools.partial(_bn_affine_kernel, relu, res_mode),
        grid=(n2,),
        in_specs=in_specs,
        out_specs=pl.BlockSpec((tm2, cpad), lambda i: (i, 0)),
        out_shape=jax.ShapeDtypeStruct((rows, cpad), out_dtype),
        compiler_params=pltpu.CompilerParams(
            dimension_semantics=("parallel",),
            vmem_limit_bytes=_vmem_limit_bytes()),
        cost_estimate=pl.CostEstimate(flops=6 * rows * cpad, transcendentals=0,
                                      bytes_accessed=int(bytes_accessed)),
    )(*inputs)


# --------------------------------------------------------------------------
# Stride-1 3x3 conv + BN (batch stats) [+ fused shortcut] [+ relu], CPF layout.
# --------------------------------------------------------------------------
def conv3x3_bn_cpf(x_cpf, mask, w_hwio, gamma, beta, n, hv, wv, *,
                   relu, shortcut=None, tm=512, eps=_BN_EPS):
    rows, k_in = x_cpf.shape
    _, wp, _, n_tiles, r_rows = _cpf_geometry(n, hv, wv, tm)
    assert rows == r_rows and mask.shape[0] == r_rows
    ci, cout = int(w_hwio.shape[2]), int(w_hwio.shape[3])
    cpad = _round_up(cout, _LANES)                 # lane-dense output channels
    halo = _pick_halo(tm, wp)
    ratio = tm // halo
    max_b = r_rows // halo - 1

    # Weights: (9, K_in, Cpad) bf16, zero-padded on both channel axes so lane
    # padding contributes nothing.
    w9 = w_hwio.astype(jnp.bfloat16).reshape(9, ci, cout)
    w9p = jnp.zeros((9, k_in, cpad), jnp.bfloat16).at[:, :ci, :cout].set(w9)
    gamma_p = jnp.pad(gamma.astype(jnp.float32), (0, cpad - cout))
    beta_p = jnp.pad(beta.astype(jnp.float32), (0, cpad - cout))

    sc_mode = shortcut[0] if shortcut is not None else None
    has_sc = sc_mode == "proj"

    in_specs = [
        # prev-tail halo / current tile / next-head halo of the SAME array.
        pl.BlockSpec((halo, k_in), lambda i: (jnp.maximum(i * ratio - 1, 0), 0)),
        pl.BlockSpec((tm, k_in), lambda i: (i, 0)),
        pl.BlockSpec((halo, k_in),
                     lambda i: (jnp.minimum((i + 1) * ratio, max_b), 0)),
        pl.BlockSpec((9, k_in, cpad), lambda i: (0, 0, 0)),   # pinned weights
        pl.BlockSpec((tm, 1), lambda i: (i, 0)),               # valid-row mask
    ]
    inputs = [x_cpf, x_cpf, x_cpf, w9p, mask]
    out_shape = [jax.ShapeDtypeStruct((r_rows, cpad), jnp.bfloat16),
                 jax.ShapeDtypeStruct((n_tiles, 1, cpad), jnp.float32),
                 jax.ShapeDtypeStruct((n_tiles, 1, cpad), jnp.float32)]
    out_specs = [pl.BlockSpec((tm, cpad), lambda i: (i, 0)),
                 pl.BlockSpec((1, 1, cpad), lambda i: (i, 0, 0)),
                 pl.BlockSpec((1, 1, cpad), lambda i: (i, 0, 0))]
    flops = 2 * r_rows * k_in * cpad * 9
    bytes_accessed = (2 * (r_rows + 2 * n_tiles * halo) * k_in
                      + 2 * 9 * k_in * cpad + 2 * r_rows * cpad
                      + 4 * r_rows + 8 * n_tiles * cpad)

    gsc_p = bsc_p = None
    if has_sc:
        _, xs_cpf, wsc, gsc, bsc = shortcut
        ks = xs_cpf.shape[1]
        wsc_p = jnp.zeros((ks, cpad), jnp.bfloat16).at[:wsc.shape[0], :cout].set(
            wsc.astype(jnp.bfloat16))
        gsc_p = jnp.pad(gsc.astype(jnp.float32), (0, cpad - cout))
        bsc_p = jnp.pad(bsc.astype(jnp.float32), (0, cpad - cout))
        in_specs += [pl.BlockSpec((tm, ks), lambda i: (i, 0)),
                     pl.BlockSpec((ks, cpad), lambda i: (0, 0))]
        inputs += [xs_cpf, wsc_p]
        out_shape += [jax.ShapeDtypeStruct((r_rows, cpad), jnp.bfloat16),
                      jax.ShapeDtypeStruct((n_tiles, 1, cpad), jnp.float32),
                      jax.ShapeDtypeStruct((n_tiles, 1, cpad), jnp.float32)]
        out_specs += [pl.BlockSpec((tm, cpad), lambda i: (i, 0)),
                      pl.BlockSpec((1, 1, cpad), lambda i: (i, 0, 0)),
                      pl.BlockSpec((1, 1, cpad), lambda i: (i, 0, 0))]
        flops += 2 * r_rows * ks * cpad
        bytes_accessed += 2 * r_rows * (ks + cpad) + 2 * ks * cpad

    outs = pl.pallas_call(
        functools.partial(_cpf_conv_stats_kernel, wp, has_sc),
        grid=(n_tiles,),
        in_specs=in_specs,
        out_specs=tuple(out_specs),
        out_shape=tuple(out_shape),
        compiler_params=pltpu.CompilerParams(
            dimension_semantics=("parallel",),
            vmem_limit_bytes=_vmem_limit_bytes()),
        cost_estimate=pl.CostEstimate(flops=int(flops), transcendentals=0,
                                      bytes_accessed=int(bytes_accessed)),
    )(*inputs)

    count = float(n * hv * wv)                     # TRUE element count per chan
    if has_sc:
        y, s1, s2, ysc, t1, t2 = outs
        scale_sc, shift_sc = _fold_bn(t1, t2, gsc_p, bsc_p, count, eps)
        residual = ("proj", ysc, scale_sc, shift_sc)
    else:
        y, s1, s2 = outs
        residual = ("add", shortcut[1]) if sc_mode == "add" else None
    scale, shift = _fold_bn(s1, s2, gamma_p, beta_p, count, eps)

    tm2 = _pick_tm2(r_rows, tm)                    # bigger tile for mem-bound pass
    out = _bn_affine(y, scale, shift, mask, residual, relu, tm2, jnp.bfloat16)
    return out, cpad


# --------------------------------------------------------------------------
# Stride-2 fallback: conv-as-matmul over an im2col matrix (+ BN, + relu).
# --------------------------------------------------------------------------
def im2col_3x3(x_nhwc, stride):
    n, h, w, c = x_nhwc.shape
    ho = (h + 2 - 3) // stride + 1
    wo = (w + 2 - 3) // stride + 1
    xp = jnp.pad(x_nhwc, ((0, 0), (1, 1), (1, 1), (0, 0)))
    cols = []
    for dy in range(3):
        for dx in range(3):
            cols.append(xp[:, dy:dy + stride * (ho - 1) + 1:stride,
                           dx:dx + stride * (wo - 1) + 1:stride, :])
    xcol = jnp.concatenate(cols, axis=-1)
    return xcol.reshape(n * ho * wo, 9 * c), (n, ho, wo)


def conv_bn_im2col(x_col, w_col, gamma, beta, *, relu, block_rows=512,
                   eps=_BN_EPS):
    m, k = x_col.shape
    cout = int(w_col.shape[1])
    cpad = _round_up(cout, _LANES)
    tm = min(_round_up(block_rows, 8), _round_up(m, 8))
    n_tiles = -(-m // tm)
    mp = n_tiles * tm

    x_p = jnp.pad(x_col.astype(jnp.bfloat16), ((0, mp - m), (0, 0)))
    w_p = jnp.pad(w_col.astype(jnp.bfloat16), ((0, 0), (0, cpad - cout)))
    gamma_p = jnp.pad(gamma.astype(jnp.float32), (0, cpad - cout))
    beta_p = jnp.pad(beta.astype(jnp.float32), (0, cpad - cout))
    mask = jnp.pad(jnp.ones((m, 1), jnp.float32), ((0, mp - m), (0, 0)))

    y, s1, s2 = pl.pallas_call(
        _matmul_stats_kernel,
        grid=(n_tiles,),
        in_specs=[pl.BlockSpec((tm, k), lambda i: (i, 0)),
                  pl.BlockSpec((k, cpad), lambda i: (0, 0)),
                  pl.BlockSpec((tm, 1), lambda i: (i, 0))],
        out_specs=(pl.BlockSpec((tm, cpad), lambda i: (i, 0)),
                   pl.BlockSpec((1, 1, cpad), lambda i: (i, 0, 0)),
                   pl.BlockSpec((1, 1, cpad), lambda i: (i, 0, 0))),
        out_shape=(jax.ShapeDtypeStruct((mp, cpad), jnp.bfloat16),
                   jax.ShapeDtypeStruct((n_tiles, 1, cpad), jnp.float32),
                   jax.ShapeDtypeStruct((n_tiles, 1, cpad), jnp.float32)),
        compiler_params=pltpu.CompilerParams(
            dimension_semantics=("parallel",),
            vmem_limit_bytes=_vmem_limit_bytes()),
        cost_estimate=pl.CostEstimate(
            flops=2 * mp * k * cpad, transcendentals=0,
            bytes_accessed=2 * (mp * k + k * cpad + mp * cpad)),
    )(x_p, w_p, mask)

    scale, shift = _fold_bn(s1, s2, gamma_p, beta_p, float(m), eps)
    out = _bn_affine(y, scale, shift, mask, None, relu, _pick_tm2(mp, tm),
                     jnp.bfloat16)
    return out[:m], cpad


# --------------------------------------------------------------------------
# Parameter init (He-style convs; BN gamma~1, beta~0). Conv weights HWIO.
# --------------------------------------------------------------------------
def init_basic_block(key, in_planes, planes, stride):
    ks = jax.random.split(key, 9)
    params = {
        "w1": jax.random.normal(ks[0], (3, 3, in_planes, planes), jnp.float32)
              * (2.0 / (9 * in_planes)) ** 0.5,
        "g1": 1.0 + 0.1 * jax.random.normal(ks[1], (planes,), jnp.float32),
        "b1": 0.1 * jax.random.normal(ks[2], (planes,), jnp.float32),
        "w2": jax.random.normal(ks[3], (3, 3, planes, planes), jnp.float32)
              * (2.0 / (9 * planes)) ** 0.5,
        "g2": 1.0 + 0.1 * jax.random.normal(ks[4], (planes,), jnp.float32),
        "b2": 0.1 * jax.random.normal(ks[5], (planes,), jnp.float32),
    }
    if stride != 1 or in_planes != planes:
        params["wsc"] = (jax.random.normal(ks[6], (1, 1, in_planes, planes),
                                           jnp.float32)
                         * (2.0 / in_planes) ** 0.5)
        params["gsc"] = 1.0 + 0.1 * jax.random.normal(ks[7], (planes,), jnp.float32)
        params["bsc"] = 0.1 * jax.random.normal(ks[8], (planes,), jnp.float32)
    return params


# --------------------------------------------------------------------------
# BasicBlock forward
# --------------------------------------------------------------------------
def basic_block_forward_nhwc(params, x_nhwc, stride=1, block_rows=512):
    x = x_nhwc.astype(jnp.bfloat16)
    n, h, w, cin = x.shape
    planes = int(params["w1"].shape[-1])
    ho = (h - 1) // stride + 1
    wo = (w - 1) // stride + 1
    has_proj = "wsc" in params

    tm = _pick_tm(n, ho, wo, block_rows)
    mask = _cpf_mask(n, ho, wo, tm)

    if stride == 1:
        x_cpf = _cpf_pack(x, tm)
        out1_cpf, _ = conv3x3_bn_cpf(
            x_cpf, mask, params["w1"], params["g1"], params["b1"],
            n, ho, wo, relu=True, shortcut=None, tm=tm)
        if has_proj:
            shortcut = ("proj", x_cpf, params["wsc"].reshape(cin, planes),
                        params["gsc"], params["bsc"])
        else:
            shortcut = ("add", x_cpf)               # identity residual
    else:
        # Downsampling block: strided conv1 via im2col fallback, then repack.
        x_col, _ = im2col_3x3(x, stride)
        out1_mat, cpad1 = conv_bn_im2col(
            x_col, params["w1"].reshape(9 * cin, planes),
            params["g1"], params["b1"], relu=True, block_rows=block_rows)
        out1_cpf = _cpf_pack(out1_mat.reshape(n, ho, wo, cpad1), tm)
        xs_cpf = _cpf_pack(x[:, ::stride, ::stride, :], tm)
        shortcut = ("proj", xs_cpf, params["wsc"].reshape(cin, planes),
                    params["gsc"], params["bsc"])

    # conv2 + bn2 + (fused shortcut) + relu, directly in CPF layout.
    out2_cpf, _ = conv3x3_bn_cpf(
        out1_cpf, mask, params["w2"], params["g2"], params["b2"],
        n, ho, wo, relu=True, shortcut=shortcut, tm=tm)
    return _cpf_unpack(out2_cpf, n, ho, wo, planes)


def basic_block_forward(params, x_nchw, stride=1, block_rows=512):
    # NCHW wrapper for PyTorch interface parity; in a full ResNet keep the CPF
    # NHWC activations end-to-end and chain basic_block_forward_nhwc directly.
    x = jnp.transpose(x_nchw, (0, 2, 3, 1))
    out = basic_block_forward_nhwc(params, x, stride=stride,
                                   block_rows=block_rows)
    return jnp.transpose(out, (0, 3, 1, 2)).astype(jnp.float32)


# --------------------------------------------------------------------------
# Pure-JAX f32 reference (same training-mode BN semantics)
# --------------------------------------------------------------------------
def _reference_forward(params, x_nchw, stride, eps=_BN_EPS):
    x = jnp.transpose(x_nchw, (0, 2, 3, 1)).astype(jnp.float32)

    def conv(inp, w, s, pad):
        return jax.lax.conv_general_dilated(
            inp, w, window_strides=(s, s), padding=pad,
            dimension_numbers=("NHWC", "HWIO", "NHWC"))

    def bn(y, g, b):
        mean = jnp.mean(y, axis=(0, 1, 2), keepdims=True)
        var = jnp.mean(jnp.square(y - mean), axis=(0, 1, 2), keepdims=True)
        return (y - mean) * jax.lax.rsqrt(var + eps) * g + b

    out = jnp.maximum(bn(conv(x, params["w1"], stride, ((1, 1), (1, 1))),
                         params["g1"], params["b1"]), 0.0)
    out = bn(conv(out, params["w2"], 1, ((1, 1), (1, 1))),
             params["g2"], params["b2"])
    if "wsc" in params:
        sc = bn(conv(x, params["wsc"], stride, ((0, 0), (0, 0))),
                params["gsc"], params["bsc"])
    else:
        sc = x
    out = jnp.maximum(out + sc, 0.0)
    return jnp.transpose(out, (0, 3, 1, 2))


if __name__ == "__main__":
    key = jax.random.PRNGKey(0)

    cases = [
        # (N, in_planes, planes, H, W, stride, block_rows)
        (2, 4, 8, 16, 16, 1, 256),    # projection shortcut, multi-tile CPF path
        (2, 4, 4, 16, 16, 1, 256),    # identity shortcut
        (2, 8, 16, 16, 16, 2, 128),   # stride-2: im2col fallback + fused proj
    ]
    for idx, (n, cin, planes, h, w, s, br) in enumerate(cases):
        kx, kp, key = jax.random.split(key, 3)
        x = jax.random.normal(kx, (n, cin, h, w), jnp.float32)     # NCHW
        params = init_basic_block(kp, cin, planes, s)

        fwd = jax.jit(functools.partial(basic_block_forward, stride=s,
                                        block_rows=br))
        out = jax.block_until_ready(fwd(params, x))

        ho = (h - 1) // s + 1
        assert out.shape == (n, planes, ho, ho), (idx, out.shape)
        assert bool(jnp.all(jnp.isfinite(out))), idx
        assert bool(jnp.all(out >= 0.0)), idx                      # final ReLU

        ref = _reference_forward(params, x, s)
        err = float(jnp.max(jnp.abs(out.astype(jnp.float32) - ref)))
        assert err < 0.2, (idx, err)   # bf16 MXU operands / bf16 intermediates

    print("KERNEL_OK")
</pallas_src>

<mosaic_0001>
module attributes {stable_mosaic.version = 11 : i64} {
  func.func @_bn_affine_kernel(%arg0: i32, %arg1: memref<768x128xbf16, #tpu.memory_space<vmem>>, %arg2: memref<1x128xf32, #tpu.memory_space<vmem>>, %arg3: memref<1x128xf32, #tpu.memory_space<vmem>>, %arg4: memref<768x1xf32, #tpu.memory_space<vmem>>, %arg5: memref<768x128xbf16, #tpu.memory_space<vmem>>) attributes {dimension_semantics = [#tpu.dimension_semantics<parallel>], iteration_bounds = array<i64: 1>, scalar_prefetch = 0 : i64, scratch_operands = 0 : i64, tpu.core_type = #tpu.core_type<tc>, window_params = [{transform_indices = @transform_0, window_bounds = array<i64: 768, 128>}, {pipeline_mode = #tpu.pipeline_mode<synchronous>, transform_indices = @transform_1, window_bounds = array<i64: 1, 128>}, {pipeline_mode = #tpu.pipeline_mode<synchronous>, transform_indices = @transform_2, window_bounds = array<i64: 1, 128>}, {transform_indices = @transform_3, window_bounds = array<i64: 768, 1>}, {transform_indices = @transform_4, window_bounds = array<i64: 768, 128>}]} {
    %c0 = arith.constant 0 : index
    %c0_0 = arith.constant 0 : index
    %0 = vector.load %arg1[%c0, %c0_0] : memref<768x128xbf16, #tpu.memory_space<vmem>>, vector<768x128xbf16>
    %1 = arith.extf %0 : vector<768x128xbf16> to vector<768x128xf32>
    %c0_1 = arith.constant 0 : index
    %c0_2 = arith.constant 0 : index
    %2 = vector.load %arg2[%c0_1, %c0_2] : memref<1x128xf32, #tpu.memory_space<vmem>>, vector<1x128xf32>
    %3 = vector.broadcast %2 : vector<1x128xf32> to vector<768x128xf32>
    %4 = arith.mulf %1, %3 : vector<768x128xf32>
    %c0_3 = arith.constant 0 : index
    %c0_4 = arith.constant 0 : index
    %5 = vector.load %arg3[%c0_3, %c0_4] : memref<1x128xf32, #tpu.memory_space<vmem>>, vector<1x128xf32>
    %6 = vector.broadcast %5 : vector<1x128xf32> to vector<768x128xf32>
    %7 = arith.addf %4, %6 : vector<768x128xf32>
    %cst = arith.constant 0.000000e+00 : f32
    %8 = vector.broadcast %cst : f32 to vector<768x128xf32>
    %9 = arith.maximumf %7, %8 : vector<768x128xf32>
    %c0_5 = arith.constant 0 : index
    %c0_6 = arith.constant 0 : index
    %10 = vector.load %arg4[%c0_5, %c0_6] : memref<768x1xf32, #tpu.memory_space<vmem>>, vector<768x1xf32>
    %cst_7 = arith.constant 0.000000e+00 : f32
    %11 = vector.broadcast %cst_7 : f32 to vector<768x1xf32>
    %12 = arith.cmpf ogt, %10, %11 : vector<768x1xf32>
    %cst_8 = arith.constant 0.000000e+00 : f32
    %13 = vector.shape_cast %12 : vector<768x1xi1> to vector<768x1xi1>
    %14 = vector.broadcast %13 : vector<768x1xi1> to vector<768x128xi1>
    %15 = vector.broadcast %cst_8 : f32 to vector<768x128xf32>
    %16 = arith.select %14, %9, %15 : vector<768x128xi1>, vector<768x128xf32>
    %17 = arith.truncf %16 : vector<768x128xf32> to vector<768x128xbf16>
    %c0_9 = arith.constant 0 : index
    %c0_10 = arith.constant 0 : index
    %18 = vector.load %arg5[%c0_9, %c0_10] : memref<768x128xbf16, #tpu.memory_space<vmem>>, vector<768x128xbf16>
    tpu.vector_store %arg5[%c0_9, %c0_10], %17 {strides = array<i32>} : memref<768x128xbf16, #tpu.memory_space<vmem>>, vector<768x128xbf16>,
    return
  }
  func.func @transform_0(%arg0: i32) -> (i32, i32) {
    %c0_i32 = arith.constant 0 : i32
    %c0_i32_0 = arith.constant 0 : i32
    return %arg0, %c0_i32 : i32, i32
  }
  func.func @transform_1(%arg0: i32) -> (i32, i32) {
    %c0_i32 = arith.constant 0 : i32
    %c0_i32_0 = arith.constant 0 : i32
    %c0_i32_1 = arith.constant 0 : i32
    return %c0_i32, %c0_i32_0 : i32, i32
  }
  func.func @transform_2(%arg0: i32) -> (i32, i32) {
    %c0_i32 = arith.constant 0 : i32
    %c0_i32_0 = arith.constant 0 : i32
    %c0_i32_1 = arith.constant 0 : i32
    return %c0_i32, %c0_i32_0 : i32, i32
  }
  func.func @transform_3(%arg0: i32) -> (i32, i32) {
    %c0_i32 = arith.constant 0 : i32
    %c0_i32_0 = arith.constant 0 : i32
    return %arg0, %c0_i32 : i32, i32
  }
  func.func @transform_4(%arg0: i32) -> (i32, i32) {
    %c0_i32 = arith.constant 0 : i32
    %c0_i32_0 = arith.constant 0 : i32
    return %arg0, %c0_i32 : i32, i32
  }
}

module attributes {stable_mosaic.version = 11 : i64} {
  func.func @_cpf_conv_stats_kernel(%arg0: i32, %arg1: memref<32x4xbf16, #tpu.memory_space<vmem>>, %arg2: memref<256x4xbf16, #tpu.memory_space<vmem>>, %arg3: memref<32x4xbf16, #tpu.memory_space<vmem>>, %arg4: memref<9x4x128xbf16, #tpu.memory_space<vmem>>, %arg5: memref<256x1xf32, #tpu.memory_space<vmem>>, %arg6: memref<256x128xbf16, #tpu.memory_space<vmem>>, %arg7: memref<1x1x128xf32, #tpu.memory_space<vmem>>, %arg8: memref<1x1x128xf32, #tpu.memory_space<vmem>>) attributes {dimension_semantics = [#tpu.dimension_semantics<parallel>], iteration_bounds = array<i64: 3>, scalar_prefetch = 0 : i64, scratch_operands = 0 : i64, tpu.core_type = #tpu.core_type<tc>, window_params = [{transform_indices = @transform_0, window_bounds = array<i64: 32, 4>}, {transform_indices = @transform_1, window_bounds = array<i64: 256, 4>}, {transform_indices = @transform_2, window_bounds = array<i64: 32, 4>}, {pipeline_mode = #tpu.pipeline_mode<synchronous>, transform_indices = @transform_3, window_bounds = array<i64: 9, 4, 128>}, {transform_indices = @transform_4, window_bounds = array<i64: 256, 1>}, {transform_indices = @transform_5, window_bounds = array<i64: 256, 128>}, {transform_indices = @transform_6, window_bounds = array<i64: 1, 1, 128>}, {transform_indices = @transform_7, window_bounds = array<i64: 1, 1, 128>}]} {
    %c0 = arith.constant 0 : index
    %c0_0 = arith.constant 0 : index
    %0 = vector.load %arg1[%c0, %c0_0] : memref<32x4xbf16, #tpu.memory_space<vmem>>, vector<32x4xbf16>
    %c0_1 = arith.constant 0 : index
    %c0_2 = arith.constant 0 : index
    %1 = vector.load %arg2[%c0_1, %c0_2] : memref<256x4xbf16, #tpu.memory_space<vmem>>, vector<256x4xbf16>
    %c0_3 = arith.constant 0 : index
    %c0_4 = arith.constant 0 : index
    %2 = vector.load %arg3[%c0_3, %c0_4] : memref<32x4xbf16, #tpu.memory_space<vmem>>, vector<32x4xbf16>
    %3 = tpu.concatenate %0, %1, %2 in 0 : vector<32x4xbf16>, vector<256x4xbf16>, vector<32x4xbf16> -> vector<320x4xbf16>
    %4 = arith.extf %3 : vector<320x4xbf16> to vector<320x4xf32>
    %cst = arith.constant 0.000000e+00 : f32
    %5 = vector.broadcast %cst : f32 to vector<256x128xf32>
    %6 = vector.extract_strided_slice %4 {offsets = [13, 0], sizes = [256, 4], strides = [1, 1]} : vector<320x4xf32> to vector<256x4xf32>
    %7 = arith.truncf %6 : vector<256x4xf32> to vector<256x4xbf16>
    %c0_5 = arith.constant 0 : index
    %c0_6 = arith.constant 0 : index
    %c0_7 = arith.constant 0 : index
    %8 = vector.load %arg4[%c0_5, %c0_6, %c0_7] : memref<9x4x128xbf16, #tpu.memory_space<vmem>>, vector<1x4x128xbf16>
    %9 = vector.shape_cast %8 : vector<1x4x128xbf16> to vector<4x128xbf16>
    %cst_8 = arith.constant dense<0.000000e+00> : vector<256x128xf32>
    %10 = tpu.matmul %7, %9, %cst_8 {dimension_numbers = #tpu.dot_dimension_numbers<[1], [0], [0], [1], [0, 0, 1, 1], [], []>} : vector<256x4xbf16>, vector<4x128xbf16>, vector<256x128xf32> -> vector<256x128xf32>
    %11 = arith.addf %5, %10 : vector<256x128xf32>
    %12 = vector.extract_strided_slice %4 {offsets = [14, 0], sizes = [256, 4], strides = [1, 1]} : vector<320x4xf32> to vector<256x4xf32>
    %13 = arith.truncf %12 : vector<256x4xf32> to vector<256x4xbf16>
    %c1 = arith.constant 1 : index
    %c0_9 = arith.constant 0 : index
    %c0_10 = arith.constant 0 : index
    %14 = vector.load %arg4[%c1, %c0_9, %c0_10] : memref<9x4x128xbf16, #tpu.memory_space<vmem>>, vector<1x4x128xbf16>
    %15 = vector.shape_cast %14 : vector<1x4x128xbf16> to vector<4x128xbf16>
    %cst_11 = arith.constant dense<0.000000e+00> : vector<256x128xf32>
    %16 = tpu.matmul %13, %15, %cst_11 {dimension_numbers = #tpu.dot_dimension_numbers<[1], [0], [0], [1], [0, 0, 1, 1], [], []>} : vector<256x4xbf16>, vector<4x128xbf16>, vector<256x128xf32> -> vector<256x128xf32>
    %17 = arith.addf %11, %16 : vector<256x128xf32>
    %18 = vector.extract_strided_slice %4 {offsets = [15, 0], sizes = [256, 4], strides = [1, 1]} : vector<320x4xf32> to vector<256x4xf32>
    %19 = arith.truncf %18 : vector<256x4xf32> to vector<256x4xbf16>
    %c2 = arith.constant 2 : index
    %c0_12 = arith.constant 0 : index
    %c0_13 = arith.constant 0 : index
    %20 = vector.load %arg4[%c2, %c0_12, %c0_13] : memref<9x4x128xbf16, #tpu.memory_space<vmem>>, vector<1x4x128xbf16>
    %21 = vector.shape_cast %20 : vector<1x4x128xbf16> to vector<4x128xbf16>
    %cst_14 = arith.constant dense<0.000000e+00> : vector<256x128xf32>
    %22 = tpu.matmul %19, %21, %cst_14 {dimension_numbers = #tpu.dot_dimension_numbers<[1], [0], [0], [1], [0, 0, 1, 1], [], []>} : vector<256x4xbf16>, vector<4x128xbf16>, vector<256x128xf32> -> vector<256x128xf32>
    %23 = arith.addf %17, %22 : vector<256x128xf32>
    %24 = vector.extract_strided_slice %4 {offsets = [31, 0], sizes = [256, 4], strides = [1, 1]} : vector<320x4xf32> to vector<256x4xf32>
    %25 = arith.truncf %24 : vector<256x4xf32> to vector<256x4xbf16>
    %c3 = arith.constant 3 : index
    %c0_15 = arith.constant 0 : index
    %c0_16 = arith.constant 0 : index
    %26 = vector.load %arg4[%c3, %c0_15, %c0_16] : memref<9x4x128xbf16, #tpu.memory_space<vmem>>, vector<1x4x128xbf16>
    %27 = vector.shape_cast %26 : vector<1x4x128xbf16> to vector<4x128xbf16>
    %cst_17 = arith.constant dense<0.000000e+00> : vector<256x128xf32>
    %28 = tpu.matmul %25, %27, %cst_17 {dimension_numbers = #tpu.dot_dimension_numbers<[1], [0], [0], [1], [0, 0, 1, 1], [], []>} : vector<256x4xbf16>, vector<4x128xbf16>, vector<256x128xf32> -> vector<256x128xf32>
    %29 = arith.addf %23, %28 : vector<256x128xf32>
    %30 = vector.extract_strided_slice %4 {offsets = [32, 0], sizes = [256, 4], strides = [1, 1]} : vector<320x4xf32> to vector<256x4xf32>
    %31 = arith.truncf %30 : vector<256x4xf32> to vector<256x4xbf16>
    %c4 = arith.constant 4 : index
    %c0_18 = arith.constant 0 : index
    %c0_19 = arith.constant 0 : index
    %32 = vector.load %arg4[%c4, %c0_18, %c0_19] : memref<9x4x128xbf16, #tpu.memory_space<vmem>>, vector<1x4x128xbf16>
    %33 = vector.shape_cast %32 : vector<1x4x128xbf16> to vector<4x128xbf16>
    %cst_20 = arith.constant dense<0.000000e+00> : vector<256x128xf32>
    %34 = tpu.matmul %31, %33, %cst_20 {dimension_numbers = #tpu.dot_dimension_numbers<[1], [0], [0], [1], [0, 0, 1, 1], [], []>} : vector<256x4xbf16>, vector<4x128xbf16>, vector<256x128xf32> -> vector<256x128xf32>
    %35 = arith.addf %29, %34 : vector<256x128xf32>
    %36 = vector.extract_strided_slice %4 {offsets = [33, 0], sizes = [256, 4], strides = [1, 1]} : vector<320x4xf32> to vector<256x4xf32>
    %37 = arith.truncf %36 : vector<256x4xf32> to vector<256x4xbf16>
    %c5 = arith.constant 5 : index
    %c0_21 = arith.constant 0 : index
    %c0_22 = arith.constant 0 : index
    %38 = vector.load %arg4[%c5, %c0_21, %c0_22] : memref<9x4x128xbf16, #tpu.memory_space<vmem>>, vector<1x4x128xbf16>
    %39 = vector.shape_cast %38 : vector<1x4x128xbf16> to vector<4x128xbf16>
    %cst_23 = arith.constant dense<0.000000e+00> : vector<256x128xf32>
    %40 = tpu.matmul %37, %39, %cst_23 {dimension_numbers = #tpu.dot_dimension_numbers<[1], [0], [0], [1], [0, 0, 1, 1], [], []>} : vector<256x4xbf16>, vector<4x128xbf16>, vector<256x128xf32> -> vector<256x128xf32>
    %41 = arith.addf %35, %40 : vector<256x128xf32>
    %42 = vector.extract_strided_slice %4 {offsets = [49, 0], sizes = [256, 4], strides = [1, 1]} : vector<320x4xf32> to vector<256x4xf32>
    %43 = arith.truncf %42 : vector<256x4xf32> to vector<256x4xbf16>
    %c6 = arith.constant 6 : index
    %c0_24 = arith.constant 0 : index
    %c0_25 = arith.constant 0 : index
    %44 = vector.load %arg4[%c6, %c0_24, %c0_25] : memref<9x4x128xbf16, #tpu.memory_space<vmem>>, vector<1x4x128xbf16>
    %45 = vector.shape_cast %44 : vector<1x4x128xbf16> to vector<4x128xbf16>
    %cst_26 = arith.constant dense<0.000000e+00> : vector<256x128xf32>
    %46 = tpu.matmul %43, %45, %cst_26 {dimension_numbers = #tpu.dot_dimension_numbers<[1], [0], [0], [1], [0, 0, 1, 1], [], []>} : vector<256x4xbf16>, vector<4x128xbf16>, vector<256x128xf32> -> vector<256x128xf32>
    %47 = arith.addf %41, %46 : vector<256x128xf32>
    %48 = vector.extract_strided_slice %4 {offsets = [50, 0], sizes = [256, 4], strides = [1, 1]} : vector<320x4xf32> to vector<256x4xf32>
    %49 = arith.truncf %48 : vector<256x4xf32> to vector<256x4xbf16>
    %c7 = arith.constant 7 : index
    %c0_27 = arith.constant 0 : index
    %c0_28 = arith.constant 0 : index
    %50 = vector.load %arg4[%c7, %c0_27, %c0_28] : memref<9x4x128xbf16, #tpu.memory_space<vmem>>, vector<1x4x128xbf16>
    %51 = vector.shape_cast %50 : vector<1x4x128xbf16> to vector<4x128xbf16>
    %cst_29 = arith.constant dense<0.000000e+00> : vector<256x128xf32>
    %52 = tpu.matmul %49, %51, %cst_29 {dimension_numbers = #tpu.dot_dimension_numbers<[1], [0], [0], [1], [0, 0, 1, 1], [], []>} : vector<256x4xbf16>, vector<4x128xbf16>, vector<256x128xf32> -> vector<256x128xf32>
    %53 = arith.addf %47, %52 : vector<256x128xf32>
    %54 = vector.extract_strided_slice %4 {offsets = [51, 0], sizes = [256, 4], strides = [1, 1]} : vector<320x4xf32> to vector<256x4xf32>
    %55 = arith.truncf %54 : vector<256x4xf32> to vector<256x4xbf16>
    %c8 = arith.constant 8 : index
    %c0_30 = arith.constant 0 : index
    %c0_31 = arith.constant 0 : index
    %56 = vector.load %arg4[%c8, %c0_30, %c0_31] : memref<9x4x128xbf16, #tpu.memory_space<vmem>>, vector<1x4x128xbf16>
    %57 = vector.shape_cast %56 : vector<1x4x128xbf16> to vector<4x128xbf16>
    %cst_32 = arith.constant dense<0.000000e+00> : vector<256x128xf32>
    %58 = tpu.matmul %55, %57, %cst_32 {dimension_numbers = #tpu.dot_dimension_numbers<[1], [0], [0], [1], [0, 0, 1, 1], [], []>} : vector<256x4xbf16>, vector<4x128xbf16>, vector<256x128xf32> -> vector<256x128xf32>
    %59 = arith.addf %53, %58 : vector<256x128xf32>
    %c0_33 = arith.constant 0 : index
    %c0_34 = arith.constant 0 : index
    %60 = vector.load %arg5[%c0_33, %c0_34] : memref<256x1xf32, #tpu.memory_space<vmem>>, vector<256x1xf32>
    %cst_35 = arith.constant 0.000000e+00 : f32
    %61 = vector.broadcast %cst_35 : f32 to vector<256x1xf32>
    %62 = arith.cmpf ogt, %60, %61 : vector<256x1xf32>
    %cst_36 = arith.constant 0.000000e+00 : f32
    %63 = vector.shape_cast %62 : vector<256x1xi1> to vector<256x1xi1>
    %64 = vector.broadcast %63 : vector<256x1xi1> to vector<256x128xi1>
    %65 = vector.broadcast %cst_36 : f32 to vector<256x128xf32>
    %66 = arith.select %64, %59, %65 : vector<256x128xi1>, vector<256x128xf32>
    %67 = arith.truncf %59 : vector<256x128xf32> to vector<256x128xbf16>
    %c0_37 = arith.constant 0 : index
    %c0_38 = arith.constant 0 : index
    %68 = vector.load %arg6[%c0_37, %c0_38] : memref<256x128xbf16, #tpu.memory_space<vmem>>, vector<256x128xbf16>
    tpu.vector_store %arg6[%c0_37, %c0_38], %67 {strides = array<i32>} : memref<256x128xbf16, #tpu.memory_space<vmem>>, vector<256x128xbf16>,
    %cst_39 = arith.constant dense<0.000000e+00> : vector<128xf32>
    %69 = vector.multi_reduction <add>, %66, %cst_39 [0] : vector<256x128xf32> to vector<128xf32>
    %70 = vector.shape_cast %69 : vector<128xf32> to vector<1x128xf32>
    %71 = vector.shape_cast %70 : vector<1x128xf32> to vector<1x1x128xf32>
    %c0_40 = arith.constant 0 : index
    %c0_41 = arith.constant 0 : index
    %c0_42 = arith.constant 0 : index
    %72 = vector.load %arg7[%c0_40, %c0_41, %c0_42] : memref<1x1x128xf32, #tpu.memory_space<vmem>>, vector<1x1x128xf32>
    tpu.vector_store %arg7[%c0_40, %c0_41, %c0_42], %71 {strides = array<i32>} : memref<1x1x128xf32, #tpu.memory_space<vmem>>, vector<1x1x128xf32>,
    %73 = arith.mulf %66, %66 : vector<256x128xf32>
    %cst_43 = arith.constant dense<0.000000e+00> : vector<128xf32>
    %74 = vector.multi_reduction <add>, %73, %cst_43 [0] : vector<256x128xf32> to vector<128xf32>
    %75 = vector.shape_cast %74 : vector<128xf32> to vector<1x128xf32>
    %76 = vector.shape_cast %75 : vector<1x128xf32> to vector<1x1x128xf32>
    %c0_44 = arith.constant 0 : index
    %c0_45 = arith.constant 0 : index
    %c0_46 = arith.constant 0 : index
    %77 = vector.load %arg8[%c0_44, %c0_45, %c0_46] : memref<1x1x128xf32, #tpu.memory_space<vmem>>, vector<1x1x128xf32>
    tpu.vector_store %arg8[%c0_44, %c0_45, %c0_46], %76 {strides = array<i32>} : memref<1x1x128xf32, #tpu.memory_space<vmem>>, vector<1x1x128xf32>,
    return
  }
  func.func @transform_0(%arg0: i32) -> (i32, i32) {
    %c8_i32 = arith.constant 8 : i32
    %0 = arith.muli %arg0, %c8_i32 : i32
    %c1_i32 = arith.constant 1 : i32
    %1 = arith.subi %0, %c1_i32 : i32
    %c0_i32 = arith.constant 0 : i32
    %2 = arith.maxsi %1, %c0_i32 : i32
    %c0_i32_0 = arith.constant 0 : i32
    %c0_i32_1 = arith.constant 0 : i32
    return %2, %c0_i32_0 : i32, i32
  }
  func.func @transform_1(%arg0: i32) -> (i32, i32) {
    %c0_i32 = arith.constant 0 : i32
    %c0_i32_0 = arith.constant 0 : i32
    return %arg0, %c0_i32 : i32, i32
  }
  func.func @transform_2(%arg0: i32) -> (i32, i32) {
    %c1_i32 = arith.constant 1 : i32
    %0 = arith.addi %arg0, %c1_i32 : i32
    %c8_i32 = arith.constant 8 : i32
    %1 = arith.muli %0, %c8_i32 : i32
    %c23_i32 = arith.constant 23 : i32
    %2 = arith.minsi %1, %c23_i32 : i32
    %c0_i32 = arith.constant 0 : i32
    %c0_i32_0 = arith.constant 0 : i32
    return %2, %c0_i32 : i32, i32
  }
  func.func @transform_3(%arg0: i32) -> (i32, i32, i32) {
    %c0_i32 = arith.constant 0 : i32
    %c0_i32_0 = arith.constant 0 : i32
    %c0_i32_1 = arith.constant 0 : i32
    %c0_i32_2 = arith.constant 0 : i32
    return %c0_i32, %c0_i32_0, %c0_i32_1 : i32, i32, i32
  }
  func.func @transform_4(%arg0: i32) -> (i32, i32) {
    %c0_i32 = arith.constant 0 : i32
    %c0_i32_0 = arith.constant 0 : i32
    return %arg0, %c0_i32 : i32, i32
  }
  func.func @transform_5(%arg0: i32) -> (i32, i32) {
    %c0_i32 = arith.constant 0 : i32
    %c0_i32_0 = arith.constant 0 : i32
    return %arg0, %c0_i32 : i32, i32
  }
  func.func @transform_6(%arg0: i32) -> (i32, i32, i32) {
    %c0_i32 = arith.constant 0 : i32
    %c0_i32_0 = arith.constant 0 : i32
    %c0_i32_1 = arith.constant 0 : i32
    return %arg0, %c0_i32, %c0_i32_0 : i32, i32, i32
  }
  func.func @transform_7(%arg0: i32) -> (i32, i32, i32) {
    %c0_i32 = arith.constant 0 : i32
    %c0_i32_0 = arith.constant 0 : i32
    %c0_i32_1 = arith.constant 0 : i32
    return %arg0, %c0_i32, %c0_i32_0 : i32, i32, i32
  }
}

module attributes {stable_mosaic.version = 11 : i64} {
  func.func @_cpf_conv_stats_kernel(%arg0: i32, %arg1: memref<32x128xbf16, #tpu.memory_space<vmem>>, %arg2: memref<256x128xbf16, #tpu.memory_space<vmem>>, %arg3: memref<32x128xbf16, #tpu.memory_space<vmem>>, %arg4: memref<9x128x128xbf16, #tpu.memory_space<vmem>>, %arg5: memref<256x1xf32, #tpu.memory_space<vmem>>, %arg6: memref<256x4xbf16, #tpu.memory_space<vmem>>, %arg7: memref<4x128xbf16, #tpu.memory_space<vmem>>, %arg8: memref<256x128xbf16, #tpu.memory_space<vmem>>, %arg9: memref<1x1x128xf32, #tpu.memory_space<vmem>>, %arg10: memref<1x1x128xf32, #tpu.memory_space<vmem>>, %arg11: memref<256x128xbf16, #tpu.memory_space<vmem>>, %arg12: memref<1x1x128xf32, #tpu.memory_space<vmem>>, %arg13: memref<1x1x128xf32, #tpu.memory_space<vmem>>) attributes {dimension_semantics = [#tpu.dimension_semantics<parallel>], iteration_bounds = array<i64: 3>, scalar_prefetch = 0 : i64, scratch_operands = 0 : i64, tpu.core_type = #tpu.core_type<tc>, window_params = [{transform_indices = @transform_0, window_bounds = array<i64: 32, 128>}, {transform_indices = @transform_1, window_bounds = array<i64: 256, 128>}, {transform_indices = @transform_2, window_bounds = array<i64: 32, 128>}, {pipeline_mode = #tpu.pipeline_mode<synchronous>, transform_indices = @transform_3, window_bounds = array<i64: 9, 128, 128>}, {transform_indices = @transform_4, window_bounds = array<i64: 256, 1>}, {transform_indices = @transform_5, window_bounds = array<i64: 256, 4>}, {pipeline_mode = #tpu.pipeline_mode<synchronous>, transform_indices = @transform_6, window_bounds = array<i64: 4, 128>}, {transform_indices = @transform_7, window_bounds = array<i64: 256, 128>}, {transform_indices = @transform_8, window_bounds = array<i64: 1, 1, 128>}, {transform_indices = @transform_9, window_bounds = array<i64: 1, 1, 128>}, {transform_indices = @transform_10, window_bounds = array<i64: 256, 128>}, {transform_indices = @transform_11, window_bounds = array<i64: 1, 1, 128>}, {transform_indices = @transform_12, window_bounds = array<i64: 1, 1, 128>}]} {
    %c0 = arith.constant 0 : index
    %c0_0 = arith.constant 0 : index
    %0 = vector.load %arg1[%c0, %c0_0] : memref<32x128xbf16, #tpu.memory_space<vmem>>, vector<32x128xbf16>
    %c0_1 = arith.constant 0 : index
    %c0_2 = arith.constant 0 : index
    %1 = vector.load %arg2[%c0_1, %c0_2] : memref<256x128xbf16, #tpu.memory_space<vmem>>, vector<256x128xbf16>
    %c0_3 = arith.constant 0 : index
    %c0_4 = arith.constant 0 : index
    %2 = vector.load %arg3[%c0_3, %c0_4] : memref<32x128xbf16, #tpu.memory_space<vmem>>, vector<32x128xbf16>
    %3 = tpu.concatenate %0, %1, %2 in 0 : vector<32x128xbf16>, vector<256x128xbf16>, vector<32x128xbf16> -> vector<320x128xbf16>
    %4 = arith.extf %3 : vector<320x128xbf16> to vector<320x128xf32>
    %cst = arith.constant 0.000000e+00 : f32
    %5 = vector.broadcast %cst : f32 to vector<256x128xf32>
    %6 = vector.extract_strided_slice %4 {offsets = [13, 0], sizes = [256, 128], strides = [1, 1]} : vector<320x128xf32> to vector<256x128xf32>
    %7 = arith.truncf %6 : vector<256x128xf32> to vector<256x128xbf16>
    %c0_5 = arith.constant 0 : index
    %c0_6 = arith.constant 0 : index
    %c0_7 = arith.constant 0 : index
    %8 = vector.load %arg4[%c0_5, %c0_6, %c0_7] : memref<9x128x128xbf16, #tpu.memory_space<vmem>>, vector<1x128x128xbf16>
    %9 = vector.shape_cast %8 : vector<1x128x128xbf16> to vector<128x128xbf16>
    %cst_8 = arith.constant dense<0.000000e+00> : vector<256x128xf32>
    %10 = tpu.matmul %7, %9, %cst_8 {dimension_numbers = #tpu.dot_dimension_numbers<[1], [0], [0], [1], [0, 0, 1, 1], [], []>} : vector<256x128xbf16>, vector<128x128xbf16>, vector<256x128xf32> -> vector<256x128xf32>
    %11 = arith.addf %5, %10 : vector<256x128xf32>
    %12 = vector.extract_strided_slice %4 {offsets = [14, 0], sizes = [256, 128], strides = [1, 1]} : vector<320x128xf32> to vector<256x128xf32>
    %13 = arith.truncf %12 : vector<256x128xf32> to vector<256x128xbf16>
    %c1 = arith.constant 1 : index
    %c0_9 = arith.constant 0 : index
    %c0_10 = arith.constant 0 : index
    %14 = vector.load %arg4[%c1, %c0_9, %c0_10] : memref<9x128x128xbf16, #tpu.memory_space<vmem>>, vector<1x128x128xbf16>
    %15 = vector.shape_cast %14 : vector<1x128x128xbf16> to vector<128x128xbf16>
    %cst_11 = arith.constant dense<0.000000e+00> : vector<256x128xf32>
    %16 = tpu.matmul %13, %15, %cst_11 {dimension_numbers = #tpu.dot_dimension_numbers<[1], [0], [0], [1], [0, 0, 1, 1], [], []>} : vector<256x128xbf16>, vector<128x128xbf16>, vector<256x128xf32> -> vector<256x128xf32>
    %17 = arith.addf %11, %16 : vector<256x128xf32>
    %18 = vector.extract_strided_slice %4 {offsets = [15, 0], sizes = [256, 128], strides = [1, 1]} : vector<320x128xf32> to vector<256x128xf32>
    %19 = arith.truncf %18 : vector<256x128xf32> to vector<256x128xbf16>
    %c2 = arith.constant 2 : index
    %c0_12 = arith.constant 0 : index
    %c0_13 = arith.constant 0 : index
    %20 = vector.load %arg4[%c2, %c0_12, %c0_13] : memref<9x128x128xbf16, #tpu.memory_space<vmem>>, vector<1x128x128xbf16>
    %21 = vector.shape_cast %20 : vector<1x128x128xbf16> to vector<128x128xbf16>
    %cst_14 = arith.constant dense<0.000000e+00> : vector<256x128xf32>
    %22 = tpu.matmul %19, %21, %cst_14 {dimension_numbers = #tpu.dot_dimension_numbers<[1], [0], [0], [1], [0, 0, 1, 1], [], []>} : vector<256x128xbf16>, vector<128x128xbf16>, vector<256x128xf32> -> vector<256x128xf32>
    %23 = arith.addf %17, %22 : vector<256x128xf32>
    %24 = vector.extract_strided_slice %4 {offsets = [31, 0], sizes = [256, 128], strides = [1, 1]} : vector<320x128xf32> to vector<256x128xf32>
    %25 = arith.truncf %24 : vector<256x128xf32> to vector<256x128xbf16>
    %c3 = arith.constant 3 : index
    %c0_15 = arith.constant 0 : index
    %c0_16 = arith.constant 0 : index
    %26 = vector.load %arg4[%c3, %c0_15, %c0_16] : memref<9x128x128xbf16, #tpu.memory_space<vmem>>, vector<1x128x128xbf16>
    %27 = vector.shape_cast %26 : vector<1x128x128xbf16> to vector<128x128xbf16>
    %cst_17 = arith.constant dense<0.000000e+00> : vector<256x128xf32>
    %28 = tpu.matmul %25, %27, %cst_17 {dimension_numbers = #tpu.dot_dimension_numbers<[1], [0], [0], [1], [0, 0, 1, 1], [], []>} : vector<256x128xbf16>, vector<128x128xbf16>, vector<256x128xf32> -> vector<256x128xf32>
    %29 = arith.addf %23, %28 : vector<256x128xf32>
    %30 = vector.extract_strided_slice %4 {offsets = [32, 0], sizes = [256, 128], strides = [1, 1]} : vector<320x128xf32> to vector<256x128xf32>
    %31 = arith.truncf %30 : vector<256x128xf32> to vector<256x128xbf16>
    %c4 = arith.constant 4 : index
    %c0_18 = arith.constant 0 : index
    %c0_19 = arith.constant 0 : index
    %32 = vector.load %arg4[%c4, %c0_18, %c0_19] : memref<9x128x128xbf16, #tpu.memory_space<vmem>>, vector<1x128x128xbf16>
    %33 = vector.shape_cast %32 : vector<1x128x128xbf16> to vector<128x128xbf16>
    %cst_20 = arith.constant dense<0.000000e+00> : vector<256x128xf32>
    %34 = tpu.matmul %31, %33, %cst_20 {dimension_numbers = #tpu.dot_dimension_numbers<[1], [0], [0], [1], [0, 0, 1, 1], [], []>} : vector<256x128xbf16>, vector<128x128xbf16>, vector<256x128xf32> -> vector<256x128xf32>
    %35 = arith.addf %29, %34 : vector<256x128xf32>
    %36 = vector.extract_strided_slice %4 {offsets = [33, 0], sizes = [256, 128], strides = [1, 1]} : vector<320x128xf32> to vector<256x128xf32>
    %37 = arith.truncf %36 : vector<256x128xf32> to vector<256x128xbf16>
    %c5 = arith.constant 5 : index
    %c0_21 = arith.constant 0 : index
    %c0_22 = arith.constant 0 : index
    %38 = vector.load %arg4[%c5, %c0_21, %c0_22] : memref<9x128x128xbf16, #tpu.memory_space<vmem>>, vector<1x128x128xbf16>
    %39 = vector.shape_cast %38 : vector<1x128x128xbf16> to vector<128x128xbf16>
    %cst_23 = arith.constant dense<0.000000e+00> : vector<256x128xf32>
    %40 = tpu.matmul %37, %39, %cst_23 {dimension_numbers = #tpu.dot_dimension_numbers<[1], [0], [0], [1], [0, 0, 1, 1], [], []>} : vector<256x128xbf16>, vector<128x128xbf16>, vector<256x128xf32> -> vector<256x128xf32>
    %41 = arith.addf %35, %40 : vector<256x128xf32>
    %42 = vector.extract_strided_slice %4 {offsets = [49, 0], sizes = [256, 128], strides = [1, 1]} : vector<320x128xf32> to vector<256x128xf32>
    %43 = arith.truncf %42 : vector<256x128xf32> to vector<256x128xbf16>
    %c6 = arith.constant 6 : index
    %c0_24 = arith.constant 0 : index
    %c0_25 = arith.constant 0 : index
    %44 = vector.load %arg4[%c6, %c0_24, %c0_25] : memref<9x128x128xbf16, #tpu.memory_space<vmem>>, vector<1x128x128xbf16>
    %45 = vector.shape_cast %44 : vector<1x128x128xbf16> to vector<128x128xbf16>
    %cst_26 = arith.constant dense<0.000000e+00> : vector<256x128xf32>
    %46 = tpu.matmul %43, %45, %cst_26 {dimension_numbers = #tpu.dot_dimension_numbers<[1], [0], [0], [1], [0, 0, 1, 1], [], []>} : vector<256x128xbf16>, vector<128x128xbf16>, vector<256x128xf32> -> vector<256x128xf32>
    %47 = arith.addf %41, %46 : vector<256x128xf32>
    %48 = vector.extract_strided_slice %4 {offsets = [50, 0], sizes = [256, 128], strides = [1, 1]} : vector<320x128xf32> to vector<256x128xf32>
    %49 = arith.truncf %48 : vector<256x128xf32> to vector<256x128xbf16>
    %c7 = arith.constant 7 : index
    %c0_27 = arith.constant 0 : index
    %c0_28 = arith.constant 0 : index
    %50 = vector.load %arg4[%c7, %c0_27, %c0_28] : memref<9x128x128xbf16, #tpu.memory_space<vmem>>, vector<1x128x128xbf16>
    %51 = vector.shape_cast %50 : vector<1x128x128xbf16> to vector<128x128xbf16>
    %cst_29 = arith.constant dense<0.000000e+00> : vector<256x128xf32>
    %52 = tpu.matmul %49, %51, %cst_29 {dimension_numbers = #tpu.dot_dimension_numbers<[1], [0], [0], [1], [0, 0, 1, 1], [], []>} : vector<256x128xbf16>, vector<128x128xbf16>, vector<256x128xf32> -> vector<256x128xf32>
    %53 = arith.addf %47, %52 : vector<256x128xf32>
    %54 = vector.extract_strided_slice %4 {offsets = [51, 0], sizes = [256, 128], strides = [1, 1]} : vector<320x128xf32> to vector<256x128xf32>
    %55 = arith.truncf %54 : vector<256x128xf32> to vector<256x128xbf16>
    %c8 = arith.constant 8 : index
    %c0_30 = arith.constant 0 : index
    %c0_31 = arith.constant 0 : index
    %56 = vector.load %arg4[%c8, %c0_30, %c0_31] : memref<9x128x128xbf16, #tpu.memory_space<vmem>>, vector<1x128x128xbf16>
    %57 = vector.shape_cast %56 : vector<1x128x128xbf16> to vector<128x128xbf16>
    %cst_32 = arith.constant dense<0.000000e+00> : vector<256x128xf32>
    %58 = tpu.matmul %55, %57, %cst_32 {dimension_numbers = #tpu.dot_dimension_numbers<[1], [0], [0], [1], [0, 0, 1, 1], [], []>} : vector<256x128xbf16>, vector<128x128xbf16>, vector<256x128xf32> -> vector<256x128xf32>
    %59 = arith.addf %53, %58 : vector<256x128xf32>
    %c0_33 = arith.constant 0 : index
    %c0_34 = arith.constant 0 : index
    %60 = vector.load %arg5[%c0_33, %c0_34] : memref<256x1xf32, #tpu.memory_space<vmem>>, vector<256x1xf32>
    %cst_35 = arith.constant 0.000000e+00 : f32
    %61 = vector.broadcast %cst_35 : f32 to vector<256x1xf32>
    %62 = arith.cmpf ogt, %60, %61 : vector<256x1xf32>
    %cst_36 = arith.constant 0.000000e+00 : f32
    %63 = vector.shape_cast %62 : vector<256x1xi1> to vector<256x1xi1>
    %64 = vector.broadcast %63 : vector<256x1xi1> to vector<256x128xi1>
    %65 = vector.broadcast %cst_36 : f32 to vector<256x128xf32>
    %66 = arith.select %64, %59, %65 : vector<256x128xi1>, vector<256x128xf32>
    %67 = arith.truncf %59 : vector<256x128xf32> to vector<256x128xbf16>
    %c0_37 = arith.constant 0 : index
    %c0_38 = arith.constant 0 : index
    %68 = vector.load %arg8[%c0_37, %c0_38] : memref<256x128xbf16, #tpu.memory_space<vmem>>, vector<256x128xbf16>
    tpu.vector_store %arg8[%c0_37, %c0_38], %67 {strides = array<i32>} : memref<256x128xbf16, #tpu.memory_space<vmem>>, vector<256x128xbf16>,
    %cst_39 = arith.constant dense<0.000000e+00> : vector<128xf32>
    %69 = vector.multi_reduction <add>, %66, %cst_39 [0] : vector<256x128xf32> to vector<128xf32>
    %70 = vector.shape_cast %69 : vector<128xf32> to vector<1x128xf32>
    %71 = vector.shape_cast %70 : vector<1x128xf32> to vector<1x1x128xf32>
    %c0_40 = arith.constant 0 : index
    %c0_41 = arith.constant 0 : index
    %c0_42 = arith.constant 0 : index
    %72 = vector.load %arg9[%c0_40, %c0_41, %c0_42] : memref<1x1x128xf32, #tpu.memory_space<vmem>>, vector<1x1x128xf32>
    tpu.vector_store %arg9[%c0_40, %c0_41, %c0_42], %71 {strides = array<i32>} : memref<1x1x128xf32, #tpu.memory_space<vmem>>, vector<1x1x128xf32>,
    %73 = arith.mulf %66, %66 : vector<256x128xf32>
    %cst_43 = arith.constant dense<0.000000e+00> : vector<128xf32>
    %74 = vector.multi_reduction <add>, %73, %cst_43 [0] : vector<256x128xf32> to vector<128xf32>
    %75 = vector.shape_cast %74 : vector<128xf32> to vector<1x128xf32>
    %76 = vector.shape_cast %75 : vector<1x128xf32> to vector<1x1x128xf32>
    %c0_44 = arith.constant 0 : index
    %c0_45 = arith.constant 0 : index
    %c0_46 = arith.constant 0 : index
    %77 = vector.load %arg10[%c0_44, %c0_45, %c0_46] : memref<1x1x128xf32, #tpu.memory_space<vmem>>, vector<1x1x128xf32>
    tpu.vector_store %arg10[%c0_44, %c0_45, %c0_46], %76 {strides = array<i32>} : memref<1x1x128xf32, #tpu.memory_space<vmem>>, vector<1x1x128xf32>,
    %c0_47 = arith.constant 0 : index
    %c0_48 = arith.constant 0 : index
    %78 = vector.load %arg6[%c0_47, %c0_48] : memref<256x4xbf16, #tpu.memory_space<vmem>>, vector<256x4xbf16>
    %c0_49 = arith.constant 0 : index
    %c0_50 = arith.constant 0 : index
    %79 = vector.load %arg7[%c0_49, %c0_50] : memref<4x128xbf16, #tpu.memory_space<vmem>>, vector<4x128xbf16>
    %cst_51 = arith.constant dense<0.000000e+00> : vector<256x128xf32>
    %80 = tpu.matmul %78, %79, %cst_51 {dimension_numbers = #tpu.dot_dimension_numbers<[1], [0], [0], [1], [0, 0, 1, 1], [], []>} : vector<256x4xbf16>, vector<4x128xbf16>, vector<256x128xf32> -> vector<256x128xf32>
    %cst_52 = arith.constant 0.000000e+00 : f32
    %81 = vector.shape_cast %62 : vector<256x1xi1> to vector<256x1xi1>
    %82 = vector.broadcast %81 : vector<256x1xi1> to vector<256x128xi1>
    %83 = vector.broadcast %cst_52 : f32 to vector<256x128xf32>
    %84 = arith.select %82, %80, %83 : vector<256x128xi1>, vector<256x128xf32>
    %85 = arith.truncf %80 : vector<256x128xf32> to vector<256x128xbf16>
    %c0_53 = arith.constant 0 : index
    %c0_54 = arith.constant 0 : index
    %86 = vector.load %arg11[%c0_53, %c0_54] : memref<256x128xbf16, #tpu.memory_space<vmem>>, vector<256x128xbf16>
    tpu.vector_store %arg11[%c0_53, %c0_54], %85 {strides = array<i32>} : memref<256x128xbf16, #tpu.memory_space<vmem>>, vector<256x128xbf16>,
    %cst_55 = arith.constant dense<0.000000e+00> : vector<128xf32>
    %87 = vector.multi_reduction <add>, %84, %cst_55 [0] : vector<256x128xf32> to vector<128xf32>
    %88 = vector.shape_cast %87 : vector<128xf32> to vector<1x128xf32>
    %89 = vector.shape_cast %88 : vector<1x128xf32> to vector<1x1x128xf32>
    %c0_56 = arith.constant 0 : index
    %c0_57 = arith.constant 0 : index
    %c0_58 = arith.constant 0 : index
    %90 = vector.load %arg12[%c0_56, %c0_57, %c0_58] : memref<1x1x128xf32, #tpu.memory_space<vmem>>, vector<1x1x128xf32>
    tpu.vector_store %arg12[%c0_56, %c0_57, %c0_58], %89 {strides = array<i32>} : memref<1x1x128xf32, #tpu.memory_space<vmem>>, vector<1x1x128xf32>,
    %91 = arith.mulf %84, %84 : vector<256x128xf32>
    %cst_59 = arith.constant dense<0.000000e+00> : vector<128xf32>
    %92 = vector.multi_reduction <add>, %91, %cst_59 [0] : vector<256x128xf32> to vector<128xf32>
    %93 = vector.shape_cast %92 : vector<128xf32> to vector<1x128xf32>
    %94 = vector.shape_cast %93 : vector<1x128xf32> to vector<1x1x128xf32>
    %c0_60 = arith.constant 0 : index
    %c0_61 = arith.constant 0 : index
    %c0_62 = arith.constant 0 : index
    %95 = vector.load %arg13[%c0_60, %c0_61, %c0_62] : memref<1x1x128xf32, #tpu.memory_space<vmem>>, vector<1x1x128xf32>
    tpu.vector_store %arg13[%c0_60, %c0_61, %c0_62], %94 {strides = array<i32>} : memref<1x1x128xf32, #tpu.memory_space<vmem>>, vector<1x1x128xf32>,
    return
  }
  func.func @transform_0(%arg0: i32) -> (i32, i32) {
    %c8_i32 = arith.constant 8 : i32
    %0 = arith.muli %arg0, %c8_i32 : i32
    %c1_i32 = arith.constant 1 : i32
    %1 = arith.subi %0, %c1_i32 : i32
    %c0_i32 = arith.constant 0 : i32
    %2 = arith.maxsi %1, %c0_i32 : i32
    %c0_i32_0 = arith.constant 0 : i32
    %c0_i32_1 = arith.constant 0 : i32
    return %2, %c0_i32_0 : i32, i32
  }
  func.func @transform_1(%arg0: i32) -> (i32, i32) {
    %c0_i32 = arith.constant 0 : i32
    %c0_i32_0 = arith.constant 0 : i32
    return %arg0, %c0_i32 : i32, i32
  }
  func.func @transform_2(%arg0: i32) -> (i32, i32) {
    %c1_i32 = arith.constant 1 : i32
    %0 = arith.addi %arg0, %c1_i32 : i32
    %c8_i32 = arith.constant 8 : i32
    %1 = arith.muli %0, %c8_i32 : i32
    %c23_i32 = arith.constant 23 : i32
    %2 = arith.minsi %1, %c23_i32 : i32
    %c0_i32 = arith.constant 0 : i32
    %c0_i32_0 = arith.constant 0 : i32
    return %2, %c0_i32 : i32, i32
  }
  func.func @transform_3(%arg0: i32) -> (i32, i32, i32) {
    %c0_i32 = arith.constant 0 : i32
    %c0_i32_0 = arith.constant 0 : i32
    %c0_i32_1 = arith.constant 0 : i32
    %c0_i32_2 = arith.constant 0 : i32
    return %c0_i32, %c0_i32_0, %c0_i32_1 : i32, i32, i32
  }
  func.func @transform_4(%arg0: i32) -> (i32, i32) {
    %c0_i32 = arith.constant 0 : i32
    %c0_i32_0 = arith.constant 0 : i32
    return %arg0, %c0_i32 : i32, i32
  }
  func.func @transform_5(%arg0: i32) -> (i32, i32) {
    %c0_i32 = arith.constant 0 : i32
    %c0_i32_0 = arith.constant 0 : i32
    return %arg0, %c0_i32 : i32, i32
  }
  func.func @transform_6(%arg0: i32) -> (i32, i32) {
    %c0_i32 = arith.constant 0 : i32
    %c0_i32_0 = arith.constant 0 : i32
    %c0_i32_1 = arith.constant 0 : i32
    return %c0_i32, %c0_i32_0 : i32, i32
  }
  func.func @transform_7(%arg0: i32) -> (i32, i32) {
    %c0_i32 = arith.constant 0 : i32
    %c0_i32_0 = arith.constant 0 : i32
    return %arg0, %c0_i32 : i32, i32
  }
  func.func @transform_8(%arg0: i32) -> (i32, i32, i32) {
    %c0_i32 = arith.constant 0 : i32
    %c0_i32_0 = arith.constant 0 : i32
    %c0_i32_1 = arith.constant 0 : i32
    return %arg0, %c0_i32, %c0_i32_0 : i32, i32, i32
  }
  func.func @transform_9(%arg0: i32) -> (i32, i32, i32) {
    %c0_i32 = arith.constant 0 : i32
    %c0_i32_0 = arith.constant 0 : i32
    %c0_i32_1 = arith.constant 0 : i32
    return %arg0, %c0_i32, %c0_i32_0 : i32, i32, i32
  }
  func.func @transform_10(%arg0: i32) -> (i32, i32) {
    %c0_i32 = arith.constant 0 : i32
    %c0_i32_0 = arith.constant 0 : i32
    return %arg0, %c0_i32 : i32, i32
  }
  func.func @transform_11(%arg0: i32) -> (i32, i32, i32) {
    %c0_i32 = arith.constant 0 : i32
    %c0_i32_0 = arith.constant 0 : i32
    %c0_i32_1 = arith.constant 0 : i32
    return %arg0, %c0_i32, %c0_i32_0 : i32, i32, i32
  }
  func.func @transform_12(%arg0: i32) -> (i32, i32, i32) {
    %c0_i32 = arith.constant 0 : i32
    %c0_i32_0 = arith.constant 0 : i32
    %c0_i32_1 = arith.constant 0 : i32
    return %arg0, %c0_i32, %c0_i32_0 : i32, i32, i32
  }
}

module attributes {stable_mosaic.version = 11 : i64} {
  func.func @_bn_affine_kernel(%arg0: i32, %arg1: memref<768x128xbf16, #tpu.memory_space<vmem>>, %arg2: memref<1x128xf32, #tpu.memory_space<vmem>>, %arg3: memref<1x128xf32, #tpu.memory_space<vmem>>, %arg4: memref<768x1xf32, #tpu.memory_space<vmem>>, %arg5: memref<768x128xbf16, #tpu.memory_space<vmem>>, %arg6: memref<1x128xf32, #tpu.memory_space<vmem>>, %arg7: memref<1x128xf32, #tpu.memory_space<vmem>>, %arg8: memref<768x128xbf16, #tpu.memory_space<vmem>>) attributes {dimension_semantics = [#tpu.dimension_semantics<parallel>], iteration_bounds = array<i64: 1>, scalar_prefetch = 0 : i64, scratch_operands = 0 : i64, tpu.core_type = #tpu.core_type<tc>, window_params = [{transform_indices = @transform_0, window_bounds = array<i64: 768, 128>}, {pipeline_mode = #tpu.pipeline_mode<synchronous>, transform_indices = @transform_1, window_bounds = array<i64: 1, 128>}, {pipeline_mode = #tpu.pipeline_mode<synchronous>, transform_indices = @transform_2, window_bounds = array<i64: 1, 128>}, {transform_indices = @transform_3, window_bounds = array<i64: 768, 1>}, {transform_indices = @transform_4, window_bounds = array<i64: 768, 128>}, {pipeline_mode = #tpu.pipeline_mode<synchronous>, transform_indices = @transform_5, window_bounds = array<i64: 1, 128>}, {pipeline_mode = #tpu.pipeline_mode<synchronous>, transform_indices = @transform_6, window_bounds = array<i64: 1, 128>}, {transform_indices = @transform_7, window_bounds = array<i64: 768, 128>}]} {
    %c0 = arith.constant 0 : index
    %c0_0 = arith.constant 0 : index
    %0 = vector.load %arg1[%c0, %c0_0] : memref<768x128xbf16, #tpu.memory_space<vmem>>, vector<768x128xbf16>
    %1 = arith.extf %0 : vector<768x128xbf16> to vector<768x128xf32>
    %c0_1 = arith.constant 0 : index
    %c0_2 = arith.constant 0 : index
    %2 = vector.load %arg2[%c0_1, %c0_2] : memref<1x128xf32, #tpu.memory_space<vmem>>, vector<1x128xf32>
    %3 = vector.broadcast %2 : vector<1x128xf32> to vector<768x128xf32>
    %4 = arith.mulf %1, %3 : vector<768x128xf32>
    %c0_3 = arith.constant 0 : index
    %c0_4 = arith.constant 0 : index
    %5 = vector.load %arg3[%c0_3, %c0_4] : memref<1x128xf32, #tpu.memory_space<vmem>>, vector<1x128xf32>
    %6 = vector.broadcast %5 : vector<1x128xf32> to vector<768x128xf32>
    %7 = arith.addf %4, %6 : vector<768x128xf32>
    %c0_5 = arith.constant 0 : index
    %c0_6 = arith.constant 0 : index
    %8 = vector.load %arg5[%c0_5, %c0_6] : memref<768x128xbf16, #tpu.memory_space<vmem>>, vector<768x128xbf16>
    %9 = arith.extf %8 : vector<768x128xbf16> to vector<768x128xf32>
    %c0_7 = arith.constant 0 : index
    %c0_8 = arith.constant 0 : index
    %10 = vector.load %arg6[%c0_7, %c0_8] : memref<1x128xf32, #tpu.memory_space<vmem>>, vector<1x128xf32>
    %11 = vector.broadcast %10 : vector<1x128xf32> to vector<768x128xf32>
    %12 = arith.mulf %9, %11 : vector<768x128xf32>
    %c0_9 = arith.constant 0 : index
    %c0_10 = arith.constant 0 : index
    %13 = vector.load %arg7[%c0_9, %c0_10] : memref<1x128xf32, #tpu.memory_space<vmem>>, vector<1x128xf32>
    %14 = vector.broadcast %13 : vector<1x128xf32> to vector<768x128xf32>
    %15 = arith.addf %12, %14 : vector<768x128xf32>
    %16 = arith.addf %7, %15 : vector<768x128xf32>
    %cst = arith.constant 0.000000e+00 : f32
    %17 = vector.broadcast %cst : f32 to vector<768x128xf32>
    %18 = arith.maximumf %16, %17 : vector<768x128xf32>
    %c0_11 = arith.constant 0 : index
    %c0_12 = arith.constant 0 : index
    %19 = vector.load %arg4[%c0_11, %c0_12] : memref<768x1xf32, #tpu.memory_space<vmem>>, vector<768x1xf32>
    %cst_13 = arith.constant 0.000000e+00 : f32
    %20 = vector.broadcast %cst_13 : f32 to vector<768x1xf32>
    %21 = arith.cmpf ogt, %19, %20 : vector<768x1xf32>
    %cst_14 = arith.constant 0.000000e+00 : f32
    %22 = vector.shape_cast %21 : vector<768x1xi1> to vector<768x1xi1>
    %23 = vector.broadcast %22 : vector<768x1xi1> to vector<768x128xi1>
    %24 = vector.broadcast %cst_14 : f32 to vector<768x128xf32>
    %25 = arith.select %23, %18, %24 : vector<768x128xi1>, vector<768x128xf32>
    %26 = arith.truncf %25 : vector<768x128xf32> to vector<768x128xbf16>
    %c0_15 = arith.constant 0 : index
    %c0_16 = arith.constant 0 : index
    %27 = vector.load %arg8[%c0_15, %c0_16] : memref<768x128xbf16, #tpu.memory_space<vmem>>, vector<768x128xbf16>
    tpu.vector_store %arg8[%c0_15, %c0_16], %26 {strides = array<i32>} : memref<768x128xbf16, #tpu.memory_space<vmem>>, vector<768x128xbf16>,
    return
  }
  func.func @transform_0(%arg0: i32) -> (i32, i32) {
    %c0_i32 = arith.constant 0 : i32
    %c0_i32_0 = arith.constant 0 : i32
    return %arg0, %c0_i32 : i32, i32
  }
  func.func @transform_1(%arg0: i32) -> (i32, i32) {
    %c0_i32 = arith.constant 0 : i32
    %c0_i32_0 = arith.constant 0 : i32
    %c0_i32_1 = arith.constant 0 : i32
    return %c0_i32, %c0_i32_0 : i32, i32
  }
  func.func @transform_2(%arg0: i32) -> (i32, i32) {
    %c0_i32 = arith.constant 0 : i32
    %c0_i32_0 = arith.constant 0 : i32
    %c0_i32_1 = arith.constant 0 : i32
    return %c0_i32, %c0_i32_0 : i32, i32
  }
  func.func @transform_3(%arg0: i32) -> (i32, i32) {
    %c0_i32 = arith.constant 0 : i32
    %c0_i32_0 = arith.constant 0 : i32
    return %arg0, %c0_i32 : i32, i32
  }
  func.func @transform_4(%arg0: i32) -> (i32, i32) {
    %c0_i32 = arith.constant 0 : i32
    %c0_i32_0 = arith.constant 0 : i32
    return %arg0, %c0_i32 : i32, i32
  }
  func.func @transform_5(%arg0: i32) -> (i32, i32) {
    %c0_i32 = arith.constant 0 : i32
    %c0_i32_0 = arith.constant 0 : i32
    %c0_i32_1 = arith.constant 0 : i32
    return %c0_i32, %c0_i32_0 : i32, i32
  }
  func.func @transform_6(%arg0: i32) -> (i32, i32) {
    %c0_i32 = arith.constant 0 : i32
    %c0_i32_0 = arith.constant 0 : i32
    %c0_i32_1 = arith.constant 0 : i32
    return %c0_i32, %c0_i32_0 : i32, i32
  }
  func.func @transform_7(%arg0: i32) -> (i32, i32) {
    %c0_i32 = arith.constant 0 : i32
    %c0_i32_0 = arith.constant 0 : i32
    return %arg0, %c0_i32 : i32, i32
  }
}

</mosaic_0001>

<llo_original>
// kernel: basic_block_forward.7
$region0: #{basic_block_forward.7}
  #allocation0 [shape = 'u32[]', space=smem, size = 0x4, offset = 0x4, fixed_abs, tag = 'smem constant byte address 0x4 - core index']
  #allocation1 [shape = 'u32[72,128]{1,0:T(1,128)}', space=vmem, size = 0x9000, scoped, tag = 'internal scratch']
  %s0 = inlined_call_operand.vmem [shape: bf16[768,128], index: 0, kind: input, shape index: {}]
  %s1 = inlined_call_operand.vmem [shape: f32[1,128], index: 1, kind: input, shape index: {}]
  %s2 = inlined_call_operand.vmem [shape: f32[1,128], index: 2, kind: input, shape index: {}]
  %s3 = inlined_call_operand.vmem [shape: f32[768,1], index: 3, kind: input, shape index: {}]
  %s4 = inlined_call_operand.vmem [shape: bf16[768,128], index: 4, kind: input, shape index: {}]
  %s5 = inlined_call_operand.vmem [shape: f32[1,128], index: 5, kind: input, shape index: {}]
  %s6 = inlined_call_operand.vmem [shape: f32[1,128], index: 6, kind: input, shape index: {}]
  %s7 = inlined_call_operand.vmem [shape: bf16[768,128], index: 7, kind: output, shape index: {}]
  %s8 = sld [smem:[#allocation0]]
  $region38: #{basic_block_forward.7} parent=0
    _
  %s10 = ssub.s32 1, %s8
  %s11 = scalar_select 0, %s10, %s8
  // Predicated region
  $region2: #{basic_block_forward.7} parent=0 // pred_check
    _
  $region3: #{basic_block_forward.7} parent=0 // pred_check_branch
    %13 = sbr.rel (0) target = $region5
  $region4: #{basic_block_forward.7} parent=0 // pred_region
    _
  $region5: #{basic_block_forward.7} parent=0 // pred_fallthru
    _
  // Predicated region
  $region6: #{basic_block_forward.7} parent=0 // pred_check
    _
  $region7: #{basic_block_forward.7} parent=0 // pred_check_branch
    %15 = sbr.rel (0) target = $region9
  $region8: #{basic_block_forward.7} parent=0 // pred_region
    _
  $region9: #{basic_block_forward.7} parent=0 // pred_fallthru
    _
  // Predicated region
  $region10: #{basic_block_forward.7} parent=0 // pred_check
    _
  $region11: #{basic_block_forward.7} parent=0 // pred_check_branch
    %17 = sbr.rel (0) target = $region13
  $region12: #{basic_block_forward.7} parent=0 // pred_region
    _
  $region13: #{basic_block_forward.7} parent=0 // pred_fallthru
    _
  // Predicated region
  $region14: #{basic_block_forward.7} parent=0 // pred_check
    _
  $region15: #{basic_block_forward.7} parent=0 // pred_check_branch
    %19 = sbr.rel (0) target = $region17
  $region16: #{basic_block_forward.7} parent=0 // pred_region
    _
  $region17: #{basic_block_forward.7} parent=0 // pred_fallthru
    _
  // Predicated region
  $region18: #{basic_block_forward.7} parent=0 // pred_check
    _
  $region19: #{basic_block_forward.7} parent=0 // pred_check_branch
    %21 = sbr.rel (0) target = $region21
  $region20: #{basic_block_forward.7} parent=0 // pred_region
    _
  $region21: #{basic_block_forward.7} parent=0 // pred_fallthru
    _
  // Predicated region
  $region22: #{basic_block_forward.7} parent=0 // pred_check
    _
  $region23: #{basic_block_forward.7} parent=0 // pred_check_branch
    %23 = sbr.rel (0) target = $region25
  $region24: #{basic_block_forward.7} parent=0 // pred_region
    _
  $region25: #{basic_block_forward.7} parent=0 // pred_fallthru
    _
  // Predicated region
  $region26: #{basic_block_forward.7} parent=0 // pred_check
    _
  $region27: #{basic_block_forward.7} parent=0 // pred_check_branch
    %25 = sbr.rel (0) target = $region29
  $region28: #{basic_block_forward.7} parent=0 // pred_region
    _
  $region29: #{basic_block_forward.7} parent=0 // pred_fallthru
    _
  %v26 = vld [vmem:[%s0] sm:$0xf]
  %v27 = vld [vmem:[%s0 + $0x4] sm:$0xf]
  %v28 = vld [vmem:[%s0 + $0x8] sm:$0xf]
  %v29 = vld [vmem:[%s0 + $0xc] sm:$0xf]
  %v30 = vld [vmem:[%s0 + $0x10] sm:$0xf]
  %v31 = vld [vmem:[%s0 + $0x14] sm:$0xf]
  %v32 = vld [vmem:[%s0 + $0x18] sm:$0xf]
  %v33 = vld [vmem:[%s0 + $0x1c] sm:$0xf]
  %v34 = vld [vmem:[%s0 + $0x20] sm:$0xf]
  %v35 = vld [vmem:[%s0 + $0x24] sm:$0xf]
  %v36 = vld [vmem:[%s0 + $0x28] sm:$0xf]
  %v37 = vld [vmem:[%s0 + $0x2c] sm:$0xf]
  %v38 = vld [vmem:[%s0 + $0x30] sm:$0xf]
  %v39 = vld [vmem:[%s0 + $0x34] sm:$0xf]
  %v40 = vld [vmem:[%s0 + $0x38] sm:$0xf]
  %v41 = vld [vmem:[%s0 + $0x3c] sm:$0xf]
  %v42 = vld [vmem:[%s0 + $0x40] sm:$0xf]
  %v43 = vld [vmem:[%s0 + $0x44] sm:$0xf]
  %v44 = vld [vmem:[%s0 + $0x48] sm:$0xf]
  %v45 = vld [vmem:[%s0 + $0x4c] sm:$0xf]
  %v46 = vld [vmem:[%s0 + $0x50] sm:$0xf]
  %v47 = vld [vmem:[%s0 + $0x54] sm:$0xf]
  %v48 = vld [vmem:[%s0 + $0x58] sm:$0xf]
  %v49 = vld [vmem:[%s0 + $0x5c] sm:$0xf]
  %v50 = vld [vmem:[%s0 + $0x60] sm:$0xf]
  %v51 = vld [vmem:[%s0 + $0x64] sm:$0xf]
  %v52 = vld [vmem:[%s0 + $0x68] sm:$0xf]
  %v53 = vld [vmem:[%s0 + $0x6c] sm:$0xf]
  %v54 = vld [vmem:[%s0 + $0x70] sm:$0xf]
  %v55 = vld [vmem:[%s0 + $0x74] sm:$0xf]
  %v56 = vld [vmem:[%s0 + $0x78] sm:$0xf]
  %v57 = vld [vmem:[%s0 + $0x7c] sm:$0xf]
  %v58 = vld [vmem:[%s0 + $0x80] sm:$0xf]
  %v59 = vld [vmem:[%s0 + $0x84] sm:$0xf]
  %v60 = vld [vmem:[%s0 + $0x88] sm:$0xf]
  %v61 = vld [vmem:[%s0 + $0x8c] sm:$0xf]
  %v62 = vld [vmem:[%s0 + $0x90] sm:$0xf]
  %v63 = vld [vmem:[%s0 + $0x94] sm:$0xf]
  %v64 = vld [vmem:[%s0 + $0x98] sm:$0xf]
  %v65 = vld [vmem:[%s0 + $0x9c] sm:$0xf]
  %v66 = vld [vmem:[%s0 + $0xa0] sm:$0xf]
  %v67 = vld [vmem:[%s0 + $0xa4] sm:$0xf]
  %v68 = vld [vmem:[%s0 + $0xa8] sm:$0xf]
  %v69 = vld [vmem:[%s0 + $0xac] sm:$0xf]
  %v70 = vld [vmem:[%s0 + $0xb0] sm:$0xf]
  %v71 = vld [vmem:[%s0 + $0xb4] sm:$0xf]
  %v72 = vld [vmem:[%s0 + $0xb8] sm:$0xf]
  %v73 = vld [vmem:[%s0 + $0xbc] sm:$0xf]
  %v74 = vld [vmem:[%s0 + $0xc0] sm:$0xf]
  %v75 = vld [vmem:[%s0 + $0xc4] sm:$0xf]
  %v76 = vld [vmem:[%s0 + $0xc8] sm:$0xf]
  %v77 = vld [vmem:[%s0 + $0xcc] sm:$0xf]
  %v78 = vld [vmem:[%s0 + $0xd0] sm:$0xf]
  %v79 = vld [vmem:[%s0 + $0xd4] sm:$0xf]
  %v80 = vld [vmem:[%s0 + $0xd8] sm:$0xf]
  %v81 = vld [vmem:[%s0 + $0xdc] sm:$0xf]
  %v82 = vld [vmem:[%s0 + $0xe0] sm:$0xf]
  %v83 = vld [vmem:[%s0 + $0xe4] sm:$0xf]
  %v84 = vld [vmem:[%s0 + $0xe8] sm:$0xf]
  %v85 = vld [vmem:[%s0 + $0xec] sm:$0xf]
  %v86 = vld [vmem:[%s0 + $0xf0] sm:$0xf]
  %v87 = vld [vmem:[%s0 + $0xf4] sm:$0xf]
  %v88 = vld [vmem:[%s0 + $0xf8] sm:$0xf]
  %v89 = vld [vmem:[%s0 + $0xfc] sm:$0xf]
  %v90 = vld [vmem:[%s0 + $0x100] sm:$0xf]
  %v91 = vld [vmem:[%s0 + $0x104] sm:$0xf]
  %v92 = vld [vmem:[%s0 + $0x108] sm:$0xf]
  %v93 = vld [vmem:[%s0 + $0x10c] sm:$0xf]
  %v94 = vld [vmem:[%s0 + $0x110] sm:$0xf]
  %v95 = vld [vmem:[%s0 + $0x114] sm:$0xf]
  %v96 = vld [vmem:[%s0 + $0x118] sm:$0xf]
  %v97 = vld [vmem:[%s0 + $0x11c] sm:$0xf]
  %v98 = vld [vmem:[%s0 + $0x120] sm:$0xf]
  %v99 = vld [vmem:[%s0 + $0x124] sm:$0xf]
  %v100 = vld [vmem:[%s0 + $0x128] sm:$0xf]
  %v101 = vld [vmem:[%s0 + $0x12c] sm:$0xf]
  %v102 = vld [vmem:[%s0 + $0x130] sm:$0xf]
  %v103 = vld [vmem:[%s0 + $0x134] sm:$0xf]
  %v104 = vld [vmem:[%s0 + $0x138] sm:$0xf]
  %v105 = vld [vmem:[%s0 + $0x13c] sm:$0xf]
  %v106 = vld [vmem:[%s0 + $0x140] sm:$0xf]
  %v107 = vld [vmem:[%s0 + $0x144] sm:$0xf]
  %v108 = vld [vmem:[%s0 + $0x148] sm:$0xf]
  %v109 = vld [vmem:[%s0 + $0x14c] sm:$0xf]
  %v110 = vld [vmem:[%s0 + $0x150] sm:$0xf]
  %v111 = vld [vmem:[%s0 + $0x154] sm:$0xf]
  %v112 = vld [vmem:[%s0 + $0x158] sm:$0xf]
  %v113 = vld [vmem:[%s0 + $0x15c] sm:$0xf]
  %v114 = vld [vmem:[%s0 + $0x160] sm:$0xf]
  %v115 = vld [vmem:[%s0 + $0x164] sm:$0xf]
  %v116 = vld [vmem:[%s0 + $0x168] sm:$0xf]
  %v117 = vld [vmem:[%s0 + $0x16c] sm:$0xf]
  %v118 = vld [vmem:[%s0 + $0x170] sm:$0xf]
  %v119 = vld [vmem:[%s0 + $0x174] sm:$0xf]
  %v120 = vld [vmem:[%s0 + $0x178] sm:$0xf]
  %v121 = vld [vmem:[%s0 + $0x17c] sm:$0xf]
  %v122 = vunpack.c.l.bf16 %v26
  %v123 = vunpack.c.l.bf16 %v27
  %v124 = vunpack.c.l.bf16 %v28
  %v125 = vunpack.c.l.bf16 %v29
  %v126 = vunpack.c.l.bf16 %v30
  %v127 = vunpack.c.l.bf16 %v31
  %v128 = vunpack.c.l.bf16 %v32
  %v129 = vunpack.c.l.bf16 %v33
  %v130 = vunpack.c.l.bf16 %v34
  %v131 = vunpack.c.l.bf16 %v35
  %v132 = vunpack.c.l.bf16 %v36
  %v133 = vunpack.c.l.bf16 %v37
  %v134 = vunpack.c.l.bf16 %v38
  %v135 = vunpack.c.l.bf16 %v39
  %v136 = vunpack.c.l.bf16 %v40
  %v137 = vunpack.c.l.bf16 %v41
  %v138 = vunpack.c.l.bf16 %v42
  %v139 = vunpack.c.l.bf16 %v43
  %v140 = vunpack.c.l.bf16 %v44
  %v141 = vunpack.c.l.bf16 %v45
  %v142 = vunpack.c.l.bf16 %v46
  %v143 = vunpack.c.l.bf16 %v47
  %v144 = vunpack.c.l.bf16 %v48
  %v145 = vunpack.c.l.bf16 %v49
  %v146 = vunpack.c.l.bf16 %v50
  %v147 = vunpack.c.l.bf16 %v51
  %v148 = vunpack.c.l.bf16 %v52
  %v149 = vunpack.c.l.bf16 %v53
  %v150 = vunpack.c.l.bf16 %v54
  %v151 = vunpack.c.l.bf16 %v55
  %v152 = vunpack.c.l.bf16 %v56
  %v153 = vunpack.c.l.bf16 %v57
  %v154 = vunpack.c.l.bf16 %v58
  %v155 = vunpack.c.l.bf16 %v59
  %v156 = vunpack.c.l.bf16 %v60
  %v157 = vunpack.c.l.bf16 %v61
  %v158 = vunpack.c.l.bf16 %v62
  %v159 = vunpack.c.l.bf16 %v63
  %v160 = vunpack.c.l.bf16 %v64
  %v161 = vunpack.c.l.bf16 %v65
  %v162 = vunpack.c.l.bf16 %v66
  %v163 = vunpack.c.l.bf16 %v67
  %v164 = vunpack.c.l.bf16 %v68
  %v165 = vunpack.c.l.bf16 %v69
  %v166 = vunpack.c.l.bf16 %v70
  %v167 = vunpack.c.l.bf16 %v71
  %v168 = vunpack.c.l.bf16 %v72
  %v169 = vunpack.c.l.bf16 %v73
  %v170 = vunpack.c.l.bf16 %v74
  %v171 = vunpack.c.l.bf16 %v75
  %v172 = vunpack.c.l.bf16 %v76
  %v173 = vunpack.c.l.bf16 %v77
  %v174 = vunpack.c.l.bf16 %v78
  %v175 = vunpack.c.l.bf16 %v79
  %v176 = vunpack.c.l.bf16 %v80
  %v177 = vunpack.c.l.bf16 %v81
  %v178 = vunpack.c.l.bf16 %v82
  %v179 = vunpack.c.l.bf16 %v83
  %v180 = vunpack.c.l.bf16 %v84
  %v181 = vunpack.c.l.bf16 %v85
  %v182 = vunpack.c.l.bf16 %v86
  %v183 = vunpack.c.l.bf16 %v87
  %v184 = vunpack.c.l.bf16 %v88
  %v185 = vunpack.c.l.bf16 %v89
  %v186 = vunpack.c.l.bf16 %v90
  %v187 = vunpack.c.l.bf16 %v91
  %v188 = vunpack.c.l.bf16 %v92
  %v189 = vunpack.c.l.bf16 %v93
  %v190 = vunpack.c.l.bf16 %v94
  %v191 = vunpack.c.l.bf16 %v95
  %v192 = vunpack.c.l.bf16 %v96
  %v193 = vunpack.c.l.bf16 %v97
  %v194 = vunpack.c.l.bf16 %v98
  %v195 = vunpack.c.l.bf16 %v99
  %v196 = vunpack.c.l.bf16 %v100
  %v197 = vunpack.c.l.bf16 %v101
  %v198 = vunpack.c.l.bf16 %v102
  %v199 = vunpack.c.l.bf16 %v103
  %v200 = vunpack.c.l.bf16 %v104
  %v201 = vunpack.c.l.bf16 %v105
  %v202 = vunpack.c.l.bf16 %v106
  %v203 = vunpack.c.l.bf16 %v107
  %v204 = vunpack.c.l.bf16 %v108
  %v205 = vunpack.c.l.bf16 %v109
  %v206 = vunpack.c.l.bf16 %v110
  %v207 = vunpack.c.l.bf16 %v111
  %v208 = vunpack.c.l.bf16 %v112
  %v209 = vunpack.c.l.bf16 %v113
  %v210 = vunpack.c.l.bf16 %v114
  %v211 = vunpack.c.l.bf16 %v115
  %v212 = vunpack.c.l.bf16 %v116
  %v213 = vunpack.c.l.bf16 %v117
  %v214 = vunpack.c.l.bf16 %v118
  %v215 = vunpack.c.l.bf16 %v119
  %v216 = vunpack.c.l.bf16 %v120
  %v217 = vunpack.c.l.bf16 %v121
  %v218 = vld [vmem:[%s1] sm:$0x1]
  %v220 = vperm.slane %v218, 0
  %v222 = vmul.f32 %v122, %v220
  %v223 = vmul.f32 %v123, %v220
  %v224 = vmul.f32 %v124, %v220
  %v225 = vmul.f32 %v125, %v220
  %v226 = vmul.f32 %v126, %v220
  %v227 = vmul.f32 %v127, %v220
  %v228 = vmul.f32 %v128, %v220
  %v229 = vmul.f32 %v129, %v220
  %v230 = vmul.f32 %v130, %v220
  %v231 = vmul.f32 %v131, %v220
  %v232 = vmul.f32 %v132, %v220
  %v233 = vmul.f32 %v133, %v220
  %v234 = vmul.f32 %v134, %v220
  %v235 = vmul.f32 %v135, %v220
  %v236 = vmul.f32 %v136, %v220
  %v237 = vmul.f32 %v137, %v220
  %v238 = vmul.f32 %v138, %v220
  %v239 = vmul.f32 %v139, %v220
  %v240 = vmul.f32 %v140, %v220
  %v241 = vmul.f32 %v141, %v220
  %v242 = vmul.f32 %v142, %v220
  %v243 = vmul.f32 %v143, %v220
  %v244 = vmul.f32 %v144, %v220
  %v245 = vmul.f32 %v145, %v220
  %v246 = vmul.f32 %v146, %v220
  %v247 = vmul.f32 %v147, %v220
  %v248 = vmul.f32 %v148, %v220
  %v249 = vmul.f32 %v149, %v220
  %v250 = vmul.f32 %v150, %v220
  %v251 = vmul.f32 %v151, %v220
  %v252 = vmul.f32 %v152, %v220
  %v253 = vmul.f32 %v153, %v220
  %v254 = vmul.f32 %v154, %v220
  %v255 = vmul.f32 %v155, %v220
  %v256 = vmul.f32 %v156, %v220
  %v257 = vmul.f32 %v157, %v220
  %v258 = vmul.f32 %v158, %v220
  %v259 = vmul.f32 %v159, %v220
  %v260 = vmul.f32 %v160, %v220
  %v261 = vmul.f32 %v161, %v220
  %v262 = vmul.f32 %v162, %v220
  %v263 = vmul.f32 %v163, %v220
  %v264 = vmul.f32 %v164, %v220
  %v265 = vmul.f32 %v165, %v220
  %v266 = vmul.f32 %v166, %v220
  %v267 = vmul.f32 %v167, %v220
  %v268 = vmul.f32 %v168, %v220
  %v269 = vmul.f32 %v169, %v220
  %v270 = vmul.f32 %v170, %v220
  %v271 = vmul.f32 %v171, %v220
  %v272 = vmul.f32 %v172, %v220
  %v273 = vmul.f32 %v173, %v220
  %v274 = vmul.f32 %v174, %v220
  %v275 = vmul.f32 %v175, %v220
  %v276 = vmul.f32 %v176, %v220
  %v277 = vmul.f32 %v177, %v220
  %v278 = vmul.f32 %v178, %v220
  %v279 = vmul.f32 %v179, %v220
  %v280 = vmul.f32 %v180, %v220
  %v281 = vmul.f32 %v181, %v220
  %v282 = vmul.f32 %v182, %v220
  %v283 = vmul.f32 %v183, %v220
  %v284 = vmul.f32 %v184, %v220
  %v285 = vmul.f32 %v185, %v220
  %v286 = vmul.f32 %v186, %v220
  %v287 = vmul.f32 %v187, %v220
  %v288 = vmul.f32 %v188, %v220
  %v289 = vmul.f32 %v189, %v220
  %v290 = vmul.f32 %v190, %v220
  %v291 = vmul.f32 %v191, %v220
  %v292 = vmul.f32 %v192, %v220
  %v293 = vmul.f32 %v193, %v220
  %v294 = vmul.f32 %v194, %v220
  %v295 = vmul.f32 %v195, %v220
  %v296 = vmul.f32 %v196, %v220
  %v297 = vmul.f32 %v197, %v220
  %v298 = vmul.f32 %v198, %v220
  %v299 = vmul.f32 %v199, %v220
  %v300 = vmul.f32 %v200, %v220
  %v301 = vmul.f32 %v201, %v220
  %v302 = vmul.f32 %v202, %v220
  %v303 = vmul.f32 %v203, %v220
  %v304 = vmul.f32 %v204, %v220
  %v305 = vmul.f32 %v205, %v220
  %v306 = vmul.f32 %v206, %v220
  %v307 = vmul.f32 %v207, %v220
  %v308 = vmul.f32 %v208, %v220
  %v309 = vmul.f32 %v209, %v220
  %v310 = vmul.f32 %v210, %v220
  %v311 = vmul.f32 %v211, %v220
  %v312 = vmul.f32 %v212, %v220
  %v313 = vmul.f32 %v213, %v220
  %v314 = vmul.f32 %v214, %v220
  %v315 = vmul.f32 %v215, %v220
  %v316 = vmul.f32 %v216, %v220
  %v317 = vmul.f32 %v217, %v220
  %v318 = vld [vmem:[%s2] sm:$0x1]
  %v320 = vperm.slane %v318, 0
  %v322 = vadd.f32 %v222, %v320
  %v323 = vadd.f32 %v223, %v320
  %v324 = vadd.f32 %v224, %v320
  %v325 = vadd.f32 %v225, %v320
  %v326 = vadd.f32 %v226, %v320
  %v327 = vadd.f32 %v227, %v320
  %v328 = vadd.f32 %v228, %v320
  %v329 = vadd.f32 %v229, %v320
  %v330 = vadd.f32 %v230, %v320
  %v331 = vadd.f32 %v231, %v320
  %v332 = vadd.f32 %v232, %v320
  %v333 = vadd.f32 %v233, %v320
  %v334 = vadd.f32 %v234, %v320
  %v335 = vadd.f32 %v235, %v320
  %v336 = vadd.f32 %v236, %v320
  %v337 = vadd.f32 %v237, %v320
  %v338 = vadd.f32 %v238, %v320
  %v339 = vadd.f32 %v239, %v320
  %v340 = vadd.f32 %v240, %v320
  %v341 = vadd.f32 %v241, %v320
  %v342 = vadd.f32 %v242, %v320
  %v343 = vadd.f32 %v243, %v320
  %v344 = vadd.f32 %v244, %v320
  %v345 = vadd.f32 %v245, %v320
  %v346 = vadd.f32 %v246, %v320
  %v347 = vadd.f32 %v247, %v320
  %v348 = vadd.f32 %v248, %v320
  %v349 = vadd.f32 %v249, %v320
  %v350 = vadd.f32 %v250, %v320
  %v351 = vadd.f32 %v251, %v320
  %v352 = vadd.f32 %v252, %v320
  %v353 = vadd.f32 %v253, %v320
  %v354 = vadd.f32 %v254, %v320
  %v355 = vadd.f32 %v255, %v320
  %v356 = vadd.f32 %v256, %v320
  %v357 = vadd.f32 %v257, %v320
  %v358 = vadd.f32 %v258, %v320
  %v359 = vadd.f32 %v259, %v320
  %v360 = vadd.f32 %v260, %v320
  %v361 = vadd.f32 %v261, %v320
  %v362 = vadd.f32 %v262, %v320
  %v363 = vadd.f32 %v263, %v320
  %v364 = vadd.f32 %v264, %v320
  %v365 = vadd.f32 %v265, %v320
  %v366 = vadd.f32 %v266, %v320
  %v367 = vadd.f32 %v267, %v320
  %v368 = vadd.f32 %v268, %v320
  %v369 = vadd.f32 %v269, %v320
  %v370 = vadd.f32 %v270, %v320
  %v371 = vadd.f32 %v271, %v320
  %v372 = vadd.f32 %v272, %v320
  %v373 = vadd.f32 %v273, %v320
  %v374 = vadd.f32 %v274, %v320
  %v375 = vadd.f32 %v275, %v320
  %v376 = vadd.f32 %v276, %v320
  %v377 = vadd.f32 %v277, %v320
  %v378 = vadd.f32 %v278, %v320
  %v379 = vadd.f32 %v279, %v320
  %v380 = vadd.f32 %v280, %v320
  %v381 = vadd.f32 %v281, %v320
  %v382 = vadd.f32 %v282, %v320
  %v383 = vadd.f32 %v283, %v320
  %v384 = vadd.f32 %v284, %v320
  %v385 = vadd.f32 %v285, %v320
  %v386 = vadd.f32 %v286, %v320
  %v387 = vadd.f32 %v287, %v320
  %v388 = vadd.f32 %v288, %v320
  %v389 = vadd.f32 %v289, %v320
  %v390 = vadd.f32 %v290, %v320
  %v391 = vadd.f32 %v291, %v320
  %v392 = vadd.f32 %v292, %v320
  %v393 = vadd.f32 %v293, %v320
  %v394 = vadd.f32 %v294, %v320
  %v395 = vadd.f32 %v295, %v320
  %v396 = vadd.f32 %v296, %v320
  %v397 = vadd.f32 %v297, %v320
  %v398 = vadd.f32 %v298, %v320
  %v399 = vadd.f32 %v299, %v320
  %v400 = vadd.f32 %v300, %v320
  %v401 = vadd.f32 %v301, %v320
  %v402 = vadd.f32 %v302, %v320
  %v403 = vadd.f32 %v303, %v320
  %v404 = vadd.f32 %v304, %v320
  %v405 = vadd.f32 %v305, %v320
  %v406 = vadd.f32 %v306, %v320
  %v407 = vadd.f32 %v307, %v320
  %v408 = vadd.f32 %v308, %v320
  %v409 = vadd.f32 %v309, %v320
  %v410 = vadd.f32 %v310, %v320
  %v411 = vadd.f32 %v311, %v320
  %v412 = vadd.f32 %v312, %v320
  %v413 = vadd.f32 %v313, %v320
  %v414 = vadd.f32 %v314, %v320
  %v415 = vadd.f32 %v315, %v320
  %v416 = vadd.f32 %v316, %v320
  %v417 = vadd.f32 %v317, %v320
  %v418 = vld [vmem:[%s4] sm:$0xf]
  %v419 = vld [vmem:[%s4 + $0x4] sm:$0xf]
  %v420 = vld [vmem:[%s4 + $0x8] sm:$0xf]
  %v421 = vld [vmem:[%s4 + $0xc] sm:$0xf]
  %v422 = vld [vmem:[%s4 + $0x10] sm:$0xf]
  %v423 = vld [vmem:[%s4 + $0x14] sm:$0xf]
  %v424 = vld [vmem:[%s4 + $0x18] sm:$0xf]
  %v425 = vld [vmem:[%s4 + $0x1c] sm:$0xf]
  %v426 = vld [vmem:[%s4 + $0x20] sm:$0xf]
  %v427 = vld [vmem:[%s4 + $0x24] sm:$0xf]
  %v428 = vld [vmem:[%s4 + $0x28] sm:$0xf]
  %v429 = vld [vmem:[%s4 + $0x2c] sm:$0xf]
  %v430 = vld [vmem:[%s4 + $0x30] sm:$0xf]
  %v431 = vld [vmem:[%s4 + $0x34] sm:$0xf]
  %v432 = vld [vmem:[%s4 + $0x38] sm:$0xf]
  %v433 = vld [vmem:[%s4 + $0x3c] sm:$0xf]
  %v434 = vld [vmem:[%s4 + $0x40] sm:$0xf]
  %v435 = vld [vmem:[%s4 + $0x44] sm:$0xf]
  %v436 = vld [vmem:[%s4 + $0x48] sm:$0xf]
  %v437 = vld [vmem:[%s4 + $0x4c] sm:$0xf]
  %v438 = vld [vmem:[%s4 + $0x50] sm:$0xf]
  %v439 = vld [vmem:[%s4 + $0x54] sm:$0xf]
  %v440 = vld [vmem:[%s4 + $0x58] sm:$0xf]
  %v441 = vld [vmem:[%s4 + $0x5c] sm:$0xf]
  %v442 = vld [vmem:[%s4 + $0x60] sm:$0xf]
  %v443 = vld [vmem:[%s4 + $0x64] sm:$0xf]
  %v444 = vld [vmem:[%s4 + $0x68] sm:$0xf]
  %v445 = vld [vmem:[%s4 + $0x6c] sm:$0xf]
  %v446 = vld [vmem:[%s4 + $0x70] sm:$0xf]
  %v447 = vld [vmem:[%s4 + $0x74] sm:$0xf]
  %v448 = vld [vmem:[%s4 + $0x78] sm:$0xf]
  %v449 = vld [vmem:[%s4 + $0x7c] sm:$0xf]
  %v450 = vld [vmem:[%s4 + $0x80] sm:$0xf]
  %v451 = vld [vmem:[%s4 + $0x84] sm:$0xf]
  %v452 = vld [vmem:[%s4 + $0x88] sm:$0xf]
  %v453 = vld [vmem:[%s4 + $0x8c] sm:$0xf]
  %v454 = vld [vmem:[%s4 + $0x90] sm:$0xf]
  %v455 = vld [vmem:[%s4 + $0x94] sm:$0xf]
  %v456 = vld [vmem:[%s4 + $0x98] sm:$0xf]
  %v457 = vld [vmem:[%s4 + $0x9c] sm:$0xf]
  %v458 = vld [vmem:[%s4 + $0xa0] sm:$0xf]
  %v459 = vld [vmem:[%s4 + $0xa4] sm:$0xf]
  %v460 = vld [vmem:[%s4 + $0xa8] sm:$0xf]
  %v461 = vld [vmem:[%s4 + $0xac] sm:$0xf]
  %v462 = vld [vmem:[%s4 + $0xb0] sm:$0xf]
  %v463 = vld [vmem:[%s4 + $0xb4] sm:$0xf]
  %v464 = vld [vmem:[%s4 + $0xb8] sm:$0xf]
  %v465 = vld [vmem:[%s4 + $0xbc] sm:$0xf]
  %v466 = vld [vmem:[%s4 + $0xc0] sm:$0xf]
  %v467 = vld [vmem:[%s4 + $0xc4] sm:$0xf]
  %v468 = vld [vmem:[%s4 + $0xc8] sm:$0xf]
  %v469 = vld [vmem:[%s4 + $0xcc] sm:$0xf]
  %v470 = vld [vmem:[%s4 + $0xd0] sm:$0xf]
  %v471 = vld [vmem:[%s4 + $0xd4] sm:$0xf]
  %v472 = vld [vmem:[%s4 + $0xd8] sm:$0xf]
  %v473 = vld [vmem:[%s4 + $0xdc] sm:$0xf]
  %v474 = vld [vmem:[%s4 + $0xe0] sm:$0xf]
  %v475 = vld [vmem:[%s4 + $0xe4] sm:$0xf]
  %v476 = vld [vmem:[%s4 + $0xe8] sm:$0xf]
  %v477 = vld [vmem:[%s4 + $0xec] sm:$0xf]
  %v478 = vld [vmem:[%s4 + $0xf0] sm:$0xf]
  %v479 = vld [vmem:[%s4 + $0xf4] sm:$0xf]
  %v480 = vld [vmem:[%s4 + $0xf8] sm:$0xf]
  %v481 = vld [vmem:[%s4 + $0xfc] sm:$0xf]
  %v482 = vld [vmem:[%s4 + $0x100] sm:$0xf]
  %v483 = vld [vmem:[%s4 + $0x104] sm:$0xf]
  %v484 = vld [vmem:[%s4 + $0x108] sm:$0xf]
  %v485 = vld [vmem:[%s4 + $0x10c] sm:$0xf]
  %v486 = vld [vmem:[%s4 + $0x110] sm:$0xf]
  %v487 = vld [vmem:[%s4 + $0x114] sm:$0xf]
  %v488 = vld [vmem:[%s4 + $0x118] sm:$0xf]
  %v489 = vld [vmem:[%s4 + $0x11c] sm:$0xf]
  %v490 = vld [vmem:[%s4 + $0x120] sm:$0xf]
  %v491 = vld [vmem:[%s4 + $0x124] sm:$0xf]
  %v492 = vld [vmem:[%s4 + $0x128] sm:$0xf]
  %v493 = vld [vmem:[%s4 + $0x12c] sm:$0xf]
  %v494 = vld [vmem:[%s4 + $0x130] sm:$0xf]
  %v495 = vld [vmem:[%s4 + $0x134] sm:$0xf]
  %v496 = vld [vmem:[%s4 + $0x138] sm:$0xf]
  %v497 = vld [vmem:[%s4 + $0x13c] sm:$0xf]
  %v498 = vld [vmem:[%s4 + $0x140] sm:$0xf]
  %v499 = vld [vmem:[%s4 + $0x144] sm:$0xf]
  %v500 = vld [vmem:[%s4 + $0x148] sm:$0xf]
  %v501 = vld [vmem:[%s4 + $0x14c] sm:$0xf]
  %v502 = vld [vmem:[%s4 + $0x150] sm:$0xf]
  %v503 = vld [vmem:[%s4 + $0x154] sm:$0xf]
  %v504 = vld [vmem:[%s4 + $0x158] sm:$0xf]
  %v505 = vld [vmem:[%s4 + $0x15c] sm:$0xf]
  %v506 = vld [vmem:[%s4 + $0x160] sm:$0xf]
  %v507 = vld [vmem:[%s4 + $0x164] sm:$0xf]
  %v508 = vld [vmem:[%s4 + $0x168] sm:$0xf]
  %v509 = vld [vmem:[%s4 + $0x16c] sm:$0xf]
  %v510 = vld [vmem:[%s4 + $0x170] sm:$0xf]
  %v511 = vld [vmem:[%s4 + $0x174] sm:$0xf]
  %v512 = vld [vmem:[%s4 + $0x178] sm:$0xf]
  %v513 = vld [vmem:[%s4 + $0x17c] sm:$0xf]
  %v514 = vunpack.c.l.bf16 %v418
  %v515 = vunpack.c.l.bf16 %v419
  %v516 = vunpack.c.l.bf16 %v420
  %v517 = vunpack.c.l.bf16 %v421
  %v518 = vunpack.c.l.bf16 %v422
  %v519 = vunpack.c.l.bf16 %v423
  %v520 = vunpack.c.l.bf16 %v424
  %v521 = vunpack.c.l.bf16 %v425
  %v522 = vunpack.c.l.bf16 %v426
  %v523 = vunpack.c.l.bf16 %v427
  %v524 = vunpack.c.l.bf16 %v428
  %v525 = vunpack.c.l.bf16 %v429
  %v526 = vunpack.c.l.bf16 %v430
  %v527 = vunpack.c.l.bf16 %v431
  %v528 = vunpack.c.l.bf16 %v432
  %v529 = vunpack.c.l.bf16 %v433
  %v530 = vunpack.c.l.bf16 %v434
  %v531 = vunpack.c.l.bf16 %v435
  %v532 = vunpack.c.l.bf16 %v436
  %v533 = vunpack.c.l.bf16 %v437
  %v534 = vunpack.c.l.bf16 %v438
  %v535 = vunpack.c.l.bf16 %v439
  %v536 = vunpack.c.l.bf16 %v440
  %v537 = vunpack.c.l.bf16 %v441
  %v538 = vunpack.c.l.bf16 %v442
  %v539 = vunpack.c.l.bf16 %v443
  %v540 = vunpack.c.l.bf16 %v444
  %v541 = vunpack.c.l.bf16 %v445
  %v542 = vunpack.c.l.bf16 %v446
  %v543 = vunpack.c.l.bf16 %v447
  %v544 = vunpack.c.l.bf16 %v448
  %v545 = vunpack.c.l.bf16 %v449
  %v546 = vunpack.c.l.bf16 %v450
  %v547 = vunpack.c.l.bf16 %v451
  %v548 = vunpack.c.l.bf16 %v452
  %v549 = vunpack.c.l.bf16 %v453
  %v550 = vunpack.c.l.bf16 %v454
  %v551 = vunpack.c.l.bf16 %v455
  %v552 = vunpack.c.l.bf16 %v456
  %v553 = vunpack.c.l.bf16 %v457
  %v554 = vunpack.c.l.bf16 %v458
  %v555 = vunpack.c.l.bf16 %v459
  %v556 = vunpack.c.l.bf16 %v460
  %v557 = vunpack.c.l.bf16 %v461
  %v558 = vunpack.c.l.bf16 %v462
  %v559 = vunpack.c.l.bf16 %v463
  %v560 = vunpack.c.l.bf16 %v464
  %v561 = vunpack.c.l.bf16 %v465
  %v562 = vunpack.c.l.bf16 %v466
  %v563 = vunpack.c.l.bf16 %v467
  %v564 = vunpack.c.l.bf16 %v468
  %v565 = vunpack.c.l.bf16 %v469
  %v566 = vunpack.c.l.bf16 %v470
  %v567 = vunpack.c.l.bf16 %v471
  %v568 = vunpack.c.l.bf16 %v472
  %v569 = vunpack.c.l.bf16 %v473
  %v570 = vunpack.c.l.bf16 %v474
  %v571 = vunpack.c.l.bf16 %v475
  %v572 = vunpack.c.l.bf16 %v476
  %v573 = vunpack.c.l.bf16 %v477
  %v574 = vunpack.c.l.bf16 %v478
  %v575 = vunpack.c.l.bf16 %v479
  %v576 = vunpack.c.l.bf16 %v480
  %v577 = vunpack.c.l.bf16 %v481
  %v578 = vunpack.c.l.bf16 %v482
  %v579 = vunpack.c.l.bf16 %v483
  %v580 = vunpack.c.l.bf16 %v484
  %v581 = vunpack.c.l.bf16 %v485
  %v582 = vunpack.c.l.bf16 %v486
  %v583 = vunpack.c.l.bf16 %v487
  %v584 = vunpack.c.l.bf16 %v488
  %v585 = vunpack.c.l.bf16 %v489
  %v586 = vunpack.c.l.bf16 %v490
  %v587 = vunpack.c.l.bf16 %v491
  %v588 = vunpack.c.l.bf16 %v492
  %v589 = vunpack.c.l.bf16 %v493
  %v590 = vunpack.c.l.bf16 %v494
  %v591 = vunpack.c.l.bf16 %v495
  %v592 = vunpack.c.l.bf16 %v496
  %v593 = vunpack.c.l.bf16 %v497
  %v594 = vunpack.c.l.bf16 %v498
  %v595 = vunpack.c.l.bf16 %v499
  %v596 = vunpack.c.l.bf16 %v500
  %v597 = vunpack.c.l.bf16 %v501
  %v598 = vunpack.c.l.bf16 %v502
  %v599 = vunpack.c.l.bf16 %v503
  %v600 = vunpack.c.l.bf16 %v504
  %v601 = vunpack.c.l.bf16 %v505
  %v602 = vunpack.c.l.bf16 %v506
  %v603 = vunpack.c.l.bf16 %v507
  %v604 = vunpack.c.l.bf16 %v508
  %v605 = vunpack.c.l.bf16 %v509
  %v606 = vunpack.c.l.bf16 %v510
  %v607 = vunpack.c.l.bf16 %v511
  %v608 = vunpack.c.l.bf16 %v512
  %v609 = vunpack.c.l.bf16 %v513
  %v610 = vld [vmem:[%s5] sm:$0x1]
  %v612 = vperm.slane %v610, 0
  %v614 = vmul.f32 %v514, %v612
  %v615 = vmul.f32 %v515, %v612
  %v616 = vmul.f32 %v516, %v612
  %v617 = vmul.f32 %v517, %v612
  %v618 = vmul.f32 %v518, %v612
  %v619 = vmul.f32 %v519, %v612
  %v620 = vmul.f32 %v520, %v612
  %v621 = vmul.f32 %v521, %v612
  %v622 = vmul.f32 %v522, %v612
  %v623 = vmul.f32 %v523, %v612
  %v624 = vmul.f32 %v524, %v612
  %v625 = vmul.f32 %v525, %v612
  %v626 = vmul.f32 %v526, %v612
  %v627 = vmul.f32 %v527, %v612
  %v628 = vmul.f32 %v528, %v612
  %v629 = vmul.f32 %v529, %v612
  %v630 = vmul.f32 %v530, %v612
  %v631 = vmul.f32 %v531, %v612
  %v632 = vmul.f32 %v532, %v612
  %v633 = vmul.f32 %v533, %v612
  %v634 = vmul.f32 %v534, %v612
  %v635 = vmul.f32 %v535, %v612
  %v636 = vmul.f32 %v536, %v612
  %v637 = vmul.f32 %v537, %v612
  %v638 = vmul.f32 %v538, %v612
  %v639 = vmul.f32 %v539, %v612
  %v640 = vmul.f32 %v540, %v612
  %v641 = vmul.f32 %v541, %v612
  %v642 = vmul.f32 %v542, %v612
  %v643 = vmul.f32 %v543, %v612
  %v644 = vmul.f32 %v544, %v612
  %v645 = vmul.f32 %v545, %v612
  %v646 = vmul.f32 %v546, %v612
  %v647 = vmul.f32 %v547, %v612
  %v648 = vmul.f32 %v548, %v612
  %v649 = vmul.f32 %v549, %v612
  %v650 = vmul.f32 %v550, %v612
  %v651 = vmul.f32 %v551, %v612
  %v652 = vmul.f32 %v552, %v612
  %v653 = vmul.f32 %v553, %v612
  %v654 = vmul.f32 %v554, %v612
  %v655 = vmul.f32 %v555, %v612
  %v656 = vmul.f32 %v556, %v612
  %v657 = vmul.f32 %v557, %v612
  %v658 = vmul.f32 %v558, %v612
  %v659 = vmul.f32 %v559, %v612
  %v660 = vmul.f32 %v560, %v612
  %v661 = vmul.f32 %v561, %v612
  %v662 = vmul.f32 %v562, %v612
  %v663 = vmul.f32 %v563, %v612
  %v664 = vmul.f32 %v564, %v612
  %v665 = vmul.f32 %v565, %v612
  %v666 = vmul.f32 %v566, %v612
  %v667 = vmul.f32 %v567, %v612
  %v668 = vmul.f32 %v568, %v612
  %v669 = vmul.f32 %v569, %v612
  %v670 = vmul.f32 %v570, %v612
  %v671 = vmul.f32 %v571, %v612
  %v672 = vmul.f32 %v572, %v612
  %v673 = vmul.f32 %v573, %v612
  %v674 = vmul.f32 %v574, %v612
  %v675 = vmul.f32 %v575, %v612
  %v676 = vmul.f32 %v576, %v612
  %v677 = vmul.f32 %v577, %v612
  %v678 = vmul.f32 %v578, %v612
  %v679 = vmul.f32 %v579, %v612
  %v680 = vmul.f32 %v580, %v612
  %v681 = vmul.f32 %v581, %v612
  %v682 = vmul.f32 %v582, %v612
  %v683 = vmul.f32 %v583, %v612
  %v684 = vmul.f32 %v584, %v612
  %v685 = vmul.f32 %v585, %v612
  %v686 = vmul.f32 %v586, %v612
  %v687 = vmul.f32 %v587, %v612
  %v688 = vmul.f32 %v588, %v612
  %v689 = vmul.f32 %v589, %v612
  %v690 = vmul.f32 %v590, %v612
  %v691 = vmul.f32 %v591, %v612
  %v692 = vmul.f32 %v592, %v612
  %v693 = vmul.f32 %v593, %v612
  %v694 = vmul.f32 %v594, %v612
  %v695 = vmul.f32 %v595, %v612
  %v696 = vmul.f32 %v596, %v612
  %v697 = vmul.f32 %v597, %v612
  %v698 = vmul.f32 %v598, %v612
  %v699 = vmul.f32 %v599, %v612
  %v700 = vmul.f32 %v600, %v612
  %v701 = vmul.f32 %v601, %v612
  %v702 = vmul.f32 %v602, %v612
  %v703 = vmul.f32 %v603, %v612
  %v704 = vmul.f32 %v604, %v612
  %v705 = vmul.f32 %v605, %v612
  %v706 = vmul.f32 %v606, %v612
  %v707 = vmul.f32 %v607, %v612
  %v708 = vmul.f32 %v608, %v612
  %v709 = vmul.f32 %v609, %v612
  %v710 = vld [vmem:[%s6] sm:$0x1]
  %v712 = vperm.slane %v710, 0
  %v714 = vadd.f32 %v614, %v712
  %v715 = vadd.f32 %v615, %v712
  %v716 = vadd.f32 %v616, %v712
  %v717 = vadd.f32 %v617, %v712
  %v718 = vadd.f32 %v618, %v712
  %v719 = vadd.f32 %v619, %v712
  %v720 = vadd.f32 %v620, %v712
  %v721 = vadd.f32 %v621, %v712
  %v722 = vadd.f32 %v622, %v712
  %v723 = vadd.f32 %v623, %v712
  %v724 = vadd.f32 %v624, %v712
  %v725 = vadd.f32 %v625, %v712
  %v726 = vadd.f32 %v626, %v712
  %v727 = vadd.f32 %v627, %v712
  %v728 = vadd.f32 %v628, %v712
  %v729 = vadd.f32 %v629, %v712
  %v730 = vadd.f32 %v630, %v712
  %v731 = vadd.f32 %v631, %v712
  %v732 = vadd.f32 %v632, %v712
  %v733 = vadd.f32 %v633, %v712
  %v734 = vadd.f32 %v634, %v712
  %v735 = vadd.f32 %v635, %v712
  %v736 = vadd.f32 %v636, %v712
  %v737 = vadd.f32 %v637, %v712
  %v738 = vadd.f32 %v638, %v712
  %v739 = vadd.f32 %v639, %v712
  %v740 = vadd.f32 %v640, %v712
  %v741 = vadd.f32 %v641, %v712
  %v742 = vadd.f32 %v642, %v712
  %v743 = vadd.f32 %v643, %v712
  %v744 = vadd.f32 %v644, %v712
  %v745 = vadd.f32 %v645, %v712
  %v746 = vadd.f32 %v646, %v712
  %v747 = vadd.f32 %v647, %v712
  %v748 = vadd.f32 %v648, %v712
  %v749 = vadd.f32 %v649, %v712
  %v750 = vadd.f32 %v650, %v712
  %v751 = vadd.f32 %v651, %v712
  %v752 = vadd.f32 %v652, %v712
  %v753 = vadd.f32 %v653, %v712
  %v754 = vadd.f32 %v654, %v712
  %v755 = vadd.f32 %v655, %v712
  %v756 = vadd.f32 %v656, %v712
  %v757 = vadd.f32 %v657, %v712
  %v758 = vadd.f32 %v658, %v712
  %v759 = vadd.f32 %v659, %v712
  %v760 = vadd.f32 %v660, %v712
  %v761 = vadd.f32 %v661, %v712
  %v762 = vadd.f32 %v662, %v712
  %v763 = vadd.f32 %v663, %v712
  %v764 = vadd.f32 %v664, %v712
  %v765 = vadd.f32 %v665, %v712
  %v766 = vadd.f32 %v666, %v712
  %v767 = vadd.f32 %v667, %v712
  %v768 = vadd.f32 %v668, %v712
  %v769 = vadd.f32 %v669, %v712
  %v770 = vadd.f32 %v670, %v712
  %v771 = vadd.f32 %v671, %v712
  %v772 = vadd.f32 %v672, %v712
  %v773 = vadd.f32 %v673, %v712
  %v774 = vadd.f32 %v674, %v712
  %v775 = vadd.f32 %v675, %v712
  %v776 = vadd.f32 %v676, %v712
  %v777 = vadd.f32 %v677, %v712
  %v778 = vadd.f32 %v678, %v712
  %v779 = vadd.f32 %v679, %v712
  %v780 = vadd.f32 %v680, %v712
  %v781 = vadd.f32 %v681, %v712
  %v782 = vadd.f32 %v682, %v712
  %v783 = vadd.f32 %v683, %v712
  %v784 = vadd.f32 %v684, %v712
  %v785 = vadd.f32 %v685, %v712
  %v786 = vadd.f32 %v686, %v712
  %v787 = vadd.f32 %v687, %v712
  %v788 = vadd.f32 %v688, %v712
  %v789 = vadd.f32 %v689, %v712
  %v790 = vadd.f32 %v690, %v712
  %v791 = vadd.f32 %v691, %v712
  %v792 = vadd.f32 %v692, %v712
  %v793 = vadd.f32 %v693, %v712
  %v794 = vadd.f32 %v694, %v712
  %v795 = vadd.f32 %v695, %v712
  %v796 = vadd.f32 %v696, %v712
  %v797 = vadd.f32 %v697, %v712
  %v798 = vadd.f32 %v698, %v712
  %v799 = vadd.f32 %v699, %v712
  %v800 = vadd.f32 %v700, %v712
  %v801 = vadd.f32 %v701, %v712
  %v802 = vadd.f32 %v702, %v712
  %v803 = vadd.f32 %v703, %v712
  %v804 = vadd.f32 %v704, %v712
  %v805 = vadd.f32 %v705, %v712
  %v806 = vadd.f32 %v706, %v712
  %v807 = vadd.f32 %v707, %v712
  %v808 = vadd.f32 %v708, %v712
  %v809 = vadd.f32 %v709, %v712
  %v810 = vadd.f32 %v322, %v714
  %v811 = vadd.f32 %v323, %v715
  %v812 = vadd.f32 %v324, %v716
  %v813 = vadd.f32 %v325, %v717
  %v814 = vadd.f32 %v326, %v718
  %v815 = vadd.f32 %v327, %v719
  %v816 = vadd.f32 %v328, %v720
  %v817 = vadd.f32 %v329, %v721
  %v818 = vadd.f32 %v330, %v722
  %v819 = vadd.f32 %v331, %v723
  %v820 = vadd.f32 %v332, %v724
  %v821 = vadd.f32 %v333, %v725
  %v822 = vadd.f32 %v334, %v726
  %v823 = vadd.f32 %v335, %v727
  %v824 = vadd.f32 %v336, %v728
  %v825 = vadd.f32 %v337, %v729
  %v826 = vadd.f32 %v338, %v730
  %v827 = vadd.f32 %v339, %v731
  %v828 = vadd.f32 %v340, %v732
  %v829 = vadd.f32 %v341, %v733
  %v830 = vadd.f32 %v342, %v734
  %v831 = vadd.f32 %v343, %v735
  %v832 = vadd.f32 %v344, %v736
  %v833 = vadd.f32 %v345, %v737
  %v834 = vadd.f32 %v346, %v738
  %v835 = vadd.f32 %v347, %v739
  %v836 = vadd.f32 %v348, %v740
  %v837 = vadd.f32 %v349, %v741
  %v838 = vadd.f32 %v350, %v742
  %v839 = vadd.f32 %v351, %v743
  %v840 = vadd.f32 %v352, %v744
  %v841 = vadd.f32 %v353, %v745
  %v842 = vadd.f32 %v354, %v746
  %v843 = vadd.f32 %v355, %v747
  %v844 = vadd.f32 %v356, %v748
  %v845 = vadd.f32 %v357, %v749
  %v846 = vadd.f32 %v358, %v750
  %v847 = vadd.f32 %v359, %v751
  %v848 = vadd.f32 %v360, %v752
  %v849 = vadd.f32 %v361, %v753
  %v850 = vadd.f32 %v362, %v754
  %v851 = vadd.f32 %v363, %v755
  %v852 = vadd.f32 %v364, %v756
  %v853 = vadd.f32 %v365, %v757
  %v854 = vadd.f32 %v366, %v758
  %v855 = vadd.f32 %v367, %v759
  %v856 = vadd.f32 %v368, %v760
  %v857 = vadd.f32 %v369, %v761
  %v858 = vadd.f32 %v370, %v762
  %v859 = vadd.f32 %v371, %v763
  %v860 = vadd.f32 %v372, %v764
  %v861 = vadd.f32 %v373, %v765
  %v862 = vadd.f32 %v374, %v766
  %v863 = vadd.f32 %v375, %v767
  %v864 = vadd.f32 %v376, %v768
  %v865 = vadd.f32 %v377, %v769
  %v866 = vadd.f32 %v378, %v770
  %v867 = vadd.f32 %v379, %v771
  %v868 = vadd.f32 %v380, %v772
  %v869 = vadd.f32 %v381, %v773
  %v870 = vadd.f32 %v382, %v774
  %v871 = vadd.f32 %v383, %v775
  %v872 = vadd.f32 %v384, %v776
  %v873 = vadd.f32 %v385, %v777
  %v874 = vadd.f32 %v386, %v778
  %v875 = vadd.f32 %v387, %v779
  %v876 = vadd.f32 %v388, %v780
  %v877 = vadd.f32 %v389, %v781
  %v878 = vadd.f32 %v390, %v782
  %v879 = vadd.f32 %v391, %v783
  %v880 = vadd.f32 %v392, %v784
  %v881 = vadd.f32 %v393, %v785
  %v882 = vadd.f32 %v394, %v786
  %v883 = vadd.f32 %v395, %v787
  %v884 = vadd.f32 %v396, %v788
  %v885 = vadd.f32 %v397, %v789
  %v886 = vadd.f32 %v398, %v790
  %v887 = vadd.f32 %v399, %v791
  %v888 = vadd.f32 %v400, %v792
  %v889 = vadd.f32 %v401, %v793
  %v890 = vadd.f32 %v402, %v794
  %v891 = vadd.f32 %v403, %v795
  %v892 = vadd.f32 %v404, %v796
  %v893 = vadd.f32 %v405, %v797
  %v894 = vadd.f32 %v406, %v798
  %v895 = vadd.f32 %v407, %v799
  %v896 = vadd.f32 %v408, %v800
  %v897 = vadd.f32 %v409, %v801
  %v898 = vadd.f32 %v410, %v802
  %v899 = vadd.f32 %v411, %v803
  %v900 = vadd.f32 %v412, %v804
  %v901 = vadd.f32 %v413, %v805
  %v902 = vadd.f32 %v414, %v806
  %v903 = vadd.f32 %v415, %v807
  %v904 = vadd.f32 %v416, %v808
  %v905 = vadd.f32 %v417, %v809
  %v906 = vmax.f32 %v810, 0.0
  %v907 = vmax.f32 %v811, 0.0
  %v908 = vmax.f32 %v812, 0.0
  %v909 = vmax.f32 %v813, 0.0
  %v910 = vmax.f32 %v814, 0.0
  %v911 = vmax.f32 %v815, 0.0
  %v912 = vmax.f32 %v816, 0.0
  %v913 = vmax.f32 %v817, 0.0
  %v914 = vmax.f32 %v818, 0.0
  %v915 = vmax.f32 %v819, 0.0
  %v916 = vmax.f32 %v820, 0.0
  %v917 = vmax.f32 %v821, 0.0
  %v918 = vmax.f32 %v822, 0.0
  %v919 = vmax.f32 %v823, 0.0
  %v920 = vmax.f32 %v824, 0.0
  %v921 = vmax.f32 %v825, 0.0
  %v922 = vmax.f32 %v826, 0.0
  %v923 = vmax.f32 %v827, 0.0
  %v924 = vmax.f32 %v828, 0.0
  %v925 = vmax.f32 %v829, 0.0
  %v926 = vmax.f32 %v830, 0.0
  %v927 = vmax.f32 %v831, 0.0
  %v928 = vmax.f32 %v832, 0.0
  %v929 = vmax.f32 %v833, 0.0
  %v930 = vmax.f32 %v834, 0.0
  %v931 = vmax.f32 %v835, 0.0
  %v932 = vmax.f32 %v836, 0.0
  %v933 = vmax.f32 %v837, 0.0
  %v934 = vmax.f32 %v838, 0.0
  %v935 = vmax.f32 %v839, 0.0
  %v936 = vmax.f32 %v840, 0.0
  %v937 = vmax.f32 %v841, 0.0
  %v938 = vmax.f32 %v842, 0.0
  %v939 = vmax.f32 %v843, 0.0
  %v940 = vmax.f32 %v844, 0.0
  %v941 = vmax.f32 %v845, 0.0
  %v942 = vmax.f32 %v846, 0.0
  %v943 = vmax.f32 %v847, 0.0
  %v944 = vmax.f32 %v848, 0.0
  %v945 = vmax.f32 %v849, 0.0
  %v946 = vmax.f32 %v850, 0.0
  %v947 = vmax.f32 %v851, 0.0
  %v948 = vmax.f32 %v852, 0.0
  %v949 = vmax.f32 %v853, 0.0
  %v950 = vmax.f32 %v854, 0.0
  %v951 = vmax.f32 %v855, 0.0
  %v952 = vmax.f32 %v856, 0.0
  %v953 = vmax.f32 %v857, 0.0
  %v954 = vmax.f32 %v858, 0.0
  %v955 = vmax.f32 %v859, 0.0
  %v956 = vmax.f32 %v860, 0.0
  %v957 = vmax.f32 %v861, 0.0
  %v958 = vmax.f32 %v862, 0.0
  %v959 = vmax.f32 %v863, 0.0
  %v960 = vmax.f32 %v864, 0.0
  %v961 = vmax.f32 %v865, 0.0
  %v962 = vmax.f32 %v866, 0.0
  %v963 = vmax.f32 %v867, 0.0
  %v964 = vmax.f32 %v868, 0.0
  %v965 = vmax.f32 %v869, 0.0
  %v966 = vmax.f32 %v870, 0.0
  %v967 = vmax.f32 %v871, 0.0
  %v968 = vmax.f32 %v872, 0.0
  %v969 = vmax.f32 %v873, 0.0
  %v970 = vmax.f32 %v874, 0.0
  %v971 = vmax.f32 %v875, 0.0
  %v972 = vmax.f32 %v876, 0.0
  %v973 = vmax.f32 %v877, 0.0
  %v974 = vmax.f32 %v878, 0.0
  %v975 = vmax.f32 %v879, 0.0
  %v976 = vmax.f32 %v880, 0.0
  %v977 = vmax.f32 %v881, 0.0
  %v978 = vmax.f32 %v882, 0.0
  %v979 = vmax.f32 %v883, 0.0
  %v980 = vmax.f32 %v884, 0.0
  %v981 = vmax.f32 %v885, 0.0
  %v982 = vmax.f32 %v886, 0.0
  %v983 = vmax.f32 %v887, 0.0
  %v984 = vmax.f32 %v888, 0.0
  %v985 = vmax.f32 %v889, 0.0
  %v986 = vmax.f32 %v890, 0.0
  %v987 = vmax.f32 %v891, 0.0
  %v988 = vmax.f32 %v892, 0.0
  %v989 = vmax.f32 %v893, 0.0
  %v990 = vmax.f32 %v894, 0.0
  %v991 = vmax.f32 %v895, 0.0
  %v992 = vmax.f32 %v896, 0.0
  %v993 = vmax.f32 %v897, 0.0
  %v994 = vmax.f32 %v898, 0.0
  %v995 = vmax.f32 %v899, 0.0
  %v996 = vmax.f32 %v900, 0.0
  %v997 = vmax.f32 %v901, 0.0
  %v998 = vmax.f32 %v902, 0.0
  %v999 = vmax.f32 %v903, 0.0
  %v1000 = vmax.f32 %v904, 0.0
  %v1001 = vmax.f32 %v905, 0.0
  %v1002 = vld [vmem:[%s3] sm:$0xff]
  %v1003 = vld [vmem:[%s3 + $0x8] sm:$0xff]
  %v1004 = vld [vmem:[%s3 + $0x10] sm:$0xff]
  %v1005 = vld [vmem:[%s3 + $0x18] sm:$0xff]
  %v1006 = vld [vmem:[%s3 + $0x20] sm:$0xff]
  %v1007 = vld [vmem:[%s3 + $0x28] sm:$0xff]
  %v1008 = vld [vmem:[%s3 + $0x30] sm:$0xff]
  %v1009 = vld [vmem:[%s3 + $0x38] sm:$0xff]
  %v1010 = vld [vmem:[%s3 + $0x40] sm:$0xff]
  %v1011 = vld [vmem:[%s3 + $0x48] sm:$0xff]
  %v1012 = vld [vmem:[%s3 + $0x50] sm:$0xff]
  %v1013 = vld [vmem:[%s3 + $0x58] sm:$0xff]
  %v1014 = vld [vmem:[%s3 + $0x60] sm:$0xff]
  %v1015 = vld [vmem:[%s3 + $0x68] sm:$0xff]
  %v1016 = vld [vmem:[%s3 + $0x70] sm:$0xff]
  %v1017 = vld [vmem:[%s3 + $0x78] sm:$0xff]
  %v1018 = vld [vmem:[%s3 + $0x80] sm:$0xff]
  %v1019 = vld [vmem:[%s3 + $0x88] sm:$0xff]
  %v1020 = vld [vmem:[%s3 + $0x90] sm:$0xff]
  %v1021 = vld [vmem:[%s3 + $0x98] sm:$0xff]
  %v1022 = vld [vmem:[%s3 + $0xa0] sm:$0xff]
  %v1023 = vld [vmem:[%s3 + $0xa8] sm:$0xff]
  %v1024 = vld [vmem:[%s3 + $0xb0] sm:$0xff]
  %v1025 = vld [vmem:[%s3 + $0xb8] sm:$0xff]
  %v1026 = vld [vmem:[%s3 + $0xc0] sm:$0xff]
  %v1027 = vld [vmem:[%s3 + $0xc8] sm:$0xff]
  %v1028 = vld [vmem:[%s3 + $0xd0] sm:$0xff]
  %v1029 = vld [vmem:[%s3 + $0xd8] sm:$0xff]
  %v1030 = vld [vmem:[%s3 + $0xe0] sm:$0xff]
  %v1031 = vld [vmem:[%s3 + $0xe8] sm:$0xff]
  %v1032 = vld [vmem:[%s3 + $0xf0] sm:$0xff]
  %v1033 = vld [vmem:[%s3 + $0xf8] sm:$0xff]
  %v1034 = vld [vmem:[%s3 + $0x100] sm:$0xff]
  %v1035 = vld [vmem:[%s3 + $0x108] sm:$0xff]
  %v1036 = vld [vmem:[%s3 + $0x110] sm:$0xff]
  %v1037 = vld [vmem:[%s3 + $0x118] sm:$0xff]
  %v1038 = vld [vmem:[%s3 + $0x120] sm:$0xff]
  %v1039 = vld [vmem:[%s3 + $0x128] sm:$0xff]
  %v1040 = vld [vmem:[%s3 + $0x130] sm:$0xff]
  %v1041 = vld [vmem:[%s3 + $0x138] sm:$0xff]
  %v1042 = vld [vmem:[%s3 + $0x140] sm:$0xff]
  %v1043 = vld [vmem:[%s3 + $0x148] sm:$0xff]
  %v1044 = vld [vmem:[%s3 + $0x150] sm:$0xff]
  %v1045 = vld [vmem:[%s3 + $0x158] sm:$0xff]
  %v1046 = vld [vmem:[%s3 + $0x160] sm:$0xff]
  %v1047 = vld [vmem:[%s3 + $0x168] sm:$0xff]
  %v1048 = vld [vmem:[%s3 + $0x170] sm:$0xff]
  %v1049 = vld [vmem:[%s3 + $0x178] sm:$0xff]
  %v1050 = vld [vmem:[%s3 + $0x180] sm:$0xff]
  %v1051 = vld [vmem:[%s3 + $0x188] sm:$0xff]
  %v1052 = vld [vmem:[%s3 + $0x190] sm:$0xff]
  %v1053 = vld [vmem:[%s3 + $0x198] sm:$0xff]
  %v1054 = vld [vmem:[%s3 + $0x1a0] sm:$0xff]
  %v1055 = vld [vmem:[%s3 + $0x1a8] sm:$0xff]
  %v1056 = vld [vmem:[%s3 + $0x1b0] sm:$0xff]
  %v1057 = vld [vmem:[%s3 + $0x1b8] sm:$0xff]
  %v1058 = vld [vmem:[%s3 + $0x1c0] sm:$0xff]
  %v1059 = vld [vmem:[%s3 + $0x1c8] sm:$0xff]
  %v1060 = vld [vmem:[%s3 + $0x1d0] sm:$0xff]
  %v1061 = vld [vmem:[%s3 + $0x1d8] sm:$0xff]
  %v1062 = vld [vmem:[%s3 + $0x1e0] sm:$0xff]
  %v1063 = vld [vmem:[%s3 + $0x1e8] sm:$0xff]
  %v1064 = vld [vmem:[%s3 + $0x1f0] sm:$0xff]
  %v1065 = vld [vmem:[%s3 + $0x1f8] sm:$0xff]
  %v1066 = vld [vmem:[%s3 + $0x200] sm:$0xff]
  %v1067 = vld [vmem:[%s3 + $0x208] sm:$0xff]
  %v1068 = vld [vmem:[%s3 + $0x210] sm:$0xff]
  %v1069 = vld [vmem:[%s3 + $0x218] sm:$0xff]
  %v1070 = vld [vmem:[%s3 + $0x220] sm:$0xff]
  %v1071 = vld [vmem:[%s3 + $0x228] sm:$0xff]
  %v1072 = vld [vmem:[%s3 + $0x230] sm:$0xff]
  %v1073 = vld [vmem:[%s3 + $0x238] sm:$0xff]
  %v1074 = vld [vmem:[%s3 + $0x240] sm:$0xff]
  %v1075 = vld [vmem:[%s3 + $0x248] sm:$0xff]
  %v1076 = vld [vmem:[%s3 + $0x250] sm:$0xff]
  %v1077 = vld [vmem:[%s3 + $0x258] sm:$0xff]
  %v1078 = vld [vmem:[%s3 + $0x260] sm:$0xff]
  %v1079 = vld [vmem:[%s3 + $0x268] sm:$0xff]
  %v1080 = vld [vmem:[%s3 + $0x270] sm:$0xff]
  %v1081 = vld [vmem:[%s3 + $0x278] sm:$0xff]
  %v1082 = vld [vmem:[%s3 + $0x280] sm:$0xff]
  %v1083 = vld [vmem:[%s3 + $0x288] sm:$0xff]
  %v1084 = vld [vmem:[%s3 + $0x290] sm:$0xff]
  %v1085 = vld [vmem:[%s3 + $0x298] sm:$0xff]
  %v1086 = vld [vmem:[%s3 + $0x2a0] sm:$0xff]
  %v1087 = vld [vmem:[%s3 + $0x2a8] sm:$0xff]
  %v1088 = vld [vmem:[%s3 + $0x2b0] sm:$0xff]
  %v1089 = vld [vmem:[%s3 + $0x2b8] sm:$0xff]
  %v1090 = vld [vmem:[%s3 + $0x2c0] sm:$0xff]
  %v1091 = vld [vmem:[%s3 + $0x2c8] sm:$0xff]
  %v1092 = vld [vmem:[%s3 + $0x2d0] sm:$0xff]
  %v1093 = vld [vmem:[%s3 + $0x2d8] sm:$0xff]
  %v1094 = vld [vmem:[%s3 + $0x2e0] sm:$0xff]
  %v1095 = vld [vmem:[%s3 + $0x2e8] sm:$0xff]
  %v1096 = vld [vmem:[%s3 + $0x2f0] sm:$0xff]
  %v1097 = vld [vmem:[%s3 + $0x2f8] sm:$0xff]
  %vm1098 = vcmp.gt.f32.partialorder %v1002, 0.0
  %vm1099 = vcmp.gt.f32.partialorder %v1003, 0.0
  %vm1100 = vcmp.gt.f32.partialorder %v1004, 0.0
  %vm1101 = vcmp.gt.f32.partialorder %v1005, 0.0
  %vm1102 = vcmp.gt.f32.partialorder %v1006, 0.0
  %vm1103 = vcmp.gt.f32.partialorder %v1007, 0.0
  %vm1104 = vcmp.gt.f32.partialorder %v1008, 0.0
  %vm1105 = vcmp.gt.f32.partialorder %v1009, 0.0
  %vm1106 = vcmp.gt.f32.partialorder %v1010, 0.0
  %vm1107 = vcmp.gt.f32.partialorder %v1011, 0.0
  %vm1108 = vcmp.gt.f32.partialorder %v1012, 0.0
  %vm1109 = vcmp.gt.f32.partialorder %v1013, 0.0
  %vm1110 = vcmp.gt.f32.partialorder %v1014, 0.0
  %vm1111 = vcmp.gt.f32.partialorder %v1015, 0.0
  %vm1112 = vcmp.gt.f32.partialorder %v1016, 0.0
  %vm1113 = vcmp.gt.f32.partialorder %v1017, 0.0
  %vm1114 = vcmp.gt.f32.partialorder %v1018, 0.0
  %vm1115 = vcmp.gt.f32.partialorder %v1019, 0.0
  %vm1116 = vcmp.gt.f32.partialorder %v1020, 0.0
  %vm1117 = vcmp.gt.f32.partialorder %v1021, 0.0
  %vm1118 = vcmp.gt.f32.partialorder %v1022, 0.0
  %vm1119 = vcmp.gt.f32.partialorder %v1023, 0.0
  %vm1120 = vcmp.gt.f32.partialorder %v1024, 0.0
  %vm1121 = vcmp.gt.f32.partialorder %v1025, 0.0
  %vm1122 = vcmp.gt.f32.partialorder %v1026, 0.0
  %vm1123 = vcmp.gt.f32.partialorder %v1027, 0.0
  %vm1124 = vcmp.gt.f32.partialorder %v1028, 0.0
  %vm1125 = vcmp.gt.f32.partialorder %v1029, 0.0
  %vm1126 = vcmp.gt.f32.partialorder %v1030, 0.0
  %vm1127 = vcmp.gt.f32.partialorder %v1031, 0.0
  %vm1128 = vcmp.gt.f32.partialorder %v1032, 0.0
  %vm1129 = vcmp.gt.f32.partialorder %v1033, 0.0
  %vm1130 = vcmp.gt.f32.partialorder %v1034, 0.0
  %vm1131 = vcmp.gt.f32.partialorder %v1035, 0.0
  %vm1132 = vcmp.gt.f32.partialorder %v1036, 0.0
  %vm1133 = vcmp.gt.f32.partialorder %v1037, 0.0
  %vm1134 = vcmp.gt.f32.partialorder %v1038, 0.0
  %vm1135 = vcmp.gt.f32.partialorder %v1039, 0.0
  %vm1136 = vcmp.gt.f32.partialorder %v1040, 0.0
  %vm1137 = vcmp.gt.f32.partialorder %v1041, 0.0
  %vm1138 = vcmp.gt.f32.partialorder %v1042, 0.0
  %vm1139 = vcmp.gt.f32.partialorder %v1043, 0.0
  %vm1140 = vcmp.gt.f32.partialorder %v1044, 0.0
  %vm1141 = vcmp.gt.f32.partialorder %v1045, 0.0
  %vm1142 = vcmp.gt.f32.partialorder %v1046, 0.0
  %vm1143 = vcmp.gt.f32.partialorder %v1047, 0.0
  %vm1144 = vcmp.gt.f32.partialorder %v1048, 0.0
  %vm1145 = vcmp.gt.f32.partialorder %v1049, 0.0
  %vm1146 = vcmp.gt.f32.partialorder %v1050, 0.0
  %vm1147 = vcmp.gt.f32.partialorder %v1051, 0.0
  %vm1148 = vcmp.gt.f32.partialorder %v1052, 0.0
  %vm1149 = vcmp.gt.f32.partialorder %v1053, 0.0
  %vm1150 = vcmp.gt.f32.partialorder %v1054, 0.0
  %vm1151 = vcmp.gt.f32.partialorder %v1055, 0.0
  %vm1152 = vcmp.gt.f32.partialorder %v1056, 0.0
  %vm1153 = vcmp.gt.f32.partialorder %v1057, 0.0
  %vm1154 = vcmp.gt.f32.partialorder %v1058, 0.0
  %vm1155 = vcmp.gt.f32.partialorder %v1059, 0.0
  %vm1156 = vcmp.gt.f32.partialorder %v1060, 0.0
  %vm1157 = vcmp.gt.f32.partialorder %v1061, 0.0
  %vm1158 = vcmp.gt.f32.partialorder %v1062, 0.0
  %vm1159 = vcmp.gt.f32.partialorder %v1063, 0.0
  %vm1160 = vcmp.gt.f32.partialorder %v1064, 0.0
  %vm1161 = vcmp.gt.f32.partialorder %v1065, 0.0
  %vm1162 = vcmp.gt.f32.partialorder %v1066, 0.0
  %vm1163 = vcmp.gt.f32.partialorder %v1067, 0.0
  %vm1164 = vcmp.gt.f32.partialorder %v1068, 0.0
  %vm1165 = vcmp.gt.f32.partialorder %v1069, 0.0
  %vm1166 = vcmp.gt.f32.partialorder %v1070, 0.0
  %vm1167 = vcmp.gt.f32.partialorder %v1071, 0.0
  %vm1168 = vcmp.gt.f32.partialorder %v1072, 0.0
  %vm1169 = vcmp.gt.f32.partialorder %v1073, 0.0
  %vm1170 = vcmp.gt.f32.partialorder %v1074, 0.0
  %vm1171 = vcmp.gt.f32.partialorder %v1075, 0.0
  %vm1172 = vcmp.gt.f32.partialorder %v1076, 0.0
  %vm1173 = vcmp.gt.f32.partialorder %v1077, 0.0
  %vm1174 = vcmp.gt.f32.partialorder %v1078, 0.0
  %vm1175 = vcmp.gt.f32.partialorder %v1079, 0.0
  %vm1176 = vcmp.gt.f32.partialorder %v1080, 0.0
  %vm1177 = vcmp.gt.f32.partialorder %v1081, 0.0
  %vm1178 = vcmp.gt.f32.partialorder %v1082, 0.0
  %vm1179 = vcmp.gt.f32.partialorder %v1083, 0.0
  %vm1180 = vcmp.gt.f32.partialorder %v1084, 0.0
  %vm1181 = vcmp.gt.f32.partialorder %v1085, 0.0
  %vm1182 = vcmp.gt.f32.partialorder %v1086, 0.0
  %vm1183 = vcmp.gt.f32.partialorder %v1087, 0.0
  %vm1184 = vcmp.gt.f32.partialorder %v1088, 0.0
  %vm1185 = vcmp.gt.f32.partialorder %v1089, 0.0
  %vm1186 = vcmp.gt.f32.partialorder %v1090, 0.0
  %vm1187 = vcmp.gt.f32.partialorder %v1091, 0.0
  %vm1188 = vcmp.gt.f32.partialorder %v1092, 0.0
  %vm1189 = vcmp.gt.f32.partialorder %v1093, 0.0
  %vm1190 = vcmp.gt.f32.partialorder %v1094, 0.0
  %vm1191 = vcmp.gt.f32.partialorder %v1095, 0.0
  %vm1192 = vcmp.gt.f32.partialorder %v1096, 0.0
  %vm1193 = vcmp.gt.f32.partialorder %v1097, 0.0
  %v1194 = vsel %vm1098, 1, 0
  %v1195 = vsel %vm1099, 1, 0
  %v1196 = vsel %vm1100, 1, 0
  %v1197 = vsel %vm1101, 1, 0
  %v1198 = vsel %vm1102, 1, 0
  %v1199 = vsel %vm1103, 1, 0
  %v1200 = vsel %vm1104, 1, 0
  %v1201 = vsel %vm1105, 1, 0
  %v1202 = vsel %vm1106, 1, 0
  %v1203 = vsel %vm1107, 1, 0
  %v1204 = vsel %vm1108, 1, 0
  %v1205 = vsel %vm1109, 1, 0
  %v1206 = vsel %vm1110, 1, 0
  %v1207 = vsel %vm1111, 1, 0
  %v1208 = vsel %vm1112, 1, 0
  %v1209 = vsel %vm1113, 1, 0
  %v1210 = vsel %vm1114, 1, 0
  %v1211 = vsel %vm1115, 1, 0
  %v1212 = vsel %vm1116, 1, 0
  %v1213 = vsel %vm1117, 1, 0
  %v1214 = vsel %vm1118, 1, 0
  %v1215 = vsel %vm1119, 1, 0
  %v1216 = vsel %vm1120, 1, 0
  %v1217 = vsel %vm1121, 1, 0
  %v1218 = vsel %vm1122, 1, 0
  %v1219 = vsel %vm1123, 1, 0
  %v1220 = vsel %vm1124, 1, 0
  %v1221 = vsel %vm1125, 1, 0
  %v1222 = vsel %vm1126, 1, 0
  %v1223 = vsel %vm1127, 1, 0
  %v1224 = vsel %vm1128, 1, 0
  %v1225 = vsel %vm1129, 1, 0
  %v1226 = vsel %vm1130, 1, 0
  %v1227 = vsel %vm1131, 1, 0
  %v1228 = vsel %vm1132, 1, 0
  %v1229 = vsel %vm1133, 1, 0
  %v1230 = vsel %vm1134, 1, 0
  %v1231 = vsel %vm1135, 1, 0
  %v1232 = vsel %vm1136, 1, 0
  %v1233 = vsel %vm1137, 1, 0
  %v1234 = vsel %vm1138, 1, 0
  %v1235 = vsel %vm1139, 1, 0
  %v1236 = vsel %vm1140, 1, 0
  %v1237 = vsel %vm1141, 1, 0
  %v1238 = vsel %vm1142, 1, 0
  %v1239 = vsel %vm1143, 1, 0
  %v1240 = vsel %vm1144, 1, 0
  %v1241 = vsel %vm1145, 1, 0
  %v1242 = vsel %vm1146, 1, 0
  %v1243 = vsel %vm1147, 1, 0
  %v1244 = vsel %vm1148, 1, 0
  %v1245 = vsel %vm1149, 1, 0
  %v1246 = vsel %vm1150, 1, 0
  %v1247 = vsel %vm1151, 1, 0
  %v1248 = vsel %vm1152, 1, 0
  %v1249 = vsel %vm1153, 1, 0
  %v1250 = vsel %vm1154, 1, 0
  %v1251 = vsel %vm1155, 1, 0
  %v1252 = vsel %vm1156, 1, 0
  %v1253 = vsel %vm1157, 1, 0
  %v1254 = vsel %vm1158, 1, 0
  %v1255 = vsel %vm1159, 1, 0
  %v1256 = vsel %vm1160, 1, 0
  %v1257 = vsel %vm1161, 1, 0
  %v1258 = vsel %vm1162, 1, 0
  %v1259 = vsel %vm1163, 1, 0
  %v1260 = vsel %vm1164, 1, 0
  %v1261 = vsel %vm1165, 1, 0
  %v1262 = vsel %vm1166, 1, 0
  %v1263 = vsel %vm1167, 1, 0
  %v1264 = vsel %vm1168, 1, 0
  %v1265 = vsel %vm1169, 1, 0
  %v1266 = vsel %vm1170, 1, 0
  %v1267 = vsel %vm1171, 1, 0
  %v1268 = vsel %vm1172, 1, 0
  %v1269 = vsel %vm1173, 1, 0
  %v1270 = vsel %vm1174, 1, 0
  %v1271 = vsel %vm1175, 1, 0
  %v1272 = vsel %vm1176, 1, 0
  %v1273 = vsel %vm1177, 1, 0
  %v1274 = vsel %vm1178, 1, 0
  %v1275 = vsel %vm1179, 1, 0
  %v1276 = vsel %vm1180, 1, 0
  %v1277 = vsel %vm1181, 1, 0
  %v1278 = vsel %vm1182, 1, 0
  %v1279 = vsel %vm1183, 1, 0
  %v1280 = vsel %vm1184, 1, 0
  %v1281 = vsel %vm1185, 1, 0
  %v1282 = vsel %vm1186, 1, 0
  %v1283 = vsel %vm1187, 1, 0
  %v1284 = vsel %vm1188, 1, 0
  %v1285 = vsel %vm1189, 1, 0
  %v1286 = vsel %vm1190, 1, 0
  %v1287 = vsel %vm1191, 1, 0
  %v1288 = vsel %vm1192, 1, 0
  %v1289 = vsel %vm1193, 1, 0
  %1290 = vset.pattern.permute.xlu0 0
  %1291 = vperm.xlu0 %1290, %v1194
  %v1292 = vpop.permute.xlu0 %1291
  %1293 = vset.pattern.permute.xlu0 0
  %1294 = vperm.xlu0 %1293, %v1195
  %v1295 = vpop.permute.xlu0 %1294
  %1296 = vset.pattern.permute.xlu0 0
  %1297 = vperm.xlu0 %1296, %v1196
  %v1298 = vpop.permute.xlu0 %1297
  %1299 = vset.pattern.permute.xlu0 0
  %1300 = vperm.xlu0 %1299, %v1197
  %v1301 = vpop.permute.xlu0 %1300
  %1302 = vset.pattern.permute.xlu0 0
  %1303 = vperm.xlu0 %1302, %v1198
  %v1304 = vpop.permute.xlu0 %1303
  %1305 = vset.pattern.permute.xlu0 0
  %1306 = vperm.xlu0 %1305, %v1199
  %v1307 = vpop.permute.xlu0 %1306
  %1308 = vset.pattern.permute.xlu0 0
  %1309 = vperm.xlu0 %1308, %v1200
  %v1310 = vpop.permute.xlu0 %1309
  %1311 = vset.pattern.permute.xlu0 0
  %1312 = vperm.xlu0 %1311, %v1201
  %v1313 = vpop.permute.xlu0 %1312
  %1314 = vset.pattern.permute.xlu0 0
  %1315 = vperm.xlu0 %1314, %v1202
  %v1316 = vpop.permute.xlu0 %1315
  %1317 = vset.pattern.permute.xlu0 0
  %1318 = vperm.xlu0 %1317, %v1203
  %v1319 = vpop.permute.xlu0 %1318
  %1320 = vset.pattern.permute.xlu0 0
  %1321 = vperm.xlu0 %1320, %v1204
  %v1322 = vpop.permute.xlu0 %1321
  %1323 = vset.pattern.permute.xlu0 0
  %1324 = vperm.xlu0 %1323, %v1205
  %v1325 = vpop.permute.xlu0 %1324
  %1326 = vset.pattern.permute.xlu0 0
  %1327 = vperm.xlu0 %1326, %v1206
  %v1328 = vpop.permute.xlu0 %1327
  %1329 = vset.pattern.permute.xlu0 0
  %1330 = vperm.xlu0 %1329, %v1207
  %v1331 = vpop.permute.xlu0 %1330
  %1332 = vset.pattern.permute.xlu0 0
  %1333 = vperm.xlu0 %1332, %v1208
  %v1334 = vpop.permute.xlu0 %1333
  %1335 = vset.pattern.permute.xlu0 0
  %1336 = vperm.xlu0 %1335, %v1209
  %v1337 = vpop.permute.xlu0 %1336
  %1338 = vset.pattern.permute.xlu0 0
  %1339 = vperm.xlu0 %1338, %v1210
  %v1340 = vpop.permute.xlu0 %1339
  %1341 = vset.pattern.permute.xlu0 0
  %1342 = vperm.xlu0 %1341, %v1211
  %v1343 = vpop.permute.xlu0 %1342
  %1344 = vset.pattern.permute.xlu0 0
  %1345 = vperm.xlu0 %1344, %v1212
  %v1346 = vpop.permute.xlu0 %1345
  %1347 = vset.pattern.permute.xlu0 0
  %1348 = vperm.xlu0 %1347, %v1213
  %v1349 = vpop.permute.xlu0 %1348
  %1350 = vset.pattern.permute.xlu0 0
  %1351 = vperm.xlu0 %1350, %v1214
  %v1352 = vpop.permute.xlu0 %1351
  %1353 = vset.pattern.permute.xlu0 0
  %1354 = vperm.xlu0 %1353, %v1215
  %v1355 = vpop.permute.xlu0 %1354
  %1356 = vset.pattern.permute.xlu0 0
  %1357 = vperm.xlu0 %1356, %v1216
  %v1358 = vpop.permute.xlu0 %1357
  %1359 = vset.pattern.permute.xlu0 0
  %1360 = vperm.xlu0 %1359, %v1217
  %v1361 = vpop.permute.xlu0 %1360
  %1362 = vset.pattern.permute.xlu0 0
  %1363 = vperm.xlu0 %1362, %v1218
  %v1364 = vpop.permute.xlu0 %1363
  %1365 = vset.pattern.permute.xlu0 0
  %1366 = vperm.xlu0 %1365, %v1219
  %v1367 = vpop.permute.xlu0 %1366
  %1368 = vset.pattern.permute.xlu0 0
  %1369 = vperm.xlu0 %1368, %v1220
  %v1370 = vpop.permute.xlu0 %1369
  %1371 = vset.pattern.permute.xlu0 0
  %1372 = vperm.xlu0 %1371, %v1221
  %v1373 = vpop.permute.xlu0 %1372
  %1374 = vset.pattern.permute.xlu0 0
  %1375 = vperm.xlu0 %1374, %v1222
  %v1376 = vpop.permute.xlu0 %1375
  %1377 = vset.pattern.permute.xlu0 0
  %1378 = vperm.xlu0 %1377, %v1223
  %v1379 = vpop.permute.xlu0 %1378
  %1380 = vset.pattern.permute.xlu0 0
  %1381 = vperm.xlu0 %1380, %v1224
  %v1382 = vpop.permute.xlu0 %1381
  %1383 = vset.pattern.permute.xlu0 0
  %1384 = vperm.xlu0 %1383, %v1225
  %v1385 = vpop.permute.xlu0 %1384
  %1386 = vset.pattern.permute.xlu0 0
  %1387 = vperm.xlu0 %1386, %v1226
  %v1388 = vpop.permute.xlu0 %1387
  %1389 = vset.pattern.permute.xlu0 0
  %1390 = vperm.xlu0 %1389, %v1227
  %v1391 = vpop.permute.xlu0 %1390
  %1392 = vset.pattern.permute.xlu0 0
  %1393 = vperm.xlu0 %1392, %v1228
  %v1394 = vpop.permute.xlu0 %1393
  %1395 = vset.pattern.permute.xlu0 0
  %1396 = vperm.xlu0 %1395, %v1229
  %v1397 = vpop.permute.xlu0 %1396
  %1398 = vset.pattern.permute.xlu0 0
  %1399 = vperm.xlu0 %1398, %v1230
  %v1400 = vpop.permute.xlu0 %1399
  %1401 = vset.pattern.permute.xlu0 0
  %1402 = vperm.xlu0 %1401, %v1231
  %v1403 = vpop.permute.xlu0 %1402
  %1404 = vset.pattern.permute.xlu0 0
  %1405 = vperm.xlu0 %1404, %v1232
  %v1406 = vpop.permute.xlu0 %1405
  %1407 = vset.pattern.permute.xlu0 0
  %1408 = vperm.xlu0 %1407, %v1233
  %v1409 = vpop.permute.xlu0 %1408
  %1410 = vset.pattern.permute.xlu0 0
  %1411 = vperm.xlu0 %1410, %v1234
  %v1412 = vpop.permute.xlu0 %1411
  %1413 = vset.pattern.permute.xlu0 0
  %1414 = vperm.xlu0 %1413, %v1235
  %v1415 = vpop.permute.xlu0 %1414
  %1416 = vset.pattern.permute.xlu0 0
  %1417 = vperm.xlu0 %1416, %v1236
  %v1418 = vpop.permute.xlu0 %1417
  %1419 = vset.pattern.permute.xlu0 0
  %1420 = vperm.xlu0 %1419, %v1237
  %v1421 = vpop.permute.xlu0 %1420
  %1422 = vset.pattern.permute.xlu0 0
  %1423 = vperm.xlu0 %1422, %v1238
  %v1424 = vpop.permute.xlu0 %1423
  %1425 = vset.pattern.permute.xlu0 0
  %1426 = vperm.xlu0 %1425, %v1239
  %v1427 = vpop.permute.xlu0 %1426
  %1428 = vset.pattern.permute.xlu0 0
  %1429 = vperm.xlu0 %1428, %v1240
  %v1430 = vpop.permute.xlu0 %1429
  %1431 = vset.pattern.permute.xlu0 0
  %1432 = vperm.xlu0 %1431, %v1241
  %v1433 = vpop.permute.xlu0 %1432
  %1434 = vset.pattern.permute.xlu0 0
  %1435 = vperm.xlu0 %1434, %v1242
  %v1436 = vpop.permute.xlu0 %1435
  %1437 = vset.pattern.permute.xlu0 0
  %1438 = vperm.xlu0 %1437, %v1243
  %v1439 = vpop.permute.xlu0 %1438
  %1440 = vset.pattern.permute.xlu0 0
  %1441 = vperm.xlu0 %1440, %v1244
  %v1442 = vpop.permute.xlu0 %1441
  %1443 = vset.pattern.permute.xlu0 0
  %1444 = vperm.xlu0 %1443, %v1245
  %v1445 = vpop.permute.xlu0 %1444
  %1446 = vset.pattern.permute.xlu0 0
  %1447 = vperm.xlu0 %1446, %v1246
  %v1448 = vpop.permute.xlu0 %1447
  %1449 = vset.pattern.permute.xlu0 0
  %1450 = vperm.xlu0 %1449, %v1247
  %v1451 = vpop.permute.xlu0 %1450
  %1452 = vset.pattern.permute.xlu0 0
  %1453 = vperm.xlu0 %1452, %v1248
  %v1454 = vpop.permute.xlu0 %1453
  %1455 = vset.pattern.permute.xlu0 0
  %1456 = vperm.xlu0 %1455, %v1249
  %v1457 = vpop.permute.xlu0 %1456
  %1458 = vset.pattern.permute.xlu0 0
  %1459 = vperm.xlu0 %1458, %v1250
  %v1460 = vpop.permute.xlu0 %1459
  %1461 = vset.pattern.permute.xlu0 0
  %1462 = vperm.xlu0 %1461, %v1251
  %v1463 = vpop.permute.xlu0 %1462
  %1464 = vset.pattern.permute.xlu0 0
  %1465 = vperm.xlu0 %1464, %v1252
  %v1466 = vpop.permute.xlu0 %1465
  %1467 = vset.pattern.permute.xlu0 0
  %1468 = vperm.xlu0 %1467, %v1253
  %v1469 = vpop.permute.xlu0 %1468
  %1470 = vset.pattern.permute.xlu0 0
  %1471 = vperm.xlu0 %1470, %v1254
  %v1472 = vpop.permute.xlu0 %1471
  %1473 = vset.pattern.permute.xlu0 0
  %1474 = vperm.xlu0 %1473, %v1255
  %v1475 = vpop.permute.xlu0 %1474
  %1476 = vset.pattern.permute.xlu0 0
  %1477 = vperm.xlu0 %1476, %v1256
  %v1478 = vpop.permute.xlu0 %1477
  %1479 = vset.pattern.permute.xlu0 0
  %1480 = vperm.xlu0 %1479, %v1257
  %v1481 = vpop.permute.xlu0 %1480
  %1482 = vset.pattern.permute.xlu0 0
  %1483 = vperm.xlu0 %1482, %v1258
  %v1484 = vpop.permute.xlu0 %1483
  %1485 = vset.pattern.permute.xlu0 0
  %1486 = vperm.xlu0 %1485, %v1259
  %v1487 = vpop.permute.xlu0 %1486
  %1488 = vset.pattern.permute.xlu0 0
  %1489 = vperm.xlu0 %1488, %v1260
  %v1490 = vpop.permute.xlu0 %1489
  %1491 = vset.pattern.permute.xlu0 0
  %1492 = vperm.xlu0 %1491, %v1261
  %v1493 = vpop.permute.xlu0 %1492
  %1494 = vset.pattern.permute.xlu0 0
  %1495 = vperm.xlu0 %1494, %v1262
  %v1496 = vpop.permute.xlu0 %1495
  %1497 = vset.pattern.permute.xlu0 0
  %1498 = vperm.xlu0 %1497, %v1263
  %v1499 = vpop.permute.xlu0 %1498
  %1500 = vset.pattern.permute.xlu0 0
  %1501 = vperm.xlu0 %1500, %v1264
  %v1502 = vpop.permute.xlu0 %1501
  %1503 = vset.pattern.permute.xlu0 0
  %1504 = vperm.xlu0 %1503, %v1265
  %v1505 = vpop.permute.xlu0 %1504
  %1506 = vset.pattern.permute.xlu0 0
  %1507 = vperm.xlu0 %1506, %v1266
  %v1508 = vpop.permute.xlu0 %1507
  %1509 = vset.pattern.permute.xlu0 0
  %1510 = vperm.xlu0 %1509, %v1267
  %v1511 = vpop.permute.xlu0 %1510
  %1512 = vset.pattern.permute.xlu0 0
  %1513 = vperm.xlu0 %1512, %v1268
  %v1514 = vpop.permute.xlu0 %1513
  %1515 = vset.pattern.permute.xlu0 0
  %1516 = vperm.xlu0 %1515, %v1269
  %v1517 = vpop.permute.xlu0 %1516
  %1518 = vset.pattern.permute.xlu0 0
  %1519 = vperm.xlu0 %1518, %v1270
  %v1520 = vpop.permute.xlu0 %1519
  %1521 = vset.pattern.permute.xlu0 0
  %1522 = vperm.xlu0 %1521, %v1271
  %v1523 = vpop.permute.xlu0 %1522
  %1524 = vset.pattern.permute.xlu0 0
  %1525 = vperm.xlu0 %1524, %v1272
  %v1526 = vpop.permute.xlu0 %1525
  %1527 = vset.pattern.permute.xlu0 0
  %1528 = vperm.xlu0 %1527, %v1273
  %v1529 = vpop.permute.xlu0 %1528
  %1530 = vset.pattern.permute.xlu0 0
  %1531 = vperm.xlu0 %1530, %v1274
  %v1532 = vpop.permute.xlu0 %1531
  %1533 = vset.pattern.permute.xlu0 0
  %1534 = vperm.xlu0 %1533, %v1275
  %v1535 = vpop.permute.xlu0 %1534
  %1536 = vset.pattern.permute.xlu0 0
  %1537 = vperm.xlu0 %1536, %v1276
  %v1538 = vpop.permute.xlu0 %1537
  %1539 = vset.pattern.permute.xlu0 0
  %1540 = vperm.xlu0 %1539, %v1277
  %v1541 = vpop.permute.xlu0 %1540
  %1542 = vset.pattern.permute.xlu0 0
  %1543 = vperm.xlu0 %1542, %v1278
  %v1544 = vpop.permute.xlu0 %1543
  %1545 = vset.pattern.permute.xlu0 0
  %1546 = vperm.xlu0 %1545, %v1279
  %v1547 = vpop.permute.xlu0 %1546
  %1548 = vset.pattern.permute.xlu0 0
  %1549 = vperm.xlu0 %1548, %v1280
  %v1550 = vpop.permute.xlu0 %1549
  %1551 = vset.pattern.permute.xlu0 0
  %1552 = vperm.xlu0 %1551, %v1281
  %v1553 = vpop.permute.xlu0 %1552
  %1554 = vset.pattern.permute.xlu0 0
  %1555 = vperm.xlu0 %1554, %v1282
  %v1556 = vpop.permute.xlu0 %1555
  %1557 = vset.pattern.permute.xlu0 0
  %1558 = vperm.xlu0 %1557, %v1283
  %v1559 = vpop.permute.xlu0 %1558
  %1560 = vset.pattern.permute.xlu0 0
  %1561 = vperm.xlu0 %1560, %v1284
  %v1562 = vpop.permute.xlu0 %1561
  %1563 = vset.pattern.permute.xlu0 0
  %1564 = vperm.xlu0 %1563, %v1285
  %v1565 = vpop.permute.xlu0 %1564
  %1566 = vset.pattern.permute.xlu0 0
  %1567 = vperm.xlu0 %1566, %v1286
  %v1568 = vpop.permute.xlu0 %1567
  %1569 = vset.pattern.permute.xlu0 0
  %1570 = vperm.xlu0 %1569, %v1287
  %v1571 = vpop.permute.xlu0 %1570
  %1572 = vset.pattern.permute.xlu0 0
  %1573 = vperm.xlu0 %1572, %v1288
  %v1574 = vpop.permute.xlu0 %1573
  %1575 = vset.pattern.permute.xlu0 0
  %1576 = vperm.xlu0 %1575, %v1289
  %v1577 = vpop.permute.xlu0 %1576
  %vm1578 = vcmp.eq.s32.totalorder %v1292, 1
  %vm1579 = vcmp.eq.s32.totalorder %v1295, 1
  %vm1580 = vcmp.eq.s32.totalorder %v1298, 1
  %vm1581 = vcmp.eq.s32.totalorder %v1301, 1
  %vm1582 = vcmp.eq.s32.totalorder %v1304, 1
  %vm1583 = vcmp.eq.s32.totalorder %v1307, 1
  %vm1584 = vcmp.eq.s32.totalorder %v1310, 1
  %vm1585 = vcmp.eq.s32.totalorder %v1313, 1
  %vm1586 = vcmp.eq.s32.totalorder %v1316, 1
  %vm1587 = vcmp.eq.s32.totalorder %v1319, 1
  %vm1588 = vcmp.eq.s32.totalorder %v1322, 1
  %vm1589 = vcmp.eq.s32.totalorder %v1325, 1
  %vm1590 = vcmp.eq.s32.totalorder %v1328, 1
  %vm1591 = vcmp.eq.s32.totalorder %v1331, 1
  %vm1592 = vcmp.eq.s32.totalorder %v1334, 1
  %vm1593 = vcmp.eq.s32.totalorder %v1337, 1
  %vm1594 = vcmp.eq.s32.totalorder %v1340, 1
  %vm1595 = vcmp.eq.s32.totalorder %v1343, 1
  %vm1596 = vcmp.eq.s32.totalorder %v1346, 1
  %vm1597 = vcmp.eq.s32.totalorder %v1349, 1
  %vm1598 = vcmp.eq.s32.totalorder %v1352, 1
  %vm1599 = vcmp.eq.s32.totalorder %v1355, 1
  %vm1600 = vcmp.eq.s32.totalorder %v1358, 1
  %vm1601 = vcmp.eq.s32.totalorder %v1361, 1
  %vm1602 = vcmp.eq.s32.totalorder %v1364, 1
  %vm1603 = vcmp.eq.s32.totalorder %v1367, 1
  %vm1604 = vcmp.eq.s32.totalorder %v1370, 1
  %vm1605 = vcmp.eq.s32.totalorder %v1373, 1
  %vm1606 = vcmp.eq.s32.totalorder %v1376, 1
  %vm1607 = vcmp.eq.s32.totalorder %v1379, 1
  %vm1608 = vcmp.eq.s32.totalorder %v1382, 1
  %vm1609 = vcmp.eq.s32.totalorder %v1385, 1
  %vm1610 = vcmp.eq.s32.totalorder %v1388, 1
  %vm1611 = vcmp.eq.s32.totalorder %v1391, 1
  %vm1612 = vcmp.eq.s32.totalorder %v1394, 1
  %vm1613 = vcmp.eq.s32.totalorder %v1397, 1
  %vm1614 = vcmp.eq.s32.totalorder %v1400, 1
  %vm1615 = vcmp.eq.s32.totalorder %v1403, 1
  %vm1616 = vcmp.eq.s32.totalorder %v1406, 1
  %vm1617 = vcmp.eq.s32.totalorder %v1409, 1
  %vm1618 = vcmp.eq.s32.totalorder %v1412, 1
  %vm1619 = vcmp.eq.s32.totalorder %v1415, 1
  %vm1620 = vcmp.eq.s32.totalorder %v1418, 1
  %vm1621 = vcmp.eq.s32.totalorder %v1421, 1
  %vm1622 = vcmp.eq.s32.totalorder %v1424, 1
  %vm1623 = vcmp.eq.s32.totalorder %v1427, 1
  %vm1624 = vcmp.eq.s32.totalorder %v1430, 1
  %vm1625 = vcmp.eq.s32.totalorder %v1433, 1
  %vm1626 = vcmp.eq.s32.totalorder %v1436, 1
  %vm1627 = vcmp.eq.s32.totalorder %v1439, 1
  %vm1628 = vcmp.eq.s32.totalorder %v1442, 1
  %vm1629 = vcmp.eq.s32.totalorder %v1445, 1
  %vm1630 = vcmp.eq.s32.totalorder %v1448, 1
  %vm1631 = vcmp.eq.s32.totalorder %v1451, 1
  %vm1632 = vcmp.eq.s32.totalorder %v1454, 1
  %vm1633 = vcmp.eq.s32.totalorder %v1457, 1
  %vm1634 = vcmp.eq.s32.totalorder %v1460, 1
  %vm1635 = vcmp.eq.s32.totalorder %v1463, 1
  %vm1636 = vcmp.eq.s32.totalorder %v1466, 1
  %vm1637 = vcmp.eq.s32.totalorder %v1469, 1
  %vm1638 = vcmp.eq.s32.totalorder %v1472, 1
  %vm1639 = vcmp.eq.s32.totalorder %v1475, 1
  %vm1640 = vcmp.eq.s32.totalorder %v1478, 1
  %vm1641 = vcmp.eq.s32.totalorder %v1481, 1
  %vm1642 = vcmp.eq.s32.totalorder %v1484, 1
  %vm1643 = vcmp.eq.s32.totalorder %v1487, 1
  %vm1644 = vcmp.eq.s32.totalorder %v1490, 1
  %vm1645 = vcmp.eq.s32.totalorder %v1493, 1
  %vm1646 = vcmp.eq.s32.totalorder %v1496, 1
  %vm1647 = vcmp.eq.s32.totalorder %v1499, 1
  %vm1648 = vcmp.eq.s32.totalorder %v1502, 1
  %vm1649 = vcmp.eq.s32.totalorder %v1505, 1
  %vm1650 = vcmp.eq.s32.totalorder %v1508, 1
  %vm1651 = vcmp.eq.s32.totalorder %v1511, 1
  %vm1652 = vcmp.eq.s32.totalorder %v1514, 1
  %vm1653 = vcmp.eq.s32.totalorder %v1517, 1
  %vm1654 = vcmp.eq.s32.totalorder %v1520, 1
  %vm1655 = vcmp.eq.s32.totalorder %v1523, 1
  %vm1656 = vcmp.eq.s32.totalorder %v1526, 1
  %vm1657 = vcmp.eq.s32.totalorder %v1529, 1
  %vm1658 = vcmp.eq.s32.totalorder %v1532, 1
  %vm1659 = vcmp.eq.s32.totalorder %v1535, 1
  %vm1660 = vcmp.eq.s32.totalorder %v1538, 1
  %vm1661 = vcmp.eq.s32.totalorder %v1541, 1
  %vm1662 = vcmp.eq.s32.totalorder %v1544, 1
  %vm1663 = vcmp.eq.s32.totalorder %v1547, 1
  %vm1664 = vcmp.eq.s32.totalorder %v1550, 1
  %vm1665 = vcmp.eq.s32.totalorder %v1553, 1
  %vm1666 = vcmp.eq.s32.totalorder %v1556, 1
  %vm1667 = vcmp.eq.s32.totalorder %v1559, 1
  %vm1668 = vcmp.eq.s32.totalorder %v1562, 1
  %vm1669 = vcmp.eq.s32.totalorder %v1565, 1
  %vm1670 = vcmp.eq.s32.totalorder %v1568, 1
  %vm1671 = vcmp.eq.s32.totalorder %v1571, 1
  %vm1672 = vcmp.eq.s32.totalorder %v1574, 1
  %vm1673 = vcmp.eq.s32.totalorder %v1577, 1
  %v1674 = vsel %vm1578, %v906, 0.0
  %v1675 = vsel %vm1579, %v907, 0.0
  %v1676 = vsel %vm1580, %v908, 0.0
  %v1677 = vsel %vm1581, %v909, 0.0
  %v1678 = vsel %vm1582, %v910, 0.0
  %v1679 = vsel %vm1583, %v911, 0.0
  %v1680 = vsel %vm1584, %v912, 0.0
  %v1681 = vsel %vm1585, %v913, 0.0
  %v1682 = vsel %vm1586, %v914, 0.0
  %v1683 = vsel %vm1587, %v915, 0.0
  %v1684 = vsel %vm1588, %v916, 0.0
  %v1685 = vsel %vm1589, %v917, 0.0
  %v1686 = vsel %vm1590, %v918, 0.0
  %v1687 = vsel %vm1591, %v919, 0.0
  %v1688 = vsel %vm1592, %v920, 0.0
  %v1689 = vsel %vm1593, %v921, 0.0
  %v1690 = vsel %vm1594, %v922, 0.0
  %v1691 = vsel %vm1595, %v923, 0.0
  %v1692 = vsel %vm1596, %v924, 0.0
  %v1693 = vsel %vm1597, %v925, 0.0
  %v1694 = vsel %vm1598, %v926, 0.0
  %v1695 = vsel %vm1599, %v927, 0.0
  %v1696 = vsel %vm1600, %v928, 0.0
  %v1697 = vsel %vm1601, %v929, 0.0
  %v1698 = vsel %vm1602, %v930, 0.0
  %v1699 = vsel %vm1603, %v931, 0.0
  %v1700 = vsel %vm1604, %v932, 0.0
  %v1701 = vsel %vm1605, %v933, 0.0
  %v1702 = vsel %vm1606, %v934, 0.0
  %v1703 = vsel %vm1607, %v935, 0.0
  %v1704 = vsel %vm1608, %v936, 0.0
  %v1705 = vsel %vm1609, %v937, 0.0
  %v1706 = vsel %vm1610, %v938, 0.0
  %v1707 = vsel %vm1611, %v939, 0.0
  %v1708 = vsel %vm1612, %v940, 0.0
  %v1709 = vsel %vm1613, %v941, 0.0
  %v1710 = vsel %vm1614, %v942, 0.0
  %v1711 = vsel %vm1615, %v943, 0.0
  %v1712 = vsel %vm1616, %v944, 0.0
  %v1713 = vsel %vm1617, %v945, 0.0
  %v1714 = vsel %vm1618, %v946, 0.0
  %v1715 = vsel %vm1619, %v947, 0.0
  %v1716 = vsel %vm1620, %v948, 0.0
  %v1717 = vsel %vm1621, %v949, 0.0
  %v1718 = vsel %vm1622, %v950, 0.0
  %v1719 = vsel %vm1623, %v951, 0.0
  %v1720 = vsel %vm1624, %v952, 0.0
  %v1721 = vsel %vm1625, %v953, 0.0
  %v1722 = vsel %vm1626, %v954, 0.0
  %v1723 = vsel %vm1627, %v955, 0.0
  %v1724 = vsel %vm1628, %v956, 0.0
  %v1725 = vsel %vm1629, %v957, 0.0
  %v1726 = vsel %vm1630, %v958, 0.0
  %v1727 = vsel %vm1631, %v959, 0.0
  %v1728 = vsel %vm1632, %v960, 0.0
  %v1729 = vsel %vm1633, %v961, 0.0
  %v1730 = vsel %vm1634, %v962, 0.0
  %v1731 = vsel %vm1635, %v963, 0.0
  %v1732 = vsel %vm1636, %v964, 0.0
  %v1733 = vsel %vm1637, %v965, 0.0
  %v1734 = vsel %vm1638, %v966, 0.0
  %v1735 = vsel %vm1639, %v967, 0.0
  %v1736 = vsel %vm1640, %v968, 0.0
  %v1737 = vsel %vm1641, %v969, 0.0
  %v1738 = vsel %vm1642, %v970, 0.0
  %v1739 = vsel %vm1643, %v971, 0.0
  %v1740 = vsel %vm1644, %v972, 0.0
  %v1741 = vsel %vm1645, %v973, 0.0
  %v1742 = vsel %vm1646, %v974, 0.0
  %v1743 = vsel %vm1647, %v975, 0.0
  %v1744 = vsel %vm1648, %v976, 0.0
  %v1745 = vsel %vm1649, %v977, 0.0
  %v1746 = vsel %vm1650, %v978, 0.0
  %v1747 = vsel %vm1651, %v979, 0.0
  %v1748 = vsel %vm1652, %v980, 0.0
  %v1749 = vsel %vm1653, %v981, 0.0
  %v1750 = vsel %vm1654, %v982, 0.0
  %v1751 = vsel %vm1655, %v983, 0.0
  %v1752 = vsel %vm1656, %v984, 0.0
  %v1753 = vsel %vm1657, %v985, 0.0
  %v1754 = vsel %vm1658, %v986, 0.0
  %v1755 = vsel %vm1659, %v987, 0.0
  %v1756 = vsel %vm1660, %v988, 0.0
  %v1757 = vsel %vm1661, %v989, 0.0
  %v1758 = vsel %vm1662, %v990, 0.0
  %v1759 = vsel %vm1663, %v991, 0.0
  %v1760 = vsel %vm1664, %v992, 0.0
  %v1761 = vsel %vm1665, %v993, 0.0
  %v1762 = vsel %vm1666, %v994, 0.0
  %v1763 = vsel %vm1667, %v995, 0.0
  %v1764 = vsel %vm1668, %v996, 0.0
  %v1765 = vsel %vm1669, %v997, 0.0
  %v1766 = vsel %vm1670, %v998, 0.0
  %v1767 = vsel %vm1671, %v999, 0.0
  %v1768 = vsel %vm1672, %v1000, 0.0
  %v1769 = vsel %vm1673, %v1001, 0.0
  %v1770 = vpack.c.bf16 %v1674, %v1674
  %v1771 = vpack.c.bf16 %v1675, %v1675
  %v1772 = vpack.c.bf16 %v1676, %v1676
  %v1773 = vpack.c.bf16 %v1677, %v1677
  %v1774 = vpack.c.bf16 %v1678, %v1678
  %v1775 = vpack.c.bf16 %v1679, %v1679
  %v1776 = vpack.c.bf16 %v1680, %v1680
  %v1777 = vpack.c.bf16 %v1681, %v1681
  %v1778 = vpack.c.bf16 %v1682, %v1682
  %v1779 = vpack.c.bf16 %v1683, %v1683
  %v1780 = vpack.c.bf16 %v1684, %v1684
  %v1781 = vpack.c.bf16 %v1685, %v1685
  %v1782 = vpack.c.bf16 %v1686, %v1686
  %v1783 = vpack.c.bf16 %v1687, %v1687
  %v1784 = vpack.c.bf16 %v1688, %v1688
  %v1785 = vpack.c.bf16 %v1689, %v1689
  %v1786 = vpack.c.bf16 %v1690, %v1690
  %v1787 = vpack.c.bf16 %v1691, %v1691
  %v1788 = vpack.c.bf16 %v1692, %v1692
  %v1789 = vpack.c.bf16 %v1693, %v1693
  %v1790 = vpack.c.bf16 %v1694, %v1694
  %v1791 = vpack.c.bf16 %v1695, %v1695
  %v1792 = vpack.c.bf16 %v1696, %v1696
  %v1793 = vpack.c.bf16 %v1697, %v1697
  %v1794 = vpack.c.bf16 %v1698, %v1698
  %v1795 = vpack.c.bf16 %v1699, %v1699
  %v1796 = vpack.c.bf16 %v1700, %v1700
  %v1797 = vpack.c.bf16 %v1701, %v1701
  %v1798 = vpack.c.bf16 %v1702, %v1702
  %v1799 = vpack.c.bf16 %v1703, %v1703
  %v1800 = vpack.c.bf16 %v1704, %v1704
  %v1801 = vpack.c.bf16 %v1705, %v1705
  %v1802 = vpack.c.bf16 %v1706, %v1706
  %v1803 = vpack.c.bf16 %v1707, %v1707
  %v1804 = vpack.c.bf16 %v1708, %v1708
  %v1805 = vpack.c.bf16 %v1709, %v1709
  %v1806 = vpack.c.bf16 %v1710, %v1710
  %v1807 = vpack.c.bf16 %v1711, %v1711
  %v1808 = vpack.c.bf16 %v1712, %v1712
  %v1809 = vpack.c.bf16 %v1713, %v1713
  %v1810 = vpack.c.bf16 %v1714, %v1714
  %v1811 = vpack.c.bf16 %v1715, %v1715
  %v1812 = vpack.c.bf16 %v1716, %v1716
  %v1813 = vpack.c.bf16 %v1717, %v1717
  %v1814 = vpack.c.bf16 %v1718, %v1718
  %v1815 = vpack.c.bf16 %v1719, %v1719
  %v1816 = vpack.c.bf16 %v1720, %v1720
  %v1817 = vpack.c.bf16 %v1721, %v1721
  %v1818 = vpack.c.bf16 %v1722, %v1722
  %v1819 = vpack.c.bf16 %v1723, %v1723
  %v1820 = vpack.c.bf16 %v1724, %v1724
  %v1821 = vpack.c.bf16 %v1725, %v1725
  %v1822 = vpack.c.bf16 %v1726, %v1726
  %v1823 = vpack.c.bf16 %v1727, %v1727
  %v1824 = vpack.c.bf16 %v1728, %v1728
  %v1825 = vpack.c.bf16 %v1729, %v1729
  %v1826 = vpack.c.bf16 %v1730, %v1730
  %v1827 = vpack.c.bf16 %v1731, %v1731
  %v1828 = vpack.c.bf16 %v1732, %v1732
  %v1829 = vpack.c.bf16 %v1733, %v1733
  %v1830 = vpack.c.bf16 %v1734, %v1734
  %v1831 = vpack.c.bf16 %v1735, %v1735
  %v1832 = vpack.c.bf16 %v1736, %v1736
  %v1833 = vpack.c.bf16 %v1737, %v1737
  %v1834 = vpack.c.bf16 %v1738, %v1738
  %v1835 = vpack.c.bf16 %v1739, %v1739
  %v1836 = vpack.c.bf16 %v1740, %v1740
  %v1837 = vpack.c.bf16 %v1741, %v1741
  %v1838 = vpack.c.bf16 %v1742, %v1742
  %v1839 = vpack.c.bf16 %v1743, %v1743
  %v1840 = vpack.c.bf16 %v1744, %v1744
  %v1841 = vpack.c.bf16 %v1745, %v1745
  %v1842 = vpack.c.bf16 %v1746, %v1746
  %v1843 = vpack.c.bf16 %v1747, %v1747
  %v1844 = vpack.c.bf16 %v1748, %v1748
  %v1845 = vpack.c.bf16 %v1749, %v1749
  %v1846 = vpack.c.bf16 %v1750, %v1750
  %v1847 = vpack.c.bf16 %v1751, %v1751
  %v1848 = vpack.c.bf16 %v1752, %v1752
  %v1849 = vpack.c.bf16 %v1753, %v1753
  %v1850 = vpack.c.bf16 %v1754, %v1754
  %v1851 = vpack.c.bf16 %v1755, %v1755
  %v1852 = vpack.c.bf16 %v1756, %v1756
  %v1853 = vpack.c.bf16 %v1757, %v1757
  %v1854 = vpack.c.bf16 %v1758, %v1758
  %v1855 = vpack.c.bf16 %v1759, %v1759
  %v1856 = vpack.c.bf16 %v1760, %v1760
  %v1857 = vpack.c.bf16 %v1761, %v1761
  %v1858 = vpack.c.bf16 %v1762, %v1762
  %v1859 = vpack.c.bf16 %v1763, %v1763
  %v1860 = vpack.c.bf16 %v1764, %v1764
  %v1861 = vpack.c.bf16 %v1765, %v1765
  %v1862 = vpack.c.bf16 %v1766, %v1766
  %v1863 = vpack.c.bf16 %v1767, %v1767
  %v1864 = vpack.c.bf16 %v1768, %v1768
  %v1865 = vpack.c.bf16 %v1769, %v1769
  %1866 = vst [vmem:[%s7] sm:$0xf] %v1770
  %1867 = vst [vmem:[%s7 + $0x4] sm:$0xf] %v1771
  %1868 = vst [vmem:[%s7 + $0x8] sm:$0xf] %v1772
  %1869 = vst [vmem:[%s7 + $0xc] sm:$0xf] %v1773
  %1870 = vst [vmem:[%s7 + $0x10] sm:$0xf] %v1774
  %1871 = vst [vmem:[%s7 + $0x14] sm:$0xf] %v1775
  %1872 = vst [vmem:[%s7 + $0x18] sm:$0xf] %v1776
  %1873 = vst [vmem:[%s7 + $0x1c] sm:$0xf] %v1777
  %1874 = vst [vmem:[%s7 + $0x20] sm:$0xf] %v1778
  %1875 = vst [vmem:[%s7 + $0x24] sm:$0xf] %v1779
  %1876 = vst [vmem:[%s7 + $0x28] sm:$0xf] %v1780
  %1877 = vst [vmem:[%s7 + $0x2c] sm:$0xf] %v1781
  %1878 = vst [vmem:[%s7 + $0x30] sm:$0xf] %v1782
  %1879 = vst [vmem:[%s7 + $0x34] sm:$0xf] %v1783
  %1880 = vst [vmem:[%s7 + $0x38] sm:$0xf] %v1784
  %1881 = vst [vmem:[%s7 + $0x3c] sm:$0xf] %v1785
  %1882 = vst [vmem:[%s7 + $0x40] sm:$0xf] %v1786
  %1883 = vst [vmem:[%s7 + $0x44] sm:$0xf] %v1787
  %1884 = vst [vmem:[%s7 + $0x48] sm:$0xf] %v1788
  %1885 = vst [vmem:[%s7 + $0x4c] sm:$0xf] %v1789
  %1886 = vst [vmem:[%s7 + $0x50] sm:$0xf] %v1790
  %1887 = vst [vmem:[%s7 + $0x54] sm:$0xf] %v1791
  %1888 = vst [vmem:[%s7 + $0x58] sm:$0xf] %v1792
  %1889 = vst [vmem:[%s7 + $0x5c] sm:$0xf] %v1793
  %1890 = vst [vmem:[%s7 + $0x60] sm:$0xf] %v1794
  %1891 = vst [vmem:[%s7 + $0x64] sm:$0xf] %v1795
  %1892 = vst [vmem:[%s7 + $0x68] sm:$0xf] %v1796
  %1893 = vst [vmem:[%s7 + $0x6c] sm:$0xf] %v1797
  %1894 = vst [vmem:[%s7 + $0x70] sm:$0xf] %v1798
  %1895 = vst [vmem:[%s7 + $0x74] sm:$0xf] %v1799
  %1896 = vst [vmem:[%s7 + $0x78] sm:$0xf] %v1800
  %1897 = vst [vmem:[%s7 + $0x7c] sm:$0xf] %v1801
  %1898 = vst [vmem:[%s7 + $0x80] sm:$0xf] %v1802
  %1899 = vst [vmem:[%s7 + $0x84] sm:$0xf] %v1803
  %1900 = vst [vmem:[%s7 + $0x88] sm:$0xf] %v1804
  %1901 = vst [vmem:[%s7 + $0x8c] sm:$0xf] %v1805
  %1902 = vst [vmem:[%s7 + $0x90] sm:$0xf] %v1806
  %1903 = vst [vmem:[%s7 + $0x94] sm:$0xf] %v1807
  %1904 = vst [vmem:[%s7 + $0x98] sm:$0xf] %v1808
  %1905 = vst [vmem:[%s7 + $0x9c] sm:$0xf] %v1809
  %1906 = vst [vmem:[%s7 + $0xa0] sm:$0xf] %v1810
  %1907 = vst [vmem:[%s7 + $0xa4] sm:$0xf] %v1811
  %1908 = vst [vmem:[%s7 + $0xa8] sm:$0xf] %v1812
  %1909 = vst [vmem:[%s7 + $0xac] sm:$0xf] %v1813
  %1910 = vst [vmem:[%s7 + $0xb0] sm:$0xf] %v1814
  %1911 = vst [vmem:[%s7 + $0xb4] sm:$0xf] %v1815
  %1912 = vst [vmem:[%s7 + $0xb8] sm:$0xf] %v1816
  %1913 = vst [vmem:[%s7 + $0xbc] sm:$0xf] %v1817
  %1914 = vst [vmem:[%s7 + $0xc0] sm:$0xf] %v1818
  %1915 = vst [vmem:[%s7 + $0xc4] sm:$0xf] %v1819
  %1916 = vst [vmem:[%s7 + $0xc8] sm:$0xf] %v1820
  %1917 = vst [vmem:[%s7 + $0xcc] sm:$0xf] %v1821
  %1918 = vst [vmem:[%s7 + $0xd0] sm:$0xf] %v1822
  %1919 = vst [vmem:[%s7 + $0xd4] sm:$0xf] %v1823
  %1920 = vst [vmem:[%s7 + $0xd8] sm:$0xf] %v1824
  %1921 = vst [vmem:[%s7 + $0xdc] sm:$0xf] %v1825
  %1922 = vst [vmem:[%s7 + $0xe0] sm:$0xf] %v1826
  %1923 = vst [vmem:[%s7 + $0xe4] sm:$0xf] %v1827
  %1924 = vst [vmem:[%s7 + $0xe8] sm:$0xf] %v1828
  %1925 = vst [vmem:[%s7 + $0xec] sm:$0xf] %v1829
  %1926 = vst [vmem:[%s7 + $0xf0] sm:$0xf] %v1830
  %1927 = vst [vmem:[%s7 + $0xf4] sm:$0xf] %v1831
  %1928 = vst [vmem:[%s7 + $0xf8] sm:$0xf] %v1832
  %1929 = vst [vmem:[%s7 + $0xfc] sm:$0xf] %v1833
  %1930 = vst [vmem:[%s7 + $0x100] sm:$0xf] %v1834
  %1931 = vst [vmem:[%s7 + $0x104] sm:$0xf] %v1835
  %1932 = vst [vmem:[%s7 + $0x108] sm:$0xf] %v1836
  %1933 = vst [vmem:[%s7 + $0x10c] sm:$0xf] %v1837
  %1934 = vst [vmem:[%s7 + $0x110] sm:$0xf] %v1838
  %1935 = vst [vmem:[%s7 + $0x114] sm:$0xf] %v1839
  %1936 = vst [vmem:[%s7 + $0x118] sm:$0xf] %v1840
  %1937 = vst [vmem:[%s7 + $0x11c] sm:$0xf] %v1841
  %1938 = vst [vmem:[%s7 + $0x120] sm:$0xf] %v1842
  %1939 = vst [vmem:[%s7 + $0x124] sm:$0xf] %v1843
  %1940 = vst [vmem:[%s7 + $0x128] sm:$0xf] %v1844
  %1941 = vst [vmem:[%s7 + $0x12c] sm:$0xf] %v1845
  %1942 = vst [vmem:[%s7 + $0x130] sm:$0xf] %v1846
  %1943 = vst [vmem:[%s7 + $0x134] sm:$0xf] %v1847
  %1944 = vst [vmem:[%s7 + $0x138] sm:$0xf] %v1848
  %1945 = vst [vmem:[%s7 + $0x13c] sm:$0xf] %v1849
  %1946 = vst [vmem:[%s7 + $0x140] sm:$0xf] %v1850
  %1947 = vst [vmem:[%s7 + $0x144] sm:$0xf] %v1851
  %1948 = vst [vmem:[%s7 + $0x148] sm:$0xf] %v1852
  %1949 = vst [vmem:[%s7 + $0x14c] sm:$0xf] %v1853
  %1950 = vst [vmem:[%s7 + $0x150] sm:$0xf] %v1854
  %1951 = vst [vmem:[%s7 + $0x154] sm:$0xf] %v1855
  %1952 = vst [vmem:[%s7 + $0x158] sm:$0xf] %v1856
  %1953 = vst [vmem:[%s7 + $0x15c] sm:$0xf] %v1857
  %1954 = vst [vmem:[%s7 + $0x160] sm:$0xf] %v1858
  %1955 = vst [vmem:[%s7 + $0x164] sm:$0xf] %v1859
  %1956 = vst [vmem:[%s7 + $0x168] sm:$0xf] %v1860
  %1957 = vst [vmem:[%s7 + $0x16c] sm:$0xf] %v1861
  %1958 = vst [vmem:[%s7 + $0x170] sm:$0xf] %v1862
  %1959 = vst [vmem:[%s7 + $0x174] sm:$0xf] %v1863
  %1960 = vst [vmem:[%s7 + $0x178] sm:$0xf] %v1864
  %1961 = vst [vmem:[%s7 + $0x17c] sm:$0xf] %v1865
  // Predicated region
  $region30: #{basic_block_forward.7} parent=0 // pred_check
    _
  $region31: #{basic_block_forward.7} parent=0 // pred_check_branch
    %1963 = sbr.rel (0) target = $region33
  $region32: #{basic_block_forward.7} parent=0 // pred_region
    _
  $region33: #{basic_block_forward.7} parent=0 // pred_fallthru
    _
  // Predicated region
  $region34: #{basic_block_forward.7} parent=0 // pred_check
    _
  $region35: #{basic_block_forward.7} parent=0 // pred_check_branch
    %1965 = sbr.rel (0) target = $region37
  $region36: #{basic_block_forward.7} parent=0 // pred_region
    _
  $region37: #{basic_block_forward.7} parent=0 // pred_fallthru
    _

// kernel: basic_block_forward.5
$region0: #{basic_block_forward.5}
  #allocation0 [shape = 'u32[]', space=smem, size = 0x4, offset = 0x4, fixed_abs, tag = 'smem constant byte address 0x4 - core index']
  #allocation1 [shape = 'u32[72,128]{1,0:T(1,128)}', space=vmem, size = 0x9000, scoped, tag = 'internal scratch']
  %s0 = inlined_call_operand.vmem [shape: bf16[768,128], index: 0, kind: input, shape index: {}]
  %s1 = inlined_call_operand.vmem [shape: f32[1,128], index: 1, kind: input, shape index: {}]
  %s2 = inlined_call_operand.vmem [shape: f32[1,128], index: 2, kind: input, shape index: {}]
  %s3 = inlined_call_operand.vmem [shape: f32[768,1], index: 3, kind: input, shape index: {}]
  %s4 = inlined_call_operand.vmem [shape: bf16[768,128], index: 4, kind: output, shape index: {}]
  %s5 = sld [smem:[#allocation0]]
  $region26: #{basic_block_forward.5} parent=0
    _
  %s7 = ssub.s32 1, %s5
  %s8 = scalar_select 0, %s7, %s5
  // Predicated region
  $region2: #{basic_block_forward.5} parent=0 // pred_check
    _
  $region3: #{basic_block_forward.5} parent=0 // pred_check_branch
    %10 = sbr.rel (0) target = $region5
  $region4: #{basic_block_forward.5} parent=0 // pred_region
    _
  $region5: #{basic_block_forward.5} parent=0 // pred_fallthru
    _
  // Predicated region
  $region6: #{basic_block_forward.5} parent=0 // pred_check
    _
  $region7: #{basic_block_forward.5} parent=0 // pred_check_branch
    %12 = sbr.rel (0) target = $region9
  $region8: #{basic_block_forward.5} parent=0 // pred_region
    _
  $region9: #{basic_block_forward.5} parent=0 // pred_fallthru
    _
  // Predicated region
  $region10: #{basic_block_forward.5} parent=0 // pred_check
    _
  $region11: #{basic_block_forward.5} parent=0 // pred_check_branch
    %14 = sbr.rel (0) target = $region13
  $region12: #{basic_block_forward.5} parent=0 // pred_region
    _
  $region13: #{basic_block_forward.5} parent=0 // pred_fallthru
    _
  // Predicated region
  $region14: #{basic_block_forward.5} parent=0 // pred_check
    _
  $region15: #{basic_block_forward.5} parent=0 // pred_check_branch
    %16 = sbr.rel (0) target = $region17
  $region16: #{basic_block_forward.5} parent=0 // pred_region
    _
  $region17: #{basic_block_forward.5} parent=0 // pred_fallthru
    _
  %v17 = vld [vmem:[%s0] sm:$0xf]
  %v18 = vld [vmem:[%s0 + $0x4] sm:$0xf]
  %v19 = vld [vmem:[%s0 + $0x8] sm:$0xf]
  %v20 = vld [vmem:[%s0 + $0xc] sm:$0xf]
  %v21 = vld [vmem:[%s0 + $0x10] sm:$0xf]
  %v22 = vld [vmem:[%s0 + $0x14] sm:$0xf]
  %v23 = vld [vmem:[%s0 + $0x18] sm:$0xf]
  %v24 = vld [vmem:[%s0 + $0x1c] sm:$0xf]
  %v25 = vld [vmem:[%s0 + $0x20] sm:$0xf]
  %v26 = vld [vmem:[%s0 + $0x24] sm:$0xf]
  %v27 = vld [vmem:[%s0 + $0x28] sm:$0xf]
  %v28 = vld [vmem:[%s0 + $0x2c] sm:$0xf]
  %v29 = vld [vmem:[%s0 + $0x30] sm:$0xf]
  %v30 = vld [vmem:[%s0 + $0x34] sm:$0xf]
  %v31 = vld [vmem:[%s0 + $0x38] sm:$0xf]
  %v32 = vld [vmem:[%s0 + $0x3c] sm:$0xf]
  %v33 = vld [vmem:[%s0 + $0x40] sm:$0xf]
  %v34 = vld [vmem:[%s0 + $0x44] sm:$0xf]
  %v35 = vld [vmem:[%s0 + $0x48] sm:$0xf]
  %v36 = vld [vmem:[%s0 + $0x4c] sm:$0xf]
  %v37 = vld [vmem:[%s0 + $0x50] sm:$0xf]
  %v38 = vld [vmem:[%s0 + $0x54] sm:$0xf]
  %v39 = vld [vmem:[%s0 + $0x58] sm:$0xf]
  %v40 = vld [vmem:[%s0 + $0x5c] sm:$0xf]
  %v41 = vld [vmem:[%s0 + $0x60] sm:$0xf]
  %v42 = vld [vmem:[%s0 + $0x64] sm:$0xf]
  %v43 = vld [vmem:[%s0 + $0x68] sm:$0xf]
  %v44 = vld [vmem:[%s0 + $0x6c] sm:$0xf]
  %v45 = vld [vmem:[%s0 + $0x70] sm:$0xf]
  %v46 = vld [vmem:[%s0 + $0x74] sm:$0xf]
  %v47 = vld [vmem:[%s0 + $0x78] sm:$0xf]
  %v48 = vld [vmem:[%s0 + $0x7c] sm:$0xf]
  %v49 = vld [vmem:[%s0 + $0x80] sm:$0xf]
  %v50 = vld [vmem:[%s0 + $0x84] sm:$0xf]
  %v51 = vld [vmem:[%s0 + $0x88] sm:$0xf]
  %v52 = vld [vmem:[%s0 + $0x8c] sm:$0xf]
  %v53 = vld [vmem:[%s0 + $0x90] sm:$0xf]
  %v54 = vld [vmem:[%s0 + $0x94] sm:$0xf]
  %v55 = vld [vmem:[%s0 + $0x98] sm:$0xf]
  %v56 = vld [vmem:[%s0 + $0x9c] sm:$0xf]
  %v57 = vld [vmem:[%s0 + $0xa0] sm:$0xf]
  %v58 = vld [vmem:[%s0 + $0xa4] sm:$0xf]
  %v59 = vld [vmem:[%s0 + $0xa8] sm:$0xf]
  %v60 = vld [vmem:[%s0 + $0xac] sm:$0xf]
  %v61 = vld [vmem:[%s0 + $0xb0] sm:$0xf]
  %v62 = vld [vmem:[%s0 + $0xb4] sm:$0xf]
  %v63 = vld [vmem:[%s0 + $0xb8] sm:$0xf]
  %v64 = vld [vmem:[%s0 + $0xbc] sm:$0xf]
  %v65 = vld [vmem:[%s0 + $0xc0] sm:$0xf]
  %v66 = vld [vmem:[%s0 + $0xc4] sm:$0xf]
  %v67 = vld [vmem:[%s0 + $0xc8] sm:$0xf]
  %v68 = vld [vmem:[%s0 + $0xcc] sm:$0xf]
  %v69 = vld [vmem:[%s0 + $0xd0] sm:$0xf]
  %v70 = vld [vmem:[%s0 + $0xd4] sm:$0xf]
  %v71 = vld [vmem:[%s0 + $0xd8] sm:$0xf]
  %v72 = vld [vmem:[%s0 + $0xdc] sm:$0xf]
  %v73 = vld [vmem:[%s0 + $0xe0] sm:$0xf]
  %v74 = vld [vmem:[%s0 + $0xe4] sm:$0xf]
  %v75 = vld [vmem:[%s0 + $0xe8] sm:$0xf]
  %v76 = vld [vmem:[%s0 + $0xec] sm:$0xf]
  %v77 = vld [vmem:[%s0 + $0xf0] sm:$0xf]
  %v78 = vld [vmem:[%s0 + $0xf4] sm:$0xf]
  %v79 = vld [vmem:[%s0 + $0xf8] sm:$0xf]
  %v80 = vld [vmem:[%s0 + $0xfc] sm:$0xf]
  %v81 = vld [vmem:[%s0 + $0x100] sm:$0xf]
  %v82 = vld [vmem:[%s0 + $0x104] sm:$0xf]
  %v83 = vld [vmem:[%s0 + $0x108] sm:$0xf]
  %v84 = vld [vmem:[%s0 + $0x10c] sm:$0xf]
  %v85 = vld [vmem:[%s0 + $0x110] sm:$0xf]
  %v86 = vld [vmem:[%s0 + $0x114] sm:$0xf]
  %v87 = vld [vmem:[%s0 + $0x118] sm:$0xf]
  %v88 = vld [vmem:[%s0 + $0x11c] sm:$0xf]
  %v89 = vld [vmem:[%s0 + $0x120] sm:$0xf]
  %v90 = vld [vmem:[%s0 + $0x124] sm:$0xf]
  %v91 = vld [vmem:[%s0 + $0x128] sm:$0xf]
  %v92 = vld [vmem:[%s0 + $0x12c] sm:$0xf]
  %v93 = vld [vmem:[%s0 + $0x130] sm:$0xf]
  %v94 = vld [vmem:[%s0 + $0x134] sm:$0xf]
  %v95 = vld [vmem:[%s0 + $0x138] sm:$0xf]
  %v96 = vld [vmem:[%s0 + $0x13c] sm:$0xf]
  %v97 = vld [vmem:[%s0 + $0x140] sm:$0xf]
  %v98 = vld [vmem:[%s0 + $0x144] sm:$0xf]
  %v99 = vld [vmem:[%s0 + $0x148] sm:$0xf]
  %v100 = vld [vmem:[%s0 + $0x14c] sm:$0xf]
  %v101 = vld [vmem:[%s0 + $0x150] sm:$0xf]
  %v102 = vld [vmem:[%s0 + $0x154] sm:$0xf]
  %v103 = vld [vmem:[%s0 + $0x158] sm:$0xf]
  %v104 = vld [vmem:[%s0 + $0x15c] sm:$0xf]
  %v105 = vld [vmem:[%s0 + $0x160] sm:$0xf]
  %v106 = vld [vmem:[%s0 + $0x164] sm:$0xf]
  %v107 = vld [vmem:[%s0 + $0x168] sm:$0xf]
  %v108 = vld [vmem:[%s0 + $0x16c] sm:$0xf]
  %v109 = vld [vmem:[%s0 + $0x170] sm:$0xf]
  %v110 = vld [vmem:[%s0 + $0x174] sm:$0xf]
  %v111 = vld [vmem:[%s0 + $0x178] sm:$0xf]
  %v112 = vld [vmem:[%s0 + $0x17c] sm:$0xf]
  %v113 = vunpack.c.l.bf16 %v17
  %v114 = vunpack.c.l.bf16 %v18
  %v115 = vunpack.c.l.bf16 %v19
  %v116 = vunpack.c.l.bf16 %v20
  %v117 = vunpack.c.l.bf16 %v21
  %v118 = vunpack.c.l.bf16 %v22
  %v119 = vunpack.c.l.bf16 %v23
  %v120 = vunpack.c.l.bf16 %v24
  %v121 = vunpack.c.l.bf16 %v25
  %v122 = vunpack.c.l.bf16 %v26
  %v123 = vunpack.c.l.bf16 %v27
  %v124 = vunpack.c.l.bf16 %v28
  %v125 = vunpack.c.l.bf16 %v29
  %v126 = vunpack.c.l.bf16 %v30
  %v127 = vunpack.c.l.bf16 %v31
  %v128 = vunpack.c.l.bf16 %v32
  %v129 = vunpack.c.l.bf16 %v33
  %v130 = vunpack.c.l.bf16 %v34
  %v131 = vunpack.c.l.bf16 %v35
  %v132 = vunpack.c.l.bf16 %v36
  %v133 = vunpack.c.l.bf16 %v37
  %v134 = vunpack.c.l.bf16 %v38
  %v135 = vunpack.c.l.bf16 %v39
  %v136 = vunpack.c.l.bf16 %v40
  %v137 = vunpack.c.l.bf16 %v41
  %v138 = vunpack.c.l.bf16 %v42
  %v139 = vunpack.c.l.bf16 %v43
  %v140 = vunpack.c.l.bf16 %v44
  %v141 = vunpack.c.l.bf16 %v45
  %v142 = vunpack.c.l.bf16 %v46
  %v143 = vunpack.c.l.bf16 %v47
  %v144 = vunpack.c.l.bf16 %v48
  %v145 = vunpack.c.l.bf16 %v49
  %v146 = vunpack.c.l.bf16 %v50
  %v147 = vunpack.c.l.bf16 %v51
  %v148 = vunpack.c.l.bf16 %v52
  %v149 = vunpack.c.l.bf16 %v53
  %v150 = vunpack.c.l.bf16 %v54
  %v151 = vunpack.c.l.bf16 %v55
  %v152 = vunpack.c.l.bf16 %v56
  %v153 = vunpack.c.l.bf16 %v57
  %v154 = vunpack.c.l.bf16 %v58
  %v155 = vunpack.c.l.bf16 %v59
  %v156 = vunpack.c.l.bf16 %v60
  %v157 = vunpack.c.l.bf16 %v61
  %v158 = vunpack.c.l.bf16 %v62
  %v159 = vunpack.c.l.bf16 %v63
  %v160 = vunpack.c.l.bf16 %v64
  %v161 = vunpack.c.l.bf16 %v65
  %v162 = vunpack.c.l.bf16 %v66
  %v163 = vunpack.c.l.bf16 %v67
  %v164 = vunpack.c.l.bf16 %v68
  %v165 = vunpack.c.l.bf16 %v69
  %v166 = vunpack.c.l.bf16 %v70
  %v167 = vunpack.c.l.bf16 %v71
  %v168 = vunpack.c.l.bf16 %v72
  %v169 = vunpack.c.l.bf16 %v73
  %v170 = vunpack.c.l.bf16 %v74
  %v171 = vunpack.c.l.bf16 %v75
  %v172 = vunpack.c.l.bf16 %v76
  %v173 = vunpack.c.l.bf16 %v77
  %v174 = vunpack.c.l.bf16 %v78
  %v175 = vunpack.c.l.bf16 %v79
  %v176 = vunpack.c.l.bf16 %v80
  %v177 = vunpack.c.l.bf16 %v81
  %v178 = vunpack.c.l.bf16 %v82
  %v179 = vunpack.c.l.bf16 %v83
  %v180 = vunpack.c.l.bf16 %v84
  %v181 = vunpack.c.l.bf16 %v85
  %v182 = vunpack.c.l.bf16 %v86
  %v183 = vunpack.c.l.bf16 %v87
  %v184 = vunpack.c.l.bf16 %v88
  %v185 = vunpack.c.l.bf16 %v89
  %v186 = vunpack.c.l.bf16 %v90
  %v187 = vunpack.c.l.bf16 %v91
  %v188 = vunpack.c.l.bf16 %v92
  %v189 = vunpack.c.l.bf16 %v93
  %v190 = vunpack.c.l.bf16 %v94
  %v191 = vunpack.c.l.bf16 %v95
  %v192 = vunpack.c.l.bf16 %v96
  %v193 = vunpack.c.l.bf16 %v97
  %v194 = vunpack.c.l.bf16 %v98
  %v195 = vunpack.c.l.bf16 %v99
  %v196 = vunpack.c.l.bf16 %v100
  %v197 = vunpack.c.l.bf16 %v101
  %v198 = vunpack.c.l.bf16 %v102
  %v199 = vunpack.c.l.bf16 %v103
  %v200 = vunpack.c.l.bf16 %v104
  %v201 = vunpack.c.l.bf16 %v105
  %v202 = vunpack.c.l.bf16 %v106
  %v203 = vunpack.c.l.bf16 %v107
  %v204 = vunpack.c.l.bf16 %v108
  %v205 = vunpack.c.l.bf16 %v109
  %v206 = vunpack.c.l.bf16 %v110
  %v207 = vunpack.c.l.bf16 %v111
  %v208 = vunpack.c.l.bf16 %v112
  %v209 = vld [vmem:[%s1] sm:$0x1]
  %v211 = vperm.slane %v209, 0
  %v213 = vmul.f32 %v113, %v211
  %v214 = vmul.f32 %v114, %v211
  %v215 = vmul.f32 %v115, %v211
  %v216 = vmul.f32 %v116, %v211
  %v217 = vmul.f32 %v117, %v211
  %v218 = vmul.f32 %v118, %v211
  %v219 = vmul.f32 %v119, %v211
  %v220 = vmul.f32 %v120, %v211
  %v221 = vmul.f32 %v121, %v211
  %v222 = vmul.f32 %v122, %v211
  %v223 = vmul.f32 %v123, %v211
  %v224 = vmul.f32 %v124, %v211
  %v225 = vmul.f32 %v125, %v211
  %v226 = vmul.f32 %v126, %v211
  %v227 = vmul.f32 %v127, %v211
  %v228 = vmul.f32 %v128, %v211
  %v229 = vmul.f32 %v129, %v211
  %v230 = vmul.f32 %v130, %v211
  %v231 = vmul.f32 %v131, %v211
  %v232 = vmul.f32 %v132, %v211
  %v233 = vmul.f32 %v133, %v211
  %v234 = vmul.f32 %v134, %v211
  %v235 = vmul.f32 %v135, %v211
  %v236 = vmul.f32 %v136, %v211
  %v237 = vmul.f32 %v137, %v211
  %v238 = vmul.f32 %v138, %v211
  %v239 = vmul.f32 %v139, %v211
  %v240 = vmul.f32 %v140, %v211
  %v241 = vmul.f32 %v141, %v211
  %v242 = vmul.f32 %v142, %v211
  %v243 = vmul.f32 %v143, %v211
  %v244 = vmul.f32 %v144, %v211
  %v245 = vmul.f32 %v145, %v211
  %v246 = vmul.f32 %v146, %v211
  %v247 = vmul.f32 %v147, %v211
  %v248 = vmul.f32 %v148, %v211
  %v249 = vmul.f32 %v149, %v211
  %v250 = vmul.f32 %v150, %v211
  %v251 = vmul.f32 %v151, %v211
  %v252 = vmul.f32 %v152, %v211
  %v253 = vmul.f32 %v153, %v211
  %v254 = vmul.f32 %v154, %v211
  %v255 = vmul.f32 %v155, %v211
  %v256 = vmul.f32 %v156, %v211
  %v257 = vmul.f32 %v157, %v211
  %v258 = vmul.f32 %v158, %v211
  %v259 = vmul.f32 %v159, %v211
  %v260 = vmul.f32 %v160, %v211
  %v261 = vmul.f32 %v161, %v211
  %v262 = vmul.f32 %v162, %v211
  %v263 = vmul.f32 %v163, %v211
  %v264 = vmul.f32 %v164, %v211
  %v265 = vmul.f32 %v165, %v211
  %v266 = vmul.f32 %v166, %v211
  %v267 = vmul.f32 %v167, %v211
  %v268 = vmul.f32 %v168, %v211
  %v269 = vmul.f32 %v169, %v211
  %v270 = vmul.f32 %v170, %v211
  %v271 = vmul.f32 %v171, %v211
  %v272 = vmul.f32 %v172, %v211
  %v273 = vmul.f32 %v173, %v211
  %v274 = vmul.f32 %v174, %v211
  %v275 = vmul.f32 %v175, %v211
  %v276 = vmul.f32 %v176, %v211
  %v277 = vmul.f32 %v177, %v211
  %v278 = vmul.f32 %v178, %v211
  %v279 = vmul.f32 %v179, %v211
  %v280 = vmul.f32 %v180, %v211
  %v281 = vmul.f32 %v181, %v211
  %v282 = vmul.f32 %v182, %v211
  %v283 = vmul.f32 %v183, %v211
  %v284 = vmul.f32 %v184, %v211
  %v285 = vmul.f32 %v185, %v211
  %v286 = vmul.f32 %v186, %v211
  %v287 = vmul.f32 %v187, %v211
  %v288 = vmul.f32 %v188, %v211
  %v289 = vmul.f32 %v189, %v211
  %v290 = vmul.f32 %v190, %v211
  %v291 = vmul.f32 %v191, %v211
  %v292 = vmul.f32 %v192, %v211
  %v293 = vmul.f32 %v193, %v211
  %v294 = vmul.f32 %v194, %v211
  %v295 = vmul.f32 %v195, %v211
  %v296 = vmul.f32 %v196, %v211
  %v297 = vmul.f32 %v197, %v211
  %v298 = vmul.f32 %v198, %v211
  %v299 = vmul.f32 %v199, %v211
  %v300 = vmul.f32 %v200, %v211
  %v301 = vmul.f32 %v201, %v211
  %v302 = vmul.f32 %v202, %v211
  %v303 = vmul.f32 %v203, %v211
  %v304 = vmul.f32 %v204, %v211
  %v305 = vmul.f32 %v205, %v211
  %v306 = vmul.f32 %v206, %v211
  %v307 = vmul.f32 %v207, %v211
  %v308 = vmul.f32 %v208, %v211
  %v309 = vld [vmem:[%s2] sm:$0x1]
  %v311 = vperm.slane %v309, 0
  %v313 = vadd.f32 %v213, %v311
  %v314 = vadd.f32 %v214, %v311
  %v315 = vadd.f32 %v215, %v311
  %v316 = vadd.f32 %v216, %v311
  %v317 = vadd.f32 %v217, %v311
  %v318 = vadd.f32 %v218, %v311
  %v319 = vadd.f32 %v219, %v311
  %v320 = vadd.f32 %v220, %v311
  %v321 = vadd.f32 %v221, %v311
  %v322 = vadd.f32 %v222, %v311
  %v323 = vadd.f32 %v223, %v311
  %v324 = vadd.f32 %v224, %v311
  %v325 = vadd.f32 %v225, %v311
  %v326 = vadd.f32 %v226, %v311
  %v327 = vadd.f32 %v227, %v311
  %v328 = vadd.f32 %v228, %v311
  %v329 = vadd.f32 %v229, %v311
  %v330 = vadd.f32 %v230, %v311
  %v331 = vadd.f32 %v231, %v311
  %v332 = vadd.f32 %v232, %v311
  %v333 = vadd.f32 %v233, %v311
  %v334 = vadd.f32 %v234, %v311
  %v335 = vadd.f32 %v235, %v311
  %v336 = vadd.f32 %v236, %v311
  %v337 = vadd.f32 %v237, %v311
  %v338 = vadd.f32 %v238, %v311
  %v339 = vadd.f32 %v239, %v311
  %v340 = vadd.f32 %v240, %v311
  %v341 = vadd.f32 %v241, %v311
  %v342 = vadd.f32 %v242, %v311
  %v343 = vadd.f32 %v243, %v311
  %v344 = vadd.f32 %v244, %v311
  %v345 = vadd.f32 %v245, %v311
  %v346 = vadd.f32 %v246, %v311
  %v347 = vadd.f32 %v247, %v311
  %v348 = vadd.f32 %v248, %v311
  %v349 = vadd.f32 %v249, %v311
  %v350 = vadd.f32 %v250, %v311
  %v351 = vadd.f32 %v251, %v311
  %v352 = vadd.f32 %v252, %v311
  %v353 = vadd.f32 %v253, %v311
  %v354 = vadd.f32 %v254, %v311
  %v355 = vadd.f32 %v255, %v311
  %v356 = vadd.f32 %v256, %v311
  %v357 = vadd.f32 %v257, %v311
  %v358 = vadd.f32 %v258, %v311
  %v359 = vadd.f32 %v259, %v311
  %v360 = vadd.f32 %v260, %v311
  %v361 = vadd.f32 %v261, %v311
  %v362 = vadd.f32 %v262, %v311
  %v363 = vadd.f32 %v263, %v311
  %v364 = vadd.f32 %v264, %v311
  %v365 = vadd.f32 %v265, %v311
  %v366 = vadd.f32 %v266, %v311
  %v367 = vadd.f32 %v267, %v311
  %v368 = vadd.f32 %v268, %v311
  %v369 = vadd.f32 %v269, %v311
  %v370 = vadd.f32 %v270, %v311
  %v371 = vadd.f32 %v271, %v311
  %v372 = vadd.f32 %v272, %v311
  %v373 = vadd.f32 %v273, %v311
  %v374 = vadd.f32 %v274, %v311
  %v375 = vadd.f32 %v275, %v311
  %v376 = vadd.f32 %v276, %v311
  %v377 = vadd.f32 %v277, %v311
  %v378 = vadd.f32 %v278, %v311
  %v379 = vadd.f32 %v279, %v311
  %v380 = vadd.f32 %v280, %v311
  %v381 = vadd.f32 %v281, %v311
  %v382 = vadd.f32 %v282, %v311
  %v383 = vadd.f32 %v283, %v311
  %v384 = vadd.f32 %v284, %v311
  %v385 = vadd.f32 %v285, %v311
  %v386 = vadd.f32 %v286, %v311
  %v387 = vadd.f32 %v287, %v311
  %v388 = vadd.f32 %v288, %v311
  %v389 = vadd.f32 %v289, %v311
  %v390 = vadd.f32 %v290, %v311
  %v391 = vadd.f32 %v291, %v311
  %v392 = vadd.f32 %v292, %v311
  %v393 = vadd.f32 %v293, %v311
  %v394 = vadd.f32 %v294, %v311
  %v395 = vadd.f32 %v295, %v311
  %v396 = vadd.f32 %v296, %v311
  %v397 = vadd.f32 %v297, %v311
  %v398 = vadd.f32 %v298, %v311
  %v399 = vadd.f32 %v299, %v311
  %v400 = vadd.f32 %v300, %v311
  %v401 = vadd.f32 %v301, %v311
  %v402 = vadd.f32 %v302, %v311
  %v403 = vadd.f32 %v303, %v311
  %v404 = vadd.f32 %v304, %v311
  %v405 = vadd.f32 %v305, %v311
  %v406 = vadd.f32 %v306, %v311
  %v407 = vadd.f32 %v307, %v311
  %v408 = vadd.f32 %v308, %v311
  %v409 = vmax.f32 %v313, 0.0
  %v410 = vmax.f32 %v314, 0.0
  %v411 = vmax.f32 %v315, 0.0
  %v412 = vmax.f32 %v316, 0.0
  %v413 = vmax.f32 %v317, 0.0
  %v414 = vmax.f32 %v318, 0.0
  %v415 = vmax.f32 %v319, 0.0
  %v416 = vmax.f32 %v320, 0.0
  %v417 = vmax.f32 %v321, 0.0
  %v418 = vmax.f32 %v322, 0.0
  %v419 = vmax.f32 %v323, 0.0
  %v420 = vmax.f32 %v324, 0.0
  %v421 = vmax.f32 %v325, 0.0
  %v422 = vmax.f32 %v326, 0.0
  %v423 = vmax.f32 %v327, 0.0
  %v424 = vmax.f32 %v328, 0.0
  %v425 = vmax.f32 %v329, 0.0
  %v426 = vmax.f32 %v330, 0.0
  %v427 = vmax.f32 %v331, 0.0
  %v428 = vmax.f32 %v332, 0.0
  %v429 = vmax.f32 %v333, 0.0
  %v430 = vmax.f32 %v334, 0.0
  %v431 = vmax.f32 %v335, 0.0
  %v432 = vmax.f32 %v336, 0.0
  %v433 = vmax.f32 %v337, 0.0
  %v434 = vmax.f32 %v338, 0.0
  %v435 = vmax.f32 %v339, 0.0
  %v436 = vmax.f32 %v340, 0.0
  %v437 = vmax.f32 %v341, 0.0
  %v438 = vmax.f32 %v342, 0.0
  %v439 = vmax.f32 %v343, 0.0
  %v440 = vmax.f32 %v344, 0.0
  %v441 = vmax.f32 %v345, 0.0
  %v442 = vmax.f32 %v346, 0.0
  %v443 = vmax.f32 %v347, 0.0
  %v444 = vmax.f32 %v348, 0.0
  %v445 = vmax.f32 %v349, 0.0
  %v446 = vmax.f32 %v350, 0.0
  %v447 = vmax.f32 %v351, 0.0
  %v448 = vmax.f32 %v352, 0.0
  %v449 = vmax.f32 %v353, 0.0
  %v450 = vmax.f32 %v354, 0.0
  %v451 = vmax.f32 %v355, 0.0
  %v452 = vmax.f32 %v356, 0.0
  %v453 = vmax.f32 %v357, 0.0
  %v454 = vmax.f32 %v358, 0.0
  %v455 = vmax.f32 %v359, 0.0
  %v456 = vmax.f32 %v360, 0.0
  %v457 = vmax.f32 %v361, 0.0
  %v458 = vmax.f32 %v362, 0.0
  %v459 = vmax.f32 %v363, 0.0
  %v460 = vmax.f32 %v364, 0.0
  %v461 = vmax.f32 %v365, 0.0
  %v462 = vmax.f32 %v366, 0.0
  %v463 = vmax.f32 %v367, 0.0
  %v464 = vmax.f32 %v368, 0.0
  %v465 = vmax.f32 %v369, 0.0
  %v466 = vmax.f32 %v370, 0.0
  %v467 = vmax.f32 %v371, 0.0
  %v468 = vmax.f32 %v372, 0.0
  %v469 = vmax.f32 %v373, 0.0
  %v470 = vmax.f32 %v374, 0.0
  %v471 = vmax.f32 %v375, 0.0
  %v472 = vmax.f32 %v376, 0.0
  %v473 = vmax.f32 %v377, 0.0
  %v474 = vmax.f32 %v378, 0.0
  %v475 = vmax.f32 %v379, 0.0
  %v476 = vmax.f32 %v380, 0.0
  %v477 = vmax.f32 %v381, 0.0
  %v478 = vmax.f32 %v382, 0.0
  %v479 = vmax.f32 %v383, 0.0
  %v480 = vmax.f32 %v384, 0.0
  %v481 = vmax.f32 %v385, 0.0
  %v482 = vmax.f32 %v386, 0.0
  %v483 = vmax.f32 %v387, 0.0
  %v484 = vmax.f32 %v388, 0.0
  %v485 = vmax.f32 %v389, 0.0
  %v486 = vmax.f32 %v390, 0.0
  %v487 = vmax.f32 %v391, 0.0
  %v488 = vmax.f32 %v392, 0.0
  %v489 = vmax.f32 %v393, 0.0
  %v490 = vmax.f32 %v394, 0.0
  %v491 = vmax.f32 %v395, 0.0
  %v492 = vmax.f32 %v396, 0.0
  %v493 = vmax.f32 %v397, 0.0
  %v494 = vmax.f32 %v398, 0.0
  %v495 = vmax.f32 %v399, 0.0
  %v496 = vmax.f32 %v400, 0.0
  %v497 = vmax.f32 %v401, 0.0
  %v498 = vmax.f32 %v402, 0.0
  %v499 = vmax.f32 %v403, 0.0
  %v500 = vmax.f32 %v404, 0.0
  %v501 = vmax.f32 %v405, 0.0
  %v502 = vmax.f32 %v406, 0.0
  %v503 = vmax.f32 %v407, 0.0
  %v504 = vmax.f32 %v408, 0.0
  %v505 = vld [vmem:[%s3] sm:$0xff]
  %v506 = vld [vmem:[%s3 + $0x8] sm:$0xff]
  %v507 = vld [vmem:[%s3 + $0x10] sm:$0xff]
  %v508 = vld [vmem:[%s3 + $0x18] sm:$0xff]
  %v509 = vld [vmem:[%s3 + $0x20] sm:$0xff]
  %v510 = vld [vmem:[%s3 + $0x28] sm:$0xff]
  %v511 = vld [vmem:[%s3 + $0x30] sm:$0xff]
  %v512 = vld [vmem:[%s3 + $0x38] sm:$0xff]
  %v513 = vld [vmem:[%s3 + $0x40] sm:$0xff]
  %v514 = vld [vmem:[%s3 + $0x48] sm:$0xff]
  %v515 = vld [vmem:[%s3 + $0x50] sm:$0xff]
  %v516 = vld [vmem:[%s3 + $0x58] sm:$0xff]
  %v517 = vld [vmem:[%s3 + $0x60] sm:$0xff]
  %v518 = vld [vmem:[%s3 + $0x68] sm:$0xff]
  %v519 = vld [vmem:[%s3 + $0x70] sm:$0xff]
  %v520 = vld [vmem:[%s3 + $0x78] sm:$0xff]
  %v521 = vld [vmem:[%s3 + $0x80] sm:$0xff]
  %v522 = vld [vmem:[%s3 + $0x88] sm:$0xff]
  %v523 = vld [vmem:[%s3 + $0x90] sm:$0xff]
  %v524 = vld [vmem:[%s3 + $0x98] sm:$0xff]
  %v525 = vld [vmem:[%s3 + $0xa0] sm:$0xff]
  %v526 = vld [vmem:[%s3 + $0xa8] sm:$0xff]
  %v527 = vld [vmem:[%s3 + $0xb0] sm:$0xff]
  %v528 = vld [vmem:[%s3 + $0xb8] sm:$0xff]
  %v529 = vld [vmem:[%s3 + $0xc0] sm:$0xff]
  %v530 = vld [vmem:[%s3 + $0xc8] sm:$0xff]
  %v531 = vld [vmem:[%s3 + $0xd0] sm:$0xff]
  %v532 = vld [vmem:[%s3 + $0xd8] sm:$0xff]
  %v533 = vld [vmem:[%s3 + $0xe0] sm:$0xff]
  %v534 = vld [vmem:[%s3 + $0xe8] sm:$0xff]
  %v535 = vld [vmem:[%s3 + $0xf0] sm:$0xff]
  %v536 = vld [vmem:[%s3 + $0xf8] sm:$0xff]
  %v537 = vld [vmem:[%s3 + $0x100] sm:$0xff]
  %v538 = vld [vmem:[%s3 + $0x108] sm:$0xff]
  %v539 = vld [vmem:[%s3 + $0x110] sm:$0xff]
  %v540 = vld [vmem:[%s3 + $0x118] sm:$0xff]
  %v541 = vld [vmem:[%s3 + $0x120] sm:$0xff]
  %v542 = vld [vmem:[%s3 + $0x128] sm:$0xff]
  %v543 = vld [vmem:[%s3 + $0x130] sm:$0xff]
  %v544 = vld [vmem:[%s3 + $0x138] sm:$0xff]
  %v545 = vld [vmem:[%s3 + $0x140] sm:$0xff]
  %v546 = vld [vmem:[%s3 + $0x148] sm:$0xff]
  %v547 = vld [vmem:[%s3 + $0x150] sm:$0xff]
  %v548 = vld [vmem:[%s3 + $0x158] sm:$0xff]
  %v549 = vld [vmem:[%s3 + $0x160] sm:$0xff]
  %v550 = vld [vmem:[%s3 + $0x168] sm:$0xff]
  %v551 = vld [vmem:[%s3 + $0x170] sm:$0xff]
  %v552 = vld [vmem:[%s3 + $0x178] sm:$0xff]
  %v553 = vld [vmem:[%s3 + $0x180] sm:$0xff]
  %v554 = vld [vmem:[%s3 + $0x188] sm:$0xff]
  %v555 = vld [vmem:[%s3 + $0x190] sm:$0xff]
  %v556 = vld [vmem:[%s3 + $0x198] sm:$0xff]
  %v557 = vld [vmem:[%s3 + $0x1a0] sm:$0xff]
  %v558 = vld [vmem:[%s3 + $0x1a8] sm:$0xff]
  %v559 = vld [vmem:[%s3 + $0x1b0] sm:$0xff]
  %v560 = vld [vmem:[%s3 + $0x1b8] sm:$0xff]
  %v561 = vld [vmem:[%s3 + $0x1c0] sm:$0xff]
  %v562 = vld [vmem:[%s3 + $0x1c8] sm:$0xff]
  %v563 = vld [vmem:[%s3 + $0x1d0] sm:$0xff]
  %v564 = vld [vmem:[%s3 + $0x1d8] sm:$0xff]
  %v565 = vld [vmem:[%s3 + $0x1e0] sm:$0xff]
  %v566 = vld [vmem:[%s3 + $0x1e8] sm:$0xff]
  %v567 = vld [vmem:[%s3 + $0x1f0] sm:$0xff]
  %v568 = vld [vmem:[%s3 + $0x1f8] sm:$0xff]
  %v569 = vld [vmem:[%s3 + $0x200] sm:$0xff]
  %v570 = vld [vmem:[%s3 + $0x208] sm:$0xff]
  %v571 = vld [vmem:[%s3 + $0x210] sm:$0xff]
  %v572 = vld [vmem:[%s3 + $0x218] sm:$0xff]
  %v573 = vld [vmem:[%s3 + $0x220] sm:$0xff]
  %v574 = vld [vmem:[%s3 + $0x228] sm:$0xff]
  %v575 = vld [vmem:[%s3 + $0x230] sm:$0xff]
  %v576 = vld [vmem:[%s3 + $0x238] sm:$0xff]
  %v577 = vld [vmem:[%s3 + $0x240] sm:$0xff]
  %v578 = vld [vmem:[%s3 + $0x248] sm:$0xff]
  %v579 = vld [vmem:[%s3 + $0x250] sm:$0xff]
  %v580 = vld [vmem:[%s3 + $0x258] sm:$0xff]
  %v581 = vld [vmem:[%s3 + $0x260] sm:$0xff]
  %v582 = vld [vmem:[%s3 + $0x268] sm:$0xff]
  %v583 = vld [vmem:[%s3 + $0x270] sm:$0xff]
  %v584 = vld [vmem:[%s3 + $0x278] sm:$0xff]
  %v585 = vld [vmem:[%s3 + $0x280] sm:$0xff]
  %v586 = vld [vmem:[%s3 + $0x288] sm:$0xff]
  %v587 = vld [vmem:[%s3 + $0x290] sm:$0xff]
  %v588 = vld [vmem:[%s3 + $0x298] sm:$0xff]
  %v589 = vld [vmem:[%s3 + $0x2a0] sm:$0xff]
  %v590 = vld [vmem:[%s3 + $0x2a8] sm:$0xff]
  %v591 = vld [vmem:[%s3 + $0x2b0] sm:$0xff]
  %v592 = vld [vmem:[%s3 + $0x2b8] sm:$0xff]
  %v593 = vld [vmem:[%s3 + $0x2c0] sm:$0xff]
  %v594 = vld [vmem:[%s3 + $0x2c8] sm:$0xff]
  %v595 = vld [vmem:[%s3 + $0x2d0] sm:$0xff]
  %v596 = vld [vmem:[%s3 + $0x2d8] sm:$0xff]
  %v597 = vld [vmem:[%s3 + $0x2e0] sm:$0xff]
  %v598 = vld [vmem:[%s3 + $0x2e8] sm:$0xff]
  %v599 = vld [vmem:[%s3 + $0x2f0] sm:$0xff]
  %v600 = vld [vmem:[%s3 + $0x2f8] sm:$0xff]
  %vm601 = vcmp.gt.f32.partialorder %v505, 0.0
  %vm602 = vcmp.gt.f32.partialorder %v506, 0.0
  %vm603 = vcmp.gt.f32.partialorder %v507, 0.0
  %vm604 = vcmp.gt.f32.partialorder %v508, 0.0
  %vm605 = vcmp.gt.f32.partialorder %v509, 0.0
  %vm606 = vcmp.gt.f32.partialorder %v510, 0.0
  %vm607 = vcmp.gt.f32.partialorder %v511, 0.0
  %vm608 = vcmp.gt.f32.partialorder %v512, 0.0
  %vm609 = vcmp.gt.f32.partialorder %v513, 0.0
  %vm610 = vcmp.gt.f32.partialorder %v514, 0.0
  %vm611 = vcmp.gt.f32.partialorder %v515, 0.0
  %vm612 = vcmp.gt.f32.partialorder %v516, 0.0
  %vm613 = vcmp.gt.f32.partialorder %v517, 0.0
  %vm614 = vcmp.gt.f32.partialorder %v518, 0.0
  %vm615 = vcmp.gt.f32.partialorder %v519, 0.0
  %vm616 = vcmp.gt.f32.partialorder %v520, 0.0
  %vm617 = vcmp.gt.f32.partialorder %v521, 0.0
  %vm618 = vcmp.gt.f32.partialorder %v522, 0.0
  %vm619 = vcmp.gt.f32.partialorder %v523, 0.0
  %vm620 = vcmp.gt.f32.partialorder %v524, 0.0
  %vm621 = vcmp.gt.f32.partialorder %v525, 0.0
  %vm622 = vcmp.gt.f32.partialorder %v526, 0.0
  %vm623 = vcmp.gt.f32.partialorder %v527, 0.0
  %vm624 = vcmp.gt.f32.partialorder %v528, 0.0
  %vm625 = vcmp.gt.f32.partialorder %v529, 0.0
  %vm626 = vcmp.gt.f32.partialorder %v530, 0.0
  %vm627 = vcmp.gt.f32.partialorder %v531, 0.0
  %vm628 = vcmp.gt.f32.partialorder %v532, 0.0
  %vm629 = vcmp.gt.f32.partialorder %v533, 0.0
  %vm630 = vcmp.gt.f32.partialorder %v534, 0.0
  %vm631 = vcmp.gt.f32.partialorder %v535, 0.0
  %vm632 = vcmp.gt.f32.partialorder %v536, 0.0
  %vm633 = vcmp.gt.f32.partialorder %v537, 0.0
  %vm634 = vcmp.gt.f32.partialorder %v538, 0.0
  %vm635 = vcmp.gt.f32.partialorder %v539, 0.0
  %vm636 = vcmp.gt.f32.partialorder %v540, 0.0
  %vm637 = vcmp.gt.f32.partialorder %v541, 0.0
  %vm638 = vcmp.gt.f32.partialorder %v542, 0.0
  %vm639 = vcmp.gt.f32.partialorder %v543, 0.0
  %vm640 = vcmp.gt.f32.partialorder %v544, 0.0
  %vm641 = vcmp.gt.f32.partialorder %v545, 0.0
  %vm642 = vcmp.gt.f32.partialorder %v546, 0.0
  %vm643 = vcmp.gt.f32.partialorder %v547, 0.0
  %vm644 = vcmp.gt.f32.partialorder %v548, 0.0
  %vm645 = vcmp.gt.f32.partialorder %v549, 0.0
  %vm646 = vcmp.gt.f32.partialorder %v550, 0.0
  %vm647 = vcmp.gt.f32.partialorder %v551, 0.0
  %vm648 = vcmp.gt.f32.partialorder %v552, 0.0
  %vm649 = vcmp.gt.f32.partialorder %v553, 0.0
  %vm650 = vcmp.gt.f32.partialorder %v554, 0.0
  %vm651 = vcmp.gt.f32.partialorder %v555, 0.0
  %vm652 = vcmp.gt.f32.partialorder %v556, 0.0
  %vm653 = vcmp.gt.f32.partialorder %v557, 0.0
  %vm654 = vcmp.gt.f32.partialorder %v558, 0.0
  %vm655 = vcmp.gt.f32.partialorder %v559, 0.0
  %vm656 = vcmp.gt.f32.partialorder %v560, 0.0
  %vm657 = vcmp.gt.f32.partialorder %v561, 0.0
  %vm658 = vcmp.gt.f32.partialorder %v562, 0.0
  %vm659 = vcmp.gt.f32.partialorder %v563, 0.0
  %vm660 = vcmp.gt.f32.partialorder %v564, 0.0
  %vm661 = vcmp.gt.f32.partialorder %v565, 0.0
  %vm662 = vcmp.gt.f32.partialorder %v566, 0.0
  %vm663 = vcmp.gt.f32.partialorder %v567, 0.0
  %vm664 = vcmp.gt.f32.partialorder %v568, 0.0
  %vm665 = vcmp.gt.f32.partialorder %v569, 0.0
  %vm666 = vcmp.gt.f32.partialorder %v570, 0.0
  %vm667 = vcmp.gt.f32.partialorder %v571, 0.0
  %vm668 = vcmp.gt.f32.partialorder %v572, 0.0
  %vm669 = vcmp.gt.f32.partialorder %v573, 0.0
  %vm670 = vcmp.gt.f32.partialorder %v574, 0.0
  %vm671 = vcmp.gt.f32.partialorder %v575, 0.0
  %vm672 = vcmp.gt.f32.partialorder %v576, 0.0
  %vm673 = vcmp.gt.f32.partialorder %v577, 0.0
  %vm674 = vcmp.gt.f32.partialorder %v578, 0.0
  %vm675 = vcmp.gt.f32.partialorder %v579, 0.0
  %vm676 = vcmp.gt.f32.partialorder %v580, 0.0
  %vm677 = vcmp.gt.f32.partialorder %v581, 0.0
  %vm678 = vcmp.gt.f32.partialorder %v582, 0.0
  %vm679 = vcmp.gt.f32.partialorder %v583, 0.0
  %vm680 = vcmp.gt.f32.partialorder %v584, 0.0
  %vm681 = vcmp.gt.f32.partialorder %v585, 0.0
  %vm682 = vcmp.gt.f32.partialorder %v586, 0.0
  %vm683 = vcmp.gt.f32.partialorder %v587, 0.0
  %vm684 = vcmp.gt.f32.partialorder %v588, 0.0
  %vm685 = vcmp.gt.f32.partialorder %v589, 0.0
  %vm686 = vcmp.gt.f32.partialorder %v590, 0.0
  %vm687 = vcmp.gt.f32.partialorder %v591, 0.0
  %vm688 = vcmp.gt.f32.partialorder %v592, 0.0
  %vm689 = vcmp.gt.f32.partialorder %v593, 0.0
  %vm690 = vcmp.gt.f32.partialorder %v594, 0.0
  %vm691 = vcmp.gt.f32.partialorder %v595, 0.0
  %vm692 = vcmp.gt.f32.partialorder %v596, 0.0
  %vm693 = vcmp.gt.f32.partialorder %v597, 0.0
  %vm694 = vcmp.gt.f32.partialorder %v598, 0.0
  %vm695 = vcmp.gt.f32.partialorder %v599, 0.0
  %vm696 = vcmp.gt.f32.partialorder %v600, 0.0
  %v697 = vsel %vm601, 1, 0
  %v698 = vsel %vm602, 1, 0
  %v699 = vsel %vm603, 1, 0
  %v700 = vsel %vm604, 1, 0
  %v701 = vsel %vm605, 1, 0
  %v702 = vsel %vm606, 1, 0
  %v703 = vsel %vm607, 1, 0
  %v704 = vsel %vm608, 1, 0
  %v705 = vsel %vm609, 1, 0
  %v706 = vsel %vm610, 1, 0
  %v707 = vsel %vm611, 1, 0
  %v708 = vsel %vm612, 1, 0
  %v709 = vsel %vm613, 1, 0
  %v710 = vsel %vm614, 1, 0
  %v711 = vsel %vm615, 1, 0
  %v712 = vsel %vm616, 1, 0
  %v713 = vsel %vm617, 1, 0
  %v714 = vsel %vm618, 1, 0
  %v715 = vsel %vm619, 1, 0
  %v716 = vsel %vm620, 1, 0
  %v717 = vsel %vm621, 1, 0
  %v718 = vsel %vm622, 1, 0
  %v719 = vsel %vm623, 1, 0
  %v720 = vsel %vm624, 1, 0
  %v721 = vsel %vm625, 1, 0
  %v722 = vsel %vm626, 1, 0
  %v723 = vsel %vm627, 1, 0
  %v724 = vsel %vm628, 1, 0
  %v725 = vsel %vm629, 1, 0
  %v726 = vsel %vm630, 1, 0
  %v727 = vsel %vm631, 1, 0
  %v728 = vsel %vm632, 1, 0
  %v729 = vsel %vm633, 1, 0
  %v730 = vsel %vm634, 1, 0
  %v731 = vsel %vm635, 1, 0
  %v732 = vsel %vm636, 1, 0
  %v733 = vsel %vm637, 1, 0
  %v734 = vsel %vm638, 1, 0
  %v735 = vsel %vm639, 1, 0
  %v736 = vsel %vm640, 1, 0
  %v737 = vsel %vm641, 1, 0
  %v738 = vsel %vm642, 1, 0
  %v739 = vsel %vm643, 1, 0
  %v740 = vsel %vm644, 1, 0
  %v741 = vsel %vm645, 1, 0
  %v742 = vsel %vm646, 1, 0
  %v743 = vsel %vm647, 1, 0
  %v744 = vsel %vm648, 1, 0
  %v745 = vsel %vm649, 1, 0
  %v746 = vsel %vm650, 1, 0
  %v747 = vsel %vm651, 1, 0
  %v748 = vsel %vm652, 1, 0
  %v749 = vsel %vm653, 1, 0
  %v750 = vsel %vm654, 1, 0
  %v751 = vsel %vm655, 1, 0
  %v752 = vsel %vm656, 1, 0
  %v753 = vsel %vm657, 1, 0
  %v754 = vsel %vm658, 1, 0
  %v755 = vsel %vm659, 1, 0
  %v756 = vsel %vm660, 1, 0
  %v757 = vsel %vm661, 1, 0
  %v758 = vsel %vm662, 1, 0
  %v759 = vsel %vm663, 1, 0
  %v760 = vsel %vm664, 1, 0
  %v761 = vsel %vm665, 1, 0
  %v762 = vsel %vm666, 1, 0
  %v763 = vsel %vm667, 1, 0
  %v764 = vsel %vm668, 1, 0
  %v765 = vsel %vm669, 1, 0
  %v766 = vsel %vm670, 1, 0
  %v767 = vsel %vm671, 1, 0
  %v768 = vsel %vm672, 1, 0
  %v769 = vsel %vm673, 1, 0
  %v770 = vsel %vm674, 1, 0
  %v771 = vsel %vm675, 1, 0
  %v772 = vsel %vm676, 1, 0
  %v773 = vsel %vm677, 1, 0
  %v774 = vsel %vm678, 1, 0
  %v775 = vsel %vm679, 1, 0
  %v776 = vsel %vm680, 1, 0
  %v777 = vsel %vm681, 1, 0
  %v778 = vsel %vm682, 1, 0
  %v779 = vsel %vm683, 1, 0
  %v780 = vsel %vm684, 1, 0
  %v781 = vsel %vm685, 1, 0
  %v782 = vsel %vm686, 1, 0
  %v783 = vsel %vm687, 1, 0
  %v784 = vsel %vm688, 1, 0
  %v785 = vsel %vm689, 1, 0
  %v786 = vsel %vm690, 1, 0
  %v787 = vsel %vm691, 1, 0
  %v788 = vsel %vm692, 1, 0
  %v789 = vsel %vm693, 1, 0
  %v790 = vsel %vm694, 1, 0
  %v791 = vsel %vm695, 1, 0
  %v792 = vsel %vm696, 1, 0
  %793 = vset.pattern.permute.xlu0 0
  %794 = vperm.xlu0 %793, %v697
  %v795 = vpop.permute.xlu0 %794
  %796 = vset.pattern.permute.xlu0 0
  %797 = vperm.xlu0 %796, %v698
  %v798 = vpop.permute.xlu0 %797
  %799 = vset.pattern.permute.xlu0 0
  %800 = vperm.xlu0 %799, %v699
  %v801 = vpop.permute.xlu0 %800
  %802 = vset.pattern.permute.xlu0 0
  %803 = vperm.xlu0 %802, %v700
  %v804 = vpop.permute.xlu0 %803
  %805 = vset.pattern.permute.xlu0 0
  %806 = vperm.xlu0 %805, %v701
  %v807 = vpop.permute.xlu0 %806
  %808 = vset.pattern.permute.xlu0 0
  %809 = vperm.xlu0 %808, %v702
  %v810 = vpop.permute.xlu0 %809
  %811 = vset.pattern.permute.xlu0 0
  %812 = vperm.xlu0 %811, %v703
  %v813 = vpop.permute.xlu0 %812
  %814 = vset.pattern.permute.xlu0 0
  %815 = vperm.xlu0 %814, %v704
  %v816 = vpop.permute.xlu0 %815
  %817 = vset.pattern.permute.xlu0 0
  %818 = vperm.xlu0 %817, %v705
  %v819 = vpop.permute.xlu0 %818
  %820 = vset.pattern.permute.xlu0 0
  %821 = vperm.xlu0 %820, %v706
  %v822 = vpop.permute.xlu0 %821
  %823 = vset.pattern.permute.xlu0 0
  %824 = vperm.xlu0 %823, %v707
  %v825 = vpop.permute.xlu0 %824
  %826 = vset.pattern.permute.xlu0 0
  %827 = vperm.xlu0 %826, %v708
  %v828 = vpop.permute.xlu0 %827
  %829 = vset.pattern.permute.xlu0 0
  %830 = vperm.xlu0 %829, %v709
  %v831 = vpop.permute.xlu0 %830
  %832 = vset.pattern.permute.xlu0 0
  %833 = vperm.xlu0 %832, %v710
  %v834 = vpop.permute.xlu0 %833
  %835 = vset.pattern.permute.xlu0 0
  %836 = vperm.xlu0 %835, %v711
  %v837 = vpop.permute.xlu0 %836
  %838 = vset.pattern.permute.xlu0 0
  %839 = vperm.xlu0 %838, %v712
  %v840 = vpop.permute.xlu0 %839
  %841 = vset.pattern.permute.xlu0 0
  %842 = vperm.xlu0 %841, %v713
  %v843 = vpop.permute.xlu0 %842
  %844 = vset.pattern.permute.xlu0 0
  %845 = vperm.xlu0 %844, %v714
  %v846 = vpop.permute.xlu0 %845
  %847 = vset.pattern.permute.xlu0 0
  %848 = vperm.xlu0 %847, %v715
  %v849 = vpop.permute.xlu0 %848
  %850 = vset.pattern.permute.xlu0 0
  %851 = vperm.xlu0 %850, %v716
  %v852 = vpop.permute.xlu0 %851
  %853 = vset.pattern.permute.xlu0 0
  %854 = vperm.xlu0 %853, %v717
  %v855 = vpop.permute.xlu0 %854
  %856 = vset.pattern.permute.xlu0 0
  %857 = vperm.xlu0 %856, %v718
  %v858 = vpop.permute.xlu0 %857
  %859 = vset.pattern.permute.xlu0 0
  %860 = vperm.xlu0 %859, %v719
  %v861 = vpop.permute.xlu0 %860
  %862 = vset.pattern.permute.xlu0 0
  %863 = vperm.xlu0 %862, %v720
  %v864 = vpop.permute.xlu0 %863
  %865 = vset.pattern.permute.xlu0 0
  %866 = vperm.xlu0 %865, %v721
  %v867 = vpop.permute.xlu0 %866
  %868 = vset.pattern.permute.xlu0 0
  %869 = vperm.xlu0 %868, %v722
  %v870 = vpop.permute.xlu0 %869
  %871 = vset.pattern.permute.xlu0 0
  %872 = vperm.xlu0 %871, %v723
  %v873 = vpop.permute.xlu0 %872
  %874 = vset.pattern.permute.xlu0 0
  %875 = vperm.xlu0 %874, %v724
  %v876 = vpop.permute.xlu0 %875
  %877 = vset.pattern.permute.xlu0 0
  %878 = vperm.xlu0 %877, %v725
  %v879 = vpop.permute.xlu0 %878
  %880 = vset.pattern.permute.xlu0 0
  %881 = vperm.xlu0 %880, %v726
  %v882 = vpop.permute.xlu0 %881
  %883 = vset.pattern.permute.xlu0 0
  %884 = vperm.xlu0 %883, %v727
  %v885 = vpop.permute.xlu0 %884
  %886 = vset.pattern.permute.xlu0 0
  %887 = vperm.xlu0 %886, %v728
  %v888 = vpop.permute.xlu0 %887
  %889 = vset.pattern.permute.xlu0 0
  %890 = vperm.xlu0 %889, %v729
  %v891 = vpop.permute.xlu0 %890
  %892 = vset.pattern.permute.xlu0 0
  %893 = vperm.xlu0 %892, %v730
  %v894 = vpop.permute.xlu0 %893
  %895 = vset.pattern.permute.xlu0 0
  %896 = vperm.xlu0 %895, %v731
  %v897 = vpop.permute.xlu0 %896
  %898 = vset.pattern.permute.xlu0 0
  %899 = vperm.xlu0 %898, %v732
  %v900 = vpop.permute.xlu0 %899
  %901 = vset.pattern.permute.xlu0 0
  %902 = vperm.xlu0 %901, %v733
  %v903 = vpop.permute.xlu0 %902
  %904 = vset.pattern.permute.xlu0 0
  %905 = vperm.xlu0 %904, %v734
  %v906 = vpop.permute.xlu0 %905
  %907 = vset.pattern.permute.xlu0 0
  %908 = vperm.xlu0 %907, %v735
  %v909 = vpop.permute.xlu0 %908
  %910 = vset.pattern.permute.xlu0 0
  %911 = vperm.xlu0 %910, %v736
  %v912 = vpop.permute.xlu0 %911
  %913 = vset.pattern.permute.xlu0 0
  %914 = vperm.xlu0 %913, %v737
  %v915 = vpop.permute.xlu0 %914
  %916 = vset.pattern.permute.xlu0 0
  %917 = vperm.xlu0 %916, %v738
  %v918 = vpop.permute.xlu0 %917
  %919 = vset.pattern.permute.xlu0 0
  %920 = vperm.xlu0 %919, %v739
  %v921 = vpop.permute.xlu0 %920
  %922 = vset.pattern.permute.xlu0 0
  %923 = vperm.xlu0 %922, %v740
  %v924 = vpop.permute.xlu0 %923
  %925 = vset.pattern.permute.xlu0 0
  %926 = vperm.xlu0 %925, %v741
  %v927 = vpop.permute.xlu0 %926
  %928 = vset.pattern.permute.xlu0 0
  %929 = vperm.xlu0 %928, %v742
  %v930 = vpop.permute.xlu0 %929
  %931 = vset.pattern.permute.xlu0 0
  %932 = vperm.xlu0 %931, %v743
  %v933 = vpop.permute.xlu0 %932
  %934 = vset.pattern.permute.xlu0 0
  %935 = vperm.xlu0 %934, %v744
  %v936 = vpop.permute.xlu0 %935
  %937 = vset.pattern.permute.xlu0 0
  %938 = vperm.xlu0 %937, %v745
  %v939 = vpop.permute.xlu0 %938
  %940 = vset.pattern.permute.xlu0 0
  %941 = vperm.xlu0 %940, %v746
  %v942 = vpop.permute.xlu0 %941
  %943 = vset.pattern.permute.xlu0 0
  %944 = vperm.xlu0 %943, %v747
  %v945 = vpop.permute.xlu0 %944
  %946 = vset.pattern.permute.xlu0 0
  %947 = vperm.xlu0 %946, %v748
  %v948 = vpop.permute.xlu0 %947
  %949 = vset.pattern.permute.xlu0 0
  %950 = vperm.xlu0 %949, %v749
  %v951 = vpop.permute.xlu0 %950
  %952 = vset.pattern.permute.xlu0 0
  %953 = vperm.xlu0 %952, %v750
  %v954 = vpop.permute.xlu0 %953
  %955 = vset.pattern.permute.xlu0 0
  %956 = vperm.xlu0 %955, %v751
  %v957 = vpop.permute.xlu0 %956
  %958 = vset.pattern.permute.xlu0 0
  %959 = vperm.xlu0 %958, %v752
  %v960 = vpop.permute.xlu0 %959
  %961 = vset.pattern.permute.xlu0 0
  %962 = vperm.xlu0 %961, %v753
  %v963 = vpop.permute.xlu0 %962
  %964 = vset.pattern.permute.xlu0 0
  %965 = vperm.xlu0 %964, %v754
  %v966 = vpop.permute.xlu0 %965
  %967 = vset.pattern.permute.xlu0 0
  %968 = vperm.xlu0 %967, %v755
  %v969 = vpop.permute.xlu0 %968
  %970 = vset.pattern.permute.xlu0 0
  %971 = vperm.xlu0 %970, %v756
  %v972 = vpop.permute.xlu0 %971
  %973 = vset.pattern.permute.xlu0 0
  %974 = vperm.xlu0 %973, %v757
  %v975 = vpop.permute.xlu0 %974
  %976 = vset.pattern.permute.xlu0 0
  %977 = vperm.xlu0 %976, %v758
  %v978 = vpop.permute.xlu0 %977
  %979 = vset.pattern.permute.xlu0 0
  %980 = vperm.xlu0 %979, %v759
  %v981 = vpop.permute.xlu0 %980
  %982 = vset.pattern.permute.xlu0 0
  %983 = vperm.xlu0 %982, %v760
  %v984 = vpop.permute.xlu0 %983
  %985 = vset.pattern.permute.xlu0 0
  %986 = vperm.xlu0 %985, %v761
  %v987 = vpop.permute.xlu0 %986
  %988 = vset.pattern.permute.xlu0 0
  %989 = vperm.xlu0 %988, %v762
  %v990 = vpop.permute.xlu0 %989
  %991 = vset.pattern.permute.xlu0 0
  %992 = vperm.xlu0 %991, %v763
  %v993 = vpop.permute.xlu0 %992
  %994 = vset.pattern.permute.xlu0 0
  %995 = vperm.xlu0 %994, %v764
  %v996 = vpop.permute.xlu0 %995
  %997 = vset.pattern.permute.xlu0 0
  %998 = vperm.xlu0 %997, %v765
  %v999 = vpop.permute.xlu0 %998
  %1000 = vset.pattern.permute.xlu0 0
  %1001 = vperm.xlu0 %1000, %v766
  %v1002 = vpop.permute.xlu0 %1001
  %1003 = vset.pattern.permute.xlu0 0
  %1004 = vperm.xlu0 %1003, %v767
  %v1005 = vpop.permute.xlu0 %1004
  %1006 = vset.pattern.permute.xlu0 0
  %1007 = vperm.xlu0 %1006, %v768
  %v1008 = vpop.permute.xlu0 %1007
  %1009 = vset.pattern.permute.xlu0 0
  %1010 = vperm.xlu0 %1009, %v769
  %v1011 = vpop.permute.xlu0 %1010
  %1012 = vset.pattern.permute.xlu0 0
  %1013 = vperm.xlu0 %1012, %v770
  %v1014 = vpop.permute.xlu0 %1013
  %1015 = vset.pattern.permute.xlu0 0
  %1016 = vperm.xlu0 %1015, %v771
  %v1017 = vpop.permute.xlu0 %1016
  %1018 = vset.pattern.permute.xlu0 0
  %1019 = vperm.xlu0 %1018, %v772
  %v1020 = vpop.permute.xlu0 %1019
  %1021 = vset.pattern.permute.xlu0 0
  %1022 = vperm.xlu0 %1021, %v773
  %v1023 = vpop.permute.xlu0 %1022
  %1024 = vset.pattern.permute.xlu0 0
  %1025 = vperm.xlu0 %1024, %v774
  %v1026 = vpop.permute.xlu0 %1025
  %1027 = vset.pattern.permute.xlu0 0
  %1028 = vperm.xlu0 %1027, %v775
  %v1029 = vpop.permute.xlu0 %1028
  %1030 = vset.pattern.permute.xlu0 0
  %1031 = vperm.xlu0 %1030, %v776
  %v1032 = vpop.permute.xlu0 %1031
  %1033 = vset.pattern.permute.xlu0 0
  %1034 = vperm.xlu0 %1033, %v777
  %v1035 = vpop.permute.xlu0 %1034
  %1036 = vset.pattern.permute.xlu0 0
  %1037 = vperm.xlu0 %1036, %v778
  %v1038 = vpop.permute.xlu0 %1037
  %1039 = vset.pattern.permute.xlu0 0
  %1040 = vperm.xlu0 %1039, %v779
  %v1041 = vpop.permute.xlu0 %1040
  %1042 = vset.pattern.permute.xlu0 0
  %1043 = vperm.xlu0 %1042, %v780
  %v1044 = vpop.permute.xlu0 %1043
  %1045 = vset.pattern.permute.xlu0 0
  %1046 = vperm.xlu0 %1045, %v781
  %v1047 = vpop.permute.xlu0 %1046
  %1048 = vset.pattern.permute.xlu0 0
  %1049 = vperm.xlu0 %1048, %v782
  %v1050 = vpop.permute.xlu0 %1049
  %1051 = vset.pattern.permute.xlu0 0
  %1052 = vperm.xlu0 %1051, %v783
  %v1053 = vpop.permute.xlu0 %1052
  %1054 = vset.pattern.permute.xlu0 0
  %1055 = vperm.xlu0 %1054, %v784
  %v1056 = vpop.permute.xlu0 %1055
  %1057 = vset.pattern.permute.xlu0 0
  %1058 = vperm.xlu0 %1057, %v785
  %v1059 = vpop.permute.xlu0 %1058
  %1060 = vset.pattern.permute.xlu0 0
  %1061 = vperm.xlu0 %1060, %v786
  %v1062 = vpop.permute.xlu0 %1061
  %1063 = vset.pattern.permute.xlu0 0
  %1064 = vperm.xlu0 %1063, %v787
  %v1065 = vpop.permute.xlu0 %1064
  %1066 = vset.pattern.permute.xlu0 0
  %1067 = vperm.xlu0 %1066, %v788
  %v1068 = vpop.permute.xlu0 %1067
  %1069 = vset.pattern.permute.xlu0 0
  %1070 = vperm.xlu0 %1069, %v789
  %v1071 = vpop.permute.xlu0 %1070
  %1072 = vset.pattern.permute.xlu0 0
  %1073 = vperm.xlu0 %1072, %v790
  %v1074 = vpop.permute.xlu0 %1073
  %1075 = vset.pattern.permute.xlu0 0
  %1076 = vperm.xlu0 %1075, %v791
  %v1077 = vpop.permute.xlu0 %1076
  %1078 = vset.pattern.permute.xlu0 0
  %1079 = vperm.xlu0 %1078, %v792
  %v1080 = vpop.permute.xlu0 %1079
  %vm1081 = vcmp.eq.s32.totalorder %v795, 1
  %vm1082 = vcmp.eq.s32.totalorder %v798, 1
  %vm1083 = vcmp.eq.s32.totalorder %v801, 1
  %vm1084 = vcmp.eq.s32.totalorder %v804, 1
  %vm1085 = vcmp.eq.s32.totalorder %v807, 1
  %vm1086 = vcmp.eq.s32.totalorder %v810, 1
  %vm1087 = vcmp.eq.s32.totalorder %v813, 1
  %vm1088 = vcmp.eq.s32.totalorder %v816, 1
  %vm1089 = vcmp.eq.s32.totalorder %v819, 1
  %vm1090 = vcmp.eq.s32.totalorder %v822, 1
  %vm1091 = vcmp.eq.s32.totalorder %v825, 1
  %vm1092 = vcmp.eq.s32.totalorder %v828, 1
  %vm1093 = vcmp.eq.s32.totalorder %v831, 1
  %vm1094 = vcmp.eq.s32.totalorder %v834, 1
  %vm1095 = vcmp.eq.s32.totalorder %v837, 1
  %vm1096 = vcmp.eq.s32.totalorder %v840, 1
  %vm1097 = vcmp.eq.s32.totalorder %v843, 1
  %vm1098 = vcmp.eq.s32.totalorder %v846, 1
  %vm1099 = vcmp.eq.s32.totalorder %v849, 1
  %vm1100 = vcmp.eq.s32.totalorder %v852, 1
  %vm1101 = vcmp.eq.s32.totalorder %v855, 1
  %vm1102 = vcmp.eq.s32.totalorder %v858, 1
  %vm1103 = vcmp.eq.s32.totalorder %v861, 1
  %vm1104 = vcmp.eq.s32.totalorder %v864, 1
  %vm1105 = vcmp.eq.s32.totalorder %v867, 1
  %vm1106 = vcmp.eq.s32.totalorder %v870, 1
  %vm1107 = vcmp.eq.s32.totalorder %v873, 1
  %vm1108 = vcmp.eq.s32.totalorder %v876, 1
  %vm1109 = vcmp.eq.s32.totalorder %v879, 1
  %vm1110 = vcmp.eq.s32.totalorder %v882, 1
  %vm1111 = vcmp.eq.s32.totalorder %v885, 1
  %vm1112 = vcmp.eq.s32.totalorder %v888, 1
  %vm1113 = vcmp.eq.s32.totalorder %v891, 1
  %vm1114 = vcmp.eq.s32.totalorder %v894, 1
  %vm1115 = vcmp.eq.s32.totalorder %v897, 1
  %vm1116 = vcmp.eq.s32.totalorder %v900, 1
  %vm1117 = vcmp.eq.s32.totalorder %v903, 1
  %vm1118 = vcmp.eq.s32.totalorder %v906, 1
  %vm1119 = vcmp.eq.s32.totalorder %v909, 1
  %vm1120 = vcmp.eq.s32.totalorder %v912, 1
  %vm1121 = vcmp.eq.s32.totalorder %v915, 1
  %vm1122 = vcmp.eq.s32.totalorder %v918, 1
  %vm1123 = vcmp.eq.s32.totalorder %v921, 1
  %vm1124 = vcmp.eq.s32.totalorder %v924, 1
  %vm1125 = vcmp.eq.s32.totalorder %v927, 1
  %vm1126 = vcmp.eq.s32.totalorder %v930, 1
  %vm1127 = vcmp.eq.s32.totalorder %v933, 1
  %vm1128 = vcmp.eq.s32.totalorder %v936, 1
  %vm1129 = vcmp.eq.s32.totalorder %v939, 1
  %vm1130 = vcmp.eq.s32.totalorder %v942, 1
  %vm1131 = vcmp.eq.s32.totalorder %v945, 1
  %vm1132 = vcmp.eq.s32.totalorder %v948, 1
  %vm1133 = vcmp.eq.s32.totalorder %v951, 1
  %vm1134 = vcmp.eq.s32.totalorder %v954, 1
  %vm1135 = vcmp.eq.s32.totalorder %v957, 1
  %vm1136 = vcmp.eq.s32.totalorder %v960, 1
  %vm1137 = vcmp.eq.s32.totalorder %v963, 1
  %vm1138 = vcmp.eq.s32.totalorder %v966, 1
  %vm1139 = vcmp.eq.s32.totalorder %v969, 1
  %vm1140 = vcmp.eq.s32.totalorder %v972, 1
  %vm1141 = vcmp.eq.s32.totalorder %v975, 1
  %vm1142 = vcmp.eq.s32.totalorder %v978, 1
  %vm1143 = vcmp.eq.s32.totalorder %v981, 1
  %vm1144 = vcmp.eq.s32.totalorder %v984, 1
  %vm1145 = vcmp.eq.s32.totalorder %v987, 1
  %vm1146 = vcmp.eq.s32.totalorder %v990, 1
  %vm1147 = vcmp.eq.s32.totalorder %v993, 1
  %vm1148 = vcmp.eq.s32.totalorder %v996, 1
  %vm1149 = vcmp.eq.s32.totalorder %v999, 1
  %vm1150 = vcmp.eq.s32.totalorder %v1002, 1
  %vm1151 = vcmp.eq.s32.totalorder %v1005, 1
  %vm1152 = vcmp.eq.s32.totalorder %v1008, 1
  %vm1153 = vcmp.eq.s32.totalorder %v1011, 1
  %vm1154 = vcmp.eq.s32.totalorder %v1014, 1
  %vm1155 = vcmp.eq.s32.totalorder %v1017, 1
  %vm1156 = vcmp.eq.s32.totalorder %v1020, 1
  %vm1157 = vcmp.eq.s32.totalorder %v1023, 1
  %vm1158 = vcmp.eq.s32.totalorder %v1026, 1
  %vm1159 = vcmp.eq.s32.totalorder %v1029, 1
  %vm1160 = vcmp.eq.s32.totalorder %v1032, 1
  %vm1161 = vcmp.eq.s32.totalorder %v1035, 1
  %vm1162 = vcmp.eq.s32.totalorder %v1038, 1
  %vm1163 = vcmp.eq.s32.totalorder %v1041, 1
  %vm1164 = vcmp.eq.s32.totalorder %v1044, 1
  %vm1165 = vcmp.eq.s32.totalorder %v1047, 1
  %vm1166 = vcmp.eq.s32.totalorder %v1050, 1
  %vm1167 = vcmp.eq.s32.totalorder %v1053, 1
  %vm1168 = vcmp.eq.s32.totalorder %v1056, 1
  %vm1169 = vcmp.eq.s32.totalorder %v1059, 1
  %vm1170 = vcmp.eq.s32.totalorder %v1062, 1
  %vm1171 = vcmp.eq.s32.totalorder %v1065, 1
  %vm1172 = vcmp.eq.s32.totalorder %v1068, 1
  %vm1173 = vcmp.eq.s32.totalorder %v1071, 1
  %vm1174 = vcmp.eq.s32.totalorder %v1074, 1
  %vm1175 = vcmp.eq.s32.totalorder %v1077, 1
  %vm1176 = vcmp.eq.s32.totalorder %v1080, 1
  %v1177 = vsel %vm1081, %v409, 0.0
  %v1178 = vsel %vm1082, %v410, 0.0
  %v1179 = vsel %vm1083, %v411, 0.0
  %v1180 = vsel %vm1084, %v412, 0.0
  %v1181 = vsel %vm1085, %v413, 0.0
  %v1182 = vsel %vm1086, %v414, 0.0
  %v1183 = vsel %vm1087, %v415, 0.0
  %v1184 = vsel %vm1088, %v416, 0.0
  %v1185 = vsel %vm1089, %v417, 0.0
  %v1186 = vsel %vm1090, %v418, 0.0
  %v1187 = vsel %vm1091, %v419, 0.0
  %v1188 = vsel %vm1092, %v420, 0.0
  %v1189 = vsel %vm1093, %v421, 0.0
  %v1190 = vsel %vm1094, %v422, 0.0
  %v1191 = vsel %vm1095, %v423, 0.0
  %v1192 = vsel %vm1096, %v424, 0.0
  %v1193 = vsel %vm1097, %v425, 0.0
  %v1194 = vsel %vm1098, %v426, 0.0
  %v1195 = vsel %vm1099, %v427, 0.0
  %v1196 = vsel %vm1100, %v428, 0.0
  %v1197 = vsel %vm1101, %v429, 0.0
  %v1198 = vsel %vm1102, %v430, 0.0
  %v1199 = vsel %vm1103, %v431, 0.0
  %v1200 = vsel %vm1104, %v432, 0.0
  %v1201 = vsel %vm1105, %v433, 0.0
  %v1202 = vsel %vm1106, %v434, 0.0
  %v1203 = vsel %vm1107, %v435, 0.0
  %v1204 = vsel %vm1108, %v436, 0.0
  %v1205 = vsel %vm1109, %v437, 0.0
  %v1206 = vsel %vm1110, %v438, 0.0
  %v1207 = vsel %vm1111, %v439, 0.0
  %v1208 = vsel %vm1112, %v440, 0.0
  %v1209 = vsel %vm1113, %v441, 0.0
  %v1210 = vsel %vm1114, %v442, 0.0
  %v1211 = vsel %vm1115, %v443, 0.0
  %v1212 = vsel %vm1116, %v444, 0.0
  %v1213 = vsel %vm1117, %v445, 0.0
  %v1214 = vsel %vm1118, %v446, 0.0
  %v1215 = vsel %vm1119, %v447, 0.0
  %v1216 = vsel %vm1120, %v448, 0.0
  %v1217 = vsel %vm1121, %v449, 0.0
  %v1218 = vsel %vm1122, %v450, 0.0
  %v1219 = vsel %vm1123, %v451, 0.0
  %v1220 = vsel %vm1124, %v452, 0.0
  %v1221 = vsel %vm1125, %v453, 0.0
  %v1222 = vsel %vm1126, %v454, 0.0
  %v1223 = vsel %vm1127, %v455, 0.0
  %v1224 = vsel %vm1128, %v456, 0.0
  %v1225 = vsel %vm1129, %v457, 0.0
  %v1226 = vsel %vm1130, %v458, 0.0
  %v1227 = vsel %vm1131, %v459, 0.0
  %v1228 = vsel %vm1132, %v460, 0.0
  %v1229 = vsel %vm1133, %v461, 0.0
  %v1230 = vsel %vm1134, %v462, 0.0
  %v1231 = vsel %vm1135, %v463, 0.0
  %v1232 = vsel %vm1136, %v464, 0.0
  %v1233 = vsel %vm1137, %v465, 0.0
  %v1234 = vsel %vm1138, %v466, 0.0
  %v1235 = vsel %vm1139, %v467, 0.0
  %v1236 = vsel %vm1140, %v468, 0.0
  %v1237 = vsel %vm1141, %v469, 0.0
  %v1238 = vsel %vm1142, %v470, 0.0
  %v1239 = vsel %vm1143, %v471, 0.0
  %v1240 = vsel %vm1144, %v472, 0.0
  %v1241 = vsel %vm1145, %v473, 0.0
  %v1242 = vsel %vm1146, %v474, 0.0
  %v1243 = vsel %vm1147, %v475, 0.0
  %v1244 = vsel %vm1148, %v476, 0.0
  %v1245 = vsel %vm1149, %v477, 0.0
  %v1246 = vsel %vm1150, %v478, 0.0
  %v1247 = vsel %vm1151, %v479, 0.0
  %v1248 = vsel %vm1152, %v480, 0.0
  %v1249 = vsel %vm1153, %v481, 0.0
  %v1250 = vsel %vm1154, %v482, 0.0
  %v1251 = vsel %vm1155, %v483, 0.0
  %v1252 = vsel %vm1156, %v484, 0.0
  %v1253 = vsel %vm1157, %v485, 0.0
  %v1254 = vsel %vm1158, %v486, 0.0
  %v1255 = vsel %vm1159, %v487, 0.0
  %v1256 = vsel %vm1160, %v488, 0.0
  %v1257 = vsel %vm1161, %v489, 0.0
  %v1258 = vsel %vm1162, %v490, 0.0
  %v1259 = vsel %vm1163, %v491, 0.0
  %v1260 = vsel %vm1164, %v492, 0.0
  %v1261 = vsel %vm1165, %v493, 0.0
  %v1262 = vsel %vm1166, %v494, 0.0
  %v1263 = vsel %vm1167, %v495, 0.0
  %v1264 = vsel %vm1168, %v496, 0.0
  %v1265 = vsel %vm1169, %v497, 0.0
  %v1266 = vsel %vm1170, %v498, 0.0
  %v1267 = vsel %vm1171, %v499, 0.0
  %v1268 = vsel %vm1172, %v500, 0.0
  %v1269 = vsel %vm1173, %v501, 0.0
  %v1270 = vsel %vm1174, %v502, 0.0
  %v1271 = vsel %vm1175, %v503, 0.0
  %v1272 = vsel %vm1176, %v504, 0.0
  %v1273 = vpack.c.bf16 %v1177, %v1177
  %v1274 = vpack.c.bf16 %v1178, %v1178
  %v1275 = vpack.c.bf16 %v1179, %v1179
  %v1276 = vpack.c.bf16 %v1180, %v1180
  %v1277 = vpack.c.bf16 %v1181, %v1181
  %v1278 = vpack.c.bf16 %v1182, %v1182
  %v1279 = vpack.c.bf16 %v1183, %v1183
  %v1280 = vpack.c.bf16 %v1184, %v1184
  %v1281 = vpack.c.bf16 %v1185, %v1185
  %v1282 = vpack.c.bf16 %v1186, %v1186
  %v1283 = vpack.c.bf16 %v1187, %v1187
  %v1284 = vpack.c.bf16 %v1188, %v1188
  %v1285 = vpack.c.bf16 %v1189, %v1189
  %v1286 = vpack.c.bf16 %v1190, %v1190
  %v1287 = vpack.c.bf16 %v1191, %v1191
  %v1288 = vpack.c.bf16 %v1192, %v1192
  %v1289 = vpack.c.bf16 %v1193, %v1193
  %v1290 = vpack.c.bf16 %v1194, %v1194
  %v1291 = vpack.c.bf16 %v1195, %v1195
  %v1292 = vpack.c.bf16 %v1196, %v1196
  %v1293 = vpack.c.bf16 %v1197, %v1197
  %v1294 = vpack.c.bf16 %v1198, %v1198
  %v1295 = vpack.c.bf16 %v1199, %v1199
  %v1296 = vpack.c.bf16 %v1200, %v1200
  %v1297 = vpack.c.bf16 %v1201, %v1201
  %v1298 = vpack.c.bf16 %v1202, %v1202
  %v1299 = vpack.c.bf16 %v1203, %v1203
  %v1300 = vpack.c.bf16 %v1204, %v1204
  %v1301 = vpack.c.bf16 %v1205, %v1205
  %v1302 = vpack.c.bf16 %v1206, %v1206
  %v1303 = vpack.c.bf16 %v1207, %v1207
  %v1304 = vpack.c.bf16 %v1208, %v1208
  %v1305 = vpack.c.bf16 %v1209, %v1209
  %v1306 = vpack.c.bf16 %v1210, %v1210
  %v1307 = vpack.c.bf16 %v1211, %v1211
  %v1308 = vpack.c.bf16 %v1212, %v1212
  %v1309 = vpack.c.bf16 %v1213, %v1213
  %v1310 = vpack.c.bf16 %v1214, %v1214
  %v1311 = vpack.c.bf16 %v1215, %v1215
  %v1312 = vpack.c.bf16 %v1216, %v1216
  %v1313 = vpack.c.bf16 %v1217, %v1217
  %v1314 = vpack.c.bf16 %v1218, %v1218
  %v1315 = vpack.c.bf16 %v1219, %v1219
  %v1316 = vpack.c.bf16 %v1220, %v1220
  %v1317 = vpack.c.bf16 %v1221, %v1221
  %v1318 = vpack.c.bf16 %v1222, %v1222
  %v1319 = vpack.c.bf16 %v1223, %v1223
  %v1320 = vpack.c.bf16 %v1224, %v1224
  %v1321 = vpack.c.bf16 %v1225, %v1225
  %v1322 = vpack.c.bf16 %v1226, %v1226
  %v1323 = vpack.c.bf16 %v1227, %v1227
  %v1324 = vpack.c.bf16 %v1228, %v1228
  %v1325 = vpack.c.bf16 %v1229, %v1229
  %v1326 = vpack.c.bf16 %v1230, %v1230
  %v1327 = vpack.c.bf16 %v1231, %v1231
  %v1328 = vpack.c.bf16 %v1232, %v1232
  %v1329 = vpack.c.bf16 %v1233, %v1233
  %v1330 = vpack.c.bf16 %v1234, %v1234
  %v1331 = vpack.c.bf16 %v1235, %v1235
  %v1332 = vpack.c.bf16 %v1236, %v1236
  %v1333 = vpack.c.bf16 %v1237, %v1237
  %v1334 = vpack.c.bf16 %v1238, %v1238
  %v1335 = vpack.c.bf16 %v1239, %v1239
  %v1336 = vpack.c.bf16 %v1240, %v1240
  %v1337 = vpack.c.bf16 %v1241, %v1241
  %v1338 = vpack.c.bf16 %v1242, %v1242
  %v1339 = vpack.c.bf16 %v1243, %v1243
  %v1340 = vpack.c.bf16 %v1244, %v1244
  %v1341 = vpack.c.bf16 %v1245, %v1245
  %v1342 = vpack.c.bf16 %v1246, %v1246
  %v1343 = vpack.c.bf16 %v1247, %v1247
  %v1344 = vpack.c.bf16 %v1248, %v1248
  %v1345 = vpack.c.bf16 %v1249, %v1249
  %v1346 = vpack.c.bf16 %v1250, %v1250
  %v1347 = vpack.c.bf16 %v1251, %v1251
  %v1348 = vpack.c.bf16 %v1252, %v1252
  %v1349 = vpack.c.bf16 %v1253, %v1253
  %v1350 = vpack.c.bf16 %v1254, %v1254
  %v1351 = vpack.c.bf16 %v1255, %v1255
  %v1352 = vpack.c.bf16 %v1256, %v1256
  %v1353 = vpack.c.bf16 %v1257, %v1257
  %v1354 = vpack.c.bf16 %v1258, %v1258
  %v1355 = vpack.c.bf16 %v1259, %v1259
  %v1356 = vpack.c.bf16 %v1260, %v1260
  %v1357 = vpack.c.bf16 %v1261, %v1261
  %v1358 = vpack.c.bf16 %v1262, %v1262
  %v1359 = vpack.c.bf16 %v1263, %v1263
  %v1360 = vpack.c.bf16 %v1264, %v1264
  %v1361 = vpack.c.bf16 %v1265, %v1265
  %v1362 = vpack.c.bf16 %v1266, %v1266
  %v1363 = vpack.c.bf16 %v1267, %v1267
  %v1364 = vpack.c.bf16 %v1268, %v1268
  %v1365 = vpack.c.bf16 %v1269, %v1269
  %v1366 = vpack.c.bf16 %v1270, %v1270
  %v1367 = vpack.c.bf16 %v1271, %v1271
  %v1368 = vpack.c.bf16 %v1272, %v1272
  %1369 = vst [vmem:[%s4] sm:$0xf] %v1273
  %1370 = vst [vmem:[%s4 + $0x4] sm:$0xf] %v1274
  %1371 = vst [vmem:[%s4 + $0x8] sm:$0xf] %v1275
  %1372 = vst [vmem:[%s4 + $0xc] sm:$0xf] %v1276
  %1373 = vst [vmem:[%s4 + $0x10] sm:$0xf] %v1277
  %1374 = vst [vmem:[%s4 + $0x14] sm:$0xf] %v1278
  %1375 = vst [vmem:[%s4 + $0x18] sm:$0xf] %v1279
  %1376 = vst [vmem:[%s4 + $0x1c] sm:$0xf] %v1280
  %1377 = vst [vmem:[%s4 + $0x20] sm:$0xf] %v1281
  %1378 = vst [vmem:[%s4 + $0x24] sm:$0xf] %v1282
  %1379 = vst [vmem:[%s4 + $0x28] sm:$0xf] %v1283
  %1380 = vst [vmem:[%s4 + $0x2c] sm:$0xf] %v1284
  %1381 = vst [vmem:[%s4 + $0x30] sm:$0xf] %v1285
  %1382 = vst [vmem:[%s4 + $0x34] sm:$0xf] %v1286
  %1383 = vst [vmem:[%s4 + $0x38] sm:$0xf] %v1287
  %1384 = vst [vmem:[%s4 + $0x3c] sm:$0xf] %v1288
  %1385 = vst [vmem:[%s4 + $0x40] sm:$0xf] %v1289
  %1386 = vst [vmem:[%s4 + $0x44] sm:$0xf] %v1290
  %1387 = vst [vmem:[%s4 + $0x48] sm:$0xf] %v1291
  %1388 = vst [vmem:[%s4 + $0x4c] sm:$0xf] %v1292
  %1389 = vst [vmem:[%s4 + $0x50] sm:$0xf] %v1293
  %1390 = vst [vmem:[%s4 + $0x54] sm:$0xf] %v1294
  %1391 = vst [vmem:[%s4 + $0x58] sm:$0xf] %v1295
  %1392 = vst [vmem:[%s4 + $0x5c] sm:$0xf] %v1296
  %1393 = vst [vmem:[%s4 + $0x60] sm:$0xf] %v1297
  %1394 = vst [vmem:[%s4 + $0x64] sm:$0xf] %v1298
  %1395 = vst [vmem:[%s4 + $0x68] sm:$0xf] %v1299
  %1396 = vst [vmem:[%s4 + $0x6c] sm:$0xf] %v1300
  %1397 = vst [vmem:[%s4 + $0x70] sm:$0xf] %v1301
  %1398 = vst [vmem:[%s4 + $0x74] sm:$0xf] %v1302
  %1399 = vst [vmem:[%s4 + $0x78] sm:$0xf] %v1303
  %1400 = vst [vmem:[%s4 + $0x7c] sm:$0xf] %v1304
  %1401 = vst [vmem:[%s4 + $0x80] sm:$0xf] %v1305
  %1402 = vst [vmem:[%s4 + $0x84] sm:$0xf] %v1306
  %1403 = vst [vmem:[%s4 + $0x88] sm:$0xf] %v1307
  %1404 = vst [vmem:[%s4 + $0x8c] sm:$0xf] %v1308
  %1405 = vst [vmem:[%s4 + $0x90] sm:$0xf] %v1309
  %1406 = vst [vmem:[%s4 + $0x94] sm:$0xf] %v1310
  %1407 = vst [vmem:[%s4 + $0x98] sm:$0xf] %v1311
  %1408 = vst [vmem:[%s4 + $0x9c] sm:$0xf] %v1312
  %1409 = vst [vmem:[%s4 + $0xa0] sm:$0xf] %v1313
  %1410 = vst [vmem:[%s4 + $0xa4] sm:$0xf] %v1314
  %1411 = vst [vmem:[%s4 + $0xa8] sm:$0xf] %v1315
  %1412 = vst [vmem:[%s4 + $0xac] sm:$0xf] %v1316
  %1413 = vst [vmem:[%s4 + $0xb0] sm:$0xf] %v1317
  %1414 = vst [vmem:[%s4 + $0xb4] sm:$0xf] %v1318
  %1415 = vst [vmem:[%s4 + $0xb8] sm:$0xf] %v1319
  %1416 = vst [vmem:[%s4 + $0xbc] sm:$0xf] %v1320
  %1417 = vst [vmem:[%s4 + $0xc0] sm:$0xf] %v1321
  %1418 = vst [vmem:[%s4 + $0xc4] sm:$0xf] %v1322
  %1419 = vst [vmem:[%s4 + $0xc8] sm:$0xf] %v1323
  %1420 = vst [vmem:[%s4 + $0xcc] sm:$0xf] %v1324
  %1421 = vst [vmem:[%s4 + $0xd0] sm:$0xf] %v1325
  %1422 = vst [vmem:[%s4 + $0xd4] sm:$0xf] %v1326
  %1423 = vst [vmem:[%s4 + $0xd8] sm:$0xf] %v1327
  %1424 = vst [vmem:[%s4 + $0xdc] sm:$0xf] %v1328
  %1425 = vst [vmem:[%s4 + $0xe0] sm:$0xf] %v1329
  %1426 = vst [vmem:[%s4 + $0xe4] sm:$0xf] %v1330
  %1427 = vst [vmem:[%s4 + $0xe8] sm:$0xf] %v1331
  %1428 = vst [vmem:[%s4 + $0xec] sm:$0xf] %v1332
  %1429 = vst [vmem:[%s4 + $0xf0] sm:$0xf] %v1333
  %1430 = vst [vmem:[%s4 + $0xf4] sm:$0xf] %v1334
  %1431 = vst [vmem:[%s4 + $0xf8] sm:$0xf] %v1335
  %1432 = vst [vmem:[%s4 + $0xfc] sm:$0xf] %v1336
  %1433 = vst [vmem:[%s4 + $0x100] sm:$0xf] %v1337
  %1434 = vst [vmem:[%s4 + $0x104] sm:$0xf] %v1338
  %1435 = vst [vmem:[%s4 + $0x108] sm:$0xf] %v1339
  %1436 = vst [vmem:[%s4 + $0x10c] sm:$0xf] %v1340
  %1437 = vst [vmem:[%s4 + $0x110] sm:$0xf] %v1341
  %1438 = vst [vmem:[%s4 + $0x114] sm:$0xf] %v1342
  %1439 = vst [vmem:[%s4 + $0x118] sm:$0xf] %v1343
  %1440 = vst [vmem:[%s4 + $0x11c] sm:$0xf] %v1344
  %1441 = vst [vmem:[%s4 + $0x120] sm:$0xf] %v1345
  %1442 = vst [vmem:[%s4 + $0x124] sm:$0xf] %v1346
  %1443 = vst [vmem:[%s4 + $0x128] sm:$0xf] %v1347
  %1444 = vst [vmem:[%s4 + $0x12c] sm:$0xf] %v1348
  %1445 = vst [vmem:[%s4 + $0x130] sm:$0xf] %v1349
  %1446 = vst [vmem:[%s4 + $0x134] sm:$0xf] %v1350
  %1447 = vst [vmem:[%s4 + $0x138] sm:$0xf] %v1351
  %1448 = vst [vmem:[%s4 + $0x13c] sm:$0xf] %v1352
  %1449 = vst [vmem:[%s4 + $0x140] sm:$0xf] %v1353
  %1450 = vst [vmem:[%s4 + $0x144] sm:$0xf] %v1354
  %1451 = vst [vmem:[%s4 + $0x148] sm:$0xf] %v1355
  %1452 = vst [vmem:[%s4 + $0x14c] sm:$0xf] %v1356
  %1453 = vst [vmem:[%s4 + $0x150] sm:$0xf] %v1357
  %1454 = vst [vmem:[%s4 + $0x154] sm:$0xf] %v1358
  %1455 = vst [vmem:[%s4 + $0x158] sm:$0xf] %v1359
  %1456 = vst [vmem:[%s4 + $0x15c] sm:$0xf] %v1360
  %1457 = vst [vmem:[%s4 + $0x160] sm:$0xf] %v1361
  %1458 = vst [vmem:[%s4 + $0x164] sm:$0xf] %v1362
  %1459 = vst [vmem:[%s4 + $0x168] sm:$0xf] %v1363
  %1460 = vst [vmem:[%s4 + $0x16c] sm:$0xf] %v1364
  %1461 = vst [vmem:[%s4 + $0x170] sm:$0xf] %v1365
  %1462 = vst [vmem:[%s4 + $0x174] sm:$0xf] %v1366
  %1463 = vst [vmem:[%s4 + $0x178] sm:$0xf] %v1367
  %1464 = vst [vmem:[%s4 + $0x17c] sm:$0xf] %v1368
  // Predicated region
  $region18: #{basic_block_forward.5} parent=0 // pred_check
    _
  $region19: #{basic_block_forward.5} parent=0 // pred_check_branch
    %1466 = sbr.rel (0) target = $region21
  $region20: #{basic_block_forward.5} parent=0 // pred_region
    _
  $region21: #{basic_block_forward.5} parent=0 // pred_fallthru
    _
  // Predicated region
  $region22: #{basic_block_forward.5} parent=0 // pred_check
    _
  $region23: #{basic_block_forward.5} parent=0 // pred_check_branch
    %1468 = sbr.rel (0) target = $region25
  $region24: #{basic_block_forward.5} parent=0 // pred_region
    _
  $region25: #{basic_block_forward.5} parent=0 // pred_fallthru
    _

// kernel: basic_block_forward.6
$region0: #{basic_block_forward.6}
  #allocation0 [shape = 'u32[]', space=smem, size = 0x4, offset = 0x4, fixed_abs, tag = 'smem constant byte address 0x4 - core index']
  #allocation1 [shape = 'u32[72,128]{1,0:T(1,128)}', space=vmem, size = 0x9000, scoped, tag = 'internal scratch']
  %s0 = inlined_call_operand.vmem [shape: bf16[768,128], index: 0, kind: input, shape index: {}, may-alias: {0,1,2}]
  %s1 = inlined_call_operand.vmem [shape: bf16[768,128], index: 1, kind: input, shape index: {}, may-alias: {0,1,2}]
  %s2 = inlined_call_operand.vmem [shape: bf16[768,128], index: 2, kind: input, shape index: {}, may-alias: {0,1,2}]
  %s3 = inlined_call_operand.vmem [shape: bf16[9,128,128], index: 3, kind: input, shape index: {}]
  %s4 = inlined_call_operand.vmem [shape: f32[768,1], index: 4, kind: input, shape index: {}]
  %s5 = inlined_call_operand.vmem [shape: bf16[768,4], index: 5, kind: input, shape index: {}]
  %s6 = inlined_call_operand.vmem [shape: bf16[4,128], index: 6, kind: input, shape index: {}]
  %s7 = inlined_call_operand.vmem [shape: bf16[768,128], index: 7, kind: output, shape index: {0}]
  %s8 = inlined_call_operand.vmem [shape: f32[3,1,128], index: 8, kind: output, shape index: {1}]
  %s9 = inlined_call_operand.vmem [shape: f32[3,1,128], index: 9, kind: output, shape index: {2}]
  %s10 = inlined_call_operand.vmem [shape: bf16[768,128], index: 10, kind: output, shape index: {3}]
  %s11 = inlined_call_operand.vmem [shape: f32[3,1,128], index: 11, kind: output, shape index: {4}]
  %s12 = inlined_call_operand.vmem [shape: f32[3,1,128], index: 12, kind: output, shape index: {5}]
  %13 = xla_tuple %s7, %s8, %s9, %s10, %s11, %s12
  %s14 = sld [smem:[#allocation0]]
  $region101: #{basic_block_forward.6} parent=0
    _
  %s16 = ssub.s32 1, %s14
  %s17 = scalar_select 0, %s16, %s14
  loop: start=0, step=1, limit=5
  $region2: #{basic_block_forward.6} parent=0 // loop_pre_header
    _
  $region3: #{basic_block_forward.6} parent=0 // loop_header
    %s19 = sphi 0, %s23
    %p20 = scmp.ge.s32.totalorder %s19, 5
    %s37 = sphi 0, %s39
    %s40 = sphi 0, %s37
    %s41 = sphi 0, %s40
    %s57 = sphi 0, %s41
    %s63 = sphi 0, %s65
    %s66 = sphi 0, %s63
    %s67 = sphi 0, %s66
    %s83 = sphi 0, %s67
    %s97 = sphi 0, %s99
    %s100 = sphi 0, %s97
    %s101 = sphi 0, %s100
    %s117 = sphi 0, %s101
    %s121 = sphi 0, %s121
    %s123 = sphi 0, %s121
    %s124 = sphi 0, %s123
    %s138 = sphi 0, %s124
    %s144 = sphi 0, %s146
    %s147 = sphi 0, %s144
    %s148 = sphi 0, %s147
    %s164 = sphi 0, %s148
    %s170 = sphi 0, %s172
    %s173 = sphi 0, %s170
    %s174 = sphi 0, %s173
    %s190 = sphi 0, %s174
    %s194 = sphi 0, %s194
    %s196 = sphi 0, %s194
    %s197 = sphi 0, %s196
    %s211 = sphi 0, %s197
    %s217 = sphi 0, %s219
    %s220 = sphi 0, %s217
    %s221 = sphi 0, %s220
    %s237 = sphi 0, %s221
    %s243 = sphi 0, %s245
    %s246 = sphi 0, %s243
    %s247 = sphi 0, %s246
    %s263 = sphi 0, %s247
    %s269 = sphi 0, %s271
    %s272 = sphi 0, %s269
    %s273 = sphi 0, %s272
    %s289 = sphi 0, %s273
    %s295 = sphi 0, %s297
    %s298 = sphi 0, %s295
    %s299 = sphi 0, %s298
    %s315 = sphi 0, %s299
    %s321 = sphi 0, %s323
    %s324 = sphi 0, %s321
    %s325 = sphi 0, %s324
    %s341 = sphi 0, %s325
    %s347 = sphi 0, %s349
    %s350 = sphi 0, %s347
    %s351 = sphi 0, %s350
    %s367 = sphi 0, %s351
  $region4: #{basic_block_forward.6} parent=0 // loop_header_branch
    %22 = sbr.rel (%p20) target = $region8
  $region5: #{basic_block_forward.6} parent=0 // loop_body
    %s24 = ssub.s32 %s19, 1
    %s25 = ssub.s32 %s19, 2
    %s26 = sadd.s32 %s19, 1
    %s27 = smul.u32 %s19, 8
    %s28 = ssub.s32 %s27, 1
    %p29 = scmp.gt.s32.totalorder %s28, 0
    %s30 = scalar_select %p29, %s28, 0
    %s31 = smul.u32 %s26, 8
    %s32 = ssub.s32 %s31, 1
    %p33 = scmp.gt.s32.totalorder %s32, 0
    %s34 = scalar_select %p33, %s32, 0
    %s35 = ssub.s32 %s30, %s34
    %p36 = scmp.eq.s32.totalorder %s35, 0
    %s38 = sadd.s32 %s37, 1
    %s39 = scalar_select %p36, %s37, %s38
    %p42 = pneg %p36
    %p43 = scmp.eq.s32.totalorder %s19, 2
    %p44 = por %p42, %p43
    %p45 = scmp.ne.s32.totalorder %s37, %s40
    %p46 = scmp.eq.s32.totalorder %s19, 0
    %p47 = por %p45, %p46
    %p48 = scmp.ne.s32.totalorder %s37, %s40
    %p49 = scmp.eq.s32.totalorder %s24, 2
    %p50 = por %p48, %p49
    %p51 = scmp.ne.s32.totalorder %s40, %s41
    %p52 = scmp.eq.s32.totalorder %s24, 0
    %p53 = por %p51, %p52
    %p54 = scmp.ne.s32.totalorder %s40, %s41
    %p55 = scmp.eq.s32.totalorder %s25, 2
    %p56 = por %p54, %p55
    %p58 = scmp.ne.s32.totalorder %s41, %s57
    %p59 = scmp.eq.s32.totalorder %s25, 0
    %p60 = por %p58, %p59
    %s61 = ssub.s32 %s19, %s26
    %p62 = scmp.eq.s32.totalorder %s61, 0
    %s64 = sadd.s32 %s63, 1
    %s65 = scalar_select %p62, %s63, %s64
    %p68 = pneg %p62
    %p69 = scmp.eq.s32.totalorder %s19, 2
    %p70 = por %p68, %p69
    %p71 = scmp.ne.s32.totalorder %s63, %s66
    %p72 = scmp.eq.s32.totalorder %s19, 0
    %p73 = por %p71, %p72
    %p74 = scmp.ne.s32.totalorder %s63, %s66
    %p75 = scmp.eq.s32.totalorder %s24, 2
    %p76 = por %p74, %p75
    %p77 = scmp.ne.s32.totalorder %s66, %s67
    %p78 = scmp.eq.s32.totalorder %s24, 0
    %p79 = por %p77, %p78
    %p80 = scmp.ne.s32.totalorder %s66, %s67
    %p81 = scmp.eq.s32.totalorder %s25, 2
    %p82 = por %p80, %p81
    %p84 = scmp.ne.s32.totalorder %s67, %s83
    %p85 = scmp.eq.s32.totalorder %s25, 0
    %p86 = por %p84, %p85
    %s87 = sadd.s32 %s19, 1
    %s88 = smul.u32 %s87, 8
    %p89 = scmp.lt.s32.totalorder %s88, 23
    %s90 = scalar_select %p89, %s88, 23
    %s91 = sadd.s32 %s26, 1
    %s92 = smul.u32 %s91, 8
    %p93 = scmp.lt.s32.totalorder %s92, 23
    %s94 = scalar_select %p93, %s92, 23
    %s95 = ssub.s32 %s90, %s94
    %p96 = scmp.eq.s32.totalorder %s95, 0
    %s98 = sadd.s32 %s97, 1
    %s99 = scalar_select %p96, %s97, %s98
    %p102 = pneg %p96
    %p103 = scmp.eq.s32.totalorder %s19, 2
    %p104 = por %p102, %p103
    %p105 = scmp.ne.s32.totalorder %s97, %s100
    %p106 = scmp.eq.s32.totalorder %s19, 0
    %p107 = por %p105, %p106
    %p108 = scmp.ne.s32.totalorder %s97, %s100
    %p109 = scmp.eq.s32.totalorder %s24, 2
    %p110 = por %p108, %p109
    %p111 = scmp.ne.s32.totalorder %s100, %s101
    %p112 = scmp.eq.s32.totalorder %s24, 0
    %p113 = por %p111, %p112
    %p114 = scmp.ne.s32.totalorder %s100, %s101
    %p115 = scmp.eq.s32.totalorder %s25, 2
    %p116 = por %p114, %p115
    %p118 = scmp.ne.s32.totalorder %s101, %s117
    %p119 = scmp.eq.s32.totalorder %s25, 0
    %p120 = por %p118, %p119
    %s122 = sadd.s32 %s121, 1
    %p125 = scmp.eq.s32.totalorder %s19, 2
    %p126 = scmp.ne.s32.totalorder %s121, %s123
    %p127 = scmp.eq.s32.totalorder %s19, 0
    %p128 = por %p126, %p127
    %p129 = scmp.ne.s32.totalorder %s121, %s123
    %p130 = scmp.eq.s32.totalorder %s24, 2
    %p131 = por %p129, %p130
    %p132 = scmp.ne.s32.totalorder %s123, %s124
    %p133 = scmp.eq.s32.totalorder %s24, 0
    %p134 = por %p132, %p133
    %p135 = scmp.ne.s32.totalorder %s123, %s124
    %p136 = scmp.eq.s32.totalorder %s25, 2
    %p137 = por %p135, %p136
    %p139 = scmp.ne.s32.totalorder %s124, %s138
    %p140 = scmp.eq.s32.totalorder %s25, 0
    %p141 = por %p139, %p140
    %s142 = ssub.s32 %s19, %s26
    %p143 = scmp.eq.s32.totalorder %s142, 0
    %s145 = sadd.s32 %s144, 1
    %s146 = scalar_select %p143, %s144, %s145
    %p149 = pneg %p143
    %p150 = scmp.eq.s32.totalorder %s19, 2
    %p151 = por %p149, %p150
    %p152 = scmp.ne.s32.totalorder %s144, %s147
    %p153 = scmp.eq.s32.totalorder %s19, 0
    %p154 = por %p152, %p153
    %p155 = scmp.ne.s32.totalorder %s144, %s147
    %p156 = scmp.eq.s32.totalorder %s24, 2
    %p157 = por %p155, %p156
    %p158 = scmp.ne.s32.totalorder %s147, %s148
    %p159 = scmp.eq.s32.totalorder %s24, 0
    %p160 = por %p158, %p159
    %p161 = scmp.ne.s32.totalorder %s147, %s148
    %p162 = scmp.eq.s32.totalorder %s25, 2
    %p163 = por %p161, %p162
    %p165 = scmp.ne.s32.totalorder %s148, %s164
    %p166 = scmp.eq.s32.totalorder %s25, 0
    %p167 = por %p165, %p166
    %s168 = ssub.s32 %s19, %s26
    %p169 = scmp.eq.s32.totalorder %s168, 0
    %s171 = sadd.s32 %s170, 1
    %s172 = scalar_select %p169, %s170, %s171
    %p175 = pneg %p169
    %p176 = scmp.eq.s32.totalorder %s19, 2
    %p177 = por %p175, %p176
    %p178 = scmp.ne.s32.totalorder %s170, %s173
    %p179 = scmp.eq.s32.totalorder %s19, 0
    %p180 = por %p178, %p179
    %p181 = scmp.ne.s32.totalorder %s170, %s173
    %p182 = scmp.eq.s32.totalorder %s24, 2
    %p183 = por %p181, %p182
    %p184 = scmp.ne.s32.totalorder %s173, %s174
    %p185 = scmp.eq.s32.totalorder %s24, 0
    %p186 = por %p184, %p185
    %p187 = scmp.ne.s32.totalorder %s173, %s174
    %p188 = scmp.eq.s32.totalorder %s25, 2
    %p189 = por %p187, %p188
    %p191 = scmp.ne.s32.totalorder %s174, %s190
    %p192 = scmp.eq.s32.totalorder %s25, 0
    %p193 = por %p191, %p192
    %s195 = sadd.s32 %s194, 1
    %p198 = scmp.eq.s32.totalorder %s19, 2
    %p199 = scmp.ne.s32.totalorder %s194, %s196
    %p200 = scmp.eq.s32.totalorder %s19, 0
    %p201 = por %p199, %p200
    %p202 = scmp.ne.s32.totalorder %s194, %s196
    %p203 = scmp.eq.s32.totalorder %s24, 2
    %p204 = por %p202, %p203
    %p205 = scmp.ne.s32.totalorder %s196, %s197
    %p206 = scmp.eq.s32.totalorder %s24, 0
    %p207 = por %p205, %p206
    %p208 = scmp.ne.s32.totalorder %s196, %s197
    %p209 = scmp.eq.s32.totalorder %s25, 2
    %p210 = por %p208, %p209
    %p212 = scmp.ne.s32.totalorder %s197, %s211
    %p213 = scmp.eq.s32.totalorder %s25, 0
    %p214 = por %p212, %p213
    %s215 = ssub.s32 %s19, %s26
    %p216 = scmp.eq.s32.totalorder %s215, 0
    %s218 = sadd.s32 %s217, 1
    %s219 = scalar_select %p216, %s217, %s218
    %p222 = pneg %p216
    %p223 = scmp.eq.s32.totalorder %s19, 2
    %p224 = por %p222, %p223
    %p225 = scmp.ne.s32.totalorder %s217, %s220
    %p226 = scmp.eq.s32.totalorder %s19, 0
    %p227 = por %p225, %p226
    %p228 = scmp.ne.s32.totalorder %s217, %s220
    %p229 = scmp.eq.s32.totalorder %s24, 2
    %p230 = por %p228, %p229
    %p231 = scmp.ne.s32.totalorder %s220, %s221
    %p232 = scmp.eq.s32.totalorder %s24, 0
    %p233 = por %p231, %p232
    %p234 = scmp.ne.s32.totalorder %s220, %s221
    %p235 = scmp.eq.s32.totalorder %s25, 2
    %p236 = por %p234, %p235
    %p238 = scmp.ne.s32.totalorder %s221, %s237
    %p239 = scmp.eq.s32.totalorder %s25, 0
    %p240 = por %p238, %p239
    %s241 = ssub.s32 %s19, %s26
    %p242 = scmp.eq.s32.totalorder %s241, 0
    %s244 = sadd.s32 %s243, 1
    %s245 = scalar_select %p242, %s243, %s244
    %p248 = pneg %p242
    %p249 = scmp.eq.s32.totalorder %s19, 2
    %p250 = por %p248, %p249
    %p251 = scmp.ne.s32.totalorder %s243, %s246
    %p252 = scmp.eq.s32.totalorder %s19, 0
    %p253 = por %p251, %p252
    %p254 = scmp.ne.s32.totalorder %s243, %s246
    %p255 = scmp.eq.s32.totalorder %s24, 2
    %p256 = por %p254, %p255
    %p257 = scmp.ne.s32.totalorder %s246, %s247
    %p258 = scmp.eq.s32.totalorder %s24, 0
    %p259 = por %p257, %p258
    %p260 = scmp.ne.s32.totalorder %s246, %s247
    %p261 = scmp.eq.s32.totalorder %s25, 2
    %p262 = por %p260, %p261
    %p264 = scmp.ne.s32.totalorder %s247, %s263
    %p265 = scmp.eq.s32.totalorder %s25, 0
    %p266 = por %p264, %p265
    %s267 = ssub.s32 %s19, %s26
    %p268 = scmp.eq.s32.totalorder %s267, 0
    %s270 = sadd.s32 %s269, 1
    %s271 = scalar_select %p268, %s269, %s270
    %p274 = pneg %p268
    %p275 = scmp.eq.s32.totalorder %s19, 2
    %p276 = por %p274, %p275
    %p277 = scmp.ne.s32.totalorder %s269, %s272
    %p278 = scmp.eq.s32.totalorder %s19, 0
    %p279 = por %p277, %p278
    %p280 = scmp.ne.s32.totalorder %s269, %s272
    %p281 = scmp.eq.s32.totalorder %s24, 2
    %p282 = por %p280, %p281
    %p283 = scmp.ne.s32.totalorder %s272, %s273
    %p284 = scmp.eq.s32.totalorder %s24, 0
    %p285 = por %p283, %p284
    %p286 = scmp.ne.s32.totalorder %s272, %s273
    %p287 = scmp.eq.s32.totalorder %s25, 2
    %p288 = por %p286, %p287
    %p290 = scmp.ne.s32.totalorder %s273, %s289
    %p291 = scmp.eq.s32.totalorder %s25, 0
    %p292 = por %p290, %p291
    %s293 = ssub.s32 %s19, %s26
    %p294 = scmp.eq.s32.totalorder %s293, 0
    %s296 = sadd.s32 %s295, 1
    %s297 = scalar_select %p294, %s295, %s296
    %p300 = pneg %p294
    %p301 = scmp.eq.s32.totalorder %s19, 2
    %p302 = por %p300, %p301
    %p303 = scmp.ne.s32.totalorder %s295, %s298
    %p304 = scmp.eq.s32.totalorder %s19, 0
    %p305 = por %p303, %p304
    %p306 = scmp.ne.s32.totalorder %s295, %s298
    %p307 = scmp.eq.s32.totalorder %s24, 2
    %p308 = por %p306, %p307
    %p309 = scmp.ne.s32.totalorder %s298, %s299
    %p310 = scmp.eq.s32.totalorder %s24, 0
    %p311 = por %p309, %p310
    %p312 = scmp.ne.s32.totalorder %s298, %s299
    %p313 = scmp.eq.s32.totalorder %s25, 2
    %p314 = por %p312, %p313
    %p316 = scmp.ne.s32.totalorder %s299, %s315
    %p317 = scmp.eq.s32.totalorder %s25, 0
    %p318 = por %p316, %p317
    %s319 = ssub.s32 %s19, %s26
    %p320 = scmp.eq.s32.totalorder %s319, 0
    %s322 = sadd.s32 %s321, 1
    %s323 = scalar_select %p320, %s321, %s322
    %p326 = pneg %p320
    %p327 = scmp.eq.s32.totalorder %s19, 2
    %p328 = por %p326, %p327
    %p329 = scmp.ne.s32.totalorder %s321, %s324
    %p330 = scmp.eq.s32.totalorder %s19, 0
    %p331 = por %p329, %p330
    %p332 = scmp.ne.s32.totalorder %s321, %s324
    %p333 = scmp.eq.s32.totalorder %s24, 2
    %p334 = por %p332, %p333
    %p335 = scmp.ne.s32.totalorder %s324, %s325
    %p336 = scmp.eq.s32.totalorder %s24, 0
    %p337 = por %p335, %p336
    %p338 = scmp.ne.s32.totalorder %s324, %s325
    %p339 = scmp.eq.s32.totalorder %s25, 2
    %p340 = por %p338, %p339
    %p342 = scmp.ne.s32.totalorder %s325, %s341
    %p343 = scmp.eq.s32.totalorder %s25, 0
    %p344 = por %p342, %p343
    %s345 = ssub.s32 %s19, %s26
    %p346 = scmp.eq.s32.totalorder %s345, 0
    %s348 = sadd.s32 %s347, 1
    %s349 = scalar_select %p346, %s347, %s348
    %p352 = pneg %p346
    %p353 = scmp.eq.s32.totalorder %s19, 2
    %p354 = por %p352, %p353
    %p355 = scmp.ne.s32.totalorder %s347, %s350
    %p356 = scmp.eq.s32.totalorder %s19, 0
    %p357 = por %p355, %p356
    %p358 = scmp.ne.s32.totalorder %s347, %s350
    %p359 = scmp.eq.s32.totalorder %s24, 2
    %p360 = por %p358, %p359
    %p361 = scmp.ne.s32.totalorder %s350, %s351
    %p362 = scmp.eq.s32.totalorder %s24, 0
    %p363 = por %p361, %p362
    %p364 = scmp.ne.s32.totalorder %s350, %s351
    %p365 = scmp.eq.s32.totalorder %s25, 2
    %p366 = por %p364, %p365
    %p368 = scmp.ne.s32.totalorder %s351, %s367
    %p369 = scmp.eq.s32.totalorder %s25, 0
    %p370 = por %p368, %p369
    %p371 = scmp.le.s32.totalorder 1, %s19
    %p372 = scmp.lt.s32.totalorder %s19, 4
    %p373 = pnand %p371, %p372
    %p374 = pneg %p373
    // Predicated region
    $region9: #{basic_block_forward.6} parent=5 // pred_check
      _
    $region10: #{basic_block_forward.6} parent=5 // pred_check_branch
      %376 = sbr.rel (%p373) target = $region12
    $region11: #{basic_block_forward.6} parent=5 // pred_region
      %s377 = ssub.s32 %s19, 1
      // Predicated region
      $region13: #{basic_block_forward.6} parent=11 // pred_check
        %p378 = pneg %p134
      $region14: #{basic_block_forward.6} parent=11 // pred_check_branch
        %380 = sbr.rel (%p378) target = $region16
      $region15: #{basic_block_forward.6} parent=11 // pred_region
        _
      $region16: #{basic_block_forward.6} parent=11 // pred_fallthru
        _
      // Predicated region
      $region17: #{basic_block_forward.6} parent=11 // pred_check
        %p381 = pneg %p207
      $region18: #{basic_block_forward.6} parent=11 // pred_check_branch
        %383 = sbr.rel (%p381) target = $region20
      $region19: #{basic_block_forward.6} parent=11 // pred_region
        _
      $region20: #{basic_block_forward.6} parent=11 // pred_fallthru
        _
    $region12: #{basic_block_forward.6} parent=5 // pred_fallthru
      _
    %p384 = scmp.lt.s32.totalorder %s19, 3
    // Predicated region
    $region21: #{basic_block_forward.6} parent=5 // pred_check
      %p385 = pneg %p384
    $region22: #{basic_block_forward.6} parent=5 // pred_check_branch
      %387 = sbr.rel (%p385) target = $region24
    $region23: #{basic_block_forward.6} parent=5 // pred_region
      // Predicated region
      $region25: #{basic_block_forward.6} parent=23 // pred_check
        %p388 = pneg %p47
      $region26: #{basic_block_forward.6} parent=23 // pred_check_branch
        %390 = sbr.rel (%p388) target = $region28
      $region27: #{basic_block_forward.6} parent=23 // pred_region
        %s391 = smul.u32 %s19, 8
        %s392 = ssub.s32 %s391, 1
        %p393 = scmp.gt.s32.totalorder %s392, 0
        %s394 = scalar_select %p393, %s392, 0
        %s395 = smul.u32 4, %s394
        %p396 = scmp.lt.s32.totalorder %s395, 95
        %s397 = scalar_select %p396, %s395, 95
        %s398 = smul.addr %s397, 4
        %s399 = scalar_lea.vmem %s0, %s398
        %s400 = smul.u32 %s19, 8
        %s401 = ssub.s32 %s400, 1
        %p402 = scmp.gt.s32.totalorder %s401, 0
        %s403 = scalar_select %p402, %s401, 0
        %s404 = smul.u32 4, %s403
      $region28: #{basic_block_forward.6} parent=23 // pred_fallthru
        _
      // Predicated region
      $region29: #{basic_block_forward.6} parent=23 // pred_check
        %p405 = pneg %p73
      $region30: #{basic_block_forward.6} parent=23 // pred_check_branch
        %407 = sbr.rel (%p405) target = $region32
      $region31: #{basic_block_forward.6} parent=23 // pred_region
        %s408 = smul.u32 32, %s19
        %p409 = scmp.lt.s32.totalorder %s408, 95
        %s410 = scalar_select %p409, %s408, 95
        %s411 = smul.addr %s410, 4
        %s412 = scalar_lea.vmem %s1, %s411
        %s413 = smul.u32 32, %s19
      $region32: #{basic_block_forward.6} parent=23 // pred_fallthru
        _
      // Predicated region
      $region33: #{basic_block_forward.6} parent=23 // pred_check
        %p414 = pneg %p107
      $region34: #{basic_block_forward.6} parent=23 // pred_check_branch
        %416 = sbr.rel (%p414) target = $region36
      $region35: #{basic_block_forward.6} parent=23 // pred_region
        %s417 = sadd.s32 %s19, 1
        %s418 = smul.u32 %s417, 8
        %p419 = scmp.lt.s32.totalorder %s418, 23
        %s420 = scalar_select %p419, %s418, 23
        %s421 = smul.u32 4, %s420
        %p422 = scmp.lt.s32.totalorder %s421, 95
        %s423 = scalar_select %p422, %s421, 95
        %s424 = smul.addr %s423, 4
        %s425 = scalar_lea.vmem %s2, %s424
        %s426 = sadd.s32 %s19, 1
        %s427 = smul.u32 %s426, 8
        %p428 = scmp.lt.s32.totalorder %s427, 23
        %s429 = scalar_select %p428, %s427, 23
        %s430 = smul.u32 4, %s429
      $region36: #{basic_block_forward.6} parent=23 // pred_fallthru
        _
      // Predicated region
      $region37: #{basic_block_forward.6} parent=23 // pred_check
        %p431 = pneg %p154
      $region38: #{basic_block_forward.6} parent=23 // pred_check_branch
        %433 = sbr.rel (%p431) target = $region40
      $region39: #{basic_block_forward.6} parent=23 // pred_region
        %s434 = smul.u32 32, %s19
        %p435 = scmp.lt.s32.totalorder %s434, 95
        %s436 = scalar_select %p435, %s434, 95
        %s437 = smul.addr %s436, 8
        %s438 = scalar_lea.vmem %s4, %s437
        %s439 = smul.u32 32, %s19
      $region40: #{basic_block_forward.6} parent=23 // pred_fallthru
        _
      // Predicated region
      $region41: #{basic_block_forward.6} parent=23 // pred_check
        %p440 = pneg %p180
      $region42: #{basic_block_forward.6} parent=23 // pred_check_branch
        %442 = sbr.rel (%p440) target = $region44
      $region43: #{basic_block_forward.6} parent=23 // pred_region
        %s443 = smul.u32 32, %s19
        %p444 = scmp.lt.s32.totalorder %s443, 95
        %s445 = scalar_select %p444, %s443, 95
        %s446 = smul.addr %s445, 4
        %s447 = scalar_lea.vmem %s5, %s446
        %s448 = smul.u32 32, %s19
      $region44: #{basic_block_forward.6} parent=23 // pred_fallthru
        _
    $region24: #{basic_block_forward.6} parent=5 // pred_fallthru
      _
    %p449 = scmp.le.s32.totalorder 1, %s19
    %p450 = scmp.lt.s32.totalorder %s19, 4
    %p451 = pnand %p449, %p450
    %p452 = pneg %p451
    // Predicated region
    $region45: #{basic_block_forward.6} parent=5 // pred_check
      _
    $region46: #{basic_block_forward.6} parent=5 // pred_check_branch
      %454 = sbr.rel (%p451) target = $region48
    $region47: #{basic_block_forward.6} parent=5 // pred_region
      %s455 = ssub.s32 %s19, 1
      %s456 = smul.u32 %s24, 8
      %s457 = ssub.s32 %s456, 1
      %p458 = scmp.gt.s32.totalorder %s457, 0
      %s459 = scalar_select %p458, %s457, 0
      %s460 = smul.u32 4, %s459
      %p461 = scmp.lt.s32.totalorder %s460, 95
      %s462 = scalar_select %p461, %s460, 95
      %s463 = smul.addr %s462, 4
      %s464 = scalar_lea.vmem %s0, %s463
      %p465 = pneg %p53
      %p466 = pneg %p50
      %s467 = smul.u32 32, %s24
      %p468 = scmp.lt.s32.totalorder %s467, 95
      %s469 = scalar_select %p468, %s467, 95
      %s470 = smul.addr %s469, 4
      %s471 = scalar_lea.vmem %s1, %s470
      %p472 = pneg %p79
      %p473 = pneg %p76
      %s474 = sadd.s32 %s24, 1
      %s475 = smul.u32 %s474, 8
      %p476 = scmp.lt.s32.totalorder %s475, 23
      %s477 = scalar_select %p476, %s475, 23
      %s478 = smul.u32 4, %s477
      %p479 = scmp.lt.s32.totalorder %s478, 95
      %s480 = scalar_select %p479, %s478, 95
      %s481 = smul.addr %s480, 4
      %s482 = scalar_lea.vmem %s2, %s481
      %p483 = pneg %p113
      %p484 = pneg %p110
      %p485 = pneg %p134
      %p486 = pneg %p131
      %s487 = smul.u32 32, %s24
      %p488 = scmp.lt.s32.totalorder %s487, 95
      %s489 = scalar_select %p488, %s487, 95
      %s490 = smul.addr %s489, 8
      %s491 = scalar_lea.vmem %s4, %s490
      %p492 = pneg %p160
      %p493 = pneg %p157
      %s494 = smul.u32 32, %s24
      %p495 = scmp.lt.s32.totalorder %s494, 95
      %s496 = scalar_select %p495, %s494, 95
      %s497 = smul.addr %s496, 4
      %s498 = scalar_lea.vmem %s5, %s497
      %p499 = pneg %p186
      %p500 = pneg %p183
      %p501 = pneg %p207
      %p502 = pneg %p204
      %p503 = pneg %p233
      %p504 = pneg %p230
      %s505 = smul.u32 32, %s24
      %p506 = scmp.lt.s32.totalorder %s505, 95
      %s507 = scalar_select %p506, %s505, 95
      %s508 = smul.addr %s507, 4
      %s509 = scalar_lea.vmem %s7, %s508
      %p510 = pneg %p259
      %p511 = pneg %p256
      %p512 = scmp.lt.s32.totalorder %s24, 2
      %s513 = scalar_select %p512, %s24, 2
      %s514 = scalar_lea.vmem %s8, %s513
      %p515 = pneg %p285
      %p516 = pneg %p282
      %p517 = scmp.lt.s32.totalorder %s24, 2
      %s518 = scalar_select %p517, %s24, 2
      %s519 = scalar_lea.vmem %s9, %s518
      %p520 = pneg %p311
      %p521 = pneg %p308
      %s522 = smul.u32 32, %s24
      %p523 = scmp.lt.s32.totalorder %s522, 95
      %s524 = scalar_select %p523, %s522, 95
      %s525 = smul.addr %s524, 4
      %s526 = scalar_lea.vmem %s10, %s525
      %p527 = pneg %p337
      %p528 = pneg %p334
      %p529 = scmp.lt.s32.totalorder %s24, 2
      %s530 = scalar_select %p529, %s24, 2
      %s531 = scalar_lea.vmem %s11, %s530
      %p532 = pneg %p363
      %p533 = pneg %p360
      %p534 = scmp.lt.s32.totalorder %s24, 2
      %s535 = scalar_select %p534, %s24, 2
      %s536 = scalar_lea.vmem %s12, %s535
      %s537 = smul.u32 %s24, 8
      %s538 = ssub.s32 %s537, 1
      %p539 = scmp.gt.s32.totalorder %s538, 0
      %s540 = scalar_select %p539, %s538, 0
      %s541 = smul.u32 4, %s540
      %p542 = scmp.lt.s32.totalorder %s541, 95
      %s543 = scalar_select %p542, %s541, 95
      %s544 = smul.addr %s543, 4
      %s545 = scalar_lea.vmem %s0, %s544
      %s546 = smul.u32 %s24, 8
      %s547 = ssub.s32 %s546, 1
      %p548 = scmp.gt.s32.totalorder %s547, 0
      %s549 = scalar_select %p548, %s547, 0
      %s550 = smul.u32 4, %s549
      %s551 = smul.u32 32, %s24
      %p552 = scmp.lt.s32.totalorder %s551, 95
      %s553 = scalar_select %p552, %s551, 95
      %s554 = smul.addr %s553, 4
      %s555 = scalar_lea.vmem %s1, %s554
      %s556 = smul.u32 32, %s24
      %s557 = sadd.s32 %s24, 1
      %s558 = smul.u32 %s557, 8
      %p559 = scmp.lt.s32.totalorder %s558, 23
      %s560 = scalar_select %p559, %s558, 23
      %s561 = smul.u32 4, %s560
      %p562 = scmp.lt.s32.totalorder %s561, 95
      %s563 = scalar_select %p562, %s561, 95
      %s564 = smul.addr %s563, 4
      %s565 = scalar_lea.vmem %s2, %s564
      %s566 = sadd.s32 %s24, 1
      %s567 = smul.u32 %s566, 8
      %p568 = scmp.lt.s32.totalorder %s567, 23
      %s569 = scalar_select %p568, %s567, 23
      %s570 = smul.u32 4, %s569
      %s571 = smul.u32 32, %s24
      %p572 = scmp.lt.s32.totalorder %s571, 95
      %s573 = scalar_select %p572, %s571, 95
      %s574 = smul.addr %s573, 8
      %s575 = scalar_lea.vmem %s4, %s574
      %s576 = smul.u32 32, %s24
      %s577 = smul.u32 32, %s24
      %p578 = scmp.lt.s32.totalorder %s577, 95
      %s579 = scalar_select %p578, %s577, 95
      %s580 = smul.addr %s579, 4
      %s581 = scalar_lea.vmem %s5, %s580
      %s582 = smul.u32 32, %s24
      %s583 = smul.u32 32, %s24
      %p584 = scmp.lt.s32.totalorder %s583, 95
      %s585 = scalar_select %p584, %s583, 95
      %s586 = smul.addr %s585, 4
      %s587 = scalar_lea.vmem %s7, %s586
      %s588 = smul.u32 32, %s24
      %p589 = scmp.lt.s32.totalorder %s24, 2
      %s590 = scalar_select %p589, %s24, 2
      %s591 = scalar_lea.vmem %s8, %s590
      %p592 = scmp.lt.s32.totalorder %s24, 2
      %s593 = scalar_select %p592, %s24, 2
      %s594 = scalar_lea.vmem %s9, %s593
      %s595 = smul.u32 32, %s24
      %p596 = scmp.lt.s32.totalorder %s595, 95
      %s597 = scalar_select %p596, %s595, 95
      %s598 = smul.addr %s597, 4
      %s599 = scalar_lea.vmem %s10, %s598
      %s600 = smul.u32 32, %s24
      %p601 = scmp.lt.s32.totalorder %s24, 2
      %s602 = scalar_select %p601, %s24, 2
      %s603 = scalar_lea.vmem %s11, %s602
      %p604 = scmp.lt.s32.totalorder %s24, 2
      %s605 = scalar_select %p604, %s24, 2
      %s606 = scalar_lea.vmem %s12, %s605
      %v608 = vld [vmem:[%s545] sm:$0xf]
      %v609 = vld [vmem:[%s545 + $0x4] sm:$0xf]
      %v610 = vld [vmem:[%s545 + $0x8] sm:$0xf]
      %v611 = vld [vmem:[%s545 + $0xc] sm:$0xf]
      %v612 = vld [vmem:[%s555] sm:$0xf]
      %v613 = vld [vmem:[%s555 + $0x4] sm:$0xf]
      %v614 = vld [vmem:[%s555 + $0x8] sm:$0xf]
      %v615 = vld [vmem:[%s555 + $0xc] sm:$0xf]
      %v616 = vld [vmem:[%s555 + $0x10] sm:$0xf]
      %v617 = vld [vmem:[%s555 + $0x14] sm:$0xf]
      %v618 = vld [vmem:[%s555 + $0x18] sm:$0xf]
      %v619 = vld [vmem:[%s555 + $0x1c] sm:$0xf]
      %v620 = vld [vmem:[%s555 + $0x20] sm:$0xf]
      %v621 = vld [vmem:[%s555 + $0x24] sm:$0xf]
      %v622 = vld [vmem:[%s555 + $0x28] sm:$0xf]
      %v623 = vld [vmem:[%s555 + $0x2c] sm:$0xf]
      %v624 = vld [vmem:[%s555 + $0x30] sm:$0xf]
      %v625 = vld [vmem:[%s555 + $0x34] sm:$0xf]
      %v626 = vld [vmem:[%s555 + $0x38] sm:$0xf]
      %v627 = vld [vmem:[%s555 + $0x3c] sm:$0xf]
      %v628 = vld [vmem:[%s555 + $0x40] sm:$0xf]
      %v629 = vld [vmem:[%s555 + $0x44] sm:$0xf]
      %v630 = vld [vmem:[%s555 + $0x48] sm:$0xf]
      %v631 = vld [vmem:[%s555 + $0x4c] sm:$0xf]
      %v632 = vld [vmem:[%s555 + $0x50] sm:$0xf]
      %v633 = vld [vmem:[%s555 + $0x54] sm:$0xf]
      %v634 = vld [vmem:[%s555 + $0x58] sm:$0xf]
      %v635 = vld [vmem:[%s555 + $0x5c] sm:$0xf]
      %v636 = vld [vmem:[%s555 + $0x60] sm:$0xf]
      %v637 = vld [vmem:[%s555 + $0x64] sm:$0xf]
      %v638 = vld [vmem:[%s555 + $0x68] sm:$0xf]
      %v639 = vld [vmem:[%s555 + $0x6c] sm:$0xf]
      %v640 = vld [vmem:[%s555 + $0x70] sm:$0xf]
      %v641 = vld [vmem:[%s555 + $0x74] sm:$0xf]
      %v642 = vld [vmem:[%s555 + $0x78] sm:$0xf]
      %v643 = vld [vmem:[%s555 + $0x7c] sm:$0xf]
      %v644 = vld [vmem:[%s565] sm:$0xf]
      %v645 = vld [vmem:[%s565 + $0x4] sm:$0xf]
      %v646 = vld [vmem:[%s565 + $0x8] sm:$0xf]
      %v647 = vld [vmem:[%s565 + $0xc] sm:$0xf]
      %v652 = vunpack.c.l.b16 %v608
      %v653 = vunpack.c.l.b16 %v609
      %v654 = vunpack.c.l.b16 %v610
      %v655 = vunpack.c.l.b16 %v611
      %v656 = vpack.c.b16 %v653, %v652
      %v657 = vpack.c.b16 %v655, %v654
      %v692 = vunpack.c.l.b16 %v612
      %v693 = vunpack.c.l.b16 %v613
      %v694 = vunpack.c.l.b16 %v614
      %v695 = vunpack.c.l.b16 %v615
      %v696 = vunpack.c.l.b16 %v616
      %v697 = vunpack.c.l.b16 %v617
      %v698 = vunpack.c.l.b16 %v618
      %v699 = vunpack.c.l.b16 %v619
      %v700 = vunpack.c.l.b16 %v620
      %v701 = vunpack.c.l.b16 %v621
      %v702 = vunpack.c.l.b16 %v622
      %v703 = vunpack.c.l.b16 %v623
      %v704 = vunpack.c.l.b16 %v624
      %v705 = vunpack.c.l.b16 %v625
      %v706 = vunpack.c.l.b16 %v626
      %v707 = vunpack.c.l.b16 %v627
      %v708 = vunpack.c.l.b16 %v628
      %v709 = vunpack.c.l.b16 %v629
      %v710 = vunpack.c.l.b16 %v630
      %v711 = vunpack.c.l.b16 %v631
      %v712 = vunpack.c.l.b16 %v632
      %v713 = vunpack.c.l.b16 %v633
      %v714 = vunpack.c.l.b16 %v634
      %v715 = vunpack.c.l.b16 %v635
      %v716 = vunpack.c.l.b16 %v636
      %v717 = vunpack.c.l.b16 %v637
      %v718 = vunpack.c.l.b16 %v638
      %v719 = vunpack.c.l.b16 %v639
      %v720 = vunpack.c.l.b16 %v640
      %v721 = vunpack.c.l.b16 %v641
      %v722 = vunpack.c.l.b16 %v642
      %v723 = vunpack.c.l.b16 %v643
      %v724 = vpack.c.b16 %v693, %v692
      %v725 = vpack.c.b16 %v695, %v694
      %v726 = vpack.c.b16 %v697, %v696
      %v727 = vpack.c.b16 %v699, %v698
      %v728 = vpack.c.b16 %v701, %v700
      %v729 = vpack.c.b16 %v703, %v702
      %v730 = vpack.c.b16 %v705, %v704
      %v731 = vpack.c.b16 %v707, %v706
      %v732 = vpack.c.b16 %v709, %v708
      %v733 = vpack.c.b16 %v711, %v710
      %v734 = vpack.c.b16 %v713, %v712
      %v735 = vpack.c.b16 %v715, %v714
      %v736 = vpack.c.b16 %v717, %v716
      %v737 = vpack.c.b16 %v719, %v718
      %v738 = vpack.c.b16 %v721, %v720
      %v739 = vpack.c.b16 %v723, %v722
      %v760 = vunpack.c.l.b16 %v644
      %v761 = vunpack.c.l.b16 %v645
      %v762 = vunpack.c.l.b16 %v646
      %v763 = vunpack.c.l.b16 %v647
      %v764 = vpack.c.b16 %v761, %v760
      %v765 = vpack.c.b16 %v763, %v762
      %v768 = vunpack.c.h.bf16 %v656
      %v769 = vunpack.c.l.bf16 %v657
      %v770 = vunpack.c.h.bf16 %v657
      %v771 = vunpack.c.l.bf16 %v724
      %v772 = vunpack.c.h.bf16 %v724
      %v773 = vunpack.c.l.bf16 %v725
      %v774 = vunpack.c.h.bf16 %v725
      %v775 = vunpack.c.l.bf16 %v726
      %v776 = vunpack.c.h.bf16 %v726
      %v777 = vunpack.c.l.bf16 %v727
      %v778 = vunpack.c.h.bf16 %v727
      %v779 = vunpack.c.l.bf16 %v728
      %v780 = vunpack.c.h.bf16 %v728
      %v781 = vunpack.c.l.bf16 %v729
      %v782 = vunpack.c.h.bf16 %v729
      %v783 = vunpack.c.l.bf16 %v730
      %v784 = vunpack.c.h.bf16 %v730
      %v785 = vunpack.c.l.bf16 %v731
      %v786 = vunpack.c.h.bf16 %v731
      %v787 = vunpack.c.l.bf16 %v732
      %v788 = vunpack.c.h.bf16 %v732
      %v789 = vunpack.c.l.bf16 %v733
      %v790 = vunpack.c.h.bf16 %v733
      %v791 = vunpack.c.l.bf16 %v734
      %v792 = vunpack.c.h.bf16 %v734
      %v793 = vunpack.c.l.bf16 %v735
      %v794 = vunpack.c.h.bf16 %v735
      %v795 = vunpack.c.l.bf16 %v736
      %v796 = vunpack.c.h.bf16 %v736
      %v797 = vunpack.c.l.bf16 %v737
      %v798 = vunpack.c.h.bf16 %v737
      %v799 = vunpack.c.l.bf16 %v738
      %v800 = vunpack.c.h.bf16 %v738
      %v801 = vunpack.c.l.bf16 %v739
      %v802 = vunpack.c.h.bf16 %v739
      %v803 = vunpack.c.l.bf16 %v764
      %v804 = vunpack.c.h.bf16 %v764
      %v805 = vunpack.c.l.bf16 %v765
      %v806 = vpack.c.bf16 %v769, %v768
      %v807 = vpack.c.bf16 %v771, %v770
      %v808 = vpack.c.bf16 %v773, %v772
      %v809 = vpack.c.bf16 %v775, %v774
      %v810 = vpack.c.bf16 %v777, %v776
      %v811 = vpack.c.bf16 %v779, %v778
      %v812 = vpack.c.bf16 %v781, %v780
      %v813 = vpack.c.bf16 %v783, %v782
      %v814 = vpack.c.bf16 %v785, %v784
      %v815 = vpack.c.bf16 %v787, %v786
      %v816 = vpack.c.bf16 %v789, %v788
      %v817 = vpack.c.bf16 %v791, %v790
      %v818 = vpack.c.bf16 %v793, %v792
      %v819 = vpack.c.bf16 %v795, %v794
      %v820 = vpack.c.bf16 %v797, %v796
      %v821 = vpack.c.bf16 %v799, %v798
      %v822 = vpack.c.bf16 %v800, %v800
      %v823 = vld [vmem:[%s3] sm:$0xf]
      %v824 = vld [vmem:[%s3 + $0x4] sm:$0xf]
      %v825 = vld [vmem:[%s3 + $0x8] sm:$0xf]
      %v826 = vld [vmem:[%s3 + $0xc] sm:$0xf]
      %v827 = vld [vmem:[%s3 + $0x10] sm:$0xf]
      %v828 = vld [vmem:[%s3 + $0x14] sm:$0xf]
      %v829 = vld [vmem:[%s3 + $0x18] sm:$0xf]
      %v830 = vld [vmem:[%s3 + $0x1c] sm:$0xf]
      %v831 = vld [vmem:[%s3 + $0x20] sm:$0xf]
      %v832 = vld [vmem:[%s3 + $0x24] sm:$0xf]
      %v833 = vld [vmem:[%s3 + $0x28] sm:$0xf]
      %v834 = vld [vmem:[%s3 + $0x2c] sm:$0xf]
      %v835 = vld [vmem:[%s3 + $0x30] sm:$0xf]
      %v836 = vld [vmem:[%s3 + $0x34] sm:$0xf]
      %v837 = vld [vmem:[%s3 + $0x38] sm:$0xf]
      %v838 = vld [vmem:[%s3 + $0x3c] sm:$0xf]
      %s839 = scalar_lea.vmem %s3, 64
      %v840 = vld [vmem:[%s839] sm:$0xf]
      %v841 = vld [vmem:[%s839 + $0x4] sm:$0xf]
      %v842 = vld [vmem:[%s839 + $0x8] sm:$0xf]
      %v843 = vld [vmem:[%s839 + $0xc] sm:$0xf]
      %v844 = vld [vmem:[%s839 + $0x10] sm:$0xf]
      %v845 = vld [vmem:[%s839 + $0x14] sm:$0xf]
      %v846 = vld [vmem:[%s839 + $0x18] sm:$0xf]
      %v847 = vld [vmem:[%s839 + $0x1c] sm:$0xf]
      %v848 = vld [vmem:[%s839 + $0x20] sm:$0xf]
      %v849 = vld [vmem:[%s839 + $0x24] sm:$0xf]
      %v850 = vld [vmem:[%s839 + $0x28] sm:$0xf]
      %v851 = vld [vmem:[%s839 + $0x2c] sm:$0xf]
      %v852 = vld [vmem:[%s839 + $0x30] sm:$0xf]
      %v853 = vld [vmem:[%s839 + $0x34] sm:$0xf]
      %v854 = vld [vmem:[%s839 + $0x38] sm:$0xf]
      %v855 = vld [vmem:[%s839 + $0x3c] sm:$0xf]
      %vm873 = vcmask 1044480
      %v874 = vrot.slane %v806, 3
      %v875 = vrot.slane %v807, 3
      %v876 = vsel %vm873, %v874, %v875
      %v877 = vrot.slane %v808, 3
      %v878 = vsel %vm873, %v875, %v877
      %v879 = vrot.slane %v809, 3
      %v880 = vsel %vm873, %v877, %v879
      %v881 = vrot.slane %v810, 3
      %v882 = vsel %vm873, %v879, %v881
      %v883 = vrot.slane %v811, 3
      %v884 = vsel %vm873, %v881, %v883
      %v885 = vrot.slane %v812, 3
      %v886 = vsel %vm873, %v883, %v885
      %v887 = vrot.slane %v813, 3
      %v888 = vsel %vm873, %v885, %v887
      %v889 = vrot.slane %v814, 3
      %v890 = vsel %vm873, %v887, %v889
      %v891 = vrot.slane %v815, 3
      %v892 = vsel %vm873, %v889, %v891
      %v893 = vrot.slane %v816, 3
      %v894 = vsel %vm873, %v891, %v893
      %v895 = vrot.slane %v817, 3
      %v896 = vsel %vm873, %v893, %v895
      %v897 = vrot.slane %v818, 3
      %v898 = vsel %vm873, %v895, %v897
      %v899 = vrot.slane %v819, 3
      %v900 = vsel %vm873, %v897, %v899
      %v901 = vrot.slane %v820, 3
      %v902 = vsel %vm873, %v899, %v901
      %v903 = vrot.slane %v821, 3
      %v904 = vsel %vm873, %v901, %v903
      %v905 = vrot.slane %v822, 3
      %v906 = vsel %vm873, %v903, %v905
      %v939 = vunpack.c.l.b16 %v840
      %v940 = vunpack.c.l.b16 %v841
      %v941 = vunpack.c.l.b16 %v842
      %v942 = vunpack.c.l.b16 %v843
      %v943 = vunpack.c.l.b16 %v844
      %v944 = vunpack.c.l.b16 %v845
      %v945 = vunpack.c.l.b16 %v846
      %v946 = vunpack.c.l.b16 %v847
      %v947 = vunpack.c.l.b16 %v848
      %v948 = vunpack.c.l.b16 %v849
      %v949 = vunpack.c.l.b16 %v850
      %v950 = vunpack.c.l.b16 %v851
      %v951 = vunpack.c.l.b16 %v852
      %v952 = vunpack.c.l.b16 %v853
      %v953 = vunpack.c.l.b16 %v854
      %v954 = vunpack.c.l.b16 %v855
      %v955 = vpack.c.b16 %v940, %v939
      %v956 = vpack.c.b16 %v942, %v941
      %v957 = vpack.c.b16 %v944, %v943
      %v958 = vpack.c.b16 %v946, %v945
      %v959 = vpack.c.b16 %v948, %v947
      %v960 = vpack.c.b16 %v950, %v949
      %v961 = vpack.c.b16 %v952, %v951
      %v962 = vpack.c.b16 %v954, %v953
      %971 = vmatpush.bf16.msra.mxu0 %v962
      %972 = vmatpush.bf16.msra.mxu0 %v961
      %973 = vmatpush.bf16.msra.mxu0 %v960
      %974 = vmatpush.bf16.msra.mxu0 %v959
      %975 = vmatpush.bf16.msra.mxu0 %v958
      %976 = vmatpush.bf16.msra.mxu0 %v957
      %977 = vmatpush.bf16.msra.mxu0 %v956
      %978 = vmatpush.bf16.msra.mxu0 %v955
      %979 = vmatmul.bf16.gmra.mxu0 %v876
      %v980 = vpop.f32.mrf.mxu0
      %v981 = vadd.f32 0.0, %v980
      %v982 = vpop.f32.mrf.mxu0
      %v983 = vadd.f32 0.0, %v982
      %984 = vmatmul.bf16.gmra.mxu0 %v878
      %v985 = vpop.f32.mrf.mxu0
      %v986 = vadd.f32 0.0, %v985
      %v987 = vpop.f32.mrf.mxu0
      %v988 = vadd.f32 0.0, %v987
      %989 = vmatmul.bf16.gmra.mxu0 %v880
      %v990 = vpop.f32.mrf.mxu0
      %v991 = vadd.f32 0.0, %v990
      %v992 = vpop.f32.mrf.mxu0
      %v993 = vadd.f32 0.0, %v992
      %994 = vmatmul.bf16.gmra.mxu0 %v882
      %v995 = vpop.f32.mrf.mxu0
      %v996 = vadd.f32 0.0, %v995
      %v997 = vpop.f32.mrf.mxu0
      %v998 = vadd.f32 0.0, %v997
      %999 = vmatmul.bf16.gmra.mxu0 %v884
      %v1000 = vpop.f32.mrf.mxu0
      %v1001 = vadd.f32 0.0, %v1000
      %v1002 = vpop.f32.mrf.mxu0
      %v1003 = vadd.f32 0.0, %v1002
      %1004 = vmatmul.bf16.gmra.mxu0 %v886
      %v1005 = vpop.f32.mrf.mxu0
      %v1006 = vadd.f32 0.0, %v1005
      %v1007 = vpop.f32.mrf.mxu0
      %v1008 = vadd.f32 0.0, %v1007
      %1009 = vmatmul.bf16.gmra.mxu0 %v888
      %v1010 = vpop.f32.mrf.mxu0
      %v1011 = vadd.f32 0.0, %v1010
      %v1012 = vpop.f32.mrf.mxu0
      %v1013 = vadd.f32 0.0, %v1012
      %1014 = vmatmul.bf16.gmra.mxu0 %v890
      %v1015 = vpop.f32.mrf.mxu0
      %v1016 = vadd.f32 0.0, %v1015
      %v1017 = vpop.f32.mrf.mxu0
      %v1018 = vadd.f32 0.0, %v1017
      %1019 = vmatmul.bf16.gmra.mxu0 %v892
      %v1020 = vpop.f32.mrf.mxu0
      %v1021 = vadd.f32 0.0, %v1020
      %v1022 = vpop.f32.mrf.mxu0
      %v1023 = vadd.f32 0.0, %v1022
      %1024 = vmatmul.bf16.gmra.mxu0 %v894
      %v1025 = vpop.f32.mrf.mxu0
      %v1026 = vadd.f32 0.0, %v1025
      %v1027 = vpop.f32.mrf.mxu0
      %v1028 = vadd.f32 0.0, %v1027
      %1029 = vmatmul.bf16.gmra.mxu0 %v896
      %v1030 = vpop.f32.mrf.mxu0
      %v1031 = vadd.f32 0.0, %v1030
      %v1032 = vpop.f32.mrf.mxu0
      %v1033 = vadd.f32 0.0, %v1032
      %1034 = vmatmul.bf16.gmra.mxu0 %v898
      %v1035 = vpop.f32.mrf.mxu0
      %v1036 = vadd.f32 0.0, %v1035
      %v1037 = vpop.f32.mrf.mxu0
      %v1038 = vadd.f32 0.0, %v1037
      %1039 = vmatmul.bf16.gmra.mxu0 %v900
      %v1040 = vpop.f32.mrf.mxu0
      %v1041 = vadd.f32 0.0, %v1040
      %v1042 = vpop.f32.mrf.mxu0
      %v1043 = vadd.f32 0.0, %v1042
      %1044 = vmatmul.bf16.gmra.mxu0 %v902
      %v1045 = vpop.f32.mrf.mxu0
      %v1046 = vadd.f32 0.0, %v1045
      %v1047 = vpop.f32.mrf.mxu0
      %v1048 = vadd.f32 0.0, %v1047
      %1049 = vmatmul.bf16.gmra.mxu0 %v904
      %v1050 = vpop.f32.mrf.mxu0
      %v1051 = vadd.f32 0.0, %v1050
      %v1052 = vpop.f32.mrf.mxu0
      %v1053 = vadd.f32 0.0, %v1052
      %1054 = vmatmul.bf16.gmra.mxu0 %v906
      %v1055 = vpop.f32.mrf.mxu0
      %v1056 = vadd.f32 0.0, %v1055
      %v1057 = vpop.f32.mrf.mxu0
      %v1058 = vadd.f32 0.0, %v1057
      %1059 = vdwg.mxu0
      %vm1060 = vsmask.f32 5376
      %v1062 = vshrl.u32 %v806, 16
      %v1064 = vrot.slane %v1062, 2
      %v1065 = vshll.u32 %v806, 16
      %v1067 = vrot.slane %v1065, 3
      %v1068 = vor.u32 %v1064, %v1067
      %v1070 = vshrl.u32 %v807, 16
      %v1072 = vrot.slane %v1070, 2
      %v1073 = vshll.u32 %v807, 16
      %v1075 = vrot.slane %v1073, 3
      %v1076 = vor.u32 %v1072, %v1075
      %v1077 = vsel %vm1060, %v1068, %v1076
      %v1079 = vshrl.u32 %v808, 16
      %v1081 = vrot.slane %v1079, 2
      %v1082 = vshll.u32 %v808, 16
      %v1084 = vrot.slane %v1082, 3
      %v1085 = vor.u32 %v1081, %v1084
      %v1086 = vsel %vm1060, %v1076, %v1085
      %v1088 = vshrl.u32 %v809, 16
      %v1090 = vrot.slane %v1088, 2
      %v1091 = vshll.u32 %v809, 16
      %v1093 = vrot.slane %v1091, 3
      %v1094 = vor.u32 %v1090, %v1093
      %v1095 = vsel %vm1060, %v1085, %v1094
      %v1097 = vshrl.u32 %v810, 16
      %v1099 = vrot.slane %v1097, 2
      %v1100 = vshll.u32 %v810, 16
      %v1102 = vrot.slane %v1100, 3
      %v1103 = vor.u32 %v1099, %v1102
      %v1104 = vsel %vm1060, %v1094, %v1103
      %v1106 = vshrl.u32 %v811, 16
      %v1108 = vrot.slane %v1106, 2
      %v1109 = vshll.u32 %v811, 16
      %v1111 = vrot.slane %v1109, 3
      %v1112 = vor.u32 %v1108, %v1111
      %v1113 = vsel %vm1060, %v1103, %v1112
      %v1115 = vshrl.u32 %v812, 16
      %v1117 = vrot.slane %v1115, 2
      %v1118 = vshll.u32 %v812, 16
      %v1120 = vrot.slane %v1118, 3
      %v1121 = vor.u32 %v1117, %v1120
      %v1122 = vsel %vm1060, %v1112, %v1121
      %v1124 = vshrl.u32 %v813, 16
      %v1126 = vrot.slane %v1124, 2
      %v1127 = vshll.u32 %v813, 16
      %v1129 = vrot.slane %v1127, 3
      %v1130 = vor.u32 %v1126, %v1129
      %v1131 = vsel %vm1060, %v1121, %v1130
      %v1133 = vshrl.u32 %v814, 16
      %v1135 = vrot.slane %v1133, 2
      %v1136 = vshll.u32 %v814, 16
      %v1138 = vrot.slane %v1136, 3
      %v1139 = vor.u32 %v1135, %v1138
      %v1140 = vsel %vm1060, %v1130, %v1139
      %v1142 = vshrl.u32 %v815, 16
      %v1144 = vrot.slane %v1142, 2
      %v1145 = vshll.u32 %v815, 16
      %v1147 = vrot.slane %v1145, 3
      %v1148 = vor.u32 %v1144, %v1147
      %v1149 = vsel %vm1060, %v1139, %v1148
      %v1151 = vshrl.u32 %v816, 16
      %v1153 = vrot.slane %v1151, 2
      %v1154 = vshll.u32 %v816, 16
      %v1156 = vrot.slane %v1154, 3
      %v1157 = vor.u32 %v1153, %v1156
      %v1158 = vsel %vm1060, %v1148, %v1157
      %v1160 = vshrl.u32 %v817, 16
      %v1162 = vrot.slane %v1160, 2
      %v1163 = vshll.u32 %v817, 16
      %v1165 = vrot.slane %v1163, 3
      %v1166 = vor.u32 %v1162, %v1165
      %v1167 = vsel %vm1060, %v1157, %v1166
      %v1169 = vshrl.u32 %v818, 16
      %v1171 = vrot.slane %v1169, 2
      %v1172 = vshll.u32 %v818, 16
      %v1174 = vrot.slane %v1172, 3
      %v1175 = vor.u32 %v1171, %v1174
      %v1176 = vsel %vm1060, %v1166, %v1175
      %v1178 = vshrl.u32 %v819, 16
      %v1180 = vrot.slane %v1178, 2
      %v1181 = vshll.u32 %v819, 16
      %v1183 = vrot.slane %v1181, 3
      %v1184 = vor.u32 %v1180, %v1183
      %v1185 = vsel %vm1060, %v1175, %v1184
      %v1187 = vshrl.u32 %v820, 16
      %v1189 = vrot.slane %v1187, 2
      %v1190 = vshll.u32 %v820, 16
      %v1192 = vrot.slane %v1190, 3
      %v1193 = vor.u32 %v1189, %v1192
      %v1194 = vsel %vm1060, %v1184, %v1193
      %v1196 = vshrl.u32 %v821, 16
      %v1198 = vrot.slane %v1196, 2
      %v1199 = vshll.u32 %v821, 16
      %v1201 = vrot.slane %v1199, 3
      %v1202 = vor.u32 %v1198, %v1201
      %v1203 = vsel %vm1060, %v1193, %v1202
      %v1205 = vshrl.u32 %v822, 16
      %v1207 = vrot.slane %v1205, 2
      %v1208 = vshll.u32 %v822, 16
      %v1210 = vrot.slane %v1208, 3
      %v1211 = vor.u32 %v1207, %v1210
      %v1212 = vsel %vm1060, %v1202, %v1211
      %v1245 = vunpack.c.l.b16 %v823
      %v1246 = vunpack.c.l.b16 %v824
      %v1247 = vunpack.c.l.b16 %v825
      %v1248 = vunpack.c.l.b16 %v826
      %v1249 = vunpack.c.l.b16 %v827
      %v1250 = vunpack.c.l.b16 %v828
      %v1251 = vunpack.c.l.b16 %v829
      %v1252 = vunpack.c.l.b16 %v830
      %v1253 = vunpack.c.l.b16 %v831
      %v1254 = vunpack.c.l.b16 %v832
      %v1255 = vunpack.c.l.b16 %v833
      %v1256 = vunpack.c.l.b16 %v834
      %v1257 = vunpack.c.l.b16 %v835
      %v1258 = vunpack.c.l.b16 %v836
      %v1259 = vunpack.c.l.b16 %v837
      %v1260 = vunpack.c.l.b16 %v838
      %v1261 = vpack.c.b16 %v1246, %v1245
      %v1262 = vpack.c.b16 %v1248, %v1247
      %v1263 = vpack.c.b16 %v1250, %v1249
      %v1264 = vpack.c.b16 %v1252, %v1251
      %v1265 = vpack.c.b16 %v1254, %v1253
      %v1266 = vpack.c.b16 %v1256, %v1255
      %v1267 = vpack.c.b16 %v1258, %v1257
      %v1268 = vpack.c.b16 %v1260, %v1259
      %1277 = vmatpush.bf16.msra.mxu0 %v1268
      %1278 = vmatpush.bf16.msra.mxu0 %v1267
      %1279 = vmatpush.bf16.msra.mxu0 %v1266
      %1280 = vmatpush.bf16.msra.mxu0 %v1265
      %1281 = vmatpush.bf16.msra.mxu0 %v1264
      %1282 = vmatpush.bf16.msra.mxu0 %v1263
      %1283 = vmatpush.bf16.msra.mxu0 %v1262
      %1284 = vmatpush.bf16.msra.mxu0 %v1261
      %1285 = vmatmul.bf16.gmra.mxu0 %v1077
      %v1286 = vpop.f32.mrf.mxu0
      %v1287 = vadd.f32 %v981, %v1286
      %v1288 = vpop.f32.mrf.mxu0
      %v1289 = vadd.f32 %v983, %v1288
      %1290 = vmatmul.bf16.gmra.mxu0 %v1086
      %v1291 = vpop.f32.mrf.mxu0
      %v1292 = vadd.f32 %v986, %v1291
      %v1293 = vpop.f32.mrf.mxu0
      %v1294 = vadd.f32 %v988, %v1293
      %1295 = vmatmul.bf16.gmra.mxu0 %v1095
      %v1296 = vpop.f32.mrf.mxu0
      %v1297 = vadd.f32 %v991, %v1296
      %v1298 = vpop.f32.mrf.mxu0
      %v1299 = vadd.f32 %v993, %v1298
      %1300 = vmatmul.bf16.gmra.mxu0 %v1104
      %v1301 = vpop.f32.mrf.mxu0
      %v1302 = vadd.f32 %v996, %v1301
      %v1303 = vpop.f32.mrf.mxu0
      %v1304 = vadd.f32 %v998, %v1303
      %1305 = vmatmul.bf16.gmra.mxu0 %v1113
      %v1306 = vpop.f32.mrf.mxu0
      %v1307 = vadd.f32 %v1001, %v1306
      %v1308 = vpop.f32.mrf.mxu0
      %v1309 = vadd.f32 %v1003, %v1308
      %1310 = vmatmul.bf16.gmra.mxu0 %v1122
      %v1311 = vpop.f32.mrf.mxu0
      %v1312 = vadd.f32 %v1006, %v1311
      %v1313 = vpop.f32.mrf.mxu0
      %v1314 = vadd.f32 %v1008, %v1313
      %1315 = vmatmul.bf16.gmra.mxu0 %v1131
      %v1316 = vpop.f32.mrf.mxu0
      %v1317 = vadd.f32 %v1011, %v1316
      %v1318 = vpop.f32.mrf.mxu0
      %v1319 = vadd.f32 %v1013, %v1318
      %1320 = vmatmul.bf16.gmra.mxu0 %v1140
      %v1321 = vpop.f32.mrf.mxu0
      %v1322 = vadd.f32 %v1016, %v1321
      %v1323 = vpop.f32.mrf.mxu0
      %v1324 = vadd.f32 %v1018, %v1323
      %1325 = vmatmul.bf16.gmra.mxu0 %v1149
      %v1326 = vpop.f32.mrf.mxu0
      %v1327 = vadd.f32 %v1021, %v1326
      %v1328 = vpop.f32.mrf.mxu0
      %v1329 = vadd.f32 %v1023, %v1328
      %1330 = vmatmul.bf16.gmra.mxu0 %v1158
      %v1331 = vpop.f32.mrf.mxu0
      %v1332 = vadd.f32 %v1026, %v1331
      %v1333 = vpop.f32.mrf.mxu0
      %v1334 = vadd.f32 %v1028, %v1333
      %1335 = vmatmul.bf16.gmra.mxu0 %v1167
      %v1336 = vpop.f32.mrf.mxu0
      %v1337 = vadd.f32 %v1031, %v1336
      %v1338 = vpop.f32.mrf.mxu0
      %v1339 = vadd.f32 %v1033, %v1338
      %1340 = vmatmul.bf16.gmra.mxu0 %v1176
      %v1341 = vpop.f32.mrf.mxu0
      %v1342 = vadd.f32 %v1036, %v1341
      %v1343 = vpop.f32.mrf.mxu0
      %v1344 = vadd.f32 %v1038, %v1343
      %1345 = vmatmul.bf16.gmra.mxu0 %v1185
      %v1346 = vpop.f32.mrf.mxu0
      %v1347 = vadd.f32 %v1041, %v1346
      %v1348 = vpop.f32.mrf.mxu0
      %v1349 = vadd.f32 %v1043, %v1348
      %1350 = vmatmul.bf16.gmra.mxu0 %v1194
      %v1351 = vpop.f32.mrf.mxu0
      %v1352 = vadd.f32 %v1046, %v1351
      %v1353 = vpop.f32.mrf.mxu0
      %v1354 = vadd.f32 %v1048, %v1353
      %1355 = vmatmul.bf16.gmra.mxu0 %v1203
      %v1356 = vpop.f32.mrf.mxu0
      %v1357 = vadd.f32 %v1051, %v1356
      %v1358 = vpop.f32.mrf.mxu0
      %v1359 = vadd.f32 %v1053, %v1358
      %1360 = vmatmul.bf16.gmra.mxu0 %v1212
      %v1361 = vpop.f32.mrf.mxu0
      %v1362 = vadd.f32 %v1056, %v1361
      %v1363 = vpop.f32.mrf.mxu0
      %v1364 = vadd.f32 %v1058, %v1363
      %1365 = vdwg.mxu0
      %s1366 = scalar_lea.vmem %s3, 128
      %v1367 = vld [vmem:[%s1366] sm:$0xf]
      %v1368 = vld [vmem:[%s1366 + $0x4] sm:$0xf]
      %v1369 = vld [vmem:[%s1366 + $0x8] sm:$0xf]
      %v1370 = vld [vmem:[%s1366 + $0xc] sm:$0xf]
      %v1371 = vld [vmem:[%s1366 + $0x10] sm:$0xf]
      %v1372 = vld [vmem:[%s1366 + $0x14] sm:$0xf]
      %v1373 = vld [vmem:[%s1366 + $0x18] sm:$0xf]
      %v1374 = vld [vmem:[%s1366 + $0x1c] sm:$0xf]
      %v1375 = vld [vmem:[%s1366 + $0x20] sm:$0xf]
      %v1376 = vld [vmem:[%s1366 + $0x24] sm:$0xf]
      %v1377 = vld [vmem:[%s1366 + $0x28] sm:$0xf]
      %v1378 = vld [vmem:[%s1366 + $0x2c] sm:$0xf]
      %v1379 = vld [vmem:[%s1366 + $0x30] sm:$0xf]
      %v1380 = vld [vmem:[%s1366 + $0x34] sm:$0xf]
      %v1381 = vld [vmem:[%s1366 + $0x38] sm:$0xf]
      %v1382 = vld [vmem:[%s1366 + $0x3c] sm:$0xf]
      %vm1383 = vsmask.f32 4352
      %v1384 = vrot.slane %v1062, 3
      %v1385 = vrot.slane %v1065, 4
      %v1386 = vor.u32 %v1384, %v1385
      %v1387 = vrot.slane %v1070, 3
      %v1388 = vrot.slane %v1073, 4
      %v1389 = vor.u32 %v1387, %v1388
      %v1390 = vsel %vm1383, %v1386, %v1389
      %v1391 = vrot.slane %v1079, 3
      %v1392 = vrot.slane %v1082, 4
      %v1393 = vor.u32 %v1391, %v1392
      %v1394 = vsel %vm1383, %v1389, %v1393
      %v1395 = vrot.slane %v1088, 3
      %v1396 = vrot.slane %v1091, 4
      %v1397 = vor.u32 %v1395, %v1396
      %v1398 = vsel %vm1383, %v1393, %v1397
      %v1399 = vrot.slane %v1097, 3
      %v1400 = vrot.slane %v1100, 4
      %v1401 = vor.u32 %v1399, %v1400
      %v1402 = vsel %vm1383, %v1397, %v1401
      %v1403 = vrot.slane %v1106, 3
      %v1404 = vrot.slane %v1109, 4
      %v1405 = vor.u32 %v1403, %v1404
      %v1406 = vsel %vm1383, %v1401, %v1405
      %v1407 = vrot.slane %v1115, 3
      %v1408 = vrot.slane %v1118, 4
      %v1409 = vor.u32 %v1407, %v1408
      %v1410 = vsel %vm1383, %v1405, %v1409
      %v1411 = vrot.slane %v1124, 3
      %v1412 = vrot.slane %v1127, 4
      %v1413 = vor.u32 %v1411, %v1412
      %v1414 = vsel %vm1383, %v1409, %v1413
      %v1415 = vrot.slane %v1133, 3
      %v1416 = vrot.slane %v1136, 4
      %v1417 = vor.u32 %v1415, %v1416
      %v1418 = vsel %vm1383, %v1413, %v1417
      %v1419 = vrot.slane %v1142, 3
      %v1420 = vrot.slane %v1145, 4
      %v1421 = vor.u32 %v1419, %v1420
      %v1422 = vsel %vm1383, %v1417, %v1421
      %v1423 = vrot.slane %v1151, 3
      %v1424 = vrot.slane %v1154, 4
      %v1425 = vor.u32 %v1423, %v1424
      %v1426 = vsel %vm1383, %v1421, %v1425
      %v1427 = vrot.slane %v1160, 3
      %v1428 = vrot.slane %v1163, 4
      %v1429 = vor.u32 %v1427, %v1428
      %v1430 = vsel %vm1383, %v1425, %v1429
      %v1431 = vrot.slane %v1169, 3
      %v1432 = vrot.slane %v1172, 4
      %v1433 = vor.u32 %v1431, %v1432
      %v1434 = vsel %vm1383, %v1429, %v1433
      %v1435 = vrot.slane %v1178, 3
      %v1436 = vrot.slane %v1181, 4
      %v1437 = vor.u32 %v1435, %v1436
      %v1438 = vsel %vm1383, %v1433, %v1437
      %v1439 = vrot.slane %v1187, 3
      %v1440 = vrot.slane %v1190, 4
      %v1441 = vor.u32 %v1439, %v1440
      %v1442 = vsel %vm1383, %v1437, %v1441
      %v1443 = vrot.slane %v1196, 3
      %v1444 = vrot.slane %v1199, 4
      %v1445 = vor.u32 %v1443, %v1444
      %v1446 = vsel %vm1383, %v1441, %v1445
      %v1447 = vrot.slane %v1205, 3
      %v1448 = vrot.slane %v1208, 4
      %v1449 = vor.u32 %v1447, %v1448
      %v1450 = vsel %vm1383, %v1445, %v1449
      %v1483 = vunpack.c.l.b16 %v1367
      %v1484 = vunpack.c.l.b16 %v1368
      %v1485 = vunpack.c.l.b16 %v1369
      %v1486 = vunpack.c.l.b16 %v1370
      %v1487 = vunpack.c.l.b16 %v1371
      %v1488 = vunpack.c.l.b16 %v1372
      %v1489 = vunpack.c.l.b16 %v1373
      %v1490 = vunpack.c.l.b16 %v1374
      %v1491 = vunpack.c.l.b16 %v1375
      %v1492 = vunpack.c.l.b16 %v1376
      %v1493 = vunpack.c.l.b16 %v1377
      %v1494 = vunpack.c.l.b16 %v1378
      %v1495 = vunpack.c.l.b16 %v1379
      %v1496 = vunpack.c.l.b16 %v1380
      %v1497 = vunpack.c.l.b16 %v1381
      %v1498 = vunpack.c.l.b16 %v1382
      %v1499 = vpack.c.b16 %v1484, %v1483
      %v1500 = vpack.c.b16 %v1486, %v1485
      %v1501 = vpack.c.b16 %v1488, %v1487
      %v1502 = vpack.c.b16 %v1490, %v1489
      %v1503 = vpack.c.b16 %v1492, %v1491
      %v1504 = vpack.c.b16 %v1494, %v1493
      %v1505 = vpack.c.b16 %v1496, %v1495
      %v1506 = vpack.c.b16 %v1498, %v1497
      %1515 = vmatpush.bf16.msra.mxu0 %v1506
      %1516 = vmatpush.bf16.msra.mxu0 %v1505
      %1517 = vmatpush.bf16.msra.mxu0 %v1504
      %1518 = vmatpush.bf16.msra.mxu0 %v1503
      %1519 = vmatpush.bf16.msra.mxu0 %v1502
      %1520 = vmatpush.bf16.msra.mxu0 %v1501
      %1521 = vmatpush.bf16.msra.mxu0 %v1500
      %1522 = vmatpush.bf16.msra.mxu0 %v1499
      %1523 = vmatmul.bf16.gmra.mxu0 %v1390
      %v1524 = vpop.f32.mrf.mxu0
      %v1525 = vadd.f32 0.0, %v1524
      %v1526 = vpop.f32.mrf.mxu0
      %v1527 = vadd.f32 0.0, %v1526
      %1528 = vmatmul.bf16.gmra.mxu0 %v1394
      %v1529 = vpop.f32.mrf.mxu0
      %v1530 = vadd.f32 0.0, %v1529
      %v1531 = vpop.f32.mrf.mxu0
      %v1532 = vadd.f32 0.0, %v1531
      %1533 = vmatmul.bf16.gmra.mxu0 %v1398
      %v1534 = vpop.f32.mrf.mxu0
      %v1535 = vadd.f32 0.0, %v1534
      %v1536 = vpop.f32.mrf.mxu0
      %v1537 = vadd.f32 0.0, %v1536
      %1538 = vmatmul.bf16.gmra.mxu0 %v1402
      %v1539 = vpop.f32.mrf.mxu0
      %v1540 = vadd.f32 0.0, %v1539
      %v1541 = vpop.f32.mrf.mxu0
      %v1542 = vadd.f32 0.0, %v1541
      %1543 = vmatmul.bf16.gmra.mxu0 %v1406
      %v1544 = vpop.f32.mrf.mxu0
      %v1545 = vadd.f32 0.0, %v1544
      %v1546 = vpop.f32.mrf.mxu0
      %v1547 = vadd.f32 0.0, %v1546
      %1548 = vmatmul.bf16.gmra.mxu0 %v1410
      %v1549 = vpop.f32.mrf.mxu0
      %v1550 = vadd.f32 0.0, %v1549
      %v1551 = vpop.f32.mrf.mxu0
      %v1552 = vadd.f32 0.0, %v1551
      %1553 = vmatmul.bf16.gmra.mxu0 %v1414
      %v1554 = vpop.f32.mrf.mxu0
      %v1555 = vadd.f32 0.0, %v1554
      %v1556 = vpop.f32.mrf.mxu0
      %v1557 = vadd.f32 0.0, %v1556
      %1558 = vmatmul.bf16.gmra.mxu0 %v1418
      %v1559 = vpop.f32.mrf.mxu0
      %v1560 = vadd.f32 0.0, %v1559
      %v1561 = vpop.f32.mrf.mxu0
      %v1562 = vadd.f32 0.0, %v1561
      %1563 = vmatmul.bf16.gmra.mxu0 %v1422
      %v1564 = vpop.f32.mrf.mxu0
      %v1565 = vadd.f32 0.0, %v1564
      %v1566 = vpop.f32.mrf.mxu0
      %v1567 = vadd.f32 0.0, %v1566
      %1568 = vmatmul.bf16.gmra.mxu0 %v1426
      %v1569 = vpop.f32.mrf.mxu0
      %v1570 = vadd.f32 0.0, %v1569
      %v1571 = vpop.f32.mrf.mxu0
      %v1572 = vadd.f32 0.0, %v1571
      %1573 = vmatmul.bf16.gmra.mxu0 %v1430
      %v1574 = vpop.f32.mrf.mxu0
      %v1575 = vadd.f32 0.0, %v1574
      %v1576 = vpop.f32.mrf.mxu0
      %v1577 = vadd.f32 0.0, %v1576
      %1578 = vmatmul.bf16.gmra.mxu0 %v1434
      %v1579 = vpop.f32.mrf.mxu0
      %v1580 = vadd.f32 0.0, %v1579
      %v1581 = vpop.f32.mrf.mxu0
      %v1582 = vadd.f32 0.0, %v1581
      %1583 = vmatmul.bf16.gmra.mxu0 %v1438
      %v1584 = vpop.f32.mrf.mxu0
      %v1585 = vadd.f32 0.0, %v1584
      %v1586 = vpop.f32.mrf.mxu0
      %v1587 = vadd.f32 0.0, %v1586
      %1588 = vmatmul.bf16.gmra.mxu0 %v1442
      %v1589 = vpop.f32.mrf.mxu0
      %v1590 = vadd.f32 0.0, %v1589
      %v1591 = vpop.f32.mrf.mxu0
      %v1592 = vadd.f32 0.0, %v1591
      %1593 = vmatmul.bf16.gmra.mxu0 %v1446
      %v1594 = vpop.f32.mrf.mxu0
      %v1595 = vadd.f32 0.0, %v1594
      %v1596 = vpop.f32.mrf.mxu0
      %v1597 = vadd.f32 0.0, %v1596
      %1598 = vmatmul.bf16.gmra.mxu0 %v1450
      %v1599 = vpop.f32.mrf.mxu0
      %v1600 = vadd.f32 0.0, %v1599
      %v1601 = vpop.f32.mrf.mxu0
      %v1602 = vadd.f32 0.0, %v1601
      %1603 = vdwg.mxu0
      %v1604 = vadd.f32 %v1287, %v1525
      %v1605 = vadd.f32 %v1289, %v1527
      %v1606 = vadd.f32 %v1292, %v1530
      %v1607 = vadd.f32 %v1294, %v1532
      %v1608 = vadd.f32 %v1297, %v1535
      %v1609 = vadd.f32 %v1299, %v1537
      %v1610 = vadd.f32 %v1302, %v1540
      %v1611 = vadd.f32 %v1304, %v1542
      %v1612 = vadd.f32 %v1307, %v1545
      %v1613 = vadd.f32 %v1309, %v1547
      %v1614 = vadd.f32 %v1312, %v1550
      %v1615 = vadd.f32 %v1314, %v1552
      %v1616 = vadd.f32 %v1317, %v1555
      %v1617 = vadd.f32 %v1319, %v1557
      %v1618 = vadd.f32 %v1322, %v1560
      %v1619 = vadd.f32 %v1324, %v1562
      %v1620 = vadd.f32 %v1327, %v1565
      %v1621 = vadd.f32 %v1329, %v1567
      %v1622 = vadd.f32 %v1332, %v1570
      %v1623 = vadd.f32 %v1334, %v1572
      %v1624 = vadd.f32 %v1337, %v1575
      %v1625 = vadd.f32 %v1339, %v1577
      %v1626 = vadd.f32 %v1342, %v1580
      %v1627 = vadd.f32 %v1344, %v1582
      %v1628 = vadd.f32 %v1347, %v1585
      %v1629 = vadd.f32 %v1349, %v1587
      %v1630 = vadd.f32 %v1352, %v1590
      %v1631 = vadd.f32 %v1354, %v1592
      %v1632 = vadd.f32 %v1357, %v1595
      %v1633 = vadd.f32 %v1359, %v1597
      %v1634 = vadd.f32 %v1362, %v1600
      %v1635 = vadd.f32 %v1364, %v1602
      %v1636 = vpack.c.bf16 %v801, %v800
      %v1637 = vpack.c.bf16 %v802, %v802
      %s1638 = scalar_lea.vmem %s3, 192
      %v1639 = vld [vmem:[%s1638] sm:$0xf]
      %v1640 = vld [vmem:[%s1638 + $0x4] sm:$0xf]
      %v1641 = vld [vmem:[%s1638 + $0x8] sm:$0xf]
      %v1642 = vld [vmem:[%s1638 + $0xc] sm:$0xf]
      %v1643 = vld [vmem:[%s1638 + $0x10] sm:$0xf]
      %v1644 = vld [vmem:[%s1638 + $0x14] sm:$0xf]
      %v1645 = vld [vmem:[%s1638 + $0x18] sm:$0xf]
      %v1646 = vld [vmem:[%s1638 + $0x1c] sm:$0xf]
      %v1647 = vld [vmem:[%s1638 + $0x20] sm:$0xf]
      %v1648 = vld [vmem:[%s1638 + $0x24] sm:$0xf]
      %v1649 = vld [vmem:[%s1638 + $0x28] sm:$0xf]
      %v1650 = vld [vmem:[%s1638 + $0x2c] sm:$0xf]
      %v1651 = vld [vmem:[%s1638 + $0x30] sm:$0xf]
      %v1652 = vld [vmem:[%s1638 + $0x34] sm:$0xf]
      %v1653 = vld [vmem:[%s1638 + $0x38] sm:$0xf]
      %v1654 = vld [vmem:[%s1638 + $0x3c] sm:$0xf]
      %v1656 = vshrl.u32 %v1636, 16
      %v1658 = vrot.slane %v1656, 3
      %v1659 = vshll.u32 %v1636, 16
      %v1661 = vrot.slane %v1659, 4
      %v1662 = vor.u32 %v1658, %v1661
      %v1663 = vsel %vm1383, %v1445, %v1662
      %v1665 = vshrl.u32 %v1637, 16
      %v1667 = vrot.slane %v1665, 3
      %v1668 = vshll.u32 %v1637, 16
      %v1670 = vrot.slane %v1668, 4
      %v1671 = vor.u32 %v1667, %v1670
      %v1672 = vsel %vm1383, %v1662, %v1671
      %v1691 = vunpack.c.l.b16 %v1639
      %v1692 = vunpack.c.l.b16 %v1640
      %v1693 = vunpack.c.l.b16 %v1641
      %v1694 = vunpack.c.l.b16 %v1642
      %v1695 = vunpack.c.l.b16 %v1643
      %v1696 = vunpack.c.l.b16 %v1644
      %v1697 = vunpack.c.l.b16 %v1645
      %v1698 = vunpack.c.l.b16 %v1646
      %v1699 = vunpack.c.l.b16 %v1647
      %v1700 = vunpack.c.l.b16 %v1648
      %v1701 = vunpack.c.l.b16 %v1649
      %v1702 = vunpack.c.l.b16 %v1650
      %v1703 = vunpack.c.l.b16 %v1651
      %v1704 = vunpack.c.l.b16 %v1652
      %v1705 = vunpack.c.l.b16 %v1653
      %v1706 = vunpack.c.l.b16 %v1654
      %v1707 = vpack.c.b16 %v1692, %v1691
      %v1708 = vpack.c.b16 %v1694, %v1693
      %v1709 = vpack.c.b16 %v1696, %v1695
      %v1710 = vpack.c.b16 %v1698, %v1697
      %v1711 = vpack.c.b16 %v1700, %v1699
      %v1712 = vpack.c.b16 %v1702, %v1701
      %v1713 = vpack.c.b16 %v1704, %v1703
      %v1714 = vpack.c.b16 %v1706, %v1705
      %1723 = vmatpush.bf16.msra.mxu0 %v1714
      %1724 = vmatpush.bf16.msra.mxu0 %v1713
      %1725 = vmatpush.bf16.msra.mxu0 %v1712
      %1726 = vmatpush.bf16.msra.mxu0 %v1711
      %1727 = vmatpush.bf16.msra.mxu0 %v1710
      %1728 = vmatpush.bf16.msra.mxu0 %v1709
      %1729 = vmatpush.bf16.msra.mxu0 %v1708
      %1730 = vmatpush.bf16.msra.mxu0 %v1707
      %1731 = vmatmul.bf16.gmra.mxu0 %v1394
      %v1732 = vpop.f32.mrf.mxu0
      %v1733 = vadd.f32 0.0, %v1732
      %v1734 = vpop.f32.mrf.mxu0
      %v1735 = vadd.f32 0.0, %v1734
      %1736 = vmatmul.bf16.gmra.mxu0 %v1398
      %v1737 = vpop.f32.mrf.mxu0
      %v1738 = vadd.f32 0.0, %v1737
      %v1739 = vpop.f32.mrf.mxu0
      %v1740 = vadd.f32 0.0, %v1739
      %1741 = vmatmul.bf16.gmra.mxu0 %v1402
      %v1742 = vpop.f32.mrf.mxu0
      %v1743 = vadd.f32 0.0, %v1742
      %v1744 = vpop.f32.mrf.mxu0
      %v1745 = vadd.f32 0.0, %v1744
      %1746 = vmatmul.bf16.gmra.mxu0 %v1406
      %v1747 = vpop.f32.mrf.mxu0
      %v1748 = vadd.f32 0.0, %v1747
      %v1749 = vpop.f32.mrf.mxu0
      %v1750 = vadd.f32 0.0, %v1749
      %1751 = vmatmul.bf16.gmra.mxu0 %v1410
      %v1752 = vpop.f32.mrf.mxu0
      %v1753 = vadd.f32 0.0, %v1752
      %v1754 = vpop.f32.mrf.mxu0
      %v1755 = vadd.f32 0.0, %v1754
      %1756 = vmatmul.bf16.gmra.mxu0 %v1414
      %v1757 = vpop.f32.mrf.mxu0
      %v1758 = vadd.f32 0.0, %v1757
      %v1759 = vpop.f32.mrf.mxu0
      %v1760 = vadd.f32 0.0, %v1759
      %1761 = vmatmul.bf16.gmra.mxu0 %v1418
      %v1762 = vpop.f32.mrf.mxu0
      %v1763 = vadd.f32 0.0, %v1762
      %v1764 = vpop.f32.mrf.mxu0
      %v1765 = vadd.f32 0.0, %v1764
      %1766 = vmatmul.bf16.gmra.mxu0 %v1422
      %v1767 = vpop.f32.mrf.mxu0
      %v1768 = vadd.f32 0.0, %v1767
      %v1769 = vpop.f32.mrf.mxu0
      %v1770 = vadd.f32 0.0, %v1769
      %1771 = vmatmul.bf16.gmra.mxu0 %v1426
      %v1772 = vpop.f32.mrf.mxu0
      %v1773 = vadd.f32 0.0, %v1772
      %v1774 = vpop.f32.mrf.mxu0
      %v1775 = vadd.f32 0.0, %v1774
      %1776 = vmatmul.bf16.gmra.mxu0 %v1430
      %v1777 = vpop.f32.mrf.mxu0
      %v1778 = vadd.f32 0.0, %v1777
      %v1779 = vpop.f32.mrf.mxu0
      %v1780 = vadd.f32 0.0, %v1779
      %1781 = vmatmul.bf16.gmra.mxu0 %v1434
      %v1782 = vpop.f32.mrf.mxu0
      %v1783 = vadd.f32 0.0, %v1782
      %v1784 = vpop.f32.mrf.mxu0
      %v1785 = vadd.f32 0.0, %v1784
      %1786 = vmatmul.bf16.gmra.mxu0 %v1438
      %v1787 = vpop.f32.mrf.mxu0
      %v1788 = vadd.f32 0.0, %v1787
      %v1789 = vpop.f32.mrf.mxu0
      %v1790 = vadd.f32 0.0, %v1789
      %1791 = vmatmul.bf16.gmra.mxu0 %v1442
      %v1792 = vpop.f32.mrf.mxu0
      %v1793 = vadd.f32 0.0, %v1792
      %v1794 = vpop.f32.mrf.mxu0
      %v1795 = vadd.f32 0.0, %v1794
      %1796 = vmatmul.bf16.gmra.mxu0 %v1446
      %v1797 = vpop.f32.mrf.mxu0
      %v1798 = vadd.f32 0.0, %v1797
      %v1799 = vpop.f32.mrf.mxu0
      %v1800 = vadd.f32 0.0, %v1799
      %1801 = vmatmul.bf16.gmra.mxu0 %v1663
      %v1802 = vpop.f32.mrf.mxu0
      %v1803 = vadd.f32 0.0, %v1802
      %v1804 = vpop.f32.mrf.mxu0
      %v1805 = vadd.f32 0.0, %v1804
      %1806 = vmatmul.bf16.gmra.mxu0 %v1672
      %v1807 = vpop.f32.mrf.mxu0
      %v1808 = vadd.f32 0.0, %v1807
      %v1809 = vpop.f32.mrf.mxu0
      %v1810 = vadd.f32 0.0, %v1809
      %1811 = vdwg.mxu0
      %v1812 = vadd.f32 %v1604, %v1733
      %v1813 = vadd.f32 %v1605, %v1735
      %v1814 = vadd.f32 %v1606, %v1738
      %v1815 = vadd.f32 %v1607, %v1740
      %v1816 = vadd.f32 %v1608, %v1743
      %v1817 = vadd.f32 %v1609, %v1745
      %v1818 = vadd.f32 %v1610, %v1748
      %v1819 = vadd.f32 %v1611, %v1750
      %v1820 = vadd.f32 %v1612, %v1753
      %v1821 = vadd.f32 %v1613, %v1755
      %v1822 = vadd.f32 %v1614, %v1758
      %v1823 = vadd.f32 %v1615, %v1760
      %v1824 = vadd.f32 %v1616, %v1763
      %v1825 = vadd.f32 %v1617, %v1765
      %v1826 = vadd.f32 %v1618, %v1768
      %v1827 = vadd.f32 %v1619, %v1770
      %v1828 = vadd.f32 %v1620, %v1773
      %v1829 = vadd.f32 %v1621, %v1775
      %v1830 = vadd.f32 %v1622, %v1778
      %v1831 = vadd.f32 %v1623, %v1780
      %v1832 = vadd.f32 %v1624, %v1783
      %v1833 = vadd.f32 %v1625, %v1785
      %v1834 = vadd.f32 %v1626, %v1788
      %v1835 = vadd.f32 %v1627, %v1790
      %v1836 = vadd.f32 %v1628, %v1793
      %v1837 = vadd.f32 %v1629, %v1795
      %v1838 = vadd.f32 %v1630, %v1798
      %v1839 = vadd.f32 %v1631, %v1800
      %v1840 = vadd.f32 %v1632, %v1803
      %v1841 = vadd.f32 %v1633, %v1805
      %v1842 = vadd.f32 %v1634, %v1808
      %v1843 = vadd.f32 %v1635, %v1810
      %v1844 = vpack.c.bf16 %v772, %v771
      %v1845 = vpack.c.bf16 %v774, %v773
      %v1846 = vpack.c.bf16 %v776, %v775
      %v1847 = vpack.c.bf16 %v778, %v777
      %v1848 = vpack.c.bf16 %v780, %v779
      %v1849 = vpack.c.bf16 %v782, %v781
      %v1850 = vpack.c.bf16 %v784, %v783
      %v1851 = vpack.c.bf16 %v786, %v785
      %v1852 = vpack.c.bf16 %v788, %v787
      %v1853 = vpack.c.bf16 %v790, %v789
      %v1854 = vpack.c.bf16 %v792, %v791
      %v1855 = vpack.c.bf16 %v794, %v793
      %v1856 = vpack.c.bf16 %v796, %v795
      %v1857 = vpack.c.bf16 %v798, %v797
      %v1858 = vpack.c.bf16 %v800, %v799
      %v1859 = vpack.c.bf16 %v802, %v801
      %s1860 = scalar_lea.vmem %s3, 256
      %v1861 = vld [vmem:[%s1860] sm:$0xf]
      %v1862 = vld [vmem:[%s1860 + $0x4] sm:$0xf]
      %v1863 = vld [vmem:[%s1860 + $0x8] sm:$0xf]
      %v1864 = vld [vmem:[%s1860 + $0xc] sm:$0xf]
      %v1865 = vld [vmem:[%s1860 + $0x10] sm:$0xf]
      %v1866 = vld [vmem:[%s1860 + $0x14] sm:$0xf]
      %v1867 = vld [vmem:[%s1860 + $0x18] sm:$0xf]
      %v1868 = vld [vmem:[%s1860 + $0x1c] sm:$0xf]
      %v1869 = vld [vmem:[%s1860 + $0x20] sm:$0xf]
      %v1870 = vld [vmem:[%s1860 + $0x24] sm:$0xf]
      %v1871 = vld [vmem:[%s1860 + $0x28] sm:$0xf]
      %v1872 = vld [vmem:[%s1860 + $0x2c] sm:$0xf]
      %v1873 = vld [vmem:[%s1860 + $0x30] sm:$0xf]
      %v1874 = vld [vmem:[%s1860 + $0x34] sm:$0xf]
      %v1875 = vld [vmem:[%s1860 + $0x38] sm:$0xf]
      %v1876 = vld [vmem:[%s1860 + $0x3c] sm:$0xf]
      %v1893 = vunpack.c.l.b16 %v1861
      %v1894 = vunpack.c.l.b16 %v1862
      %v1895 = vunpack.c.l.b16 %v1863
      %v1896 = vunpack.c.l.b16 %v1864
      %v1897 = vunpack.c.l.b16 %v1865
      %v1898 = vunpack.c.l.b16 %v1866
      %v1899 = vunpack.c.l.b16 %v1867
      %v1900 = vunpack.c.l.b16 %v1868
      %v1901 = vunpack.c.l.b16 %v1869
      %v1902 = vunpack.c.l.b16 %v1870
      %v1903 = vunpack.c.l.b16 %v1871
      %v1904 = vunpack.c.l.b16 %v1872
      %v1905 = vunpack.c.l.b16 %v1873
      %v1906 = vunpack.c.l.b16 %v1874
      %v1907 = vunpack.c.l.b16 %v1875
      %v1908 = vunpack.c.l.b16 %v1876
      %v1909 = vpack.c.b16 %v1894, %v1893
      %v1910 = vpack.c.b16 %v1896, %v1895
      %v1911 = vpack.c.b16 %v1898, %v1897
      %v1912 = vpack.c.b16 %v1900, %v1899
      %v1913 = vpack.c.b16 %v1902, %v1901
      %v1914 = vpack.c.b16 %v1904, %v1903
      %v1915 = vpack.c.b16 %v1906, %v1905
      %v1916 = vpack.c.b16 %v1908, %v1907
      %1925 = vmatpush.bf16.msra.mxu0 %v1916
      %1926 = vmatpush.bf16.msra.mxu0 %v1915
      %1927 = vmatpush.bf16.msra.mxu0 %v1914
      %1928 = vmatpush.bf16.msra.mxu0 %v1913
      %1929 = vmatpush.bf16.msra.mxu0 %v1912
      %1930 = vmatpush.bf16.msra.mxu0 %v1911
      %1931 = vmatpush.bf16.msra.mxu0 %v1910
      %1932 = vmatpush.bf16.msra.mxu0 %v1909
      %1933 = vmatmul.bf16.gmra.mxu0 %v1844
      %v1934 = vpop.f32.mrf.mxu0
      %v1935 = vadd.f32 0.0, %v1934
      %v1936 = vpop.f32.mrf.mxu0
      %v1937 = vadd.f32 0.0, %v1936
      %1938 = vmatmul.bf16.gmra.mxu0 %v1845
      %v1939 = vpop.f32.mrf.mxu0
      %v1940 = vadd.f32 0.0, %v1939
      %v1941 = vpop.f32.mrf.mxu0
      %v1942 = vadd.f32 0.0, %v1941
      %1943 = vmatmul.bf16.gmra.mxu0 %v1846
      %v1944 = vpop.f32.mrf.mxu0
      %v1945 = vadd.f32 0.0, %v1944
      %v1946 = vpop.f32.mrf.mxu0
      %v1947 = vadd.f32 0.0, %v1946
      %1948 = vmatmul.bf16.gmra.mxu0 %v1847
      %v1949 = vpop.f32.mrf.mxu0
      %v1950 = vadd.f32 0.0, %v1949
      %v1951 = vpop.f32.mrf.mxu0
      %v1952 = vadd.f32 0.0, %v1951
      %1953 = vmatmul.bf16.gmra.mxu0 %v1848
      %v1954 = vpop.f32.mrf.mxu0
      %v1955 = vadd.f32 0.0, %v1954
      %v1956 = vpop.f32.mrf.mxu0
      %v1957 = vadd.f32 0.0, %v1956
      %1958 = vmatmul.bf16.gmra.mxu0 %v1849
      %v1959 = vpop.f32.mrf.mxu0
      %v1960 = vadd.f32 0.0, %v1959
      %v1961 = vpop.f32.mrf.mxu0
      %v1962 = vadd.f32 0.0, %v1961
      %1963 = vmatmul.bf16.gmra.mxu0 %v1850
      %v1964 = vpop.f32.mrf.mxu0
      %v1965 = vadd.f32 0.0, %v1964
      %v1966 = vpop.f32.mrf.mxu0
      %v1967 = vadd.f32 0.0, %v1966
      %1968 = vmatmul.bf16.gmra.mxu0 %v1851
      %v1969 = vpop.f32.mrf.mxu0
      %v1970 = vadd.f32 0.0, %v1969
      %v1971 = vpop.f32.mrf.mxu0
      %v1972 = vadd.f32 0.0, %v1971
      %1973 = vmatmul.bf16.gmra.mxu0 %v1852
      %v1974 = vpop.f32.mrf.mxu0
      %v1975 = vadd.f32 0.0, %v1974
      %v1976 = vpop.f32.mrf.mxu0
      %v1977 = vadd.f32 0.0, %v1976
      %1978 = vmatmul.bf16.gmra.mxu0 %v1853
      %v1979 = vpop.f32.mrf.mxu0
      %v1980 = vadd.f32 0.0, %v1979
      %v1981 = vpop.f32.mrf.mxu0
      %v1982 = vadd.f32 0.0, %v1981
      %1983 = vmatmul.bf16.gmra.mxu0 %v1854
      %v1984 = vpop.f32.mrf.mxu0
      %v1985 = vadd.f32 0.0, %v1984
      %v1986 = vpop.f32.mrf.mxu0
      %v1987 = vadd.f32 0.0, %v1986
      %1988 = vmatmul.bf16.gmra.mxu0 %v1855
      %v1989 = vpop.f32.mrf.mxu0
      %v1990 = vadd.f32 0.0, %v1989
      %v1991 = vpop.f32.mrf.mxu0
      %v1992 = vadd.f32 0.0, %v1991
      %1993 = vmatmul.bf16.gmra.mxu0 %v1856
      %v1994 = vpop.f32.mrf.mxu0
      %v1995 = vadd.f32 0.0, %v1994
      %v1996 = vpop.f32.mrf.mxu0
      %v1997 = vadd.f32 0.0, %v1996
      %1998 = vmatmul.bf16.gmra.mxu0 %v1857
      %v1999 = vpop.f32.mrf.mxu0
      %v2000 = vadd.f32 0.0, %v1999
      %v2001 = vpop.f32.mrf.mxu0
      %v2002 = vadd.f32 0.0, %v2001
      %2003 = vmatmul.bf16.gmra.mxu0 %v1858
      %v2004 = vpop.f32.mrf.mxu0
      %v2005 = vadd.f32 0.0, %v2004
      %v2006 = vpop.f32.mrf.mxu0
      %v2007 = vadd.f32 0.0, %v2006
      %2008 = vmatmul.bf16.gmra.mxu0 %v1859
      %v2009 = vpop.f32.mrf.mxu0
      %v2010 = vadd.f32 0.0, %v2009
      %v2011 = vpop.f32.mrf.mxu0
      %v2012 = vadd.f32 0.0, %v2011
      %2013 = vdwg.mxu0
      %v2014 = vadd.f32 %v1812, %v1935
      %v2015 = vadd.f32 %v1813, %v1937
      %v2016 = vadd.f32 %v1814, %v1940
      %v2017 = vadd.f32 %v1815, %v1942
      %v2018 = vadd.f32 %v1816, %v1945
      %v2019 = vadd.f32 %v1817, %v1947
      %v2020 = vadd.f32 %v1818, %v1950
      %v2021 = vadd.f32 %v1819, %v1952
      %v2022 = vadd.f32 %v1820, %v1955
      %v2023 = vadd.f32 %v1821, %v1957
      %v2024 = vadd.f32 %v1822, %v1960
      %v2025 = vadd.f32 %v1823, %v1962
      %v2026 = vadd.f32 %v1824, %v1965
      %v2027 = vadd.f32 %v1825, %v1967
      %v2028 = vadd.f32 %v1826, %v1970
      %v2029 = vadd.f32 %v1827, %v1972
      %v2030 = vadd.f32 %v1828, %v1975
      %v2031 = vadd.f32 %v1829, %v1977
      %v2032 = vadd.f32 %v1830, %v1980
      %v2033 = vadd.f32 %v1831, %v1982
      %v2034 = vadd.f32 %v1832, %v1985
      %v2035 = vadd.f32 %v1833, %v1987
      %v2036 = vadd.f32 %v1834, %v1990
      %v2037 = vadd.f32 %v1835, %v1992
      %v2038 = vadd.f32 %v1836, %v1995
      %v2039 = vadd.f32 %v1837, %v1997
      %v2040 = vadd.f32 %v1838, %v2000
      %v2041 = vadd.f32 %v1839, %v2002
      %v2042 = vadd.f32 %v1840, %v2005
      %v2043 = vadd.f32 %v1841, %v2007
      %v2044 = vadd.f32 %v1842, %v2010
      %v2045 = vadd.f32 %v1843, %v2012
      %v2046 = vpack.c.bf16 %v803, %v803
      %s2047 = scalar_lea.vmem %s3, 320
      %v2048 = vld [vmem:[%s2047] sm:$0xf]
      %v2049 = vld [vmem:[%s2047 + $0x4] sm:$0xf]
      %v2050 = vld [vmem:[%s2047 + $0x8] sm:$0xf]
      %v2051 = vld [vmem:[%s2047 + $0xc] sm:$0xf]
      %v2052 = vld [vmem:[%s2047 + $0x10] sm:$0xf]
      %v2053 = vld [vmem:[%s2047 + $0x14] sm:$0xf]
      %v2054 = vld [vmem:[%s2047 + $0x18] sm:$0xf]
      %v2055 = vld [vmem:[%s2047 + $0x1c] sm:$0xf]
      %v2056 = vld [vmem:[%s2047 + $0x20] sm:$0xf]
      %v2057 = vld [vmem:[%s2047 + $0x24] sm:$0xf]
      %v2058 = vld [vmem:[%s2047 + $0x28] sm:$0xf]
      %v2059 = vld [vmem:[%s2047 + $0x2c] sm:$0xf]
      %v2060 = vld [vmem:[%s2047 + $0x30] sm:$0xf]
      %v2061 = vld [vmem:[%s2047 + $0x34] sm:$0xf]
      %v2062 = vld [vmem:[%s2047 + $0x38] sm:$0xf]
      %v2063 = vld [vmem:[%s2047 + $0x3c] sm:$0xf]
      %vm2064 = vsmask.f32 7424
      %v2066 = vshrl.u32 %v1844, 16
      %v2068 = vshll.u32 %v1844, 16
      %v2070 = vrot.slane %v2068, 1
      %v2071 = vor.u32 %v2066, %v2070
      %v2073 = vshll.u32 %v1845, 16
      %v2075 = vrot.slane %v2073, 1
      %v2076 = vsel %vm2064, %v2071, %v2075
      %v2077 = vshrl.u32 %v1845, 16
      %v2079 = vor.u32 %v2077, %v2075
      %v2081 = vshll.u32 %v1846, 16
      %v2083 = vrot.slane %v2081, 1
      %v2084 = vsel %vm2064, %v2079, %v2083
      %v2085 = vshrl.u32 %v1846, 16
      %v2087 = vor.u32 %v2085, %v2083
      %v2089 = vshll.u32 %v1847, 16
      %v2091 = vrot.slane %v2089, 1
      %v2092 = vsel %vm2064, %v2087, %v2091
      %v2093 = vshrl.u32 %v1847, 16
      %v2095 = vor.u32 %v2093, %v2091
      %v2097 = vshll.u32 %v1848, 16
      %v2099 = vrot.slane %v2097, 1
      %v2100 = vsel %vm2064, %v2095, %v2099
      %v2101 = vshrl.u32 %v1848, 16
      %v2103 = vor.u32 %v2101, %v2099
      %v2105 = vshll.u32 %v1849, 16
      %v2107 = vrot.slane %v2105, 1
      %v2108 = vsel %vm2064, %v2103, %v2107
      %v2109 = vshrl.u32 %v1849, 16
      %v2111 = vor.u32 %v2109, %v2107
      %v2113 = vshll.u32 %v1850, 16
      %v2115 = vrot.slane %v2113, 1
      %v2116 = vsel %vm2064, %v2111, %v2115
      %v2117 = vshrl.u32 %v1850, 16
      %v2119 = vor.u32 %v2117, %v2115
      %v2121 = vshll.u32 %v1851, 16
      %v2123 = vrot.slane %v2121, 1
      %v2124 = vsel %vm2064, %v2119, %v2123
      %v2125 = vshrl.u32 %v1851, 16
      %v2127 = vor.u32 %v2125, %v2123
      %v2129 = vshll.u32 %v1852, 16
      %v2131 = vrot.slane %v2129, 1
      %v2132 = vsel %vm2064, %v2127, %v2131
      %v2133 = vshrl.u32 %v1852, 16
      %v2135 = vor.u32 %v2133, %v2131
      %v2137 = vshll.u32 %v1853, 16
      %v2139 = vrot.slane %v2137, 1
      %v2140 = vsel %vm2064, %v2135, %v2139
      %v2141 = vshrl.u32 %v1853, 16
      %v2143 = vor.u32 %v2141, %v2139
      %v2145 = vshll.u32 %v1854, 16
      %v2147 = vrot.slane %v2145, 1
      %v2148 = vsel %vm2064, %v2143, %v2147
      %v2149 = vshrl.u32 %v1854, 16
      %v2151 = vor.u32 %v2149, %v2147
      %v2153 = vshll.u32 %v1855, 16
      %v2155 = vrot.slane %v2153, 1
      %v2156 = vsel %vm2064, %v2151, %v2155
      %v2157 = vshrl.u32 %v1855, 16
      %v2159 = vor.u32 %v2157, %v2155
      %v2161 = vshll.u32 %v1856, 16
      %v2163 = vrot.slane %v2161, 1
      %v2164 = vsel %vm2064, %v2159, %v2163
      %v2165 = vshrl.u32 %v1856, 16
      %v2167 = vor.u32 %v2165, %v2163
      %v2169 = vshll.u32 %v1857, 16
      %v2171 = vrot.slane %v2169, 1
      %v2172 = vsel %vm2064, %v2167, %v2171
      %v2173 = vshrl.u32 %v1857, 16
      %v2175 = vor.u32 %v2173, %v2171
      %v2177 = vshll.u32 %v1858, 16
      %v2179 = vrot.slane %v2177, 1
      %v2180 = vsel %vm2064, %v2175, %v2179
      %v2181 = vshrl.u32 %v1858, 16
      %v2183 = vor.u32 %v2181, %v2179
      %v2185 = vshll.u32 %v1859, 16
      %v2187 = vrot.slane %v2185, 1
      %v2188 = vsel %vm2064, %v2183, %v2187
      %v2189 = vshrl.u32 %v1859, 16
      %v2191 = vor.u32 %v2189, %v2187
      %v2193 = vshll.u32 %v2046, 16
      %v2195 = vrot.slane %v2193, 1
      %v2196 = vsel %vm2064, %v2191, %v2195
      %v2229 = vunpack.c.l.b16 %v2048
      %v2230 = vunpack.c.l.b16 %v2049
      %v2231 = vunpack.c.l.b16 %v2050
      %v2232 = vunpack.c.l.b16 %v2051
      %v2233 = vunpack.c.l.b16 %v2052
      %v2234 = vunpack.c.l.b16 %v2053
      %v2235 = vunpack.c.l.b16 %v2054
      %v2236 = vunpack.c.l.b16 %v2055
      %v2237 = vunpack.c.l.b16 %v2056
      %v2238 = vunpack.c.l.b16 %v2057
      %v2239 = vunpack.c.l.b16 %v2058
      %v2240 = vunpack.c.l.b16 %v2059
      %v2241 = vunpack.c.l.b16 %v2060
      %v2242 = vunpack.c.l.b16 %v2061
      %v2243 = vunpack.c.l.b16 %v2062
      %v2244 = vunpack.c.l.b16 %v2063
      %v2245 = vpack.c.b16 %v2230, %v2229
      %v2246 = vpack.c.b16 %v2232, %v2231
      %v2247 = vpack.c.b16 %v2234, %v2233
      %v2248 = vpack.c.b16 %v2236, %v2235
      %v2249 = vpack.c.b16 %v2238, %v2237
      %v2250 = vpack.c.b16 %v2240, %v2239
      %v2251 = vpack.c.b16 %v2242, %v2241
      %v2252 = vpack.c.b16 %v2244, %v2243
      %2261 = vmatpush.bf16.msra.mxu0 %v2252
      %2262 = vmatpush.bf16.msra.mxu0 %v2251
      %2263 = vmatpush.bf16.msra.mxu0 %v2250
      %2264 = vmatpush.bf16.msra.mxu0 %v2249
      %2265 = vmatpush.bf16.msra.mxu0 %v2248
      %2266 = vmatpush.bf16.msra.mxu0 %v2247
      %2267 = vmatpush.bf16.msra.mxu0 %v2246
      %2268 = vmatpush.bf16.msra.mxu0 %v2245
      %2269 = vmatmul.bf16.gmra.mxu0 %v2076
      %v2270 = vpop.f32.mrf.mxu0
      %v2271 = vadd.f32 0.0, %v2270
      %v2272 = vpop.f32.mrf.mxu0
      %v2273 = vadd.f32 0.0, %v2272
      %2274 = vmatmul.bf16.gmra.mxu0 %v2084
      %v2275 = vpop.f32.mrf.mxu0
      %v2276 = vadd.f32 0.0, %v2275
      %v2277 = vpop.f32.mrf.mxu0
      %v2278 = vadd.f32 0.0, %v2277
      %2279 = vmatmul.bf16.gmra.mxu0 %v2092
      %v2280 = vpop.f32.mrf.mxu0
      %v2281 = vadd.f32 0.0, %v2280
      %v2282 = vpop.f32.mrf.mxu0
      %v2283 = vadd.f32 0.0, %v2282
      %2284 = vmatmul.bf16.gmra.mxu0 %v2100
      %v2285 = vpop.f32.mrf.mxu0
      %v2286 = vadd.f32 0.0, %v2285
      %v2287 = vpop.f32.mrf.mxu0
      %v2288 = vadd.f32 0.0, %v2287
      %2289 = vmatmul.bf16.gmra.mxu0 %v2108
      %v2290 = vpop.f32.mrf.mxu0
      %v2291 = vadd.f32 0.0, %v2290
      %v2292 = vpop.f32.mrf.mxu0
      %v2293 = vadd.f32 0.0, %v2292
      %2294 = vmatmul.bf16.gmra.mxu0 %v2116
      %v2295 = vpop.f32.mrf.mxu0
      %v2296 = vadd.f32 0.0, %v2295
      %v2297 = vpop.f32.mrf.mxu0
      %v2298 = vadd.f32 0.0, %v2297
      %2299 = vmatmul.bf16.gmra.mxu0 %v2124
      %v2300 = vpop.f32.mrf.mxu0
      %v2301 = vadd.f32 0.0, %v2300
      %v2302 = vpop.f32.mrf.mxu0
      %v2303 = vadd.f32 0.0, %v2302
      %2304 = vmatmul.bf16.gmra.mxu0 %v2132
      %v2305 = vpop.f32.mrf.mxu0
      %v2306 = vadd.f32 0.0, %v2305
      %v2307 = vpop.f32.mrf.mxu0
      %v2308 = vadd.f32 0.0, %v2307
      %2309 = vmatmul.bf16.gmra.mxu0 %v2140
      %v2310 = vpop.f32.mrf.mxu0
      %v2311 = vadd.f32 0.0, %v2310
      %v2312 = vpop.f32.mrf.mxu0
      %v2313 = vadd.f32 0.0, %v2312
      %2314 = vmatmul.bf16.gmra.mxu0 %v2148
      %v2315 = vpop.f32.mrf.mxu0
      %v2316 = vadd.f32 0.0, %v2315
      %v2317 = vpop.f32.mrf.mxu0
      %v2318 = vadd.f32 0.0, %v2317
      %2319 = vmatmul.bf16.gmra.mxu0 %v2156
      %v2320 = vpop.f32.mrf.mxu0
      %v2321 = vadd.f32 0.0, %v2320
      %v2322 = vpop.f32.mrf.mxu0
      %v2323 = vadd.f32 0.0, %v2322
      %2324 = vmatmul.bf16.gmra.mxu0 %v2164
      %v2325 = vpop.f32.mrf.mxu0
      %v2326 = vadd.f32 0.0, %v2325
      %v2327 = vpop.f32.mrf.mxu0
      %v2328 = vadd.f32 0.0, %v2327
      %2329 = vmatmul.bf16.gmra.mxu0 %v2172
      %v2330 = vpop.f32.mrf.mxu0
      %v2331 = vadd.f32 0.0, %v2330
      %v2332 = vpop.f32.mrf.mxu0
      %v2333 = vadd.f32 0.0, %v2332
      %2334 = vmatmul.bf16.gmra.mxu0 %v2180
      %v2335 = vpop.f32.mrf.mxu0
      %v2336 = vadd.f32 0.0, %v2335
      %v2337 = vpop.f32.mrf.mxu0
      %v2338 = vadd.f32 0.0, %v2337
      %2339 = vmatmul.bf16.gmra.mxu0 %v2188
      %v2340 = vpop.f32.mrf.mxu0
      %v2341 = vadd.f32 0.0, %v2340
      %v2342 = vpop.f32.mrf.mxu0
      %v2343 = vadd.f32 0.0, %v2342
      %2344 = vmatmul.bf16.gmra.mxu0 %v2196
      %v2345 = vpop.f32.mrf.mxu0
      %v2346 = vadd.f32 0.0, %v2345
      %v2347 = vpop.f32.mrf.mxu0
      %v2348 = vadd.f32 0.0, %v2347
      %2349 = vdwg.mxu0
      %v2350 = vadd.f32 %v2014, %v2271
      %v2351 = vadd.f32 %v2015, %v2273
      %v2352 = vadd.f32 %v2016, %v2276
      %v2353 = vadd.f32 %v2017, %v2278
      %v2354 = vadd.f32 %v2018, %v2281
      %v2355 = vadd.f32 %v2019, %v2283
      %v2356 = vadd.f32 %v2020, %v2286
      %v2357 = vadd.f32 %v2021, %v2288
      %v2358 = vadd.f32 %v2022, %v2291
      %v2359 = vadd.f32 %v2023, %v2293
      %v2360 = vadd.f32 %v2024, %v2296
      %v2361 = vadd.f32 %v2025, %v2298
      %v2362 = vadd.f32 %v2026, %v2301
      %v2363 = vadd.f32 %v2027, %v2303
      %v2364 = vadd.f32 %v2028, %v2306
      %v2365 = vadd.f32 %v2029, %v2308
      %v2366 = vadd.f32 %v2030, %v2311
      %v2367 = vadd.f32 %v2031, %v2313
      %v2368 = vadd.f32 %v2032, %v2316
      %v2369 = vadd.f32 %v2033, %v2318
      %v2370 = vadd.f32 %v2034, %v2321
      %v2371 = vadd.f32 %v2035, %v2323
      %v2372 = vadd.f32 %v2036, %v2326
      %v2373 = vadd.f32 %v2037, %v2328
      %v2374 = vadd.f32 %v2038, %v2331
      %v2375 = vadd.f32 %v2039, %v2333
      %v2376 = vadd.f32 %v2040, %v2336
      %v2377 = vadd.f32 %v2041, %v2338
      %v2378 = vadd.f32 %v2042, %v2341
      %v2379 = vadd.f32 %v2043, %v2343
      %v2380 = vadd.f32 %v2044, %v2346
      %v2381 = vadd.f32 %v2045, %v2348
      %v2382 = vpack.c.bf16 %v804, %v803
      %v2383 = vpack.c.bf16 %v805, %v805
      %s2384 = scalar_lea.vmem %s3, 384
      %v2385 = vld [vmem:[%s2384] sm:$0xf]
      %v2386 = vld [vmem:[%s2384 + $0x4] sm:$0xf]
      %v2387 = vld [vmem:[%s2384 + $0x8] sm:$0xf]
      %v2388 = vld [vmem:[%s2384 + $0xc] sm:$0xf]
      %v2389 = vld [vmem:[%s2384 + $0x10] sm:$0xf]
      %v2390 = vld [vmem:[%s2384 + $0x14] sm:$0xf]
      %v2391 = vld [vmem:[%s2384 + $0x18] sm:$0xf]
      %v2392 = vld [vmem:[%s2384 + $0x1c] sm:$0xf]
      %v2393 = vld [vmem:[%s2384 + $0x20] sm:$0xf]
      %v2394 = vld [vmem:[%s2384 + $0x24] sm:$0xf]
      %v2395 = vld [vmem:[%s2384 + $0x28] sm:$0xf]
      %v2396 = vld [vmem:[%s2384 + $0x2c] sm:$0xf]
      %v2397 = vld [vmem:[%s2384 + $0x30] sm:$0xf]
      %v2398 = vld [vmem:[%s2384 + $0x34] sm:$0xf]
      %v2399 = vld [vmem:[%s2384 + $0x38] sm:$0xf]
      %v2400 = vld [vmem:[%s2384 + $0x3c] sm:$0xf]
      %v2402 = vshll.u32 %v2382, 16
      %v2404 = vrot.slane %v2402, 1
      %v2405 = vsel %vm2064, %v2191, %v2404
      %v2406 = vshrl.u32 %v2382, 16
      %v2408 = vor.u32 %v2406, %v2404
      %v2410 = vshll.u32 %v2383, 16
      %v2412 = vrot.slane %v2410, 1
      %v2413 = vsel %vm2064, %v2408, %v2412
      %v2432 = vunpack.c.l.b16 %v2385
      %v2433 = vunpack.c.l.b16 %v2386
      %v2434 = vunpack.c.l.b16 %v2387
      %v2435 = vunpack.c.l.b16 %v2388
      %v2436 = vunpack.c.l.b16 %v2389
      %v2437 = vunpack.c.l.b16 %v2390
      %v2438 = vunpack.c.l.b16 %v2391
      %v2439 = vunpack.c.l.b16 %v2392
      %v2440 = vunpack.c.l.b16 %v2393
      %v2441 = vunpack.c.l.b16 %v2394
      %v2442 = vunpack.c.l.b16 %v2395
      %v2443 = vunpack.c.l.b16 %v2396
      %v2444 = vunpack.c.l.b16 %v2397
      %v2445 = vunpack.c.l.b16 %v2398
      %v2446 = vunpack.c.l.b16 %v2399
      %v2447 = vunpack.c.l.b16 %v2400
      %v2448 = vpack.c.b16 %v2433, %v2432
      %v2449 = vpack.c.b16 %v2435, %v2434
      %v2450 = vpack.c.b16 %v2437, %v2436
      %v2451 = vpack.c.b16 %v2439, %v2438
      %v2452 = vpack.c.b16 %v2441, %v2440
      %v2453 = vpack.c.b16 %v2443, %v2442
      %v2454 = vpack.c.b16 %v2445, %v2444
      %v2455 = vpack.c.b16 %v2447, %v2446
      %2464 = vmatpush.bf16.msra.mxu0 %v2455
      %2465 = vmatpush.bf16.msra.mxu0 %v2454
      %2466 = vmatpush.bf16.msra.mxu0 %v2453
      %2467 = vmatpush.bf16.msra.mxu0 %v2452
      %2468 = vmatpush.bf16.msra.mxu0 %v2451
      %2469 = vmatpush.bf16.msra.mxu0 %v2450
      %2470 = vmatpush.bf16.msra.mxu0 %v2449
      %2471 = vmatpush.bf16.msra.mxu0 %v2448
      %2472 = vmatmul.bf16.gmra.mxu0 %v2084
      %v2473 = vpop.f32.mrf.mxu0
      %v2474 = vadd.f32 0.0, %v2473
      %v2475 = vpop.f32.mrf.mxu0
      %v2476 = vadd.f32 0.0, %v2475
      %2477 = vmatmul.bf16.gmra.mxu0 %v2092
      %v2478 = vpop.f32.mrf.mxu0
      %v2479 = vadd.f32 0.0, %v2478
      %v2480 = vpop.f32.mrf.mxu0
      %v2481 = vadd.f32 0.0, %v2480
      %2482 = vmatmul.bf16.gmra.mxu0 %v2100
      %v2483 = vpop.f32.mrf.mxu0
      %v2484 = vadd.f32 0.0, %v2483
      %v2485 = vpop.f32.mrf.mxu0
      %v2486 = vadd.f32 0.0, %v2485
      %2487 = vmatmul.bf16.gmra.mxu0 %v2108
      %v2488 = vpop.f32.mrf.mxu0
      %v2489 = vadd.f32 0.0, %v2488
      %v2490 = vpop.f32.mrf.mxu0
      %v2491 = vadd.f32 0.0, %v2490
      %2492 = vmatmul.bf16.gmra.mxu0 %v2116
      %v2493 = vpop.f32.mrf.mxu0
      %v2494 = vadd.f32 0.0, %v2493
      %v2495 = vpop.f32.mrf.mxu0
      %v2496 = vadd.f32 0.0, %v2495
      %2497 = vmatmul.bf16.gmra.mxu0 %v2124
      %v2498 = vpop.f32.mrf.mxu0
      %v2499 = vadd.f32 0.0, %v2498
      %v2500 = vpop.f32.mrf.mxu0
      %v2501 = vadd.f32 0.0, %v2500
      %2502 = vmatmul.bf16.gmra.mxu0 %v2132
      %v2503 = vpop.f32.mrf.mxu0
      %v2504 = vadd.f32 0.0, %v2503
      %v2505 = vpop.f32.mrf.mxu0
      %v2506 = vadd.f32 0.0, %v2505
      %2507 = vmatmul.bf16.gmra.mxu0 %v2140
      %v2508 = vpop.f32.mrf.mxu0
      %v2509 = vadd.f32 0.0, %v2508
      %v2510 = vpop.f32.mrf.mxu0
      %v2511 = vadd.f32 0.0, %v2510
      %2512 = vmatmul.bf16.gmra.mxu0 %v2148
      %v2513 = vpop.f32.mrf.mxu0
      %v2514 = vadd.f32 0.0, %v2513
      %v2515 = vpop.f32.mrf.mxu0
      %v2516 = vadd.f32 0.0, %v2515
      %2517 = vmatmul.bf16.gmra.mxu0 %v2156
      %v2518 = vpop.f32.mrf.mxu0
      %v2519 = vadd.f32 0.0, %v2518
      %v2520 = vpop.f32.mrf.mxu0
      %v2521 = vadd.f32 0.0, %v2520
      %2522 = vmatmul.bf16.gmra.mxu0 %v2164
      %v2523 = vpop.f32.mrf.mxu0
      %v2524 = vadd.f32 0.0, %v2523
      %v2525 = vpop.f32.mrf.mxu0
      %v2526 = vadd.f32 0.0, %v2525
      %2527 = vmatmul.bf16.gmra.mxu0 %v2172
      %v2528 = vpop.f32.mrf.mxu0
      %v2529 = vadd.f32 0.0, %v2528
      %v2530 = vpop.f32.mrf.mxu0
      %v2531 = vadd.f32 0.0, %v2530
      %2532 = vmatmul.bf16.gmra.mxu0 %v2180
      %v2533 = vpop.f32.mrf.mxu0
      %v2534 = vadd.f32 0.0, %v2533
      %v2535 = vpop.f32.mrf.mxu0
      %v2536 = vadd.f32 0.0, %v2535
      %2537 = vmatmul.bf16.gmra.mxu0 %v2188
      %v2538 = vpop.f32.mrf.mxu0
      %v2539 = vadd.f32 0.0, %v2538
      %v2540 = vpop.f32.mrf.mxu0
      %v2541 = vadd.f32 0.0, %v2540
      %2542 = vmatmul.bf16.gmra.mxu0 %v2405
      %v2543 = vpop.f32.mrf.mxu0
      %v2544 = vadd.f32 0.0, %v2543
      %v2545 = vpop.f32.mrf.mxu0
      %v2546 = vadd.f32 0.0, %v2545
      %2547 = vmatmul.bf16.gmra.mxu0 %v2413
      %v2548 = vpop.f32.mrf.mxu0
      %v2549 = vadd.f32 0.0, %v2548
      %v2550 = vpop.f32.mrf.mxu0
      %v2551 = vadd.f32 0.0, %v2550
      %2552 = vdwg.mxu0
      %v2553 = vadd.f32 %v2350, %v2474
      %v2554 = vadd.f32 %v2351, %v2476
      %v2555 = vadd.f32 %v2352, %v2479
      %v2556 = vadd.f32 %v2353, %v2481
      %v2557 = vadd.f32 %v2354, %v2484
      %v2558 = vadd.f32 %v2355, %v2486
      %v2559 = vadd.f32 %v2356, %v2489
      %v2560 = vadd.f32 %v2357, %v2491
      %v2561 = vadd.f32 %v2358, %v2494
      %v2562 = vadd.f32 %v2359, %v2496
      %v2563 = vadd.f32 %v2360, %v2499
      %v2564 = vadd.f32 %v2361, %v2501
      %v2565 = vadd.f32 %v2362, %v2504
      %v2566 = vadd.f32 %v2363, %v2506
      %v2567 = vadd.f32 %v2364, %v2509
      %v2568 = vadd.f32 %v2365, %v2511
      %v2569 = vadd.f32 %v2366, %v2514
      %v2570 = vadd.f32 %v2367, %v2516
      %v2571 = vadd.f32 %v2368, %v2519
      %v2572 = vadd.f32 %v2369, %v2521
      %v2573 = vadd.f32 %v2370, %v2524
      %v2574 = vadd.f32 %v2371, %v2526
      %v2575 = vadd.f32 %v2372, %v2529
      %v2576 = vadd.f32 %v2373, %v2531
      %v2577 = vadd.f32 %v2374, %v2534
      %v2578 = vadd.f32 %v2375, %v2536
      %v2579 = vadd.f32 %v2376, %v2539
      %v2580 = vadd.f32 %v2377, %v2541
      %v2581 = vadd.f32 %v2378, %v2544
      %v2582 = vadd.f32 %v2379, %v2546
      %v2583 = vadd.f32 %v2380, %v2549
      %v2584 = vadd.f32 %v2381, %v2551
      %s2585 = scalar_lea.vmem %s3, 448
      %v2586 = vld [vmem:[%s2585] sm:$0xf]
      %v2587 = vld [vmem:[%s2585 + $0x4] sm:$0xf]
      %v2588 = vld [vmem:[%s2585 + $0x8] sm:$0xf]
      %v2589 = vld [vmem:[%s2585 + $0xc] sm:$0xf]
      %v2590 = vld [vmem:[%s2585 + $0x10] sm:$0xf]
      %v2591 = vld [vmem:[%s2585 + $0x14] sm:$0xf]
      %v2592 = vld [vmem:[%s2585 + $0x18] sm:$0xf]
      %v2593 = vld [vmem:[%s2585 + $0x1c] sm:$0xf]
      %v2594 = vld [vmem:[%s2585 + $0x20] sm:$0xf]
      %v2595 = vld [vmem:[%s2585 + $0x24] sm:$0xf]
      %v2596 = vld [vmem:[%s2585 + $0x28] sm:$0xf]
      %v2597 = vld [vmem:[%s2585 + $0x2c] sm:$0xf]
      %v2598 = vld [vmem:[%s2585 + $0x30] sm:$0xf]
      %v2599 = vld [vmem:[%s2585 + $0x34] sm:$0xf]
      %v2600 = vld [vmem:[%s2585 + $0x38] sm:$0xf]
      %v2601 = vld [vmem:[%s2585 + $0x3c] sm:$0xf]
      %vm2619 = vcmask 1046528
      %v2620 = vrot.slane %v1845, 1
      %v2621 = vrot.slane %v1846, 1
      %v2622 = vsel %vm2619, %v2620, %v2621
      %v2623 = vrot.slane %v1847, 1
      %v2624 = vsel %vm2619, %v2621, %v2623
      %v2625 = vrot.slane %v1848, 1
      %v2626 = vsel %vm2619, %v2623, %v2625
      %v2627 = vrot.slane %v1849, 1
      %v2628 = vsel %vm2619, %v2625, %v2627
      %v2629 = vrot.slane %v1850, 1
      %v2630 = vsel %vm2619, %v2627, %v2629
      %v2631 = vrot.slane %v1851, 1
      %v2632 = vsel %vm2619, %v2629, %v2631
      %v2633 = vrot.slane %v1852, 1
      %v2634 = vsel %vm2619, %v2631, %v2633
      %v2635 = vrot.slane %v1853, 1
      %v2636 = vsel %vm2619, %v2633, %v2635
      %v2637 = vrot.slane %v1854, 1
      %v2638 = vsel %vm2619, %v2635, %v2637
      %v2639 = vrot.slane %v1855, 1
      %v2640 = vsel %vm2619, %v2637, %v2639
      %v2641 = vrot.slane %v1856, 1
      %v2642 = vsel %vm2619, %v2639, %v2641
      %v2643 = vrot.slane %v1857, 1
      %v2644 = vsel %vm2619, %v2641, %v2643
      %v2645 = vrot.slane %v1858, 1
      %v2646 = vsel %vm2619, %v2643, %v2645
      %v2647 = vrot.slane %v1859, 1
      %v2648 = vsel %vm2619, %v2645, %v2647
      %v2649 = vrot.slane %v2382, 1
      %v2650 = vsel %vm2619, %v2647, %v2649
      %v2651 = vrot.slane %v2383, 1
      %v2652 = vsel %vm2619, %v2649, %v2651
      %v2685 = vunpack.c.l.b16 %v2586
      %v2686 = vunpack.c.l.b16 %v2587
      %v2687 = vunpack.c.l.b16 %v2588
      %v2688 = vunpack.c.l.b16 %v2589
      %v2689 = vunpack.c.l.b16 %v2590
      %v2690 = vunpack.c.l.b16 %v2591
      %v2691 = vunpack.c.l.b16 %v2592
      %v2692 = vunpack.c.l.b16 %v2593
      %v2693 = vunpack.c.l.b16 %v2594
      %v2694 = vunpack.c.l.b16 %v2595
      %v2695 = vunpack.c.l.b16 %v2596
      %v2696 = vunpack.c.l.b16 %v2597
      %v2697 = vunpack.c.l.b16 %v2598
      %v2698 = vunpack.c.l.b16 %v2599
      %v2699 = vunpack.c.l.b16 %v2600
      %v2700 = vunpack.c.l.b16 %v2601
      %v2701 = vpack.c.b16 %v2686, %v2685
      %v2702 = vpack.c.b16 %v2688, %v2687
      %v2703 = vpack.c.b16 %v2690, %v2689
      %v2704 = vpack.c.b16 %v2692, %v2691
      %v2705 = vpack.c.b16 %v2694, %v2693
      %v2706 = vpack.c.b16 %v2696, %v2695
      %v2707 = vpack.c.b16 %v2698, %v2697
      %v2708 = vpack.c.b16 %v2700, %v2699
      %2717 = vmatpush.bf16.msra.mxu0 %v2708
      %2718 = vmatpush.bf16.msra.mxu0 %v2707
      %2719 = vmatpush.bf16.msra.mxu0 %v2706
      %2720 = vmatpush.bf16.msra.mxu0 %v2705
      %2721 = vmatpush.bf16.msra.mxu0 %v2704
      %2722 = vmatpush.bf16.msra.mxu0 %v2703
      %2723 = vmatpush.bf16.msra.mxu0 %v2702
      %2724 = vmatpush.bf16.msra.mxu0 %v2701
      %2725 = vmatmul.bf16.gmra.mxu0 %v2622
      %v2726 = vpop.f32.mrf.mxu0
      %v2727 = vadd.f32 0.0, %v2726
      %v2728 = vpop.f32.mrf.mxu0
      %v2729 = vadd.f32 0.0, %v2728
      %2730 = vmatmul.bf16.gmra.mxu0 %v2624
      %v2731 = vpop.f32.mrf.mxu0
      %v2732 = vadd.f32 0.0, %v2731
      %v2733 = vpop.f32.mrf.mxu0
      %v2734 = vadd.f32 0.0, %v2733
      %2735 = vmatmul.bf16.gmra.mxu0 %v2626
      %v2736 = vpop.f32.mrf.mxu0
      %v2737 = vadd.f32 0.0, %v2736
      %v2738 = vpop.f32.mrf.mxu0
      %v2739 = vadd.f32 0.0, %v2738
      %2740 = vmatmul.bf16.gmra.mxu0 %v2628
      %v2741 = vpop.f32.mrf.mxu0
      %v2742 = vadd.f32 0.0, %v2741
      %v2743 = vpop.f32.mrf.mxu0
      %v2744 = vadd.f32 0.0, %v2743
      %2745 = vmatmul.bf16.gmra.mxu0 %v2630
      %v2746 = vpop.f32.mrf.mxu0
      %v2747 = vadd.f32 0.0, %v2746
      %v2748 = vpop.f32.mrf.mxu0
      %v2749 = vadd.f32 0.0, %v2748
      %2750 = vmatmul.bf16.gmra.mxu0 %v2632
      %v2751 = vpop.f32.mrf.mxu0
      %v2752 = vadd.f32 0.0, %v2751
      %v2753 = vpop.f32.mrf.mxu0
      %v2754 = vadd.f32 0.0, %v2753
      %2755 = vmatmul.bf16.gmra.mxu0 %v2634
      %v2756 = vpop.f32.mrf.mxu0
      %v2757 = vadd.f32 0.0, %v2756
      %v2758 = vpop.f32.mrf.mxu0
      %v2759 = vadd.f32 0.0, %v2758
      %2760 = vmatmul.bf16.gmra.mxu0 %v2636
      %v2761 = vpop.f32.mrf.mxu0
      %v2762 = vadd.f32 0.0, %v2761
      %v2763 = vpop.f32.mrf.mxu0
      %v2764 = vadd.f32 0.0, %v2763
      %2765 = vmatmul.bf16.gmra.mxu0 %v2638
      %v2766 = vpop.f32.mrf.mxu0
      %v2767 = vadd.f32 0.0, %v2766
      %v2768 = vpop.f32.mrf.mxu0
      %v2769 = vadd.f32 0.0, %v2768
      %2770 = vmatmul.bf16.gmra.mxu0 %v2640
      %v2771 = vpop.f32.mrf.mxu0
      %v2772 = vadd.f32 0.0, %v2771
      %v2773 = vpop.f32.mrf.mxu0
      %v2774 = vadd.f32 0.0, %v2773
      %2775 = vmatmul.bf16.gmra.mxu0 %v2642
      %v2776 = vpop.f32.mrf.mxu0
      %v2777 = vadd.f32 0.0, %v2776
      %v2778 = vpop.f32.mrf.mxu0
      %v2779 = vadd.f32 0.0, %v2778
      %2780 = vmatmul.bf16.gmra.mxu0 %v2644
      %v2781 = vpop.f32.mrf.mxu0
      %v2782 = vadd.f32 0.0, %v2781
      %v2783 = vpop.f32.mrf.mxu0
      %v2784 = vadd.f32 0.0, %v2783
      %2785 = vmatmul.bf16.gmra.mxu0 %v2646
      %v2786 = vpop.f32.mrf.mxu0
      %v2787 = vadd.f32 0.0, %v2786
      %v2788 = vpop.f32.mrf.mxu0
      %v2789 = vadd.f32 0.0, %v2788
      %2790 = vmatmul.bf16.gmra.mxu0 %v2648
      %v2791 = vpop.f32.mrf.mxu0
      %v2792 = vadd.f32 0.0, %v2791
      %v2793 = vpop.f32.mrf.mxu0
      %v2794 = vadd.f32 0.0, %v2793
      %2795 = vmatmul.bf16.gmra.mxu0 %v2650
      %v2796 = vpop.f32.mrf.mxu0
      %v2797 = vadd.f32 0.0, %v2796
      %v2798 = vpop.f32.mrf.mxu0
      %v2799 = vadd.f32 0.0, %v2798
      %2800 = vmatmul.bf16.gmra.mxu0 %v2652
      %v2801 = vpop.f32.mrf.mxu0
      %v2802 = vadd.f32 0.0, %v2801
      %v2803 = vpop.f32.mrf.mxu0
      %v2804 = vadd.f32 0.0, %v2803
      %2805 = vdwg.mxu0
      %v2806 = vadd.f32 %v2553, %v2727
      %v2807 = vadd.f32 %v2554, %v2729
      %v2808 = vadd.f32 %v2555, %v2732
      %v2809 = vadd.f32 %v2556, %v2734
      %v2810 = vadd.f32 %v2557, %v2737
      %v2811 = vadd.f32 %v2558, %v2739
      %v2812 = vadd.f32 %v2559, %v2742
      %v2813 = vadd.f32 %v2560, %v2744
      %v2814 = vadd.f32 %v2561, %v2747
      %v2815 = vadd.f32 %v2562, %v2749
      %v2816 = vadd.f32 %v2563, %v2752
      %v2817 = vadd.f32 %v2564, %v2754
      %v2818 = vadd.f32 %v2565, %v2757
      %v2819 = vadd.f32 %v2566, %v2759
      %v2820 = vadd.f32 %v2567, %v2762
      %v2821 = vadd.f32 %v2568, %v2764
      %v2822 = vadd.f32 %v2569, %v2767
      %v2823 = vadd.f32 %v2570, %v2769
      %v2824 = vadd.f32 %v2571, %v2772
      %v2825 = vadd.f32 %v2572, %v2774
      %v2826 = vadd.f32 %v2573, %v2777
      %v2827 = vadd.f32 %v2574, %v2779
      %v2828 = vadd.f32 %v2575, %v2782
      %v2829 = vadd.f32 %v2576, %v2784
      %v2830 = vadd.f32 %v2577, %v2787
      %v2831 = vadd.f32 %v2578, %v2789
      %v2832 = vadd.f32 %v2579, %v2792
      %v2833 = vadd.f32 %v2580, %v2794
      %v2834 = vadd.f32 %v2581, %v2797
      %v2835 = vadd.f32 %v2582, %v2799
      %v2836 = vadd.f32 %v2583, %v2802
      %v2837 = vadd.f32 %v2584, %v2804
      %s2838 = scalar_lea.vmem %s3, 512
      %v2839 = vld [vmem:[%s2838] sm:$0xf]
      %v2840 = vld [vmem:[%s2838 + $0x4] sm:$0xf]
      %v2841 = vld [vmem:[%s2838 + $0x8] sm:$0xf]
      %v2842 = vld [vmem:[%s2838 + $0xc] sm:$0xf]
      %v2843 = vld [vmem:[%s2838 + $0x10] sm:$0xf]
      %v2844 = vld [vmem:[%s2838 + $0x14] sm:$0xf]
      %v2845 = vld [vmem:[%s2838 + $0x18] sm:$0xf]
      %v2846 = vld [vmem:[%s2838 + $0x1c] sm:$0xf]
      %v2847 = vld [vmem:[%s2838 + $0x20] sm:$0xf]
      %v2848 = vld [vmem:[%s2838 + $0x24] sm:$0xf]
      %v2849 = vld [vmem:[%s2838 + $0x28] sm:$0xf]
      %v2850 = vld [vmem:[%s2838 + $0x2c] sm:$0xf]
      %v2851 = vld [vmem:[%s2838 + $0x30] sm:$0xf]
      %v2852 = vld [vmem:[%s2838 + $0x34] sm:$0xf]
      %v2853 = vld [vmem:[%s2838 + $0x38] sm:$0xf]
      %v2854 = vld [vmem:[%s2838 + $0x3c] sm:$0xf]
      %vm2855 = vsmask.f32 6400
      %v2856 = vrot.slane %v2077, 1
      %v2857 = vrot.slane %v2073, 2
      %v2858 = vor.u32 %v2856, %v2857
      %v2859 = vrot.slane %v2085, 1
      %v2860 = vrot.slane %v2081, 2
      %v2861 = vor.u32 %v2859, %v2860
      %v2862 = vsel %vm2855, %v2858, %v2861
      %v2863 = vrot.slane %v2093, 1
      %v2864 = vrot.slane %v2089, 2
      %v2865 = vor.u32 %v2863, %v2864
      %v2866 = vsel %vm2855, %v2861, %v2865
      %v2867 = vrot.slane %v2101, 1
      %v2868 = vrot.slane %v2097, 2
      %v2869 = vor.u32 %v2867, %v2868
      %v2870 = vsel %vm2855, %v2865, %v2869
      %v2871 = vrot.slane %v2109, 1
      %v2872 = vrot.slane %v2105, 2
      %v2873 = vor.u32 %v2871, %v2872
      %v2874 = vsel %vm2855, %v2869, %v2873
      %v2875 = vrot.slane %v2117, 1
      %v2876 = vrot.slane %v2113, 2
      %v2877 = vor.u32 %v2875, %v2876
      %v2878 = vsel %vm2855, %v2873, %v2877
      %v2879 = vrot.slane %v2125, 1
      %v2880 = vrot.slane %v2121, 2
      %v2881 = vor.u32 %v2879, %v2880
      %v2882 = vsel %vm2855, %v2877, %v2881
      %v2883 = vrot.slane %v2133, 1
      %v2884 = vrot.slane %v2129, 2
      %v2885 = vor.u32 %v2883, %v2884
      %v2886 = vsel %vm2855, %v2881, %v2885
      %v2887 = vrot.slane %v2141, 1
      %v2888 = vrot.slane %v2137, 2
      %v2889 = vor.u32 %v2887, %v2888
      %v2890 = vsel %vm2855, %v2885, %v2889
      %v2891 = vrot.slane %v2149, 1
      %v2892 = vrot.slane %v2145, 2
      %v2893 = vor.u32 %v2891, %v2892
      %v2894 = vsel %vm2855, %v2889, %v2893
      %v2895 = vrot.slane %v2157, 1
      %v2896 = vrot.slane %v2153, 2
      %v2897 = vor.u32 %v2895, %v2896
      %v2898 = vsel %vm2855, %v2893, %v2897
      %v2899 = vrot.slane %v2165, 1
      %v2900 = vrot.slane %v2161, 2
      %v2901 = vor.u32 %v2899, %v2900
      %v2902 = vsel %vm2855, %v2897, %v2901
      %v2903 = vrot.slane %v2173, 1
      %v2904 = vrot.slane %v2169, 2
      %v2905 = vor.u32 %v2903, %v2904
      %v2906 = vsel %vm2855, %v2901, %v2905
      %v2907 = vrot.slane %v2181, 1
      %v2908 = vrot.slane %v2177, 2
      %v2909 = vor.u32 %v2907, %v2908
      %v2910 = vsel %vm2855, %v2905, %v2909
      %v2911 = vrot.slane %v2189, 1
      %v2912 = vrot.slane %v2185, 2
      %v2913 = vor.u32 %v2911, %v2912
      %v2914 = vsel %vm2855, %v2909, %v2913
      %v2915 = vrot.slane %v2406, 1
      %v2916 = vrot.slane %v2402, 2
      %v2917 = vor.u32 %v2915, %v2916
      %v2918 = vsel %vm2855, %v2913, %v2917
      %v2919 = vshrl.u32 %v2383, 16
      %v2921 = vrot.slane %v2919, 1
      %v2922 = vrot.slane %v2410, 2
      %v2923 = vor.u32 %v2921, %v2922
      %v2924 = vsel %vm2855, %v2917, %v2923
      %v2957 = vunpack.c.l.b16 %v2839
      %v2958 = vunpack.c.l.b16 %v2840
      %v2959 = vunpack.c.l.b16 %v2841
      %v2960 = vunpack.c.l.b16 %v2842
      %v2961 = vunpack.c.l.b16 %v2843
      %v2962 = vunpack.c.l.b16 %v2844
      %v2963 = vunpack.c.l.b16 %v2845
      %v2964 = vunpack.c.l.b16 %v2846
      %v2965 = vunpack.c.l.b16 %v2847
      %v2966 = vunpack.c.l.b16 %v2848
      %v2967 = vunpack.c.l.b16 %v2849
      %v2968 = vunpack.c.l.b16 %v2850
      %v2969 = vunpack.c.l.b16 %v2851
      %v2970 = vunpack.c.l.b16 %v2852
      %v2971 = vunpack.c.l.b16 %v2853
      %v2972 = vunpack.c.l.b16 %v2854
      %v2973 = vpack.c.b16 %v2958, %v2957
      %v2974 = vpack.c.b16 %v2960, %v2959
      %v2975 = vpack.c.b16 %v2962, %v2961
      %v2976 = vpack.c.b16 %v2964, %v2963
      %v2977 = vpack.c.b16 %v2966, %v2965
      %v2978 = vpack.c.b16 %v2968, %v2967
      %v2979 = vpack.c.b16 %v2970, %v2969
      %v2980 = vpack.c.b16 %v2972, %v2971
      %2989 = vmatpush.bf16.msra.mxu0 %v2980
      %2990 = vmatpush.bf16.msra.mxu0 %v2979
      %2991 = vmatpush.bf16.msra.mxu0 %v2978
      %2992 = vmatpush.bf16.msra.mxu0 %v2977
      %2993 = vmatpush.bf16.msra.mxu0 %v2976
      %2994 = vmatpush.bf16.msra.mxu0 %v2975
      %2995 = vmatpush.bf16.msra.mxu0 %v2974
      %2996 = vmatpush.bf16.msra.mxu0 %v2973
      %2997 = vmatmul.bf16.gmra.mxu0 %v2862
      %v2998 = vpop.f32.mrf.mxu0
      %v2999 = vadd.f32 0.0, %v2998
      %v3000 = vpop.f32.mrf.mxu0
      %v3001 = vadd.f32 0.0, %v3000
      %3002 = vmatmul.bf16.gmra.mxu0 %v2866
      %v3003 = vpop.f32.mrf.mxu0
      %v3004 = vadd.f32 0.0, %v3003
      %v3005 = vpop.f32.mrf.mxu0
      %v3006 = vadd.f32 0.0, %v3005
      %3007 = vmatmul.bf16.gmra.mxu0 %v2870
      %v3008 = vpop.f32.mrf.mxu0
      %v3009 = vadd.f32 0.0, %v3008
      %v3010 = vpop.f32.mrf.mxu0
      %v3011 = vadd.f32 0.0, %v3010
      %3012 = vmatmul.bf16.gmra.mxu0 %v2874
      %v3013 = vpop.f32.mrf.mxu0
      %v3014 = vadd.f32 0.0, %v3013
      %v3015 = vpop.f32.mrf.mxu0
      %v3016 = vadd.f32 0.0, %v3015
      %3017 = vmatmul.bf16.gmra.mxu0 %v2878
      %v3018 = vpop.f32.mrf.mxu0
      %v3019 = vadd.f32 0.0, %v3018
      %v3020 = vpop.f32.mrf.mxu0
      %v3021 = vadd.f32 0.0, %v3020
      %3022 = vmatmul.bf16.gmra.mxu0 %v2882
      %v3023 = vpop.f32.mrf.mxu0
      %v3024 = vadd.f32 0.0, %v3023
      %v3025 = vpop.f32.mrf.mxu0
      %v3026 = vadd.f32 0.0, %v3025
      %3027 = vmatmul.bf16.gmra.mxu0 %v2886
      %v3028 = vpop.f32.mrf.mxu0
      %v3029 = vadd.f32 0.0, %v3028
      %v3030 = vpop.f32.mrf.mxu0
      %v3031 = vadd.f32 0.0, %v3030
      %3032 = vmatmul.bf16.gmra.mxu0 %v2890
      %v3033 = vpop.f32.mrf.mxu0
      %v3034 = vadd.f32 0.0, %v3033
      %v3035 = vpop.f32.mrf.mxu0
      %v3036 = vadd.f32 0.0, %v3035
      %3037 = vmatmul.bf16.gmra.mxu0 %v2894
      %v3038 = vpop.f32.mrf.mxu0
      %v3039 = vadd.f32 0.0, %v3038
      %v3040 = vpop.f32.mrf.mxu0
      %v3041 = vadd.f32 0.0, %v3040
      %3042 = vmatmul.bf16.gmra.mxu0 %v2898
      %v3043 = vpop.f32.mrf.mxu0
      %v3044 = vadd.f32 0.0, %v3043
      %v3045 = vpop.f32.mrf.mxu0
      %v3046 = vadd.f32 0.0, %v3045
      %3047 = vmatmul.bf16.gmra.mxu0 %v2902
      %v3048 = vpop.f32.mrf.mxu0
      %v3049 = vadd.f32 0.0, %v3048
      %v3050 = vpop.f32.mrf.mxu0
      %v3051 = vadd.f32 0.0, %v3050
      %3052 = vmatmul.bf16.gmra.mxu0 %v2906
      %v3053 = vpop.f32.mrf.mxu0
      %v3054 = vadd.f32 0.0, %v3053
      %v3055 = vpop.f32.mrf.mxu0
      %v3056 = vadd.f32 0.0, %v3055
      %3057 = vmatmul.bf16.gmra.mxu0 %v2910
      %v3058 = vpop.f32.mrf.mxu0
      %v3059 = vadd.f32 0.0, %v3058
      %v3060 = vpop.f32.mrf.mxu0
      %v3061 = vadd.f32 0.0, %v3060
      %3062 = vmatmul.bf16.gmra.mxu0 %v2914
      %v3063 = vpop.f32.mrf.mxu0
      %v3064 = vadd.f32 0.0, %v3063
      %v3065 = vpop.f32.mrf.mxu0
      %v3066 = vadd.f32 0.0, %v3065
      %3067 = vmatmul.bf16.gmra.mxu0 %v2918
      %v3068 = vpop.f32.mrf.mxu0
      %v3069 = vadd.f32 0.0, %v3068
      %v3070 = vpop.f32.mrf.mxu0
      %v3071 = vadd.f32 0.0, %v3070
      %3072 = vmatmul.bf16.gmra.mxu0 %v2924
      %v3073 = vpop.f32.mrf.mxu0
      %v3074 = vadd.f32 0.0, %v3073
      %v3075 = vpop.f32.mrf.mxu0
      %v3076 = vadd.f32 0.0, %v3075
      %3077 = vdwg.mxu0
      %v3078 = vadd.f32 %v2806, %v2999
      %v3079 = vadd.f32 %v2807, %v3001
      %v3080 = vadd.f32 %v2808, %v3004
      %v3081 = vadd.f32 %v2809, %v3006
      %v3082 = vadd.f32 %v2810, %v3009
      %v3083 = vadd.f32 %v2811, %v3011
      %v3084 = vadd.f32 %v2812, %v3014
      %v3085 = vadd.f32 %v2813, %v3016
      %v3086 = vadd.f32 %v2814, %v3019
      %v3087 = vadd.f32 %v2815, %v3021
      %v3088 = vadd.f32 %v2816, %v3024
      %v3089 = vadd.f32 %v2817, %v3026
      %v3090 = vadd.f32 %v2818, %v3029
      %v3091 = vadd.f32 %v2819, %v3031
      %v3092 = vadd.f32 %v2820, %v3034
      %v3093 = vadd.f32 %v2821, %v3036
      %v3094 = vadd.f32 %v2822, %v3039
      %v3095 = vadd.f32 %v2823, %v3041
      %v3096 = vadd.f32 %v2824, %v3044
      %v3097 = vadd.f32 %v2825, %v3046
      %v3098 = vadd.f32 %v2826, %v3049
      %v3099 = vadd.f32 %v2827, %v3051
      %v3100 = vadd.f32 %v2828, %v3054
      %v3101 = vadd.f32 %v2829, %v3056
      %v3102 = vadd.f32 %v2830, %v3059
      %v3103 = vadd.f32 %v2831, %v3061
      %v3104 = vadd.f32 %v2832, %v3064
      %v3105 = vadd.f32 %v2833, %v3066
      %v3106 = vadd.f32 %v2834, %v3069
      %v3107 = vadd.f32 %v2835, %v3071
      %v3108 = vadd.f32 %v2836, %v3074
      %v3109 = vadd.f32 %v2837, %v3076
      %v3110 = vld [vmem:[%s575] sm:$0xff]
      %v3111 = vld [vmem:[%s575 + $0x8] sm:$0xff]
      %v3112 = vld [vmem:[%s575 + $0x10] sm:$0xff]
      %v3113 = vld [vmem:[%s575 + $0x18] sm:$0xff]
      %v3114 = vld [vmem:[%s575 + $0x20] sm:$0xff]
      %v3115 = vld [vmem:[%s575 + $0x28] sm:$0xff]
      %v3116 = vld [vmem:[%s575 + $0x30] sm:$0xff]
      %v3117 = vld [vmem:[%s575 + $0x38] sm:$0xff]
      %v3118 = vld [vmem:[%s575 + $0x40] sm:$0xff]
      %v3119 = vld [vmem:[%s575 + $0x48] sm:$0xff]
      %v3120 = vld [vmem:[%s575 + $0x50] sm:$0xff]
      %v3121 = vld [vmem:[%s575 + $0x58] sm:$0xff]
      %v3122 = vld [vmem:[%s575 + $0x60] sm:$0xff]
      %v3123 = vld [vmem:[%s575 + $0x68] sm:$0xff]
      %v3124 = vld [vmem:[%s575 + $0x70] sm:$0xff]
      %v3125 = vld [vmem:[%s575 + $0x78] sm:$0xff]
      %v3126 = vld [vmem:[%s575 + $0x80] sm:$0xff]
      %v3127 = vld [vmem:[%s575 + $0x88] sm:$0xff]
      %v3128 = vld [vmem:[%s575 + $0x90] sm:$0xff]
      %v3129 = vld [vmem:[%s575 + $0x98] sm:$0xff]
      %v3130 = vld [vmem:[%s575 + $0xa0] sm:$0xff]
      %v3131 = vld [vmem:[%s575 + $0xa8] sm:$0xff]
      %v3132 = vld [vmem:[%s575 + $0xb0] sm:$0xff]
      %v3133 = vld [vmem:[%s575 + $0xb8] sm:$0xff]
      %v3134 = vld [vmem:[%s575 + $0xc0] sm:$0xff]
      %v3135 = vld [vmem:[%s575 + $0xc8] sm:$0xff]
      %v3136 = vld [vmem:[%s575 + $0xd0] sm:$0xff]
      %v3137 = vld [vmem:[%s575 + $0xd8] sm:$0xff]
      %v3138 = vld [vmem:[%s575 + $0xe0] sm:$0xff]
      %v3139 = vld [vmem:[%s575 + $0xe8] sm:$0xff]
      %v3140 = vld [vmem:[%s575 + $0xf0] sm:$0xff]
      %v3141 = vld [vmem:[%s575 + $0xf8] sm:$0xff]
      %vm3142 = vcmp.gt.f32.partialorder %v3110, 0.0
      %vm3143 = vcmp.gt.f32.partialorder %v3111, 0.0
      %vm3144 = vcmp.gt.f32.partialorder %v3112, 0.0
      %vm3145 = vcmp.gt.f32.partialorder %v3113, 0.0
      %vm3146 = vcmp.gt.f32.partialorder %v3114, 0.0
      %vm3147 = vcmp.gt.f32.partialorder %v3115, 0.0
      %vm3148 = vcmp.gt.f32.partialorder %v3116, 0.0
      %vm3149 = vcmp.gt.f32.partialorder %v3117, 0.0
      %vm3150 = vcmp.gt.f32.partialorder %v3118, 0.0
      %vm3151 = vcmp.gt.f32.partialorder %v3119, 0.0
      %vm3152 = vcmp.gt.f32.partialorder %v3120, 0.0
      %vm3153 = vcmp.gt.f32.partialorder %v3121, 0.0
      %vm3154 = vcmp.gt.f32.partialorder %v3122, 0.0
      %vm3155 = vcmp.gt.f32.partialorder %v3123, 0.0
      %vm3156 = vcmp.gt.f32.partialorder %v3124, 0.0
      %vm3157 = vcmp.gt.f32.partialorder %v3125, 0.0
      %vm3158 = vcmp.gt.f32.partialorder %v3126, 0.0
      %vm3159 = vcmp.gt.f32.partialorder %v3127, 0.0
      %vm3160 = vcmp.gt.f32.partialorder %v3128, 0.0
      %vm3161 = vcmp.gt.f32.partialorder %v3129, 0.0
      %vm3162 = vcmp.gt.f32.partialorder %v3130, 0.0
      %vm3163 = vcmp.gt.f32.partialorder %v3131, 0.0
      %vm3164 = vcmp.gt.f32.partialorder %v3132, 0.0
      %vm3165 = vcmp.gt.f32.partialorder %v3133, 0.0
      %vm3166 = vcmp.gt.f32.partialorder %v3134, 0.0
      %vm3167 = vcmp.gt.f32.partialorder %v3135, 0.0
      %vm3168 = vcmp.gt.f32.partialorder %v3136, 0.0
      %vm3169 = vcmp.gt.f32.partialorder %v3137, 0.0
      %vm3170 = vcmp.gt.f32.partialorder %v3138, 0.0
      %vm3171 = vcmp.gt.f32.partialorder %v3139, 0.0
      %vm3172 = vcmp.gt.f32.partialorder %v3140, 0.0
      %vm3173 = vcmp.gt.f32.partialorder %v3141, 0.0
      %v3174 = vsel %vm3142, 1, 0
      %v3175 = vsel %vm3143, 1, 0
      %v3176 = vsel %vm3144, 1, 0
      %v3177 = vsel %vm3145, 1, 0
      %v3178 = vsel %vm3146, 1, 0
      %v3179 = vsel %vm3147, 1, 0
      %v3180 = vsel %vm3148, 1, 0
      %v3181 = vsel %vm3149, 1, 0
      %v3182 = vsel %vm3150, 1, 0
      %v3183 = vsel %vm3151, 1, 0
      %v3184 = vsel %vm3152, 1, 0
      %v3185 = vsel %vm3153, 1, 0
      %v3186 = vsel %vm3154, 1, 0
      %v3187 = vsel %vm3155, 1, 0
      %v3188 = vsel %vm3156, 1, 0
      %v3189 = vsel %vm3157, 1, 0
      %v3190 = vsel %vm3158, 1, 0
      %v3191 = vsel %vm3159, 1, 0
      %v3192 = vsel %vm3160, 1, 0
      %v3193 = vsel %vm3161, 1, 0
      %v3194 = vsel %vm3162, 1, 0
      %v3195 = vsel %vm3163, 1, 0
      %v3196 = vsel %vm3164, 1, 0
      %v3197 = vsel %vm3165, 1, 0
      %v3198 = vsel %vm3166, 1, 0
      %v3199 = vsel %vm3167, 1, 0
      %v3200 = vsel %vm3168, 1, 0
      %v3201 = vsel %vm3169, 1, 0
      %v3202 = vsel %vm3170, 1, 0
      %v3203 = vsel %vm3171, 1, 0
      %v3204 = vsel %vm3172, 1, 0
      %v3205 = vsel %vm3173, 1, 0
      %3206 = vset.pattern.permute.xlu0 0
      %3207 = vperm.xlu0 %3206, %v3174
      %v3208 = vpop.permute.xlu0 %3207
      %3209 = vset.pattern.permute.xlu0 0
      %3210 = vperm.xlu0 %3209, %v3175
      %v3211 = vpop.permute.xlu0 %3210
      %3212 = vset.pattern.permute.xlu0 0
      %3213 = vperm.xlu0 %3212, %v3176
      %v3214 = vpop.permute.xlu0 %3213
      %3215 = vset.pattern.permute.xlu0 0
      %3216 = vperm.xlu0 %3215, %v3177
      %v3217 = vpop.permute.xlu0 %3216
      %3218 = vset.pattern.permute.xlu0 0
      %3219 = vperm.xlu0 %3218, %v3178
      %v3220 = vpop.permute.xlu0 %3219
      %3221 = vset.pattern.permute.xlu0 0
      %3222 = vperm.xlu0 %3221, %v3179
      %v3223 = vpop.permute.xlu0 %3222
      %3224 = vset.pattern.permute.xlu0 0
      %3225 = vperm.xlu0 %3224, %v3180
      %v3226 = vpop.permute.xlu0 %3225
      %3227 = vset.pattern.permute.xlu0 0
      %3228 = vperm.xlu0 %3227, %v3181
      %v3229 = vpop.permute.xlu0 %3228
      %3230 = vset.pattern.permute.xlu0 0
      %3231 = vperm.xlu0 %3230, %v3182
      %v3232 = vpop.permute.xlu0 %3231
      %3233 = vset.pattern.permute.xlu0 0
      %3234 = vperm.xlu0 %3233, %v3183
      %v3235 = vpop.permute.xlu0 %3234
      %3236 = vset.pattern.permute.xlu0 0
      %3237 = vperm.xlu0 %3236, %v3184
      %v3238 = vpop.permute.xlu0 %3237
      %3239 = vset.pattern.permute.xlu0 0
      %3240 = vperm.xlu0 %3239, %v3185
      %v3241 = vpop.permute.xlu0 %3240
      %3242 = vset.pattern.permute.xlu0 0
      %3243 = vperm.xlu0 %3242, %v3186
      %v3244 = vpop.permute.xlu0 %3243
      %3245 = vset.pattern.permute.xlu0 0
      %3246 = vperm.xlu0 %3245, %v3187
      %v3247 = vpop.permute.xlu0 %3246
      %3248 = vset.pattern.permute.xlu0 0
      %3249 = vperm.xlu0 %3248, %v3188
      %v3250 = vpop.permute.xlu0 %3249
      %3251 = vset.pattern.permute.xlu0 0
      %3252 = vperm.xlu0 %3251, %v3189
      %v3253 = vpop.permute.xlu0 %3252
      %3254 = vset.pattern.permute.xlu0 0
      %3255 = vperm.xlu0 %3254, %v3190
      %v3256 = vpop.permute.xlu0 %3255
      %3257 = vset.pattern.permute.xlu0 0
      %3258 = vperm.xlu0 %3257, %v3191
      %v3259 = vpop.permute.xlu0 %3258
      %3260 = vset.pattern.permute.xlu0 0
      %3261 = vperm.xlu0 %3260, %v3192
      %v3262 = vpop.permute.xlu0 %3261
      %3263 = vset.pattern.permute.xlu0 0
      %3264 = vperm.xlu0 %3263, %v3193
      %v3265 = vpop.permute.xlu0 %3264
      %3266 = vset.pattern.permute.xlu0 0
      %3267 = vperm.xlu0 %3266, %v3194
      %v3268 = vpop.permute.xlu0 %3267
      %3269 = vset.pattern.permute.xlu0 0
      %3270 = vperm.xlu0 %3269, %v3195
      %v3271 = vpop.permute.xlu0 %3270
      %3272 = vset.pattern.permute.xlu0 0
      %3273 = vperm.xlu0 %3272, %v3196
      %v3274 = vpop.permute.xlu0 %3273
      %3275 = vset.pattern.permute.xlu0 0
      %3276 = vperm.xlu0 %3275, %v3197
      %v3277 = vpop.permute.xlu0 %3276
      %3278 = vset.pattern.permute.xlu0 0
      %3279 = vperm.xlu0 %3278, %v3198
      %v3280 = vpop.permute.xlu0 %3279
      %3281 = vset.pattern.permute.xlu0 0
      %3282 = vperm.xlu0 %3281, %v3199
      %v3283 = vpop.permute.xlu0 %3282
      %3284 = vset.pattern.permute.xlu0 0
      %3285 = vperm.xlu0 %3284, %v3200
      %v3286 = vpop.permute.xlu0 %3285
      %3287 = vset.pattern.permute.xlu0 0
      %3288 = vperm.xlu0 %3287, %v3201
      %v3289 = vpop.permute.xlu0 %3288
      %3290 = vset.pattern.permute.xlu0 0
      %3291 = vperm.xlu0 %3290, %v3202
      %v3292 = vpop.permute.xlu0 %3291
      %3293 = vset.pattern.permute.xlu0 0
      %3294 = vperm.xlu0 %3293, %v3203
      %v3295 = vpop.permute.xlu0 %3294
      %3296 = vset.pattern.permute.xlu0 0
      %3297 = vperm.xlu0 %3296, %v3204
      %v3298 = vpop.permute.xlu0 %3297
      %3299 = vset.pattern.permute.xlu0 0
      %3300 = vperm.xlu0 %3299, %v3205
      %v3301 = vpop.permute.xlu0 %3300
      %vm3302 = vcmp.eq.s32.totalorder %v3208, 1
      %vm3303 = vcmp.eq.s32.totalorder %v3211, 1
      %vm3304 = vcmp.eq.s32.totalorder %v3214, 1
      %vm3305 = vcmp.eq.s32.totalorder %v3217, 1
      %vm3306 = vcmp.eq.s32.totalorder %v3220, 1
      %vm3307 = vcmp.eq.s32.totalorder %v3223, 1
      %vm3308 = vcmp.eq.s32.totalorder %v3226, 1
      %vm3309 = vcmp.eq.s32.totalorder %v3229, 1
      %vm3310 = vcmp.eq.s32.totalorder %v3232, 1
      %vm3311 = vcmp.eq.s32.totalorder %v3235, 1
      %vm3312 = vcmp.eq.s32.totalorder %v3238, 1
      %vm3313 = vcmp.eq.s32.totalorder %v3241, 1
      %vm3314 = vcmp.eq.s32.totalorder %v3244, 1
      %vm3315 = vcmp.eq.s32.totalorder %v3247, 1
      %vm3316 = vcmp.eq.s32.totalorder %v3250, 1
      %vm3317 = vcmp.eq.s32.totalorder %v3253, 1
      %vm3318 = vcmp.eq.s32.totalorder %v3256, 1
      %vm3319 = vcmp.eq.s32.totalorder %v3259, 1
      %vm3320 = vcmp.eq.s32.totalorder %v3262, 1
      %vm3321 = vcmp.eq.s32.totalorder %v3265, 1
      %vm3322 = vcmp.eq.s32.totalorder %v3268, 1
      %vm3323 = vcmp.eq.s32.totalorder %v3271, 1
      %vm3324 = vcmp.eq.s32.totalorder %v3274, 1
      %vm3325 = vcmp.eq.s32.totalorder %v3277, 1
      %vm3326 = vcmp.eq.s32.totalorder %v3280, 1
      %vm3327 = vcmp.eq.s32.totalorder %v3283, 1
      %vm3328 = vcmp.eq.s32.totalorder %v3286, 1
      %vm3329 = vcmp.eq.s32.totalorder %v3289, 1
      %vm3330 = vcmp.eq.s32.totalorder %v3292, 1
      %vm3331 = vcmp.eq.s32.totalorder %v3295, 1
      %vm3332 = vcmp.eq.s32.totalorder %v3298, 1
      %vm3333 = vcmp.eq.s32.totalorder %v3301, 1
      %v3334 = vsel %vm3302, %v3078, 0.0
      %v3335 = vsel %vm3303, %v3079, 0.0
      %v3336 = vsel %vm3304, %v3080, 0.0
      %v3337 = vsel %vm3305, %v3081, 0.0
      %v3338 = vsel %vm3306, %v3082, 0.0
      %v3339 = vsel %vm3307, %v3083, 0.0
      %v3340 = vsel %vm3308, %v3084, 0.0
      %v3341 = vsel %vm3309, %v3085, 0.0
      %v3342 = vsel %vm3310, %v3086, 0.0
      %v3343 = vsel %vm3311, %v3087, 0.0
      %v3344 = vsel %vm3312, %v3088, 0.0
      %v3345 = vsel %vm3313, %v3089, 0.0
      %v3346 = vsel %vm3314, %v3090, 0.0
      %v3347 = vsel %vm3315, %v3091, 0.0
      %v3348 = vsel %vm3316, %v3092, 0.0
      %v3349 = vsel %vm3317, %v3093, 0.0
      %v3350 = vsel %vm3318, %v3094, 0.0
      %v3351 = vsel %vm3319, %v3095, 0.0
      %v3352 = vsel %vm3320, %v3096, 0.0
      %v3353 = vsel %vm3321, %v3097, 0.0
      %v3354 = vsel %vm3322, %v3098, 0.0
      %v3355 = vsel %vm3323, %v3099, 0.0
      %v3356 = vsel %vm3324, %v3100, 0.0
      %v3357 = vsel %vm3325, %v3101, 0.0
      %v3358 = vsel %vm3326, %v3102, 0.0
      %v3359 = vsel %vm3327, %v3103, 0.0
      %v3360 = vsel %vm3328, %v3104, 0.0
      %v3361 = vsel %vm3329, %v3105, 0.0
      %v3362 = vsel %vm3330, %v3106, 0.0
      %v3363 = vsel %vm3331, %v3107, 0.0
      %v3364 = vsel %vm3332, %v3108, 0.0
      %v3365 = vsel %vm3333, %v3109, 0.0
      %v3366 = vpack.c.bf16 %v3078, %v3078
      %v3367 = vpack.c.bf16 %v3079, %v3079
      %v3368 = vpack.c.bf16 %v3080, %v3080
      %v3369 = vpack.c.bf16 %v3081, %v3081
      %v3370 = vpack.c.bf16 %v3082, %v3082
      %v3371 = vpack.c.bf16 %v3083, %v3083
      %v3372 = vpack.c.bf16 %v3084, %v3084
      %v3373 = vpack.c.bf16 %v3085, %v3085
      %v3374 = vpack.c.bf16 %v3086, %v3086
      %v3375 = vpack.c.bf16 %v3087, %v3087
      %v3376 = vpack.c.bf16 %v3088, %v3088
      %v3377 = vpack.c.bf16 %v3089, %v3089
      %v3378 = vpack.c.bf16 %v3090, %v3090
      %v3379 = vpack.c.bf16 %v3091, %v3091
      %v3380 = vpack.c.bf16 %v3092, %v3092
      %v3381 = vpack.c.bf16 %v3093, %v3093
      %v3382 = vpack.c.bf16 %v3094, %v3094
      %v3383 = vpack.c.bf16 %v3095, %v3095
      %v3384 = vpack.c.bf16 %v3096, %v3096
      %v3385 = vpack.c.bf16 %v3097, %v3097
      %v3386 = vpack.c.bf16 %v3098, %v3098
      %v3387 = vpack.c.bf16 %v3099, %v3099
      %v3388 = vpack.c.bf16 %v3100, %v3100
      %v3389 = vpack.c.bf16 %v3101, %v3101
      %v3390 = vpack.c.bf16 %v3102, %v3102
      %v3391 = vpack.c.bf16 %v3103, %v3103
      %v3392 = vpack.c.bf16 %v3104, %v3104
      %v3393 = vpack.c.bf16 %v3105, %v3105
      %v3394 = vpack.c.bf16 %v3106, %v3106
      %v3395 = vpack.c.bf16 %v3107, %v3107
      %v3396 = vpack.c.bf16 %v3108, %v3108
      %v3397 = vpack.c.bf16 %v3109, %v3109
      %3398 = vst [vmem:[%s587] sm:$0xf] %v3366
      %3399 = vst [vmem:[%s587 + $0x4] sm:$0xf] %v3367
      %3400 = vst [vmem:[%s587 + $0x8] sm:$0xf] %v3368
      %3401 = vst [vmem:[%s587 + $0xc] sm:$0xf] %v3369
      %3402 = vst [vmem:[%s587 + $0x10] sm:$0xf] %v3370
      %3403 = vst [vmem:[%s587 + $0x14] sm:$0xf] %v3371
      %3404 = vst [vmem:[%s587 + $0x18] sm:$0xf] %v3372
      %3405 = vst [vmem:[%s587 + $0x1c] sm:$0xf] %v3373
      %3406 = vst [vmem:[%s587 + $0x20] sm:$0xf] %v3374
      %3407 = vst [vmem:[%s587 + $0x24] sm:$0xf] %v3375
      %3408 = vst [vmem:[%s587 + $0x28] sm:$0xf] %v3376
      %3409 = vst [vmem:[%s587 + $0x2c] sm:$0xf] %v3377
      %3410 = vst [vmem:[%s587 + $0x30] sm:$0xf] %v3378
      %3411 = vst [vmem:[%s587 + $0x34] sm:$0xf] %v3379
      %3412 = vst [vmem:[%s587 + $0x38] sm:$0xf] %v3380
      %3413 = vst [vmem:[%s587 + $0x3c] sm:$0xf] %v3381
      %3414 = vst [vmem:[%s587 + $0x40] sm:$0xf] %v3382
      %3415 = vst [vmem:[%s587 + $0x44] sm:$0xf] %v3383
      %3416 = vst [vmem:[%s587 + $0x48] sm:$0xf] %v3384
      %3417 = vst [vmem:[%s587 + $0x4c] sm:$0xf] %v3385
      %3418 = vst [vmem:[%s587 + $0x50] sm:$0xf] %v3386
      %3419 = vst [vmem:[%s587 + $0x54] sm:$0xf] %v3387
      %3420 = vst [vmem:[%s587 + $0x58] sm:$0xf] %v3388
      %3421 = vst [vmem:[%s587 + $0x5c] sm:$0xf] %v3389
      %3422 = vst [vmem:[%s587 + $0x60] sm:$0xf] %v3390
      %3423 = vst [vmem:[%s587 + $0x64] sm:$0xf] %v3391
      %3424 = vst [vmem:[%s587 + $0x68] sm:$0xf] %v3392
      %3425 = vst [vmem:[%s587 + $0x6c] sm:$0xf] %v3393
      %3426 = vst [vmem:[%s587 + $0x70] sm:$0xf] %v3394
      %3427 = vst [vmem:[%s587 + $0x74] sm:$0xf] %v3395
      %3428 = vst [vmem:[%s587 + $0x78] sm:$0xf] %v3396
      %3429 = vst [vmem:[%s587 + $0x7c] sm:$0xf] %v3397
      %v3430 = vadd.f32 %v3334, %v3335
      %v3431 = vadd.f32 %v3430, %v3336
      %v3432 = vadd.f32 %v3431, %v3337
      %v3433 = vadd.f32 %v3432, %v3338
      %v3434 = vadd.f32 %v3433, %v3339
      %v3435 = vadd.f32 %v3434, %v3340
      %v3436 = vadd.f32 %v3435, %v3341
      %v3437 = vadd.f32 %v3436, %v3342
      %v3438 = vadd.f32 %v3437, %v3343
      %v3439 = vadd.f32 %v3438, %v3344
      %v3440 = vadd.f32 %v3439, %v3345
      %v3441 = vadd.f32 %v3440, %v3346
      %v3442 = vadd.f32 %v3441, %v3347
      %v3443 = vadd.f32 %v3442, %v3348
      %v3444 = vadd.f32 %v3443, %v3349
      %v3445 = vadd.f32 %v3444, %v3350
      %v3446 = vadd.f32 %v3445, %v3351
      %v3447 = vadd.f32 %v3446, %v3352
      %v3448 = vadd.f32 %v3447, %v3353
      %v3449 = vadd.f32 %v3448, %v3354
      %v3450 = vadd.f32 %v3449, %v3355
      %v3451 = vadd.f32 %v3450, %v3356
      %v3452 = vadd.f32 %v3451, %v3357
      %v3453 = vadd.f32 %v3452, %v3358
      %v3454 = vadd.f32 %v3453, %v3359
      %v3455 = vadd.f32 %v3454, %v3360
      %v3456 = vadd.f32 %v3455, %v3361
      %v3457 = vadd.f32 %v3456, %v3362
      %v3458 = vadd.f32 %v3457, %v3363
      %v3459 = vadd.f32 %v3458, %v3364
      %v3460 = vadd.f32 %v3459, %v3365
      %v3461 = vrot.slane %v3460, 4
      %v3462 = vadd.f32 %v3460, %v3461
      %v3463 = vrot.slane %v3462, 2
      %v3464 = vadd.f32 %v3462, %v3463
      %v3465 = vrot.slane %v3464, 1
      %v3466 = vadd.f32 %v3464, %v3465
      %3467 = vst [vmem:[%s591] sm:$0x1] %v3466
      %v3468 = vmul.f32 %v3334, %v3334
      %v3469 = vmul.f32 %v3335, %v3335
      %v3470 = vmul.f32 %v3336, %v3336
      %v3471 = vmul.f32 %v3337, %v3337
      %v3472 = vmul.f32 %v3338, %v3338
      %v3473 = vmul.f32 %v3339, %v3339
      %v3474 = vmul.f32 %v3340, %v3340
      %v3475 = vmul.f32 %v3341, %v3341
      %v3476 = vmul.f32 %v3342, %v3342
      %v3477 = vmul.f32 %v3343, %v3343
      %v3478 = vmul.f32 %v3344, %v3344
      %v3479 = vmul.f32 %v3345, %v3345
      %v3480 = vmul.f32 %v3346, %v3346
      %v3481 = vmul.f32 %v3347, %v3347
      %v3482 = vmul.f32 %v3348, %v3348
      %v3483 = vmul.f32 %v3349, %v3349
      %v3484 = vmul.f32 %v3350, %v3350
      %v3485 = vmul.f32 %v3351, %v3351
      %v3486 = vmul.f32 %v3352, %v3352
      %v3487 = vmul.f32 %v3353, %v3353
      %v3488 = vmul.f32 %v3354, %v3354
      %v3489 = vmul.f32 %v3355, %v3355
      %v3490 = vmul.f32 %v3356, %v3356
      %v3491 = vmul.f32 %v3357, %v3357
      %v3492 = vmul.f32 %v3358, %v3358
      %v3493 = vmul.f32 %v3359, %v3359
      %v3494 = vmul.f32 %v3360, %v3360
      %v3495 = vmul.f32 %v3361, %v3361
      %v3496 = vmul.f32 %v3362, %v3362
      %v3497 = vmul.f32 %v3363, %v3363
      %v3498 = vmul.f32 %v3364, %v3364
      %v3499 = vmul.f32 %v3365, %v3365
      %v3500 = vadd.f32 %v3468, %v3469
      %v3501 = vadd.f32 %v3500, %v3470
      %v3502 = vadd.f32 %v3501, %v3471
      %v3503 = vadd.f32 %v3502, %v3472
      %v3504 = vadd.f32 %v3503, %v3473
      %v3505 = vadd.f32 %v3504, %v3474
      %v3506 = vadd.f32 %v3505, %v3475
      %v3507 = vadd.f32 %v3506, %v3476
      %v3508 = vadd.f32 %v3507, %v3477
      %v3509 = vadd.f32 %v3508, %v3478
      %v3510 = vadd.f32 %v3509, %v3479
      %v3511 = vadd.f32 %v3510, %v3480
      %v3512 = vadd.f32 %v3511, %v3481
      %v3513 = vadd.f32 %v3512, %v3482
      %v3514 = vadd.f32 %v3513, %v3483
      %v3515 = vadd.f32 %v3514, %v3484
      %v3516 = vadd.f32 %v3515, %v3485
      %v3517 = vadd.f32 %v3516, %v3486
      %v3518 = vadd.f32 %v3517, %v3487
      %v3519 = vadd.f32 %v3518, %v3488
      %v3520 = vadd.f32 %v3519, %v3489
      %v3521 = vadd.f32 %v3520, %v3490
      %v3522 = vadd.f32 %v3521, %v3491
      %v3523 = vadd.f32 %v3522, %v3492
      %v3524 = vadd.f32 %v3523, %v3493
      %v3525 = vadd.f32 %v3524, %v3494
      %v3526 = vadd.f32 %v3525, %v3495
      %v3527 = vadd.f32 %v3526, %v3496
      %v3528 = vadd.f32 %v3527, %v3497
      %v3529 = vadd.f32 %v3528, %v3498
      %v3530 = vadd.f32 %v3529, %v3499
      %v3531 = vrot.slane %v3530, 4
      %v3532 = vadd.f32 %v3530, %v3531
      %v3533 = vrot.slane %v3532, 2
      %v3534 = vadd.f32 %v3532, %v3533
      %v3535 = vrot.slane %v3534, 1
      %v3536 = vadd.f32 %v3534, %v3535
      %3537 = vst [vmem:[%s594] sm:$0x1] %v3536
      %v3538 = vld [vmem:[%s581] sm:$0xf]
      %v3539 = vld [vmem:[%s581 + $0x4] sm:$0xf]
      %v3540 = vld [vmem:[%s581 + $0x8] sm:$0xf]
      %v3541 = vld [vmem:[%s581 + $0xc] sm:$0xf]
      %v3542 = vld [vmem:[%s581 + $0x10] sm:$0xf]
      %v3543 = vld [vmem:[%s581 + $0x14] sm:$0xf]
      %v3544 = vld [vmem:[%s581 + $0x18] sm:$0xf]
      %v3545 = vld [vmem:[%s581 + $0x1c] sm:$0xf]
      %v3546 = vld [vmem:[%s581 + $0x20] sm:$0xf]
      %v3547 = vld [vmem:[%s581 + $0x24] sm:$0xf]
      %v3548 = vld [vmem:[%s581 + $0x28] sm:$0xf]
      %v3549 = vld [vmem:[%s581 + $0x2c] sm:$0xf]
      %v3550 = vld [vmem:[%s581 + $0x30] sm:$0xf]
      %v3551 = vld [vmem:[%s581 + $0x34] sm:$0xf]
      %v3552 = vld [vmem:[%s581 + $0x38] sm:$0xf]
      %v3553 = vld [vmem:[%s581 + $0x3c] sm:$0xf]
      %v3554 = vld [vmem:[%s581 + $0x40] sm:$0xf]
      %v3555 = vld [vmem:[%s581 + $0x44] sm:$0xf]
      %v3556 = vld [vmem:[%s581 + $0x48] sm:$0xf]
      %v3557 = vld [vmem:[%s581 + $0x4c] sm:$0xf]
      %v3558 = vld [vmem:[%s581 + $0x50] sm:$0xf]
      %v3559 = vld [vmem:[%s581 + $0x54] sm:$0xf]
      %v3560 = vld [vmem:[%s581 + $0x58] sm:$0xf]
      %v3561 = vld [vmem:[%s581 + $0x5c] sm:$0xf]
      %v3562 = vld [vmem:[%s581 + $0x60] sm:$0xf]
      %v3563 = vld [vmem:[%s581 + $0x64] sm:$0xf]
      %v3564 = vld [vmem:[%s581 + $0x68] sm:$0xf]
      %v3565 = vld [vmem:[%s581 + $0x6c] sm:$0xf]
      %v3566 = vld [vmem:[%s581 + $0x70] sm:$0xf]
      %v3567 = vld [vmem:[%s581 + $0x74] sm:$0xf]
      %v3568 = vld [vmem:[%s581 + $0x78] sm:$0xf]
      %v3569 = vld [vmem:[%s581 + $0x7c] sm:$0xf]
      %v3570 = vld [vmem:[%s6] sm:$0x3]
      %v3603 = vunpack.c.l.b16 %v3538
      %v3604 = vunpack.c.l.b16 %v3539
      %v3605 = vunpack.c.l.b16 %v3540
      %v3606 = vunpack.c.l.b16 %v3541
      %v3607 = vunpack.c.l.b16 %v3542
      %v3608 = vunpack.c.l.b16 %v3543
      %v3609 = vunpack.c.l.b16 %v3544
      %v3610 = vunpack.c.l.b16 %v3545
      %v3611 = vunpack.c.l.b16 %v3546
      %v3612 = vunpack.c.l.b16 %v3547
      %v3613 = vunpack.c.l.b16 %v3548
      %v3614 = vunpack.c.l.b16 %v3549
      %v3615 = vunpack.c.l.b16 %v3550
      %v3616 = vunpack.c.l.b16 %v3551
      %v3617 = vunpack.c.l.b16 %v3552
      %v3618 = vunpack.c.l.b16 %v3553
      %v3619 = vunpack.c.l.b16 %v3554
      %v3620 = vunpack.c.l.b16 %v3555
      %v3621 = vunpack.c.l.b16 %v3556
      %v3622 = vunpack.c.l.b16 %v3557
      %v3623 = vunpack.c.l.b16 %v3558
      %v3624 = vunpack.c.l.b16 %v3559
      %v3625 = vunpack.c.l.b16 %v3560
      %v3626 = vunpack.c.l.b16 %v3561
      %v3627 = vunpack.c.l.b16 %v3562
      %v3628 = vunpack.c.l.b16 %v3563
      %v3629 = vunpack.c.l.b16 %v3564
      %v3630 = vunpack.c.l.b16 %v3565
      %v3631 = vunpack.c.l.b16 %v3566
      %v3632 = vunpack.c.l.b16 %v3567
      %v3633 = vunpack.c.l.b16 %v3568
      %v3634 = vunpack.c.l.b16 %v3569
      %v3635 = vpack.c.b16 %v3604, %v3603
      %v3636 = vpack.c.b16 %v3606, %v3605
      %v3637 = vpack.c.b16 %v3608, %v3607
      %v3638 = vpack.c.b16 %v3610, %v3609
      %v3639 = vpack.c.b16 %v3612, %v3611
      %v3640 = vpack.c.b16 %v3614, %v3613
      %v3641 = vpack.c.b16 %v3616, %v3615
      %v3642 = vpack.c.b16 %v3618, %v3617
      %v3643 = vpack.c.b16 %v3620, %v3619
      %v3644 = vpack.c.b16 %v3622, %v3621
      %v3645 = vpack.c.b16 %v3624, %v3623
      %v3646 = vpack.c.b16 %v3626, %v3625
      %v3647 = vpack.c.b16 %v3628, %v3627
      %v3648 = vpack.c.b16 %v3630, %v3629
      %v3649 = vpack.c.b16 %v3632, %v3631
      %v3650 = vpack.c.b16 %v3634, %v3633
      %vm3651 = vcmask 31744
      %v3653 = vsel %vm3651, %v3635, 0
      %v3656 = vsel %vm3651, %v3636, 0
      %v3659 = vsel %vm3651, %v3637, 0
      %v3662 = vsel %vm3651, %v3638, 0
      %v3665 = vsel %vm3651, %v3639, 0
      %v3668 = vsel %vm3651, %v3640, 0
      %v3671 = vsel %vm3651, %v3641, 0
      %v3674 = vsel %vm3651, %v3642, 0
      %v3677 = vsel %vm3651, %v3643, 0
      %v3680 = vsel %vm3651, %v3644, 0
      %v3683 = vsel %vm3651, %v3645, 0
      %v3686 = vsel %vm3651, %v3646, 0
      %v3689 = vsel %vm3651, %v3647, 0
      %v3692 = vsel %vm3651, %v3648, 0
      %v3695 = vsel %vm3651, %v3649, 0
      %v3698 = vsel %vm3651, %v3650, 0
      %vm3700 = vcmask 1041408
      %v3702 = vsel %vm3700, %v3570, 0
      %3704 = vmatpush.bf16.msra.mxu0 0
      %3705 = vmatpush.bf16.msra.mxu0 0
      %3706 = vmatpush.bf16.msra.mxu0 0
      %3707 = vmatpush.bf16.msra.mxu0 0
      %3708 = vmatpush.bf16.msra.mxu0 0
      %3709 = vmatpush.bf16.msra.mxu0 0
      %3710 = vmatpush.bf16.msra.mxu0 0
      %3711 = vmatpush.bf16.msra.mxu0 %v3702
      %3712 = vmatmul.bf16.gmra.mxu0 %v3653
      %v3713 = vpop.f32.mrf.mxu0
      %v3714 = vadd.f32 0.0, %v3713
      %v3715 = vpop.f32.mrf.mxu0
      %v3716 = vadd.f32 0.0, %v3715
      %3717 = vmatmul.bf16.gmra.mxu0 %v3656
      %v3718 = vpop.f32.mrf.mxu0
      %v3719 = vadd.f32 0.0, %v3718
      %v3720 = vpop.f32.mrf.mxu0
      %v3721 = vadd.f32 0.0, %v3720
      %3722 = vmatmul.bf16.gmra.mxu0 %v3659
      %v3723 = vpop.f32.mrf.mxu0
      %v3724 = vadd.f32 0.0, %v3723
      %v3725 = vpop.f32.mrf.mxu0
      %v3726 = vadd.f32 0.0, %v3725
      %3727 = vmatmul.bf16.gmra.mxu0 %v3662
      %v3728 = vpop.f32.mrf.mxu0
      %v3729 = vadd.f32 0.0, %v3728
      %v3730 = vpop.f32.mrf.mxu0
      %v3731 = vadd.f32 0.0, %v3730
      %3732 = vmatmul.bf16.gmra.mxu0 %v3665
      %v3733 = vpop.f32.mrf.mxu0
      %v3734 = vadd.f32 0.0, %v3733
      %v3735 = vpop.f32.mrf.mxu0
      %v3736 = vadd.f32 0.0, %v3735
      %3737 = vmatmul.bf16.gmra.mxu0 %v3668
      %v3738 = vpop.f32.mrf.mxu0
      %v3739 = vadd.f32 0.0, %v3738
      %v3740 = vpop.f32.mrf.mxu0
      %v3741 = vadd.f32 0.0, %v3740
      %3742 = vmatmul.bf16.gmra.mxu0 %v3671
      %v3743 = vpop.f32.mrf.mxu0
      %v3744 = vadd.f32 0.0, %v3743
      %v3745 = vpop.f32.mrf.mxu0
      %v3746 = vadd.f32 0.0, %v3745
      %3747 = vmatmul.bf16.gmra.mxu0 %v3674
      %v3748 = vpop.f32.mrf.mxu0
      %v3749 = vadd.f32 0.0, %v3748
      %v3750 = vpop.f32.mrf.mxu0
      %v3751 = vadd.f32 0.0, %v3750
      %3752 = vmatmul.bf16.gmra.mxu0 %v3677
      %v3753 = vpop.f32.mrf.mxu0
      %v3754 = vadd.f32 0.0, %v3753
      %v3755 = vpop.f32.mrf.mxu0
      %v3756 = vadd.f32 0.0, %v3755
      %3757 = vmatmul.bf16.gmra.mxu0 %v3680
      %v3758 = vpop.f32.mrf.mxu0
      %v3759 = vadd.f32 0.0, %v3758
      %v3760 = vpop.f32.mrf.mxu0
      %v3761 = vadd.f32 0.0, %v3760
      %3762 = vmatmul.bf16.gmra.mxu0 %v3683
      %v3763 = vpop.f32.mrf.mxu0
      %v3764 = vadd.f32 0.0, %v3763
      %v3765 = vpop.f32.mrf.mxu0
      %v3766 = vadd.f32 0.0, %v3765
      %3767 = vmatmul.bf16.gmra.mxu0 %v3686
      %v3768 = vpop.f32.mrf.mxu0
      %v3769 = vadd.f32 0.0, %v3768
      %v3770 = vpop.f32.mrf.mxu0
      %v3771 = vadd.f32 0.0, %v3770
      %3772 = vmatmul.bf16.gmra.mxu0 %v3689
      %v3773 = vpop.f32.mrf.mxu0
      %v3774 = vadd.f32 0.0, %v3773
      %v3775 = vpop.f32.mrf.mxu0
      %v3776 = vadd.f32 0.0, %v3775
      %3777 = vmatmul.bf16.gmra.mxu0 %v3692
      %v3778 = vpop.f32.mrf.mxu0
      %v3779 = vadd.f32 0.0, %v3778
      %v3780 = vpop.f32.mrf.mxu0
      %v3781 = vadd.f32 0.0, %v3780
      %3782 = vmatmul.bf16.gmra.mxu0 %v3695
      %v3783 = vpop.f32.mrf.mxu0
      %v3784 = vadd.f32 0.0, %v3783
      %v3785 = vpop.f32.mrf.mxu0
      %v3786 = vadd.f32 0.0, %v3785
      %3787 = vmatmul.bf16.gmra.mxu0 %v3698
      %v3788 = vpop.f32.mrf.mxu0
      %v3789 = vadd.f32 0.0, %v3788
      %v3790 = vpop.f32.mrf.mxu0
      %v3791 = vadd.f32 0.0, %v3790
      %3792 = vdwg.mxu0
      %v3793 = vsel %vm3302, %v3714, 0.0
      %v3794 = vsel %vm3303, %v3716, 0.0
      %v3795 = vsel %vm3304, %v3719, 0.0
      %v3796 = vsel %vm3305, %v3721, 0.0
      %v3797 = vsel %vm3306, %v3724, 0.0
      %v3798 = vsel %vm3307, %v3726, 0.0
      %v3799 = vsel %vm3308, %v3729, 0.0
      %v3800 = vsel %vm3309, %v3731, 0.0
      %v3801 = vsel %vm3310, %v3734, 0.0
      %v3802 = vsel %vm3311, %v3736, 0.0
      %v3803 = vsel %vm3312, %v3739, 0.0
      %v3804 = vsel %vm3313, %v3741, 0.0
      %v3805 = vsel %vm3314, %v3744, 0.0
      %v3806 = vsel %vm3315, %v3746, 0.0
      %v3807 = vsel %vm3316, %v3749, 0.0
      %v3808 = vsel %vm3317, %v3751, 0.0
      %v3809 = vsel %vm3318, %v3754, 0.0
      %v3810 = vsel %vm3319, %v3756, 0.0
      %v3811 = vsel %vm3320, %v3759, 0.0
      %v3812 = vsel %vm3321, %v3761, 0.0
      %v3813 = vsel %vm3322, %v3764, 0.0
      %v3814 = vsel %vm3323, %v3766, 0.0
      %v3815 = vsel %vm3324, %v3769, 0.0
      %v3816 = vsel %vm3325, %v3771, 0.0
      %v3817 = vsel %vm3326, %v3774, 0.0
      %v3818 = vsel %vm3327, %v3776, 0.0
      %v3819 = vsel %vm3328, %v3779, 0.0
      %v3820 = vsel %vm3329, %v3781, 0.0
      %v3821 = vsel %vm3330, %v3784, 0.0
      %v3822 = vsel %vm3331, %v3786, 0.0
      %v3823 = vsel %vm3332, %v3789, 0.0
      %v3824 = vsel %vm3333, %v3791, 0.0
      %v3825 = vpack.c.bf16 %v3714, %v3714
      %v3826 = vpack.c.bf16 %v3716, %v3716
      %v3827 = vpack.c.bf16 %v3719, %v3719
      %v3828 = vpack.c.bf16 %v3721, %v3721
      %v3829 = vpack.c.bf16 %v3724, %v3724
      %v3830 = vpack.c.bf16 %v3726, %v3726
      %v3831 = vpack.c.bf16 %v3729, %v3729
      %v3832 = vpack.c.bf16 %v3731, %v3731
      %v3833 = vpack.c.bf16 %v3734, %v3734
      %v3834 = vpack.c.bf16 %v3736, %v3736
      %v3835 = vpack.c.bf16 %v3739, %v3739
      %v3836 = vpack.c.bf16 %v3741, %v3741
      %v3837 = vpack.c.bf16 %v3744, %v3744
      %v3838 = vpack.c.bf16 %v3746, %v3746
      %v3839 = vpack.c.bf16 %v3749, %v3749
      %v3840 = vpack.c.bf16 %v3751, %v3751
      %v3841 = vpack.c.bf16 %v3754, %v3754
      %v3842 = vpack.c.bf16 %v3756, %v3756
      %v3843 = vpack.c.bf16 %v3759, %v3759
      %v3844 = vpack.c.bf16 %v3761, %v3761
      %v3845 = vpack.c.bf16 %v3764, %v3764
      %v3846 = vpack.c.bf16 %v3766, %v3766
      %v3847 = vpack.c.bf16 %v3769, %v3769
      %v3848 = vpack.c.bf16 %v3771, %v3771
      %v3849 = vpack.c.bf16 %v3774, %v3774
      %v3850 = vpack.c.bf16 %v3776, %v3776
      %v3851 = vpack.c.bf16 %v3779, %v3779
      %v3852 = vpack.c.bf16 %v3781, %v3781
      %v3853 = vpack.c.bf16 %v3784, %v3784
      %v3854 = vpack.c.bf16 %v3786, %v3786
      %v3855 = vpack.c.bf16 %v3789, %v3789
      %v3856 = vpack.c.bf16 %v3791, %v3791
      %3857 = vst [vmem:[%s599] sm:$0xf] %v3825
      %3858 = vst [vmem:[%s599 + $0x4] sm:$0xf] %v3826
      %3859 = vst [vmem:[%s599 + $0x8] sm:$0xf] %v3827
      %3860 = vst [vmem:[%s599 + $0xc] sm:$0xf] %v3828
      %3861 = vst [vmem:[%s599 + $0x10] sm:$0xf] %v3829
      %3862 = vst [vmem:[%s599 + $0x14] sm:$0xf] %v3830
      %3863 = vst [vmem:[%s599 + $0x18] sm:$0xf] %v3831
      %3864 = vst [vmem:[%s599 + $0x1c] sm:$0xf] %v3832
      %3865 = vst [vmem:[%s599 + $0x20] sm:$0xf] %v3833
      %3866 = vst [vmem:[%s599 + $0x24] sm:$0xf] %v3834
      %3867 = vst [vmem:[%s599 + $0x28] sm:$0xf] %v3835
      %3868 = vst [vmem:[%s599 + $0x2c] sm:$0xf] %v3836
      %3869 = vst [vmem:[%s599 + $0x30] sm:$0xf] %v3837
      %3870 = vst [vmem:[%s599 + $0x34] sm:$0xf] %v3838
      %3871 = vst [vmem:[%s599 + $0x38] sm:$0xf] %v3839
      %3872 = vst [vmem:[%s599 + $0x3c] sm:$0xf] %v3840
      %3873 = vst [vmem:[%s599 + $0x40] sm:$0xf] %v3841
      %3874 = vst [vmem:[%s599 + $0x44] sm:$0xf] %v3842
      %3875 = vst [vmem:[%s599 + $0x48] sm:$0xf] %v3843
      %3876 = vst [vmem:[%s599 + $0x4c] sm:$0xf] %v3844
      %3877 = vst [vmem:[%s599 + $0x50] sm:$0xf] %v3845
      %3878 = vst [vmem:[%s599 + $0x54] sm:$0xf] %v3846
      %3879 = vst [vmem:[%s599 + $0x58] sm:$0xf] %v3847
      %3880 = vst [vmem:[%s599 + $0x5c] sm:$0xf] %v3848
      %3881 = vst [vmem:[%s599 + $0x60] sm:$0xf] %v3849
      %3882 = vst [vmem:[%s599 + $0x64] sm:$0xf] %v3850
      %3883 = vst [vmem:[%s599 + $0x68] sm:$0xf] %v3851
      %3884 = vst [vmem:[%s599 + $0x6c] sm:$0xf] %v3852
      %3885 = vst [vmem:[%s599 + $0x70] sm:$0xf] %v3853
      %3886 = vst [vmem:[%s599 + $0x74] sm:$0xf] %v3854
      %3887 = vst [vmem:[%s599 + $0x78] sm:$0xf] %v3855
      %3888 = vst [vmem:[%s599 + $0x7c] sm:$0xf] %v3856
      %v3889 = vadd.f32 %v3793, %v3794
      %v3890 = vadd.f32 %v3889, %v3795
      %v3891 = vadd.f32 %v3890, %v3796
      %v3892 = vadd.f32 %v3891, %v3797
      %v3893 = vadd.f32 %v3892, %v3798
      %v3894 = vadd.f32 %v3893, %v3799
      %v3895 = vadd.f32 %v3894, %v3800
      %v3896 = vadd.f32 %v3895, %v3801
      %v3897 = vadd.f32 %v3896, %v3802
      %v3898 = vadd.f32 %v3897, %v3803
      %v3899 = vadd.f32 %v3898, %v3804
      %v3900 = vadd.f32 %v3899, %v3805
      %v3901 = vadd.f32 %v3900, %v3806
      %v3902 = vadd.f32 %v3901, %v3807
      %v3903 = vadd.f32 %v3902, %v3808
      %v3904 = vadd.f32 %v3903, %v3809
      %v3905 = vadd.f32 %v3904, %v3810
      %v3906 = vadd.f32 %v3905, %v3811
      %v3907 = vadd.f32 %v3906, %v3812
      %v3908 = vadd.f32 %v3907, %v3813
      %v3909 = vadd.f32 %v3908, %v3814
      %v3910 = vadd.f32 %v3909, %v3815
      %v3911 = vadd.f32 %v3910, %v3816
      %v3912 = vadd.f32 %v3911, %v3817
      %v3913 = vadd.f32 %v3912, %v3818
      %v3914 = vadd.f32 %v3913, %v3819
      %v3915 = vadd.f32 %v3914, %v3820
      %v3916 = vadd.f32 %v3915, %v3821
      %v3917 = vadd.f32 %v3916, %v3822
      %v3918 = vadd.f32 %v3917, %v3823
      %v3919 = vadd.f32 %v3918, %v3824
      %v3920 = vrot.slane %v3919, 4
      %v3921 = vadd.f32 %v3919, %v3920
      %v3922 = vrot.slane %v3921, 2
      %v3923 = vadd.f32 %v3921, %v3922
      %v3924 = vrot.slane %v3923, 1
      %v3925 = vadd.f32 %v3923, %v3924
      %3926 = vst [vmem:[%s603] sm:$0x1] %v3925
      %v3927 = vmul.f32 %v3793, %v3793
      %v3928 = vmul.f32 %v3794, %v3794
      %v3929 = vmul.f32 %v3795, %v3795
      %v3930 = vmul.f32 %v3796, %v3796
      %v3931 = vmul.f32 %v3797, %v3797
      %v3932 = vmul.f32 %v3798, %v3798
      %v3933 = vmul.f32 %v3799, %v3799
      %v3934 = vmul.f32 %v3800, %v3800
      %v3935 = vmul.f32 %v3801, %v3801
      %v3936 = vmul.f32 %v3802, %v3802
      %v3937 = vmul.f32 %v3803, %v3803
      %v3938 = vmul.f32 %v3804, %v3804
      %v3939 = vmul.f32 %v3805, %v3805
      %v3940 = vmul.f32 %v3806, %v3806
      %v3941 = vmul.f32 %v3807, %v3807
      %v3942 = vmul.f32 %v3808, %v3808
      %v3943 = vmul.f32 %v3809, %v3809
      %v3944 = vmul.f32 %v3810, %v3810
      %v3945 = vmul.f32 %v3811, %v3811
      %v3946 = vmul.f32 %v3812, %v3812
      %v3947 = vmul.f32 %v3813, %v3813
      %v3948 = vmul.f32 %v3814, %v3814
      %v3949 = vmul.f32 %v3815, %v3815
      %v3950 = vmul.f32 %v3816, %v3816
      %v3951 = vmul.f32 %v3817, %v3817
      %v3952 = vmul.f32 %v3818, %v3818
      %v3953 = vmul.f32 %v3819, %v3819
      %v3954 = vmul.f32 %v3820, %v3820
      %v3955 = vmul.f32 %v3821, %v3821
      %v3956 = vmul.f32 %v3822, %v3822
      %v3957 = vmul.f32 %v3823, %v3823
      %v3958 = vmul.f32 %v3824, %v3824
      %v3959 = vadd.f32 %v3927, %v3928
      %v3960 = vadd.f32 %v3959, %v3929
      %v3961 = vadd.f32 %v3960, %v3930
      %v3962 = vadd.f32 %v3961, %v3931
      %v3963 = vadd.f32 %v3962, %v3932
      %v3964 = vadd.f32 %v3963, %v3933
      %v3965 = vadd.f32 %v3964, %v3934
      %v3966 = vadd.f32 %v3965, %v3935
      %v3967 = vadd.f32 %v3966, %v3936
      %v3968 = vadd.f32 %v3967, %v3937
      %v3969 = vadd.f32 %v3968, %v3938
      %v3970 = vadd.f32 %v3969, %v3939
      %v3971 = vadd.f32 %v3970, %v3940
      %v3972 = vadd.f32 %v3971, %v3941
      %v3973 = vadd.f32 %v3972, %v3942
      %v3974 = vadd.f32 %v3973, %v3943
      %v3975 = vadd.f32 %v3974, %v3944
      %v3976 = vadd.f32 %v3975, %v3945
      %v3977 = vadd.f32 %v3976, %v3946
      %v3978 = vadd.f32 %v3977, %v3947
      %v3979 = vadd.f32 %v3978, %v3948
      %v3980 = vadd.f32 %v3979, %v3949
      %v3981 = vadd.f32 %v3980, %v3950
      %v3982 = vadd.f32 %v3981, %v3951
      %v3983 = vadd.f32 %v3982, %v3952
      %v3984 = vadd.f32 %v3983, %v3953
      %v3985 = vadd.f32 %v3984, %v3954
      %v3986 = vadd.f32 %v3985, %v3955
      %v3987 = vadd.f32 %v3986, %v3956
      %v3988 = vadd.f32 %v3987, %v3957
      %v3989 = vadd.f32 %v3988, %v3958
      %v3990 = vrot.slane %v3989, 4
      %v3991 = vadd.f32 %v3989, %v3990
      %v3992 = vrot.slane %v3991, 2
      %v3993 = vadd.f32 %v3991, %v3992
      %v3994 = vrot.slane %v3993, 1
      %v3995 = vadd.f32 %v3993, %v3994
      %3996 = vst [vmem:[%s606] sm:$0x1] %v3995
      %s3997 = smul.u32 32, %s24
      %p3998 = scmp.lt.s32.totalorder %s3997, 95
      %s3999 = scalar_select %p3998, %s3997, 95
      %s4000 = smul.addr %s3999, 4
      %s4001 = scalar_lea.vmem %s7, %s4000
      %p4002 = scmp.lt.s32.totalorder %s24, 2
      %s4003 = scalar_select %p4002, %s24, 2
      %s4004 = scalar_lea.vmem %s8, %s4003
      %p4005 = scmp.lt.s32.totalorder %s24, 2
      %s4006 = scalar_select %p4005, %s24, 2
      %s4007 = scalar_lea.vmem %s9, %s4006
      %s4008 = smul.u32 32, %s24
      %p4009 = scmp.lt.s32.totalorder %s4008, 95
      %s4010 = scalar_select %p4009, %s4008, 95
      %s4011 = smul.addr %s4010, 4
      %s4012 = scalar_lea.vmem %s10, %s4011
      %p4013 = scmp.lt.s32.totalorder %s24, 2
      %s4014 = scalar_select %p4013, %s24, 2
      %s4015 = scalar_lea.vmem %s11, %s4014
      %p4016 = scmp.lt.s32.totalorder %s24, 2
      %s4017 = scalar_select %p4016, %s24, 2
      %s4018 = scalar_lea.vmem %s12, %s4017
      // Predicated region
      $region49: #{basic_block_forward.6} parent=47 // pred_check
        %p4019 = pneg %p230
      $region50: #{basic_block_forward.6} parent=47 // pred_check_branch
        %4021 = sbr.rel (%p4019) target = $region52
      $region51: #{basic_block_forward.6} parent=47 // pred_region
        %s4022 = smul.u32 32, %s24
      $region52: #{basic_block_forward.6} parent=47 // pred_fallthru
        _
      // Predicated region
      $region53: #{basic_block_forward.6} parent=47 // pred_check
        %p4023 = pneg %p256
      $region54: #{basic_block_forward.6} parent=47 // pred_check_branch
        %4025 = sbr.rel (%p4023) target = $region56
      $region55: #{basic_block_forward.6} parent=47 // pred_region
        _
      $region56: #{basic_block_forward.6} parent=47 // pred_fallthru
        _
      // Predicated region
      $region57: #{basic_block_forward.6} parent=47 // pred_check
        %p4026 = pneg %p282
      $region58: #{basic_block_forward.6} parent=47 // pred_check_branch
        %4028 = sbr.rel (%p4026) target = $region60
      $region59: #{basic_block_forward.6} parent=47 // pred_region
        _
      $region60: #{basic_block_forward.6} parent=47 // pred_fallthru
        _
      // Predicated region
      $region61: #{basic_block_forward.6} parent=47 // pred_check
        %p4029 = pneg %p308
      $region62: #{basic_block_forward.6} parent=47 // pred_check_branch
        %4031 = sbr.rel (%p4029) target = $region64
      $region63: #{basic_block_forward.6} parent=47 // pred_region
        %s4032 = smul.u32 32, %s24
      $region64: #{basic_block_forward.6} parent=47 // pred_fallthru
        _
      // Predicated region
      $region65: #{basic_block_forward.6} parent=47 // pred_check
        %p4033 = pneg %p334
      $region66: #{basic_block_forward.6} parent=47 // pred_check_branch
        %4035 = sbr.rel (%p4033) target = $region68
      $region67: #{basic_block_forward.6} parent=47 // pred_region
        _
      $region68: #{basic_block_forward.6} parent=47 // pred_fallthru
        _
      // Predicated region
      $region69: #{basic_block_forward.6} parent=47 // pred_check
        %p4036 = pneg %p360
      $region70: #{basic_block_forward.6} parent=47 // pred_check_branch
        %4038 = sbr.rel (%p4036) target = $region72
      $region71: #{basic_block_forward.6} parent=47 // pred_region
        _
      $region72: #{basic_block_forward.6} parent=47 // pred_fallthru
        _
    $region48: #{basic_block_forward.6} parent=5 // pred_fallthru
      _
    %p4039 = scmp.le.s32.totalorder 2, %s19
    // Predicated region
    $region73: #{basic_block_forward.6} parent=5 // pred_check
      %p4040 = pneg %p4039
    $region74: #{basic_block_forward.6} parent=5 // pred_check_branch
      %4042 = sbr.rel (%p4040) target = $region76
    $region75: #{basic_block_forward.6} parent=5 // pred_region
      %s4043 = ssub.s32 %s19, 2
      // Predicated region
      $region77: #{basic_block_forward.6} parent=75 // pred_check
        %p4044 = pneg %p236
      $region78: #{basic_block_forward.6} parent=75 // pred_check_branch
        %4046 = sbr.rel (%p4044) target = $region80
      $region79: #{basic_block_forward.6} parent=75 // pred_region
        %s4047 = smul.u32 32, %s25
        %p4048 = scmp.lt.s32.totalorder %s4047, 95
        %s4049 = scalar_select %p4048, %s4047, 95
        %s4050 = smul.addr %s4049, 4
        %s4051 = scalar_lea.vmem %s7, %s4050
      $region80: #{basic_block_forward.6} parent=75 // pred_fallthru
        _
      // Predicated region
      $region81: #{basic_block_forward.6} parent=75 // pred_check
        %p4052 = pneg %p262
      $region82: #{basic_block_forward.6} parent=75 // pred_check_branch
        %4054 = sbr.rel (%p4052) target = $region84
      $region83: #{basic_block_forward.6} parent=75 // pred_region
        %p4055 = scmp.lt.s32.totalorder %s25, 2
        %s4056 = scalar_select %p4055, %s25, 2
        %s4057 = scalar_lea.vmem %s8, %s4056
      $region84: #{basic_block_forward.6} parent=75 // pred_fallthru
        _
      // Predicated region
      $region85: #{basic_block_forward.6} parent=75 // pred_check
        %p4058 = pneg %p288
      $region86: #{basic_block_forward.6} parent=75 // pred_check_branch
        %4060 = sbr.rel (%p4058) target = $region88
      $region87: #{basic_block_forward.6} parent=75 // pred_region
        %p4061 = scmp.lt.s32.totalorder %s25, 2
        %s4062 = scalar_select %p4061, %s25, 2
        %s4063 = scalar_lea.vmem %s9, %s4062
      $region88: #{basic_block_forward.6} parent=75 // pred_fallthru
        _
      // Predicated region
      $region89: #{basic_block_forward.6} parent=75 // pred_check
        %p4064 = pneg %p314
      $region90: #{basic_block_forward.6} parent=75 // pred_check_branch
        %4066 = sbr.rel (%p4064) target = $region92
      $region91: #{basic_block_forward.6} parent=75 // pred_region
        %s4067 = smul.u32 32, %s25
        %p4068 = scmp.lt.s32.totalorder %s4067, 95
        %s4069 = scalar_select %p4068, %s4067, 95
        %s4070 = smul.addr %s4069, 4
        %s4071 = scalar_lea.vmem %s10, %s4070
      $region92: #{basic_block_forward.6} parent=75 // pred_fallthru
        _
      // Predicated region
      $region93: #{basic_block_forward.6} parent=75 // pred_check
        %p4072 = pneg %p340
      $region94: #{basic_block_forward.6} parent=75 // pred_check_branch
        %4074 = sbr.rel (%p4072) target = $region96
      $region95: #{basic_block_forward.6} parent=75 // pred_region
        %p4075 = scmp.lt.s32.totalorder %s25, 2
        %s4076 = scalar_select %p4075, %s25, 2
        %s4077 = scalar_lea.vmem %s11, %s4076
      $region96: #{basic_block_forward.6} parent=75 // pred_fallthru
        _
      // Predicated region
      $region97: #{basic_block_forward.6} parent=75 // pred_check
        %p4078 = pneg %p366
      $region98: #{basic_block_forward.6} parent=75 // pred_check_branch
        %4080 = sbr.rel (%p4078) target = $region100
      $region99: #{basic_block_forward.6} parent=75 // pred_region
        %p4081 = scmp.lt.s32.totalorder %s25, 2
        %s4082 = scalar_select %p4081, %s25, 2
        %s4083 = scalar_lea.vmem %s12, %s4082
      $region100: #{basic_block_forward.6} parent=75 // pred_fallthru
        _
    $region76: #{basic_block_forward.6} parent=5 // pred_fallthru
      _
  $region6: #{basic_block_forward.6} parent=0 // loop_footer
    %s23 = sadd.s32 1, %s19
  $region7: #{basic_block_forward.6} parent=0 // loop_footer_branch
    %18 = sbr.rel target = $region3
  $region8: #{basic_block_forward.6} parent=0 // loop_exit
    _

// kernel: basic_block_forward.4
$region0: #{basic_block_forward.4}
  #allocation0 [shape = 'u32[]', space=smem, size = 0x4, offset = 0x4, fixed_abs, tag = 'smem constant byte address 0x4 - core index']
  #allocation1 [shape = 'u32[72,128]{1,0:T(1,128)}', space=vmem, size = 0x9000, scoped, tag = 'internal scratch']
  %s0 = inlined_call_operand.vmem [shape: bf16[768,4], index: 0, kind: input, shape index: {}, may-alias: {0,1,2}]
  %s1 = inlined_call_operand.vmem [shape: bf16[768,4], index: 1, kind: input, shape index: {}, may-alias: {0,1,2}]
  %s2 = inlined_call_operand.vmem [shape: bf16[768,4], index: 2, kind: input, shape index: {}, may-alias: {0,1,2}]
  %s3 = inlined_call_operand.vmem [shape: bf16[9,4,128], index: 3, kind: input, shape index: {}]
  %s4 = inlined_call_operand.vmem [shape: f32[768,1], index: 4, kind: input, shape index: {}]
  %s5 = inlined_call_operand.vmem [shape: bf16[768,128], index: 5, kind: output, shape index: {0}]
  %s6 = inlined_call_operand.vmem [shape: f32[3,1,128], index: 6, kind: output, shape index: {1}]
  %s7 = inlined_call_operand.vmem [shape: f32[3,1,128], index: 7, kind: output, shape index: {2}]
  %8 = xla_tuple %s5, %s6, %s7
  %s9 = sld [smem:[#allocation0]]
  $region69: #{basic_block_forward.4} parent=0
    _
  %s11 = ssub.s32 1, %s9
  %s12 = scalar_select 0, %s11, %s9
  loop: start=0, step=1, limit=5
  $region2: #{basic_block_forward.4} parent=0 // loop_pre_header
    _
  $region3: #{basic_block_forward.4} parent=0 // loop_header
    %s14 = sphi 0, %s18
    %p15 = scmp.ge.s32.totalorder %s14, 5
    %s32 = sphi 0, %s34
    %s35 = sphi 0, %s32
    %s36 = sphi 0, %s35
    %s52 = sphi 0, %s36
    %s58 = sphi 0, %s60
    %s61 = sphi 0, %s58
    %s62 = sphi 0, %s61
    %s78 = sphi 0, %s62
    %s92 = sphi 0, %s94
    %s95 = sphi 0, %s92
    %s96 = sphi 0, %s95
    %s112 = sphi 0, %s96
    %s116 = sphi 0, %s116
    %s118 = sphi 0, %s116
    %s119 = sphi 0, %s118
    %s133 = sphi 0, %s119
    %s139 = sphi 0, %s141
    %s142 = sphi 0, %s139
    %s143 = sphi 0, %s142
    %s159 = sphi 0, %s143
    %s165 = sphi 0, %s167
    %s168 = sphi 0, %s165
    %s169 = sphi 0, %s168
    %s185 = sphi 0, %s169
    %s191 = sphi 0, %s193
    %s194 = sphi 0, %s191
    %s195 = sphi 0, %s194
    %s211 = sphi 0, %s195
    %s217 = sphi 0, %s219
    %s220 = sphi 0, %s217
    %s221 = sphi 0, %s220
    %s237 = sphi 0, %s221
  $region4: #{basic_block_forward.4} parent=0 // loop_header_branch
    %17 = sbr.rel (%p15) target = $region8
  $region5: #{basic_block_forward.4} parent=0 // loop_body
    %s19 = ssub.s32 %s14, 1
    %s20 = ssub.s32 %s14, 2
    %s21 = sadd.s32 %s14, 1
    %s22 = smul.u32 %s14, 8
    %s23 = ssub.s32 %s22, 1
    %p24 = scmp.gt.s32.totalorder %s23, 0
    %s25 = scalar_select %p24, %s23, 0
    %s26 = smul.u32 %s21, 8
    %s27 = ssub.s32 %s26, 1
    %p28 = scmp.gt.s32.totalorder %s27, 0
    %s29 = scalar_select %p28, %s27, 0
    %s30 = ssub.s32 %s25, %s29
    %p31 = scmp.eq.s32.totalorder %s30, 0
    %s33 = sadd.s32 %s32, 1
    %s34 = scalar_select %p31, %s32, %s33
    %p37 = pneg %p31
    %p38 = scmp.eq.s32.totalorder %s14, 2
    %p39 = por %p37, %p38
    %p40 = scmp.ne.s32.totalorder %s32, %s35
    %p41 = scmp.eq.s32.totalorder %s14, 0
    %p42 = por %p40, %p41
    %p43 = scmp.ne.s32.totalorder %s32, %s35
    %p44 = scmp.eq.s32.totalorder %s19, 2
    %p45 = por %p43, %p44
    %p46 = scmp.ne.s32.totalorder %s35, %s36
    %p47 = scmp.eq.s32.totalorder %s19, 0
    %p48 = por %p46, %p47
    %p49 = scmp.ne.s32.totalorder %s35, %s36
    %p50 = scmp.eq.s32.totalorder %s20, 2
    %p51 = por %p49, %p50
    %p53 = scmp.ne.s32.totalorder %s36, %s52
    %p54 = scmp.eq.s32.totalorder %s20, 0
    %p55 = por %p53, %p54
    %s56 = ssub.s32 %s14, %s21
    %p57 = scmp.eq.s32.totalorder %s56, 0
    %s59 = sadd.s32 %s58, 1
    %s60 = scalar_select %p57, %s58, %s59
    %p63 = pneg %p57
    %p64 = scmp.eq.s32.totalorder %s14, 2
    %p65 = por %p63, %p64
    %p66 = scmp.ne.s32.totalorder %s58, %s61
    %p67 = scmp.eq.s32.totalorder %s14, 0
    %p68 = por %p66, %p67
    %p69 = scmp.ne.s32.totalorder %s58, %s61
    %p70 = scmp.eq.s32.totalorder %s19, 2
    %p71 = por %p69, %p70
    %p72 = scmp.ne.s32.totalorder %s61, %s62
    %p73 = scmp.eq.s32.totalorder %s19, 0
    %p74 = por %p72, %p73
    %p75 = scmp.ne.s32.totalorder %s61, %s62
    %p76 = scmp.eq.s32.totalorder %s20, 2
    %p77 = por %p75, %p76
    %p79 = scmp.ne.s32.totalorder %s62, %s78
    %p80 = scmp.eq.s32.totalorder %s20, 0
    %p81 = por %p79, %p80
    %s82 = sadd.s32 %s14, 1
    %s83 = smul.u32 %s82, 8
    %p84 = scmp.lt.s32.totalorder %s83, 23
    %s85 = scalar_select %p84, %s83, 23
    %s86 = sadd.s32 %s21, 1
    %s87 = smul.u32 %s86, 8
    %p88 = scmp.lt.s32.totalorder %s87, 23
    %s89 = scalar_select %p88, %s87, 23
    %s90 = ssub.s32 %s85, %s89
    %p91 = scmp.eq.s32.totalorder %s90, 0
    %s93 = sadd.s32 %s92, 1
    %s94 = scalar_select %p91, %s92, %s93
    %p97 = pneg %p91
    %p98 = scmp.eq.s32.totalorder %s14, 2
    %p99 = por %p97, %p98
    %p100 = scmp.ne.s32.totalorder %s92, %s95
    %p101 = scmp.eq.s32.totalorder %s14, 0
    %p102 = por %p100, %p101
    %p103 = scmp.ne.s32.totalorder %s92, %s95
    %p104 = scmp.eq.s32.totalorder %s19, 2
    %p105 = por %p103, %p104
    %p106 = scmp.ne.s32.totalorder %s95, %s96
    %p107 = scmp.eq.s32.totalorder %s19, 0
    %p108 = por %p106, %p107
    %p109 = scmp.ne.s32.totalorder %s95, %s96
    %p110 = scmp.eq.s32.totalorder %s20, 2
    %p111 = por %p109, %p110
    %p113 = scmp.ne.s32.totalorder %s96, %s112
    %p114 = scmp.eq.s32.totalorder %s20, 0
    %p115 = por %p113, %p114
    %s117 = sadd.s32 %s116, 1
    %p120 = scmp.eq.s32.totalorder %s14, 2
    %p121 = scmp.ne.s32.totalorder %s116, %s118
    %p122 = scmp.eq.s32.totalorder %s14, 0
    %p123 = por %p121, %p122
    %p124 = scmp.ne.s32.totalorder %s116, %s118
    %p125 = scmp.eq.s32.totalorder %s19, 2
    %p126 = por %p124, %p125
    %p127 = scmp.ne.s32.totalorder %s118, %s119
    %p128 = scmp.eq.s32.totalorder %s19, 0
    %p129 = por %p127, %p128
    %p130 = scmp.ne.s32.totalorder %s118, %s119
    %p131 = scmp.eq.s32.totalorder %s20, 2
    %p132 = por %p130, %p131
    %p134 = scmp.ne.s32.totalorder %s119, %s133
    %p135 = scmp.eq.s32.totalorder %s20, 0
    %p136 = por %p134, %p135
    %s137 = ssub.s32 %s14, %s21
    %p138 = scmp.eq.s32.totalorder %s137, 0
    %s140 = sadd.s32 %s139, 1
    %s141 = scalar_select %p138, %s139, %s140
    %p144 = pneg %p138
    %p145 = scmp.eq.s32.totalorder %s14, 2
    %p146 = por %p144, %p145
    %p147 = scmp.ne.s32.totalorder %s139, %s142
    %p148 = scmp.eq.s32.totalorder %s14, 0
    %p149 = por %p147, %p148
    %p150 = scmp.ne.s32.totalorder %s139, %s142
    %p151 = scmp.eq.s32.totalorder %s19, 2
    %p152 = por %p150, %p151
    %p153 = scmp.ne.s32.totalorder %s142, %s143
    %p154 = scmp.eq.s32.totalorder %s19, 0
    %p155 = por %p153, %p154
    %p156 = scmp.ne.s32.totalorder %s142, %s143
    %p157 = scmp.eq.s32.totalorder %s20, 2
    %p158 = por %p156, %p157
    %p160 = scmp.ne.s32.totalorder %s143, %s159
    %p161 = scmp.eq.s32.totalorder %s20, 0
    %p162 = por %p160, %p161
    %s163 = ssub.s32 %s14, %s21
    %p164 = scmp.eq.s32.totalorder %s163, 0
    %s166 = sadd.s32 %s165, 1
    %s167 = scalar_select %p164, %s165, %s166
    %p170 = pneg %p164
    %p171 = scmp.eq.s32.totalorder %s14, 2
    %p172 = por %p170, %p171
    %p173 = scmp.ne.s32.totalorder %s165, %s168
    %p174 = scmp.eq.s32.totalorder %s14, 0
    %p175 = por %p173, %p174
    %p176 = scmp.ne.s32.totalorder %s165, %s168
    %p177 = scmp.eq.s32.totalorder %s19, 2
    %p178 = por %p176, %p177
    %p179 = scmp.ne.s32.totalorder %s168, %s169
    %p180 = scmp.eq.s32.totalorder %s19, 0
    %p181 = por %p179, %p180
    %p182 = scmp.ne.s32.totalorder %s168, %s169
    %p183 = scmp.eq.s32.totalorder %s20, 2
    %p184 = por %p182, %p183
    %p186 = scmp.ne.s32.totalorder %s169, %s185
    %p187 = scmp.eq.s32.totalorder %s20, 0
    %p188 = por %p186, %p187
    %s189 = ssub.s32 %s14, %s21
    %p190 = scmp.eq.s32.totalorder %s189, 0
    %s192 = sadd.s32 %s191, 1
    %s193 = scalar_select %p190, %s191, %s192
    %p196 = pneg %p190
    %p197 = scmp.eq.s32.totalorder %s14, 2
    %p198 = por %p196, %p197
    %p199 = scmp.ne.s32.totalorder %s191, %s194
    %p200 = scmp.eq.s32.totalorder %s14, 0
    %p201 = por %p199, %p200
    %p202 = scmp.ne.s32.totalorder %s191, %s194
    %p203 = scmp.eq.s32.totalorder %s19, 2
    %p204 = por %p202, %p203
    %p205 = scmp.ne.s32.totalorder %s194, %s195
    %p206 = scmp.eq.s32.totalorder %s19, 0
    %p207 = por %p205, %p206
    %p208 = scmp.ne.s32.totalorder %s194, %s195
    %p209 = scmp.eq.s32.totalorder %s20, 2
    %p210 = por %p208, %p209
    %p212 = scmp.ne.s32.totalorder %s195, %s211
    %p213 = scmp.eq.s32.totalorder %s20, 0
    %p214 = por %p212, %p213
    %s215 = ssub.s32 %s14, %s21
    %p216 = scmp.eq.s32.totalorder %s215, 0
    %s218 = sadd.s32 %s217, 1
    %s219 = scalar_select %p216, %s217, %s218
    %p222 = pneg %p216
    %p223 = scmp.eq.s32.totalorder %s14, 2
    %p224 = por %p222, %p223
    %p225 = scmp.ne.s32.totalorder %s217, %s220
    %p226 = scmp.eq.s32.totalorder %s14, 0
    %p227 = por %p225, %p226
    %p228 = scmp.ne.s32.totalorder %s217, %s220
    %p229 = scmp.eq.s32.totalorder %s19, 2
    %p230 = por %p228, %p229
    %p231 = scmp.ne.s32.totalorder %s220, %s221
    %p232 = scmp.eq.s32.totalorder %s19, 0
    %p233 = por %p231, %p232
    %p234 = scmp.ne.s32.totalorder %s220, %s221
    %p235 = scmp.eq.s32.totalorder %s20, 2
    %p236 = por %p234, %p235
    %p238 = scmp.ne.s32.totalorder %s221, %s237
    %p239 = scmp.eq.s32.totalorder %s20, 0
    %p240 = por %p238, %p239
    %p241 = scmp.le.s32.totalorder 1, %s14
    %p242 = scmp.lt.s32.totalorder %s14, 4
    %p243 = pnand %p241, %p242
    %p244 = pneg %p243
    // Predicated region
    $region9: #{basic_block_forward.4} parent=5 // pred_check
      _
    $region10: #{basic_block_forward.4} parent=5 // pred_check_branch
      %246 = sbr.rel (%p243) target = $region12
    $region11: #{basic_block_forward.4} parent=5 // pred_region
      %s247 = ssub.s32 %s14, 1
      // Predicated region
      $region13: #{basic_block_forward.4} parent=11 // pred_check
        %p248 = pneg %p129
      $region14: #{basic_block_forward.4} parent=11 // pred_check_branch
        %250 = sbr.rel (%p248) target = $region16
      $region15: #{basic_block_forward.4} parent=11 // pred_region
        _
      $region16: #{basic_block_forward.4} parent=11 // pred_fallthru
        _
    $region12: #{basic_block_forward.4} parent=5 // pred_fallthru
      _
    %p251 = scmp.lt.s32.totalorder %s14, 3
    // Predicated region
    $region17: #{basic_block_forward.4} parent=5 // pred_check
      %p252 = pneg %p251
    $region18: #{basic_block_forward.4} parent=5 // pred_check_branch
      %254 = sbr.rel (%p252) target = $region20
    $region19: #{basic_block_forward.4} parent=5 // pred_region
      // Predicated region
      $region21: #{basic_block_forward.4} parent=19 // pred_check
        %p255 = pneg %p42
      $region22: #{basic_block_forward.4} parent=19 // pred_check_branch
        %257 = sbr.rel (%p255) target = $region24
      $region23: #{basic_block_forward.4} parent=19 // pred_region
        %s258 = smul.u32 %s14, 8
        %s259 = ssub.s32 %s258, 1
        %p260 = scmp.gt.s32.totalorder %s259, 0
        %s261 = scalar_select %p260, %s259, 0
        %s262 = smul.u32 4, %s261
        %p263 = scmp.lt.s32.totalorder %s262, 95
        %s264 = scalar_select %p263, %s262, 95
        %s265 = smul.addr %s264, 4
        %s266 = scalar_lea.vmem %s0, %s265
        %s267 = smul.u32 %s14, 8
        %s268 = ssub.s32 %s267, 1
        %p269 = scmp.gt.s32.totalorder %s268, 0
        %s270 = scalar_select %p269, %s268, 0
        %s271 = smul.u32 4, %s270
      $region24: #{basic_block_forward.4} parent=19 // pred_fallthru
        _
      // Predicated region
      $region25: #{basic_block_forward.4} parent=19 // pred_check
        %p272 = pneg %p68
      $region26: #{basic_block_forward.4} parent=19 // pred_check_branch
        %274 = sbr.rel (%p272) target = $region28
      $region27: #{basic_block_forward.4} parent=19 // pred_region
        %s275 = smul.u32 32, %s14
        %p276 = scmp.lt.s32.totalorder %s275, 95
        %s277 = scalar_select %p276, %s275, 95
        %s278 = smul.addr %s277, 4
        %s279 = scalar_lea.vmem %s1, %s278
        %s280 = smul.u32 32, %s14
      $region28: #{basic_block_forward.4} parent=19 // pred_fallthru
        _
      // Predicated region
      $region29: #{basic_block_forward.4} parent=19 // pred_check
        %p281 = pneg %p102
      $region30: #{basic_block_forward.4} parent=19 // pred_check_branch
        %283 = sbr.rel (%p281) target = $region32
      $region31: #{basic_block_forward.4} parent=19 // pred_region
        %s284 = sadd.s32 %s14, 1
        %s285 = smul.u32 %s284, 8
        %p286 = scmp.lt.s32.totalorder %s285, 23
        %s287 = scalar_select %p286, %s285, 23
        %s288 = smul.u32 4, %s287
        %p289 = scmp.lt.s32.totalorder %s288, 95
        %s290 = scalar_select %p289, %s288, 95
        %s291 = smul.addr %s290, 4
        %s292 = scalar_lea.vmem %s2, %s291
        %s293 = sadd.s32 %s14, 1
        %s294 = smul.u32 %s293, 8
        %p295 = scmp.lt.s32.totalorder %s294, 23
        %s296 = scalar_select %p295, %s294, 23
        %s297 = smul.u32 4, %s296
      $region32: #{basic_block_forward.4} parent=19 // pred_fallthru
        _
      // Predicated region
      $region33: #{basic_block_forward.4} parent=19 // pred_check
        %p298 = pneg %p149
      $region34: #{basic_block_forward.4} parent=19 // pred_check_branch
        %300 = sbr.rel (%p298) target = $region36
      $region35: #{basic_block_forward.4} parent=19 // pred_region
        %s301 = smul.u32 32, %s14
        %p302 = scmp.lt.s32.totalorder %s301, 95
        %s303 = scalar_select %p302, %s301, 95
        %s304 = smul.addr %s303, 8
        %s305 = scalar_lea.vmem %s4, %s304
        %s306 = smul.u32 32, %s14
      $region36: #{basic_block_forward.4} parent=19 // pred_fallthru
        _
    $region20: #{basic_block_forward.4} parent=5 // pred_fallthru
      _
    %p307 = scmp.le.s32.totalorder 1, %s14
    %p308 = scmp.lt.s32.totalorder %s14, 4
    %p309 = pnand %p307, %p308
    %p310 = pneg %p309
    // Predicated region
    $region37: #{basic_block_forward.4} parent=5 // pred_check
      _
    $region38: #{basic_block_forward.4} parent=5 // pred_check_branch
      %312 = sbr.rel (%p309) target = $region40
    $region39: #{basic_block_forward.4} parent=5 // pred_region
      %s313 = ssub.s32 %s14, 1
      %s314 = smul.u32 %s19, 8
      %s315 = ssub.s32 %s314, 1
      %p316 = scmp.gt.s32.totalorder %s315, 0
      %s317 = scalar_select %p316, %s315, 0
      %s318 = smul.u32 4, %s317
      %p319 = scmp.lt.s32.totalorder %s318, 95
      %s320 = scalar_select %p319, %s318, 95
      %s321 = smul.addr %s320, 4
      %s322 = scalar_lea.vmem %s0, %s321
      %p323 = pneg %p48
      %p324 = pneg %p45
      %s325 = smul.u32 32, %s19
      %p326 = scmp.lt.s32.totalorder %s325, 95
      %s327 = scalar_select %p326, %s325, 95
      %s328 = smul.addr %s327, 4
      %s329 = scalar_lea.vmem %s1, %s328
      %p330 = pneg %p74
      %p331 = pneg %p71
      %s332 = sadd.s32 %s19, 1
      %s333 = smul.u32 %s332, 8
      %p334 = scmp.lt.s32.totalorder %s333, 23
      %s335 = scalar_select %p334, %s333, 23
      %s336 = smul.u32 4, %s335
      %p337 = scmp.lt.s32.totalorder %s336, 95
      %s338 = scalar_select %p337, %s336, 95
      %s339 = smul.addr %s338, 4
      %s340 = scalar_lea.vmem %s2, %s339
      %p341 = pneg %p108
      %p342 = pneg %p105
      %p343 = pneg %p129
      %p344 = pneg %p126
      %s345 = smul.u32 32, %s19
      %p346 = scmp.lt.s32.totalorder %s345, 95
      %s347 = scalar_select %p346, %s345, 95
      %s348 = smul.addr %s347, 8
      %s349 = scalar_lea.vmem %s4, %s348
      %p350 = pneg %p155
      %p351 = pneg %p152
      %p352 = pneg %p181
      %p353 = pneg %p178
      %s354 = smul.u32 32, %s19
      %p355 = scmp.lt.s32.totalorder %s354, 95
      %s356 = scalar_select %p355, %s354, 95
      %s357 = smul.addr %s356, 4
      %s358 = scalar_lea.vmem %s5, %s357
      %p359 = pneg %p207
      %p360 = pneg %p204
      %p361 = scmp.lt.s32.totalorder %s19, 2
      %s362 = scalar_select %p361, %s19, 2
      %s363 = scalar_lea.vmem %s6, %s362
      %p364 = pneg %p233
      %p365 = pneg %p230
      %p366 = scmp.lt.s32.totalorder %s19, 2
      %s367 = scalar_select %p366, %s19, 2
      %s368 = scalar_lea.vmem %s7, %s367
      %s369 = smul.u32 %s19, 8
      %s370 = ssub.s32 %s369, 1
      %p371 = scmp.gt.s32.totalorder %s370, 0
      %s372 = scalar_select %p371, %s370, 0
      %s373 = smul.u32 4, %s372
      %p374 = scmp.lt.s32.totalorder %s373, 95
      %s375 = scalar_select %p374, %s373, 95
      %s376 = smul.addr %s375, 4
      %s377 = scalar_lea.vmem %s0, %s376
      %s378 = smul.u32 %s19, 8
      %s379 = ssub.s32 %s378, 1
      %p380 = scmp.gt.s32.totalorder %s379, 0
      %s381 = scalar_select %p380, %s379, 0
      %s382 = smul.u32 4, %s381
      %s383 = smul.u32 32, %s19
      %p384 = scmp.lt.s32.totalorder %s383, 95
      %s385 = scalar_select %p384, %s383, 95
      %s386 = smul.addr %s385, 4
      %s387 = scalar_lea.vmem %s1, %s386
      %s388 = smul.u32 32, %s19
      %s389 = sadd.s32 %s19, 1
      %s390 = smul.u32 %s389, 8
      %p391 = scmp.lt.s32.totalorder %s390, 23
      %s392 = scalar_select %p391, %s390, 23
      %s393 = smul.u32 4, %s392
      %p394 = scmp.lt.s32.totalorder %s393, 95
      %s395 = scalar_select %p394, %s393, 95
      %s396 = smul.addr %s395, 4
      %s397 = scalar_lea.vmem %s2, %s396
      %s398 = sadd.s32 %s19, 1
      %s399 = smul.u32 %s398, 8
      %p400 = scmp.lt.s32.totalorder %s399, 23
      %s401 = scalar_select %p400, %s399, 23
      %s402 = smul.u32 4, %s401
      %s403 = smul.u32 32, %s19
      %p404 = scmp.lt.s32.totalorder %s403, 95
      %s405 = scalar_select %p404, %s403, 95
      %s406 = smul.addr %s405, 8
      %s407 = scalar_lea.vmem %s4, %s406
      %s408 = smul.u32 32, %s19
      %s409 = smul.u32 32, %s19
      %p410 = scmp.lt.s32.totalorder %s409, 95
      %s411 = scalar_select %p410, %s409, 95
      %s412 = smul.addr %s411, 4
      %s413 = scalar_lea.vmem %s5, %s412
      %s414 = smul.u32 32, %s19
      %p415 = scmp.lt.s32.totalorder %s19, 2
      %s416 = scalar_select %p415, %s19, 2
      %s417 = scalar_lea.vmem %s6, %s416
      %p418 = scmp.lt.s32.totalorder %s19, 2
      %s419 = scalar_select %p418, %s19, 2
      %s420 = scalar_lea.vmem %s7, %s419
      %v422 = vld [vmem:[%s377] sm:$0xf]
      %v423 = vld [vmem:[%s377 + $0x4] sm:$0xf]
      %v424 = vld [vmem:[%s377 + $0x8] sm:$0xf]
      %v425 = vld [vmem:[%s377 + $0xc] sm:$0xf]
      %v426 = vld [vmem:[%s387] sm:$0xf]
      %v427 = vld [vmem:[%s387 + $0x4] sm:$0xf]
      %v428 = vld [vmem:[%s387 + $0x8] sm:$0xf]
      %v429 = vld [vmem:[%s387 + $0xc] sm:$0xf]
      %v430 = vld [vmem:[%s387 + $0x10] sm:$0xf]
      %v431 = vld [vmem:[%s387 + $0x14] sm:$0xf]
      %v432 = vld [vmem:[%s387 + $0x18] sm:$0xf]
      %v433 = vld [vmem:[%s387 + $0x1c] sm:$0xf]
      %v434 = vld [vmem:[%s387 + $0x20] sm:$0xf]
      %v435 = vld [vmem:[%s387 + $0x24] sm:$0xf]
      %v436 = vld [vmem:[%s387 + $0x28] sm:$0xf]
      %v437 = vld [vmem:[%s387 + $0x2c] sm:$0xf]
      %v438 = vld [vmem:[%s387 + $0x30] sm:$0xf]
      %v439 = vld [vmem:[%s387 + $0x34] sm:$0xf]
      %v440 = vld [vmem:[%s387 + $0x38] sm:$0xf]
      %v441 = vld [vmem:[%s387 + $0x3c] sm:$0xf]
      %v442 = vld [vmem:[%s387 + $0x40] sm:$0xf]
      %v443 = vld [vmem:[%s387 + $0x44] sm:$0xf]
      %v444 = vld [vmem:[%s387 + $0x48] sm:$0xf]
      %v445 = vld [vmem:[%s387 + $0x4c] sm:$0xf]
      %v446 = vld [vmem:[%s387 + $0x50] sm:$0xf]
      %v447 = vld [vmem:[%s387 + $0x54] sm:$0xf]
      %v448 = vld [vmem:[%s387 + $0x58] sm:$0xf]
      %v449 = vld [vmem:[%s387 + $0x5c] sm:$0xf]
      %v450 = vld [vmem:[%s387 + $0x60] sm:$0xf]
      %v451 = vld [vmem:[%s387 + $0x64] sm:$0xf]
      %v452 = vld [vmem:[%s387 + $0x68] sm:$0xf]
      %v453 = vld [vmem:[%s387 + $0x6c] sm:$0xf]
      %v454 = vld [vmem:[%s387 + $0x70] sm:$0xf]
      %v455 = vld [vmem:[%s387 + $0x74] sm:$0xf]
      %v456 = vld [vmem:[%s387 + $0x78] sm:$0xf]
      %v457 = vld [vmem:[%s387 + $0x7c] sm:$0xf]
      %v458 = vld [vmem:[%s397] sm:$0xf]
      %v459 = vld [vmem:[%s397 + $0x4] sm:$0xf]
      %v460 = vld [vmem:[%s397 + $0x8] sm:$0xf]
      %v461 = vld [vmem:[%s397 + $0xc] sm:$0xf]
      %v466 = vunpack.c.l.b16 %v422
      %v467 = vunpack.c.l.b16 %v423
      %v468 = vunpack.c.l.b16 %v424
      %v469 = vunpack.c.l.b16 %v425
      %v470 = vpack.c.b16 %v467, %v466
      %v471 = vpack.c.b16 %v469, %v468
      %v506 = vunpack.c.l.b16 %v426
      %v507 = vunpack.c.l.b16 %v427
      %v508 = vunpack.c.l.b16 %v428
      %v509 = vunpack.c.l.b16 %v429
      %v510 = vunpack.c.l.b16 %v430
      %v511 = vunpack.c.l.b16 %v431
      %v512 = vunpack.c.l.b16 %v432
      %v513 = vunpack.c.l.b16 %v433
      %v514 = vunpack.c.l.b16 %v434
      %v515 = vunpack.c.l.b16 %v435
      %v516 = vunpack.c.l.b16 %v436
      %v517 = vunpack.c.l.b16 %v437
      %v518 = vunpack.c.l.b16 %v438
      %v519 = vunpack.c.l.b16 %v439
      %v520 = vunpack.c.l.b16 %v440
      %v521 = vunpack.c.l.b16 %v441
      %v522 = vunpack.c.l.b16 %v442
      %v523 = vunpack.c.l.b16 %v443
      %v524 = vunpack.c.l.b16 %v444
      %v525 = vunpack.c.l.b16 %v445
      %v526 = vunpack.c.l.b16 %v446
      %v527 = vunpack.c.l.b16 %v447
      %v528 = vunpack.c.l.b16 %v448
      %v529 = vunpack.c.l.b16 %v449
      %v530 = vunpack.c.l.b16 %v450
      %v531 = vunpack.c.l.b16 %v451
      %v532 = vunpack.c.l.b16 %v452
      %v533 = vunpack.c.l.b16 %v453
      %v534 = vunpack.c.l.b16 %v454
      %v535 = vunpack.c.l.b16 %v455
      %v536 = vunpack.c.l.b16 %v456
      %v537 = vunpack.c.l.b16 %v457
      %v538 = vpack.c.b16 %v507, %v506
      %v539 = vpack.c.b16 %v509, %v508
      %v540 = vpack.c.b16 %v511, %v510
      %v541 = vpack.c.b16 %v513, %v512
      %v542 = vpack.c.b16 %v515, %v514
      %v543 = vpack.c.b16 %v517, %v516
      %v544 = vpack.c.b16 %v519, %v518
      %v545 = vpack.c.b16 %v521, %v520
      %v546 = vpack.c.b16 %v523, %v522
      %v547 = vpack.c.b16 %v525, %v524
      %v548 = vpack.c.b16 %v527, %v526
      %v549 = vpack.c.b16 %v529, %v528
      %v550 = vpack.c.b16 %v531, %v530
      %v551 = vpack.c.b16 %v533, %v532
      %v552 = vpack.c.b16 %v535, %v534
      %v553 = vpack.c.b16 %v537, %v536
      %v574 = vunpack.c.l.b16 %v458
      %v575 = vunpack.c.l.b16 %v459
      %v576 = vunpack.c.l.b16 %v460
      %v577 = vunpack.c.l.b16 %v461
      %v578 = vpack.c.b16 %v575, %v574
      %v579 = vpack.c.b16 %v577, %v576
      %v582 = vunpack.c.h.bf16 %v470
      %v583 = vunpack.c.l.bf16 %v471
      %v584 = vunpack.c.h.bf16 %v471
      %v585 = vunpack.c.l.bf16 %v538
      %v586 = vunpack.c.h.bf16 %v538
      %v587 = vunpack.c.l.bf16 %v539
      %v588 = vunpack.c.h.bf16 %v539
      %v589 = vunpack.c.l.bf16 %v540
      %v590 = vunpack.c.h.bf16 %v540
      %v591 = vunpack.c.l.bf16 %v541
      %v592 = vunpack.c.h.bf16 %v541
      %v593 = vunpack.c.l.bf16 %v542
      %v594 = vunpack.c.h.bf16 %v542
      %v595 = vunpack.c.l.bf16 %v543
      %v596 = vunpack.c.h.bf16 %v543
      %v597 = vunpack.c.l.bf16 %v544
      %v598 = vunpack.c.h.bf16 %v544
      %v599 = vunpack.c.l.bf16 %v545
      %v600 = vunpack.c.h.bf16 %v545
      %v601 = vunpack.c.l.bf16 %v546
      %v602 = vunpack.c.h.bf16 %v546
      %v603 = vunpack.c.l.bf16 %v547
      %v604 = vunpack.c.h.bf16 %v547
      %v605 = vunpack.c.l.bf16 %v548
      %v606 = vunpack.c.h.bf16 %v548
      %v607 = vunpack.c.l.bf16 %v549
      %v608 = vunpack.c.h.bf16 %v549
      %v609 = vunpack.c.l.bf16 %v550
      %v610 = vunpack.c.h.bf16 %v550
      %v611 = vunpack.c.l.bf16 %v551
      %v612 = vunpack.c.h.bf16 %v551
      %v613 = vunpack.c.l.bf16 %v552
      %v614 = vunpack.c.h.bf16 %v552
      %v615 = vunpack.c.l.bf16 %v553
      %v616 = vunpack.c.h.bf16 %v553
      %v617 = vunpack.c.l.bf16 %v578
      %v618 = vunpack.c.h.bf16 %v578
      %v619 = vunpack.c.l.bf16 %v579
      %v620 = vpack.c.bf16 %v583, %v582
      %v621 = vpack.c.bf16 %v585, %v584
      %v622 = vpack.c.bf16 %v587, %v586
      %v623 = vpack.c.bf16 %v589, %v588
      %v624 = vpack.c.bf16 %v591, %v590
      %v625 = vpack.c.bf16 %v593, %v592
      %v626 = vpack.c.bf16 %v595, %v594
      %v627 = vpack.c.bf16 %v597, %v596
      %v628 = vpack.c.bf16 %v599, %v598
      %v629 = vpack.c.bf16 %v601, %v600
      %v630 = vpack.c.bf16 %v603, %v602
      %v631 = vpack.c.bf16 %v605, %v604
      %v632 = vpack.c.bf16 %v607, %v606
      %v633 = vpack.c.bf16 %v609, %v608
      %v634 = vpack.c.bf16 %v611, %v610
      %v635 = vpack.c.bf16 %v613, %v612
      %v636 = vpack.c.bf16 %v614, %v614
      %v637 = vld [vmem:[%s3] sm:$0x3]
      %s638 = scalar_lea.vmem %s3, 2
      %v639 = vld [vmem:[%s638] sm:$0x3]
      %vm657 = vcmask 1044480
      %v658 = vrot.slane %v620, 3
      %v659 = vrot.slane %v621, 3
      %v660 = vsel %vm657, %v658, %v659
      %v661 = vrot.slane %v622, 3
      %v662 = vsel %vm657, %v659, %v661
      %v663 = vrot.slane %v623, 3
      %v664 = vsel %vm657, %v661, %v663
      %v665 = vrot.slane %v624, 3
      %v666 = vsel %vm657, %v663, %v665
      %v667 = vrot.slane %v625, 3
      %v668 = vsel %vm657, %v665, %v667
      %v669 = vrot.slane %v626, 3
      %v670 = vsel %vm657, %v667, %v669
      %v671 = vrot.slane %v627, 3
      %v672 = vsel %vm657, %v669, %v671
      %v673 = vrot.slane %v628, 3
      %v674 = vsel %vm657, %v671, %v673
      %v675 = vrot.slane %v629, 3
      %v676 = vsel %vm657, %v673, %v675
      %v677 = vrot.slane %v630, 3
      %v678 = vsel %vm657, %v675, %v677
      %v679 = vrot.slane %v631, 3
      %v680 = vsel %vm657, %v677, %v679
      %v681 = vrot.slane %v632, 3
      %v682 = vsel %vm657, %v679, %v681
      %v683 = vrot.slane %v633, 3
      %v684 = vsel %vm657, %v681, %v683
      %v685 = vrot.slane %v634, 3
      %v686 = vsel %vm657, %v683, %v685
      %v687 = vrot.slane %v635, 3
      %v688 = vsel %vm657, %v685, %v687
      %v689 = vrot.slane %v636, 3
      %v690 = vsel %vm657, %v687, %v689
      %vm691 = vcmask 31744
      %v693 = vsel %vm691, %v660, 0
      %v696 = vsel %vm691, %v662, 0
      %v699 = vsel %vm691, %v664, 0
      %v702 = vsel %vm691, %v666, 0
      %v705 = vsel %vm691, %v668, 0
      %v708 = vsel %vm691, %v670, 0
      %v711 = vsel %vm691, %v672, 0
      %v714 = vsel %vm691, %v674, 0
      %v717 = vsel %vm691, %v676, 0
      %v720 = vsel %vm691, %v678, 0
      %v723 = vsel %vm691, %v680, 0
      %v726 = vsel %vm691, %v682, 0
      %v729 = vsel %vm691, %v684, 0
      %v732 = vsel %vm691, %v686, 0
      %v735 = vsel %vm691, %v688, 0
      %v738 = vsel %vm691, %v690, 0
      %vm740 = vcmask 1041408
      %v742 = vsel %vm740, %v639, 0
      %744 = vmatpush.bf16.msra.mxu0 0
      %745 = vmatpush.bf16.msra.mxu0 0
      %746 = vmatpush.bf16.msra.mxu0 0
      %747 = vmatpush.bf16.msra.mxu0 0
      %748 = vmatpush.bf16.msra.mxu0 0
      %749 = vmatpush.bf16.msra.mxu0 0
      %750 = vmatpush.bf16.msra.mxu0 0
      %751 = vmatpush.bf16.msra.mxu0 %v742
      %752 = vmatmul.bf16.gmra.mxu0 %v693
      %v753 = vpop.f32.mrf.mxu0
      %v754 = vadd.f32 0.0, %v753
      %v755 = vpop.f32.mrf.mxu0
      %v756 = vadd.f32 0.0, %v755
      %757 = vmatmul.bf16.gmra.mxu0 %v696
      %v758 = vpop.f32.mrf.mxu0
      %v759 = vadd.f32 0.0, %v758
      %v760 = vpop.f32.mrf.mxu0
      %v761 = vadd.f32 0.0, %v760
      %762 = vmatmul.bf16.gmra.mxu0 %v699
      %v763 = vpop.f32.mrf.mxu0
      %v764 = vadd.f32 0.0, %v763
      %v765 = vpop.f32.mrf.mxu0
      %v766 = vadd.f32 0.0, %v765
      %767 = vmatmul.bf16.gmra.mxu0 %v702
      %v768 = vpop.f32.mrf.mxu0
      %v769 = vadd.f32 0.0, %v768
      %v770 = vpop.f32.mrf.mxu0
      %v771 = vadd.f32 0.0, %v770
      %772 = vmatmul.bf16.gmra.mxu0 %v705
      %v773 = vpop.f32.mrf.mxu0
      %v774 = vadd.f32 0.0, %v773
      %v775 = vpop.f32.mrf.mxu0
      %v776 = vadd.f32 0.0, %v775
      %777 = vmatmul.bf16.gmra.mxu0 %v708
      %v778 = vpop.f32.mrf.mxu0
      %v779 = vadd.f32 0.0, %v778
      %v780 = vpop.f32.mrf.mxu0
      %v781 = vadd.f32 0.0, %v780
      %782 = vmatmul.bf16.gmra.mxu0 %v711
      %v783 = vpop.f32.mrf.mxu0
      %v784 = vadd.f32 0.0, %v783
      %v785 = vpop.f32.mrf.mxu0
      %v786 = vadd.f32 0.0, %v785
      %787 = vmatmul.bf16.gmra.mxu0 %v714
      %v788 = vpop.f32.mrf.mxu0
      %v789 = vadd.f32 0.0, %v788
      %v790 = vpop.f32.mrf.mxu0
      %v791 = vadd.f32 0.0, %v790
      %792 = vmatmul.bf16.gmra.mxu0 %v717
      %v793 = vpop.f32.mrf.mxu0
      %v794 = vadd.f32 0.0, %v793
      %v795 = vpop.f32.mrf.mxu0
      %v796 = vadd.f32 0.0, %v795
      %797 = vmatmul.bf16.gmra.mxu0 %v720
      %v798 = vpop.f32.mrf.mxu0
      %v799 = vadd.f32 0.0, %v798
      %v800 = vpop.f32.mrf.mxu0
      %v801 = vadd.f32 0.0, %v800
      %802 = vmatmul.bf16.gmra.mxu0 %v723
      %v803 = vpop.f32.mrf.mxu0
      %v804 = vadd.f32 0.0, %v803
      %v805 = vpop.f32.mrf.mxu0
      %v806 = vadd.f32 0.0, %v805
      %807 = vmatmul.bf16.gmra.mxu0 %v726
      %v808 = vpop.f32.mrf.mxu0
      %v809 = vadd.f32 0.0, %v808
      %v810 = vpop.f32.mrf.mxu0
      %v811 = vadd.f32 0.0, %v810
      %812 = vmatmul.bf16.gmra.mxu0 %v729
      %v813 = vpop.f32.mrf.mxu0
      %v814 = vadd.f32 0.0, %v813
      %v815 = vpop.f32.mrf.mxu0
      %v816 = vadd.f32 0.0, %v815
      %817 = vmatmul.bf16.gmra.mxu0 %v732
      %v818 = vpop.f32.mrf.mxu0
      %v819 = vadd.f32 0.0, %v818
      %v820 = vpop.f32.mrf.mxu0
      %v821 = vadd.f32 0.0, %v820
      %822 = vmatmul.bf16.gmra.mxu0 %v735
      %v823 = vpop.f32.mrf.mxu0
      %v824 = vadd.f32 0.0, %v823
      %v825 = vpop.f32.mrf.mxu0
      %v826 = vadd.f32 0.0, %v825
      %827 = vmatmul.bf16.gmra.mxu0 %v738
      %v828 = vpop.f32.mrf.mxu0
      %v829 = vadd.f32 0.0, %v828
      %v830 = vpop.f32.mrf.mxu0
      %v831 = vadd.f32 0.0, %v830
      %832 = vdwg.mxu0
      %vm833 = vsmask.f32 5376
      %v835 = vshrl.u32 %v620, 16
      %v837 = vrot.slane %v835, 2
      %v838 = vshll.u32 %v620, 16
      %v840 = vrot.slane %v838, 3
      %v841 = vor.u32 %v837, %v840
      %v843 = vshrl.u32 %v621, 16
      %v845 = vrot.slane %v843, 2
      %v846 = vshll.u32 %v621, 16
      %v848 = vrot.slane %v846, 3
      %v849 = vor.u32 %v845, %v848
      %v850 = vsel %vm833, %v841, %v849
      %v852 = vshrl.u32 %v622, 16
      %v854 = vrot.slane %v852, 2
      %v855 = vshll.u32 %v622, 16
      %v857 = vrot.slane %v855, 3
      %v858 = vor.u32 %v854, %v857
      %v859 = vsel %vm833, %v849, %v858
      %v861 = vshrl.u32 %v623, 16
      %v863 = vrot.slane %v861, 2
      %v864 = vshll.u32 %v623, 16
      %v866 = vrot.slane %v864, 3
      %v867 = vor.u32 %v863, %v866
      %v868 = vsel %vm833, %v858, %v867
      %v870 = vshrl.u32 %v624, 16
      %v872 = vrot.slane %v870, 2
      %v873 = vshll.u32 %v624, 16
      %v875 = vrot.slane %v873, 3
      %v876 = vor.u32 %v872, %v875
      %v877 = vsel %vm833, %v867, %v876
      %v879 = vshrl.u32 %v625, 16
      %v881 = vrot.slane %v879, 2
      %v882 = vshll.u32 %v625, 16
      %v884 = vrot.slane %v882, 3
      %v885 = vor.u32 %v881, %v884
      %v886 = vsel %vm833, %v876, %v885
      %v888 = vshrl.u32 %v626, 16
      %v890 = vrot.slane %v888, 2
      %v891 = vshll.u32 %v626, 16
      %v893 = vrot.slane %v891, 3
      %v894 = vor.u32 %v890, %v893
      %v895 = vsel %vm833, %v885, %v894
      %v897 = vshrl.u32 %v627, 16
      %v899 = vrot.slane %v897, 2
      %v900 = vshll.u32 %v627, 16
      %v902 = vrot.slane %v900, 3
      %v903 = vor.u32 %v899, %v902
      %v904 = vsel %vm833, %v894, %v903
      %v906 = vshrl.u32 %v628, 16
      %v908 = vrot.slane %v906, 2
      %v909 = vshll.u32 %v628, 16
      %v911 = vrot.slane %v909, 3
      %v912 = vor.u32 %v908, %v911
      %v913 = vsel %vm833, %v903, %v912
      %v915 = vshrl.u32 %v629, 16
      %v917 = vrot.slane %v915, 2
      %v918 = vshll.u32 %v629, 16
      %v920 = vrot.slane %v918, 3
      %v921 = vor.u32 %v917, %v920
      %v922 = vsel %vm833, %v912, %v921
      %v924 = vshrl.u32 %v630, 16
      %v926 = vrot.slane %v924, 2
      %v927 = vshll.u32 %v630, 16
      %v929 = vrot.slane %v927, 3
      %v930 = vor.u32 %v926, %v929
      %v931 = vsel %vm833, %v921, %v930
      %v933 = vshrl.u32 %v631, 16
      %v935 = vrot.slane %v933, 2
      %v936 = vshll.u32 %v631, 16
      %v938 = vrot.slane %v936, 3
      %v939 = vor.u32 %v935, %v938
      %v940 = vsel %vm833, %v930, %v939
      %v942 = vshrl.u32 %v632, 16
      %v944 = vrot.slane %v942, 2
      %v945 = vshll.u32 %v632, 16
      %v947 = vrot.slane %v945, 3
      %v948 = vor.u32 %v944, %v947
      %v949 = vsel %vm833, %v939, %v948
      %v951 = vshrl.u32 %v633, 16
      %v953 = vrot.slane %v951, 2
      %v954 = vshll.u32 %v633, 16
      %v956 = vrot.slane %v954, 3
      %v957 = vor.u32 %v953, %v956
      %v958 = vsel %vm833, %v948, %v957
      %v960 = vshrl.u32 %v634, 16
      %v962 = vrot.slane %v960, 2
      %v963 = vshll.u32 %v634, 16
      %v965 = vrot.slane %v963, 3
      %v966 = vor.u32 %v962, %v965
      %v967 = vsel %vm833, %v957, %v966
      %v969 = vshrl.u32 %v635, 16
      %v971 = vrot.slane %v969, 2
      %v972 = vshll.u32 %v635, 16
      %v974 = vrot.slane %v972, 3
      %v975 = vor.u32 %v971, %v974
      %v976 = vsel %vm833, %v966, %v975
      %v978 = vshrl.u32 %v636, 16
      %v980 = vrot.slane %v978, 2
      %v981 = vshll.u32 %v636, 16
      %v983 = vrot.slane %v981, 3
      %v984 = vor.u32 %v980, %v983
      %v985 = vsel %vm833, %v975, %v984
      %v987 = vsel %vm691, %v850, 0
      %v990 = vsel %vm691, %v859, 0
      %v993 = vsel %vm691, %v868, 0
      %v996 = vsel %vm691, %v877, 0
      %v999 = vsel %vm691, %v886, 0
      %v1002 = vsel %vm691, %v895, 0
      %v1005 = vsel %vm691, %v904, 0
      %v1008 = vsel %vm691, %v913, 0
      %v1011 = vsel %vm691, %v922, 0
      %v1014 = vsel %vm691, %v931, 0
      %v1017 = vsel %vm691, %v940, 0
      %v1020 = vsel %vm691, %v949, 0
      %v1023 = vsel %vm691, %v958, 0
      %v1026 = vsel %vm691, %v967, 0
      %v1029 = vsel %vm691, %v976, 0
      %v1032 = vsel %vm691, %v985, 0
      %v1035 = vsel %vm740, %v637, 0
      %1037 = vmatpush.bf16.msra.mxu0 0
      %1038 = vmatpush.bf16.msra.mxu0 0
      %1039 = vmatpush.bf16.msra.mxu0 0
      %1040 = vmatpush.bf16.msra.mxu0 0
      %1041 = vmatpush.bf16.msra.mxu0 0
      %1042 = vmatpush.bf16.msra.mxu0 0
      %1043 = vmatpush.bf16.msra.mxu0 0
      %1044 = vmatpush.bf16.msra.mxu0 %v1035
      %1045 = vmatmul.bf16.gmra.mxu0 %v987
      %v1046 = vpop.f32.mrf.mxu0
      %v1047 = vadd.f32 %v754, %v1046
      %v1048 = vpop.f32.mrf.mxu0
      %v1049 = vadd.f32 %v756, %v1048
      %1050 = vmatmul.bf16.gmra.mxu0 %v990
      %v1051 = vpop.f32.mrf.mxu0
      %v1052 = vadd.f32 %v759, %v1051
      %v1053 = vpop.f32.mrf.mxu0
      %v1054 = vadd.f32 %v761, %v1053
      %1055 = vmatmul.bf16.gmra.mxu0 %v993
      %v1056 = vpop.f32.mrf.mxu0
      %v1057 = vadd.f32 %v764, %v1056
      %v1058 = vpop.f32.mrf.mxu0
      %v1059 = vadd.f32 %v766, %v1058
      %1060 = vmatmul.bf16.gmra.mxu0 %v996
      %v1061 = vpop.f32.mrf.mxu0
      %v1062 = vadd.f32 %v769, %v1061
      %v1063 = vpop.f32.mrf.mxu0
      %v1064 = vadd.f32 %v771, %v1063
      %1065 = vmatmul.bf16.gmra.mxu0 %v999
      %v1066 = vpop.f32.mrf.mxu0
      %v1067 = vadd.f32 %v774, %v1066
      %v1068 = vpop.f32.mrf.mxu0
      %v1069 = vadd.f32 %v776, %v1068
      %1070 = vmatmul.bf16.gmra.mxu0 %v1002
      %v1071 = vpop.f32.mrf.mxu0
      %v1072 = vadd.f32 %v779, %v1071
      %v1073 = vpop.f32.mrf.mxu0
      %v1074 = vadd.f32 %v781, %v1073
      %1075 = vmatmul.bf16.gmra.mxu0 %v1005
      %v1076 = vpop.f32.mrf.mxu0
      %v1077 = vadd.f32 %v784, %v1076
      %v1078 = vpop.f32.mrf.mxu0
      %v1079 = vadd.f32 %v786, %v1078
      %1080 = vmatmul.bf16.gmra.mxu0 %v1008
      %v1081 = vpop.f32.mrf.mxu0
      %v1082 = vadd.f32 %v789, %v1081
      %v1083 = vpop.f32.mrf.mxu0
      %v1084 = vadd.f32 %v791, %v1083
      %1085 = vmatmul.bf16.gmra.mxu0 %v1011
      %v1086 = vpop.f32.mrf.mxu0
      %v1087 = vadd.f32 %v794, %v1086
      %v1088 = vpop.f32.mrf.mxu0
      %v1089 = vadd.f32 %v796, %v1088
      %1090 = vmatmul.bf16.gmra.mxu0 %v1014
      %v1091 = vpop.f32.mrf.mxu0
      %v1092 = vadd.f32 %v799, %v1091
      %v1093 = vpop.f32.mrf.mxu0
      %v1094 = vadd.f32 %v801, %v1093
      %1095 = vmatmul.bf16.gmra.mxu0 %v1017
      %v1096 = vpop.f32.mrf.mxu0
      %v1097 = vadd.f32 %v804, %v1096
      %v1098 = vpop.f32.mrf.mxu0
      %v1099 = vadd.f32 %v806, %v1098
      %1100 = vmatmul.bf16.gmra.mxu0 %v1020
      %v1101 = vpop.f32.mrf.mxu0
      %v1102 = vadd.f32 %v809, %v1101
      %v1103 = vpop.f32.mrf.mxu0
      %v1104 = vadd.f32 %v811, %v1103
      %1105 = vmatmul.bf16.gmra.mxu0 %v1023
      %v1106 = vpop.f32.mrf.mxu0
      %v1107 = vadd.f32 %v814, %v1106
      %v1108 = vpop.f32.mrf.mxu0
      %v1109 = vadd.f32 %v816, %v1108
      %1110 = vmatmul.bf16.gmra.mxu0 %v1026
      %v1111 = vpop.f32.mrf.mxu0
      %v1112 = vadd.f32 %v819, %v1111
      %v1113 = vpop.f32.mrf.mxu0
      %v1114 = vadd.f32 %v821, %v1113
      %1115 = vmatmul.bf16.gmra.mxu0 %v1029
      %v1116 = vpop.f32.mrf.mxu0
      %v1117 = vadd.f32 %v824, %v1116
      %v1118 = vpop.f32.mrf.mxu0
      %v1119 = vadd.f32 %v826, %v1118
      %1120 = vmatmul.bf16.gmra.mxu0 %v1032
      %v1121 = vpop.f32.mrf.mxu0
      %v1122 = vadd.f32 %v829, %v1121
      %v1123 = vpop.f32.mrf.mxu0
      %v1124 = vadd.f32 %v831, %v1123
      %1125 = vdwg.mxu0
      %s1126 = scalar_lea.vmem %s3, 4
      %v1127 = vld [vmem:[%s1126] sm:$0x3]
      %vm1128 = vsmask.f32 4352
      %v1129 = vrot.slane %v835, 3
      %v1130 = vrot.slane %v838, 4
      %v1131 = vor.u32 %v1129, %v1130
      %v1132 = vrot.slane %v843, 3
      %v1133 = vrot.slane %v846, 4
      %v1134 = vor.u32 %v1132, %v1133
      %v1135 = vsel %vm1128, %v1131, %v1134
      %v1136 = vrot.slane %v852, 3
      %v1137 = vrot.slane %v855, 4
      %v1138 = vor.u32 %v1136, %v1137
      %v1139 = vsel %vm1128, %v1134, %v1138
      %v1140 = vrot.slane %v861, 3
      %v1141 = vrot.slane %v864, 4
      %v1142 = vor.u32 %v1140, %v1141
      %v1143 = vsel %vm1128, %v1138, %v1142
      %v1144 = vrot.slane %v870, 3
      %v1145 = vrot.slane %v873, 4
      %v1146 = vor.u32 %v1144, %v1145
      %v1147 = vsel %vm1128, %v1142, %v1146
      %v1148 = vrot.slane %v879, 3
      %v1149 = vrot.slane %v882, 4
      %v1150 = vor.u32 %v1148, %v1149
      %v1151 = vsel %vm1128, %v1146, %v1150
      %v1152 = vrot.slane %v888, 3
      %v1153 = vrot.slane %v891, 4
      %v1154 = vor.u32 %v1152, %v1153
      %v1155 = vsel %vm1128, %v1150, %v1154
      %v1156 = vrot.slane %v897, 3
      %v1157 = vrot.slane %v900, 4
      %v1158 = vor.u32 %v1156, %v1157
      %v1159 = vsel %vm1128, %v1154, %v1158
      %v1160 = vrot.slane %v906, 3
      %v1161 = vrot.slane %v909, 4
      %v1162 = vor.u32 %v1160, %v1161
      %v1163 = vsel %vm1128, %v1158, %v1162
      %v1164 = vrot.slane %v915, 3
      %v1165 = vrot.slane %v918, 4
      %v1166 = vor.u32 %v1164, %v1165
      %v1167 = vsel %vm1128, %v1162, %v1166
      %v1168 = vrot.slane %v924, 3
      %v1169 = vrot.slane %v927, 4
      %v1170 = vor.u32 %v1168, %v1169
      %v1171 = vsel %vm1128, %v1166, %v1170
      %v1172 = vrot.slane %v933, 3
      %v1173 = vrot.slane %v936, 4
      %v1174 = vor.u32 %v1172, %v1173
      %v1175 = vsel %vm1128, %v1170, %v1174
      %v1176 = vrot.slane %v942, 3
      %v1177 = vrot.slane %v945, 4
      %v1178 = vor.u32 %v1176, %v1177
      %v1179 = vsel %vm1128, %v1174, %v1178
      %v1180 = vrot.slane %v951, 3
      %v1181 = vrot.slane %v954, 4
      %v1182 = vor.u32 %v1180, %v1181
      %v1183 = vsel %vm1128, %v1178, %v1182
      %v1184 = vrot.slane %v960, 3
      %v1185 = vrot.slane %v963, 4
      %v1186 = vor.u32 %v1184, %v1185
      %v1187 = vsel %vm1128, %v1182, %v1186
      %v1188 = vrot.slane %v969, 3
      %v1189 = vrot.slane %v972, 4
      %v1190 = vor.u32 %v1188, %v1189
      %v1191 = vsel %vm1128, %v1186, %v1190
      %v1192 = vrot.slane %v978, 3
      %v1193 = vrot.slane %v981, 4
      %v1194 = vor.u32 %v1192, %v1193
      %v1195 = vsel %vm1128, %v1190, %v1194
      %v1197 = vsel %vm691, %v1135, 0
      %v1200 = vsel %vm691, %v1139, 0
      %v1203 = vsel %vm691, %v1143, 0
      %v1206 = vsel %vm691, %v1147, 0
      %v1209 = vsel %vm691, %v1151, 0
      %v1212 = vsel %vm691, %v1155, 0
      %v1215 = vsel %vm691, %v1159, 0
      %v1218 = vsel %vm691, %v1163, 0
      %v1221 = vsel %vm691, %v1167, 0
      %v1224 = vsel %vm691, %v1171, 0
      %v1227 = vsel %vm691, %v1175, 0
      %v1230 = vsel %vm691, %v1179, 0
      %v1233 = vsel %vm691, %v1183, 0
      %v1236 = vsel %vm691, %v1187, 0
      %v1239 = vsel %vm691, %v1191, 0
      %v1242 = vsel %vm691, %v1195, 0
      %v1245 = vsel %vm740, %v1127, 0
      %1247 = vmatpush.bf16.msra.mxu0 0
      %1248 = vmatpush.bf16.msra.mxu0 0
      %1249 = vmatpush.bf16.msra.mxu0 0
      %1250 = vmatpush.bf16.msra.mxu0 0
      %1251 = vmatpush.bf16.msra.mxu0 0
      %1252 = vmatpush.bf16.msra.mxu0 0
      %1253 = vmatpush.bf16.msra.mxu0 0
      %1254 = vmatpush.bf16.msra.mxu0 %v1245
      %1255 = vmatmul.bf16.gmra.mxu0 %v1197
      %v1256 = vpop.f32.mrf.mxu0
      %v1257 = vadd.f32 0.0, %v1256
      %v1258 = vpop.f32.mrf.mxu0
      %v1259 = vadd.f32 0.0, %v1258
      %1260 = vmatmul.bf16.gmra.mxu0 %v1200
      %v1261 = vpop.f32.mrf.mxu0
      %v1262 = vadd.f32 0.0, %v1261
      %v1263 = vpop.f32.mrf.mxu0
      %v1264 = vadd.f32 0.0, %v1263
      %1265 = vmatmul.bf16.gmra.mxu0 %v1203
      %v1266 = vpop.f32.mrf.mxu0
      %v1267 = vadd.f32 0.0, %v1266
      %v1268 = vpop.f32.mrf.mxu0
      %v1269 = vadd.f32 0.0, %v1268
      %1270 = vmatmul.bf16.gmra.mxu0 %v1206
      %v1271 = vpop.f32.mrf.mxu0
      %v1272 = vadd.f32 0.0, %v1271
      %v1273 = vpop.f32.mrf.mxu0
      %v1274 = vadd.f32 0.0, %v1273
      %1275 = vmatmul.bf16.gmra.mxu0 %v1209
      %v1276 = vpop.f32.mrf.mxu0
      %v1277 = vadd.f32 0.0, %v1276
      %v1278 = vpop.f32.mrf.mxu0
      %v1279 = vadd.f32 0.0, %v1278
      %1280 = vmatmul.bf16.gmra.mxu0 %v1212
      %v1281 = vpop.f32.mrf.mxu0
      %v1282 = vadd.f32 0.0, %v1281
      %v1283 = vpop.f32.mrf.mxu0
      %v1284 = vadd.f32 0.0, %v1283
      %1285 = vmatmul.bf16.gmra.mxu0 %v1215
      %v1286 = vpop.f32.mrf.mxu0
      %v1287 = vadd.f32 0.0, %v1286
      %v1288 = vpop.f32.mrf.mxu0
      %v1289 = vadd.f32 0.0, %v1288
      %1290 = vmatmul.bf16.gmra.mxu0 %v1218
      %v1291 = vpop.f32.mrf.mxu0
      %v1292 = vadd.f32 0.0, %v1291
      %v1293 = vpop.f32.mrf.mxu0
      %v1294 = vadd.f32 0.0, %v1293
      %1295 = vmatmul.bf16.gmra.mxu0 %v1221
      %v1296 = vpop.f32.mrf.mxu0
      %v1297 = vadd.f32 0.0, %v1296
      %v1298 = vpop.f32.mrf.mxu0
      %v1299 = vadd.f32 0.0, %v1298
      %1300 = vmatmul.bf16.gmra.mxu0 %v1224
      %v1301 = vpop.f32.mrf.mxu0
      %v1302 = vadd.f32 0.0, %v1301
      %v1303 = vpop.f32.mrf.mxu0
      %v1304 = vadd.f32 0.0, %v1303
      %1305 = vmatmul.bf16.gmra.mxu0 %v1227
      %v1306 = vpop.f32.mrf.mxu0
      %v1307 = vadd.f32 0.0, %v1306
      %v1308 = vpop.f32.mrf.mxu0
      %v1309 = vadd.f32 0.0, %v1308
      %1310 = vmatmul.bf16.gmra.mxu0 %v1230
      %v1311 = vpop.f32.mrf.mxu0
      %v1312 = vadd.f32 0.0, %v1311
      %v1313 = vpop.f32.mrf.mxu0
      %v1314 = vadd.f32 0.0, %v1313
      %1315 = vmatmul.bf16.gmra.mxu0 %v1233
      %v1316 = vpop.f32.mrf.mxu0
      %v1317 = vadd.f32 0.0, %v1316
      %v1318 = vpop.f32.mrf.mxu0
      %v1319 = vadd.f32 0.0, %v1318
      %1320 = vmatmul.bf16.gmra.mxu0 %v1236
      %v1321 = vpop.f32.mrf.mxu0
      %v1322 = vadd.f32 0.0, %v1321
      %v1323 = vpop.f32.mrf.mxu0
      %v1324 = vadd.f32 0.0, %v1323
      %1325 = vmatmul.bf16.gmra.mxu0 %v1239
      %v1326 = vpop.f32.mrf.mxu0
      %v1327 = vadd.f32 0.0, %v1326
      %v1328 = vpop.f32.mrf.mxu0
      %v1329 = vadd.f32 0.0, %v1328
      %1330 = vmatmul.bf16.gmra.mxu0 %v1242
      %v1331 = vpop.f32.mrf.mxu0
      %v1332 = vadd.f32 0.0, %v1331
      %v1333 = vpop.f32.mrf.mxu0
      %v1334 = vadd.f32 0.0, %v1333
      %1335 = vdwg.mxu0
      %v1336 = vadd.f32 %v1047, %v1257
      %v1337 = vadd.f32 %v1049, %v1259
      %v1338 = vadd.f32 %v1052, %v1262
      %v1339 = vadd.f32 %v1054, %v1264
      %v1340 = vadd.f32 %v1057, %v1267
      %v1341 = vadd.f32 %v1059, %v1269
      %v1342 = vadd.f32 %v1062, %v1272
      %v1343 = vadd.f32 %v1064, %v1274
      %v1344 = vadd.f32 %v1067, %v1277
      %v1345 = vadd.f32 %v1069, %v1279
      %v1346 = vadd.f32 %v1072, %v1282
      %v1347 = vadd.f32 %v1074, %v1284
      %v1348 = vadd.f32 %v1077, %v1287
      %v1349 = vadd.f32 %v1079, %v1289
      %v1350 = vadd.f32 %v1082, %v1292
      %v1351 = vadd.f32 %v1084, %v1294
      %v1352 = vadd.f32 %v1087, %v1297
      %v1353 = vadd.f32 %v1089, %v1299
      %v1354 = vadd.f32 %v1092, %v1302
      %v1355 = vadd.f32 %v1094, %v1304
      %v1356 = vadd.f32 %v1097, %v1307
      %v1357 = vadd.f32 %v1099, %v1309
      %v1358 = vadd.f32 %v1102, %v1312
      %v1359 = vadd.f32 %v1104, %v1314
      %v1360 = vadd.f32 %v1107, %v1317
      %v1361 = vadd.f32 %v1109, %v1319
      %v1362 = vadd.f32 %v1112, %v1322
      %v1363 = vadd.f32 %v1114, %v1324
      %v1364 = vadd.f32 %v1117, %v1327
      %v1365 = vadd.f32 %v1119, %v1329
      %v1366 = vadd.f32 %v1122, %v1332
      %v1367 = vadd.f32 %v1124, %v1334
      %v1368 = vpack.c.bf16 %v615, %v614
      %v1369 = vpack.c.bf16 %v616, %v616
      %s1370 = scalar_lea.vmem %s3, 6
      %v1371 = vld [vmem:[%s1370] sm:$0x3]
      %v1373 = vshrl.u32 %v1368, 16
      %v1375 = vrot.slane %v1373, 3
      %v1376 = vshll.u32 %v1368, 16
      %v1378 = vrot.slane %v1376, 4
      %v1379 = vor.u32 %v1375, %v1378
      %v1380 = vsel %vm1128, %v1190, %v1379
      %v1382 = vshrl.u32 %v1369, 16
      %v1384 = vrot.slane %v1382, 3
      %v1385 = vshll.u32 %v1369, 16
      %v1387 = vrot.slane %v1385, 4
      %v1388 = vor.u32 %v1384, %v1387
      %v1389 = vsel %vm1128, %v1379, %v1388
      %v1391 = vsel %vm691, %v1380, 0
      %v1394 = vsel %vm691, %v1389, 0
      %v1397 = vsel %vm740, %v1371, 0
      %1399 = vmatpush.bf16.msra.mxu0 0
      %1400 = vmatpush.bf16.msra.mxu0 0
      %1401 = vmatpush.bf16.msra.mxu0 0
      %1402 = vmatpush.bf16.msra.mxu0 0
      %1403 = vmatpush.bf16.msra.mxu0 0
      %1404 = vmatpush.bf16.msra.mxu0 0
      %1405 = vmatpush.bf16.msra.mxu0 0
      %1406 = vmatpush.bf16.msra.mxu0 %v1397
      %1407 = vmatmul.bf16.gmra.mxu0 %v1200
      %v1408 = vpop.f32.mrf.mxu0
      %v1409 = vadd.f32 0.0, %v1408
      %v1410 = vpop.f32.mrf.mxu0
      %v1411 = vadd.f32 0.0, %v1410
      %1412 = vmatmul.bf16.gmra.mxu0 %v1203
      %v1413 = vpop.f32.mrf.mxu0
      %v1414 = vadd.f32 0.0, %v1413
      %v1415 = vpop.f32.mrf.mxu0
      %v1416 = vadd.f32 0.0, %v1415
      %1417 = vmatmul.bf16.gmra.mxu0 %v1206
      %v1418 = vpop.f32.mrf.mxu0
      %v1419 = vadd.f32 0.0, %v1418
      %v1420 = vpop.f32.mrf.mxu0
      %v1421 = vadd.f32 0.0, %v1420
      %1422 = vmatmul.bf16.gmra.mxu0 %v1209
      %v1423 = vpop.f32.mrf.mxu0
      %v1424 = vadd.f32 0.0, %v1423
      %v1425 = vpop.f32.mrf.mxu0
      %v1426 = vadd.f32 0.0, %v1425
      %1427 = vmatmul.bf16.gmra.mxu0 %v1212
      %v1428 = vpop.f32.mrf.mxu0
      %v1429 = vadd.f32 0.0, %v1428
      %v1430 = vpop.f32.mrf.mxu0
      %v1431 = vadd.f32 0.0, %v1430
      %1432 = vmatmul.bf16.gmra.mxu0 %v1215
      %v1433 = vpop.f32.mrf.mxu0
      %v1434 = vadd.f32 0.0, %v1433
      %v1435 = vpop.f32.mrf.mxu0
      %v1436 = vadd.f32 0.0, %v1435
      %1437 = vmatmul.bf16.gmra.mxu0 %v1218
      %v1438 = vpop.f32.mrf.mxu0
      %v1439 = vadd.f32 0.0, %v1438
      %v1440 = vpop.f32.mrf.mxu0
      %v1441 = vadd.f32 0.0, %v1440
      %1442 = vmatmul.bf16.gmra.mxu0 %v1221
      %v1443 = vpop.f32.mrf.mxu0
      %v1444 = vadd.f32 0.0, %v1443
      %v1445 = vpop.f32.mrf.mxu0
      %v1446 = vadd.f32 0.0, %v1445
      %1447 = vmatmul.bf16.gmra.mxu0 %v1224
      %v1448 = vpop.f32.mrf.mxu0
      %v1449 = vadd.f32 0.0, %v1448
      %v1450 = vpop.f32.mrf.mxu0
      %v1451 = vadd.f32 0.0, %v1450
      %1452 = vmatmul.bf16.gmra.mxu0 %v1227
      %v1453 = vpop.f32.mrf.mxu0
      %v1454 = vadd.f32 0.0, %v1453
      %v1455 = vpop.f32.mrf.mxu0
      %v1456 = vadd.f32 0.0, %v1455
      %1457 = vmatmul.bf16.gmra.mxu0 %v1230
      %v1458 = vpop.f32.mrf.mxu0
      %v1459 = vadd.f32 0.0, %v1458
      %v1460 = vpop.f32.mrf.mxu0
      %v1461 = vadd.f32 0.0, %v1460
      %1462 = vmatmul.bf16.gmra.mxu0 %v1233
      %v1463 = vpop.f32.mrf.mxu0
      %v1464 = vadd.f32 0.0, %v1463
      %v1465 = vpop.f32.mrf.mxu0
      %v1466 = vadd.f32 0.0, %v1465
      %1467 = vmatmul.bf16.gmra.mxu0 %v1236
      %v1468 = vpop.f32.mrf.mxu0
      %v1469 = vadd.f32 0.0, %v1468
      %v1470 = vpop.f32.mrf.mxu0
      %v1471 = vadd.f32 0.0, %v1470
      %1472 = vmatmul.bf16.gmra.mxu0 %v1239
      %v1473 = vpop.f32.mrf.mxu0
      %v1474 = vadd.f32 0.0, %v1473
      %v1475 = vpop.f32.mrf.mxu0
      %v1476 = vadd.f32 0.0, %v1475
      %1477 = vmatmul.bf16.gmra.mxu0 %v1391
      %v1478 = vpop.f32.mrf.mxu0
      %v1479 = vadd.f32 0.0, %v1478
      %v1480 = vpop.f32.mrf.mxu0
      %v1481 = vadd.f32 0.0, %v1480
      %1482 = vmatmul.bf16.gmra.mxu0 %v1394
      %v1483 = vpop.f32.mrf.mxu0
      %v1484 = vadd.f32 0.0, %v1483
      %v1485 = vpop.f32.mrf.mxu0
      %v1486 = vadd.f32 0.0, %v1485
      %1487 = vdwg.mxu0
      %v1488 = vadd.f32 %v1336, %v1409
      %v1489 = vadd.f32 %v1337, %v1411
      %v1490 = vadd.f32 %v1338, %v1414
      %v1491 = vadd.f32 %v1339, %v1416
      %v1492 = vadd.f32 %v1340, %v1419
      %v1493 = vadd.f32 %v1341, %v1421
      %v1494 = vadd.f32 %v1342, %v1424
      %v1495 = vadd.f32 %v1343, %v1426
      %v1496 = vadd.f32 %v1344, %v1429
      %v1497 = vadd.f32 %v1345, %v1431
      %v1498 = vadd.f32 %v1346, %v1434
      %v1499 = vadd.f32 %v1347, %v1436
      %v1500 = vadd.f32 %v1348, %v1439
      %v1501 = vadd.f32 %v1349, %v1441
      %v1502 = vadd.f32 %v1350, %v1444
      %v1503 = vadd.f32 %v1351, %v1446
      %v1504 = vadd.f32 %v1352, %v1449
      %v1505 = vadd.f32 %v1353, %v1451
      %v1506 = vadd.f32 %v1354, %v1454
      %v1507 = vadd.f32 %v1355, %v1456
      %v1508 = vadd.f32 %v1356, %v1459
      %v1509 = vadd.f32 %v1357, %v1461
      %v1510 = vadd.f32 %v1358, %v1464
      %v1511 = vadd.f32 %v1359, %v1466
      %v1512 = vadd.f32 %v1360, %v1469
      %v1513 = vadd.f32 %v1361, %v1471
      %v1514 = vadd.f32 %v1362, %v1474
      %v1515 = vadd.f32 %v1363, %v1476
      %v1516 = vadd.f32 %v1364, %v1479
      %v1517 = vadd.f32 %v1365, %v1481
      %v1518 = vadd.f32 %v1366, %v1484
      %v1519 = vadd.f32 %v1367, %v1486
      %v1520 = vpack.c.bf16 %v586, %v585
      %v1521 = vpack.c.bf16 %v588, %v587
      %v1522 = vpack.c.bf16 %v590, %v589
      %v1523 = vpack.c.bf16 %v592, %v591
      %v1524 = vpack.c.bf16 %v594, %v593
      %v1525 = vpack.c.bf16 %v596, %v595
      %v1526 = vpack.c.bf16 %v598, %v597
      %v1527 = vpack.c.bf16 %v600, %v599
      %v1528 = vpack.c.bf16 %v602, %v601
      %v1529 = vpack.c.bf16 %v604, %v603
      %v1530 = vpack.c.bf16 %v606, %v605
      %v1531 = vpack.c.bf16 %v608, %v607
      %v1532 = vpack.c.bf16 %v610, %v609
      %v1533 = vpack.c.bf16 %v612, %v611
      %v1534 = vpack.c.bf16 %v614, %v613
      %v1535 = vpack.c.bf16 %v616, %v615
      %s1536 = scalar_lea.vmem %s3, 8
      %v1537 = vld [vmem:[%s1536] sm:$0x3]
      %v1539 = vsel %vm691, %v1520, 0
      %v1542 = vsel %vm691, %v1521, 0
      %v1545 = vsel %vm691, %v1522, 0
      %v1548 = vsel %vm691, %v1523, 0
      %v1551 = vsel %vm691, %v1524, 0
      %v1554 = vsel %vm691, %v1525, 0
      %v1557 = vsel %vm691, %v1526, 0
      %v1560 = vsel %vm691, %v1527, 0
      %v1563 = vsel %vm691, %v1528, 0
      %v1566 = vsel %vm691, %v1529, 0
      %v1569 = vsel %vm691, %v1530, 0
      %v1572 = vsel %vm691, %v1531, 0
      %v1575 = vsel %vm691, %v1532, 0
      %v1578 = vsel %vm691, %v1533, 0
      %v1581 = vsel %vm691, %v1534, 0
      %v1584 = vsel %vm691, %v1535, 0
      %v1587 = vsel %vm740, %v1537, 0
      %1589 = vmatpush.bf16.msra.mxu0 0
      %1590 = vmatpush.bf16.msra.mxu0 0
      %1591 = vmatpush.bf16.msra.mxu0 0
      %1592 = vmatpush.bf16.msra.mxu0 0
      %1593 = vmatpush.bf16.msra.mxu0 0
      %1594 = vmatpush.bf16.msra.mxu0 0
      %1595 = vmatpush.bf16.msra.mxu0 0
      %1596 = vmatpush.bf16.msra.mxu0 %v1587
      %1597 = vmatmul.bf16.gmra.mxu0 %v1539
      %v1598 = vpop.f32.mrf.mxu0
      %v1599 = vadd.f32 0.0, %v1598
      %v1600 = vpop.f32.mrf.mxu0
      %v1601 = vadd.f32 0.0, %v1600
      %1602 = vmatmul.bf16.gmra.mxu0 %v1542
      %v1603 = vpop.f32.mrf.mxu0
      %v1604 = vadd.f32 0.0, %v1603
      %v1605 = vpop.f32.mrf.mxu0
      %v1606 = vadd.f32 0.0, %v1605
      %1607 = vmatmul.bf16.gmra.mxu0 %v1545
      %v1608 = vpop.f32.mrf.mxu0
      %v1609 = vadd.f32 0.0, %v1608
      %v1610 = vpop.f32.mrf.mxu0
      %v1611 = vadd.f32 0.0, %v1610
      %1612 = vmatmul.bf16.gmra.mxu0 %v1548
      %v1613 = vpop.f32.mrf.mxu0
      %v1614 = vadd.f32 0.0, %v1613
      %v1615 = vpop.f32.mrf.mxu0
      %v1616 = vadd.f32 0.0, %v1615
      %1617 = vmatmul.bf16.gmra.mxu0 %v1551
      %v1618 = vpop.f32.mrf.mxu0
      %v1619 = vadd.f32 0.0, %v1618
      %v1620 = vpop.f32.mrf.mxu0
      %v1621 = vadd.f32 0.0, %v1620
      %1622 = vmatmul.bf16.gmra.mxu0 %v1554
      %v1623 = vpop.f32.mrf.mxu0
      %v1624 = vadd.f32 0.0, %v1623
      %v1625 = vpop.f32.mrf.mxu0
      %v1626 = vadd.f32 0.0, %v1625
      %1627 = vmatmul.bf16.gmra.mxu0 %v1557
      %v1628 = vpop.f32.mrf.mxu0
      %v1629 = vadd.f32 0.0, %v1628
      %v1630 = vpop.f32.mrf.mxu0
      %v1631 = vadd.f32 0.0, %v1630
      %1632 = vmatmul.bf16.gmra.mxu0 %v1560
      %v1633 = vpop.f32.mrf.mxu0
      %v1634 = vadd.f32 0.0, %v1633
      %v1635 = vpop.f32.mrf.mxu0
      %v1636 = vadd.f32 0.0, %v1635
      %1637 = vmatmul.bf16.gmra.mxu0 %v1563
      %v1638 = vpop.f32.mrf.mxu0
      %v1639 = vadd.f32 0.0, %v1638
      %v1640 = vpop.f32.mrf.mxu0
      %v1641 = vadd.f32 0.0, %v1640
      %1642 = vmatmul.bf16.gmra.mxu0 %v1566
      %v1643 = vpop.f32.mrf.mxu0
      %v1644 = vadd.f32 0.0, %v1643
      %v1645 = vpop.f32.mrf.mxu0
      %v1646 = vadd.f32 0.0, %v1645
      %1647 = vmatmul.bf16.gmra.mxu0 %v1569
      %v1648 = vpop.f32.mrf.mxu0
      %v1649 = vadd.f32 0.0, %v1648
      %v1650 = vpop.f32.mrf.mxu0
      %v1651 = vadd.f32 0.0, %v1650
      %1652 = vmatmul.bf16.gmra.mxu0 %v1572
      %v1653 = vpop.f32.mrf.mxu0
      %v1654 = vadd.f32 0.0, %v1653
      %v1655 = vpop.f32.mrf.mxu0
      %v1656 = vadd.f32 0.0, %v1655
      %1657 = vmatmul.bf16.gmra.mxu0 %v1575
      %v1658 = vpop.f32.mrf.mxu0
      %v1659 = vadd.f32 0.0, %v1658
      %v1660 = vpop.f32.mrf.mxu0
      %v1661 = vadd.f32 0.0, %v1660
      %1662 = vmatmul.bf16.gmra.mxu0 %v1578
      %v1663 = vpop.f32.mrf.mxu0
      %v1664 = vadd.f32 0.0, %v1663
      %v1665 = vpop.f32.mrf.mxu0
      %v1666 = vadd.f32 0.0, %v1665
      %1667 = vmatmul.bf16.gmra.mxu0 %v1581
      %v1668 = vpop.f32.mrf.mxu0
      %v1669 = vadd.f32 0.0, %v1668
      %v1670 = vpop.f32.mrf.mxu0
      %v1671 = vadd.f32 0.0, %v1670
      %1672 = vmatmul.bf16.gmra.mxu0 %v1584
      %v1673 = vpop.f32.mrf.mxu0
      %v1674 = vadd.f32 0.0, %v1673
      %v1675 = vpop.f32.mrf.mxu0
      %v1676 = vadd.f32 0.0, %v1675
      %1677 = vdwg.mxu0
      %v1678 = vadd.f32 %v1488, %v1599
      %v1679 = vadd.f32 %v1489, %v1601
      %v1680 = vadd.f32 %v1490, %v1604
      %v1681 = vadd.f32 %v1491, %v1606
      %v1682 = vadd.f32 %v1492, %v1609
      %v1683 = vadd.f32 %v1493, %v1611
      %v1684 = vadd.f32 %v1494, %v1614
      %v1685 = vadd.f32 %v1495, %v1616
      %v1686 = vadd.f32 %v1496, %v1619
      %v1687 = vadd.f32 %v1497, %v1621
      %v1688 = vadd.f32 %v1498, %v1624
      %v1689 = vadd.f32 %v1499, %v1626
      %v1690 = vadd.f32 %v1500, %v1629
      %v1691 = vadd.f32 %v1501, %v1631
      %v1692 = vadd.f32 %v1502, %v1634
      %v1693 = vadd.f32 %v1503, %v1636
      %v1694 = vadd.f32 %v1504, %v1639
      %v1695 = vadd.f32 %v1505, %v1641
      %v1696 = vadd.f32 %v1506, %v1644
      %v1697 = vadd.f32 %v1507, %v1646
      %v1698 = vadd.f32 %v1508, %v1649
      %v1699 = vadd.f32 %v1509, %v1651
      %v1700 = vadd.f32 %v1510, %v1654
      %v1701 = vadd.f32 %v1511, %v1656
      %v1702 = vadd.f32 %v1512, %v1659
      %v1703 = vadd.f32 %v1513, %v1661
      %v1704 = vadd.f32 %v1514, %v1664
      %v1705 = vadd.f32 %v1515, %v1666
      %v1706 = vadd.f32 %v1516, %v1669
      %v1707 = vadd.f32 %v1517, %v1671
      %v1708 = vadd.f32 %v1518, %v1674
      %v1709 = vadd.f32 %v1519, %v1676
      %v1710 = vpack.c.bf16 %v617, %v617
      %s1711 = scalar_lea.vmem %s3, 10
      %v1712 = vld [vmem:[%s1711] sm:$0x3]
      %vm1713 = vsmask.f32 7424
      %v1714 = vshrl.u32 %v1520, 16
      %v1716 = vshll.u32 %v1520, 16
      %v1718 = vrot.slane %v1716, 1
      %v1719 = vor.u32 %v1714, %v1718
      %v1720 = vshll.u32 %v1521, 16
      %v1722 = vrot.slane %v1720, 1
      %v1723 = vsel %vm1713, %v1719, %v1722
      %v1724 = vshrl.u32 %v1521, 16
      %v1726 = vor.u32 %v1724, %v1722
      %v1727 = vshll.u32 %v1522, 16
      %v1729 = vrot.slane %v1727, 1
      %v1730 = vsel %vm1713, %v1726, %v1729
      %v1731 = vshrl.u32 %v1522, 16
      %v1733 = vor.u32 %v1731, %v1729
      %v1734 = vshll.u32 %v1523, 16
      %v1736 = vrot.slane %v1734, 1
      %v1737 = vsel %vm1713, %v1733, %v1736
      %v1738 = vshrl.u32 %v1523, 16
      %v1740 = vor.u32 %v1738, %v1736
      %v1741 = vshll.u32 %v1524, 16
      %v1743 = vrot.slane %v1741, 1
      %v1744 = vsel %vm1713, %v1740, %v1743
      %v1745 = vshrl.u32 %v1524, 16
      %v1747 = vor.u32 %v1745, %v1743
      %v1748 = vshll.u32 %v1525, 16
      %v1750 = vrot.slane %v1748, 1
      %v1751 = vsel %vm1713, %v1747, %v1750
      %v1752 = vshrl.u32 %v1525, 16
      %v1754 = vor.u32 %v1752, %v1750
      %v1755 = vshll.u32 %v1526, 16
      %v1757 = vrot.slane %v1755, 1
      %v1758 = vsel %vm1713, %v1754, %v1757
      %v1759 = vshrl.u32 %v1526, 16
      %v1761 = vor.u32 %v1759, %v1757
      %v1762 = vshll.u32 %v1527, 16
      %v1764 = vrot.slane %v1762, 1
      %v1765 = vsel %vm1713, %v1761, %v1764
      %v1766 = vshrl.u32 %v1527, 16
      %v1768 = vor.u32 %v1766, %v1764
      %v1769 = vshll.u32 %v1528, 16
      %v1771 = vrot.slane %v1769, 1
      %v1772 = vsel %vm1713, %v1768, %v1771
      %v1773 = vshrl.u32 %v1528, 16
      %v1775 = vor.u32 %v1773, %v1771
      %v1776 = vshll.u32 %v1529, 16
      %v1778 = vrot.slane %v1776, 1
      %v1779 = vsel %vm1713, %v1775, %v1778
      %v1780 = vshrl.u32 %v1529, 16
      %v1782 = vor.u32 %v1780, %v1778
      %v1783 = vshll.u32 %v1530, 16
      %v1785 = vrot.slane %v1783, 1
      %v1786 = vsel %vm1713, %v1782, %v1785
      %v1787 = vshrl.u32 %v1530, 16
      %v1789 = vor.u32 %v1787, %v1785
      %v1790 = vshll.u32 %v1531, 16
      %v1792 = vrot.slane %v1790, 1
      %v1793 = vsel %vm1713, %v1789, %v1792
      %v1794 = vshrl.u32 %v1531, 16
      %v1796 = vor.u32 %v1794, %v1792
      %v1797 = vshll.u32 %v1532, 16
      %v1799 = vrot.slane %v1797, 1
      %v1800 = vsel %vm1713, %v1796, %v1799
      %v1801 = vshrl.u32 %v1532, 16
      %v1803 = vor.u32 %v1801, %v1799
      %v1804 = vshll.u32 %v1533, 16
      %v1806 = vrot.slane %v1804, 1
      %v1807 = vsel %vm1713, %v1803, %v1806
      %v1808 = vshrl.u32 %v1533, 16
      %v1810 = vor.u32 %v1808, %v1806
      %v1811 = vshll.u32 %v1534, 16
      %v1813 = vrot.slane %v1811, 1
      %v1814 = vsel %vm1713, %v1810, %v1813
      %v1815 = vshrl.u32 %v1534, 16
      %v1817 = vor.u32 %v1815, %v1813
      %v1818 = vshll.u32 %v1535, 16
      %v1820 = vrot.slane %v1818, 1
      %v1821 = vsel %vm1713, %v1817, %v1820
      %v1822 = vshrl.u32 %v1535, 16
      %v1824 = vor.u32 %v1822, %v1820
      %v1826 = vshll.u32 %v1710, 16
      %v1828 = vrot.slane %v1826, 1
      %v1829 = vsel %vm1713, %v1824, %v1828
      %v1831 = vsel %vm691, %v1723, 0
      %v1834 = vsel %vm691, %v1730, 0
      %v1837 = vsel %vm691, %v1737, 0
      %v1840 = vsel %vm691, %v1744, 0
      %v1843 = vsel %vm691, %v1751, 0
      %v1846 = vsel %vm691, %v1758, 0
      %v1849 = vsel %vm691, %v1765, 0
      %v1852 = vsel %vm691, %v1772, 0
      %v1855 = vsel %vm691, %v1779, 0
      %v1858 = vsel %vm691, %v1786, 0
      %v1861 = vsel %vm691, %v1793, 0
      %v1864 = vsel %vm691, %v1800, 0
      %v1867 = vsel %vm691, %v1807, 0
      %v1870 = vsel %vm691, %v1814, 0
      %v1873 = vsel %vm691, %v1821, 0
      %v1876 = vsel %vm691, %v1829, 0
      %v1879 = vsel %vm740, %v1712, 0
      %1881 = vmatpush.bf16.msra.mxu0 0
      %1882 = vmatpush.bf16.msra.mxu0 0
      %1883 = vmatpush.bf16.msra.mxu0 0
      %1884 = vmatpush.bf16.msra.mxu0 0
      %1885 = vmatpush.bf16.msra.mxu0 0
      %1886 = vmatpush.bf16.msra.mxu0 0
      %1887 = vmatpush.bf16.msra.mxu0 0
      %1888 = vmatpush.bf16.msra.mxu0 %v1879
      %1889 = vmatmul.bf16.gmra.mxu0 %v1831
      %v1890 = vpop.f32.mrf.mxu0
      %v1891 = vadd.f32 0.0, %v1890
      %v1892 = vpop.f32.mrf.mxu0
      %v1893 = vadd.f32 0.0, %v1892
      %1894 = vmatmul.bf16.gmra.mxu0 %v1834
      %v1895 = vpop.f32.mrf.mxu0
      %v1896 = vadd.f32 0.0, %v1895
      %v1897 = vpop.f32.mrf.mxu0
      %v1898 = vadd.f32 0.0, %v1897
      %1899 = vmatmul.bf16.gmra.mxu0 %v1837
      %v1900 = vpop.f32.mrf.mxu0
      %v1901 = vadd.f32 0.0, %v1900
      %v1902 = vpop.f32.mrf.mxu0
      %v1903 = vadd.f32 0.0, %v1902
      %1904 = vmatmul.bf16.gmra.mxu0 %v1840
      %v1905 = vpop.f32.mrf.mxu0
      %v1906 = vadd.f32 0.0, %v1905
      %v1907 = vpop.f32.mrf.mxu0
      %v1908 = vadd.f32 0.0, %v1907
      %1909 = vmatmul.bf16.gmra.mxu0 %v1843
      %v1910 = vpop.f32.mrf.mxu0
      %v1911 = vadd.f32 0.0, %v1910
      %v1912 = vpop.f32.mrf.mxu0
      %v1913 = vadd.f32 0.0, %v1912
      %1914 = vmatmul.bf16.gmra.mxu0 %v1846
      %v1915 = vpop.f32.mrf.mxu0
      %v1916 = vadd.f32 0.0, %v1915
      %v1917 = vpop.f32.mrf.mxu0
      %v1918 = vadd.f32 0.0, %v1917
      %1919 = vmatmul.bf16.gmra.mxu0 %v1849
      %v1920 = vpop.f32.mrf.mxu0
      %v1921 = vadd.f32 0.0, %v1920
      %v1922 = vpop.f32.mrf.mxu0
      %v1923 = vadd.f32 0.0, %v1922
      %1924 = vmatmul.bf16.gmra.mxu0 %v1852
      %v1925 = vpop.f32.mrf.mxu0
      %v1926 = vadd.f32 0.0, %v1925
      %v1927 = vpop.f32.mrf.mxu0
      %v1928 = vadd.f32 0.0, %v1927
      %1929 = vmatmul.bf16.gmra.mxu0 %v1855
      %v1930 = vpop.f32.mrf.mxu0
      %v1931 = vadd.f32 0.0, %v1930
      %v1932 = vpop.f32.mrf.mxu0
      %v1933 = vadd.f32 0.0, %v1932
      %1934 = vmatmul.bf16.gmra.mxu0 %v1858
      %v1935 = vpop.f32.mrf.mxu0
      %v1936 = vadd.f32 0.0, %v1935
      %v1937 = vpop.f32.mrf.mxu0
      %v1938 = vadd.f32 0.0, %v1937
      %1939 = vmatmul.bf16.gmra.mxu0 %v1861
      %v1940 = vpop.f32.mrf.mxu0
      %v1941 = vadd.f32 0.0, %v1940
      %v1942 = vpop.f32.mrf.mxu0
      %v1943 = vadd.f32 0.0, %v1942
      %1944 = vmatmul.bf16.gmra.mxu0 %v1864
      %v1945 = vpop.f32.mrf.mxu0
      %v1946 = vadd.f32 0.0, %v1945
      %v1947 = vpop.f32.mrf.mxu0
      %v1948 = vadd.f32 0.0, %v1947
      %1949 = vmatmul.bf16.gmra.mxu0 %v1867
      %v1950 = vpop.f32.mrf.mxu0
      %v1951 = vadd.f32 0.0, %v1950
      %v1952 = vpop.f32.mrf.mxu0
      %v1953 = vadd.f32 0.0, %v1952
      %1954 = vmatmul.bf16.gmra.mxu0 %v1870
      %v1955 = vpop.f32.mrf.mxu0
      %v1956 = vadd.f32 0.0, %v1955
      %v1957 = vpop.f32.mrf.mxu0
      %v1958 = vadd.f32 0.0, %v1957
      %1959 = vmatmul.bf16.gmra.mxu0 %v1873
      %v1960 = vpop.f32.mrf.mxu0
      %v1961 = vadd.f32 0.0, %v1960
      %v1962 = vpop.f32.mrf.mxu0
      %v1963 = vadd.f32 0.0, %v1962
      %1964 = vmatmul.bf16.gmra.mxu0 %v1876
      %v1965 = vpop.f32.mrf.mxu0
      %v1966 = vadd.f32 0.0, %v1965
      %v1967 = vpop.f32.mrf.mxu0
      %v1968 = vadd.f32 0.0, %v1967
      %1969 = vdwg.mxu0
      %v1970 = vadd.f32 %v1678, %v1891
      %v1971 = vadd.f32 %v1679, %v1893
      %v1972 = vadd.f32 %v1680, %v1896
      %v1973 = vadd.f32 %v1681, %v1898
      %v1974 = vadd.f32 %v1682, %v1901
      %v1975 = vadd.f32 %v1683, %v1903
      %v1976 = vadd.f32 %v1684, %v1906
      %v1977 = vadd.f32 %v1685, %v1908
      %v1978 = vadd.f32 %v1686, %v1911
      %v1979 = vadd.f32 %v1687, %v1913
      %v1980 = vadd.f32 %v1688, %v1916
      %v1981 = vadd.f32 %v1689, %v1918
      %v1982 = vadd.f32 %v1690, %v1921
      %v1983 = vadd.f32 %v1691, %v1923
      %v1984 = vadd.f32 %v1692, %v1926
      %v1985 = vadd.f32 %v1693, %v1928
      %v1986 = vadd.f32 %v1694, %v1931
      %v1987 = vadd.f32 %v1695, %v1933
      %v1988 = vadd.f32 %v1696, %v1936
      %v1989 = vadd.f32 %v1697, %v1938
      %v1990 = vadd.f32 %v1698, %v1941
      %v1991 = vadd.f32 %v1699, %v1943
      %v1992 = vadd.f32 %v1700, %v1946
      %v1993 = vadd.f32 %v1701, %v1948
      %v1994 = vadd.f32 %v1702, %v1951
      %v1995 = vadd.f32 %v1703, %v1953
      %v1996 = vadd.f32 %v1704, %v1956
      %v1997 = vadd.f32 %v1705, %v1958
      %v1998 = vadd.f32 %v1706, %v1961
      %v1999 = vadd.f32 %v1707, %v1963
      %v2000 = vadd.f32 %v1708, %v1966
      %v2001 = vadd.f32 %v1709, %v1968
      %v2002 = vpack.c.bf16 %v618, %v617
      %v2003 = vpack.c.bf16 %v619, %v619
      %s2004 = scalar_lea.vmem %s3, 12
      %v2005 = vld [vmem:[%s2004] sm:$0x3]
      %v2007 = vshll.u32 %v2002, 16
      %v2009 = vrot.slane %v2007, 1
      %v2010 = vsel %vm1713, %v1824, %v2009
      %v2011 = vshrl.u32 %v2002, 16
      %v2013 = vor.u32 %v2011, %v2009
      %v2015 = vshll.u32 %v2003, 16
      %v2017 = vrot.slane %v2015, 1
      %v2018 = vsel %vm1713, %v2013, %v2017
      %v2020 = vsel %vm691, %v2010, 0
      %v2023 = vsel %vm691, %v2018, 0
      %v2026 = vsel %vm740, %v2005, 0
      %2028 = vmatpush.bf16.msra.mxu0 0
      %2029 = vmatpush.bf16.msra.mxu0 0
      %2030 = vmatpush.bf16.msra.mxu0 0
      %2031 = vmatpush.bf16.msra.mxu0 0
      %2032 = vmatpush.bf16.msra.mxu0 0
      %2033 = vmatpush.bf16.msra.mxu0 0
      %2034 = vmatpush.bf16.msra.mxu0 0
      %2035 = vmatpush.bf16.msra.mxu0 %v2026
      %2036 = vmatmul.bf16.gmra.mxu0 %v1834
      %v2037 = vpop.f32.mrf.mxu0
      %v2038 = vadd.f32 0.0, %v2037
      %v2039 = vpop.f32.mrf.mxu0
      %v2040 = vadd.f32 0.0, %v2039
      %2041 = vmatmul.bf16.gmra.mxu0 %v1837
      %v2042 = vpop.f32.mrf.mxu0
      %v2043 = vadd.f32 0.0, %v2042
      %v2044 = vpop.f32.mrf.mxu0
      %v2045 = vadd.f32 0.0, %v2044
      %2046 = vmatmul.bf16.gmra.mxu0 %v1840
      %v2047 = vpop.f32.mrf.mxu0
      %v2048 = vadd.f32 0.0, %v2047
      %v2049 = vpop.f32.mrf.mxu0
      %v2050 = vadd.f32 0.0, %v2049
      %2051 = vmatmul.bf16.gmra.mxu0 %v1843
      %v2052 = vpop.f32.mrf.mxu0
      %v2053 = vadd.f32 0.0, %v2052
      %v2054 = vpop.f32.mrf.mxu0
      %v2055 = vadd.f32 0.0, %v2054
      %2056 = vmatmul.bf16.gmra.mxu0 %v1846
      %v2057 = vpop.f32.mrf.mxu0
      %v2058 = vadd.f32 0.0, %v2057
      %v2059 = vpop.f32.mrf.mxu0
      %v2060 = vadd.f32 0.0, %v2059
      %2061 = vmatmul.bf16.gmra.mxu0 %v1849
      %v2062 = vpop.f32.mrf.mxu0
      %v2063 = vadd.f32 0.0, %v2062
      %v2064 = vpop.f32.mrf.mxu0
      %v2065 = vadd.f32 0.0, %v2064
      %2066 = vmatmul.bf16.gmra.mxu0 %v1852
      %v2067 = vpop.f32.mrf.mxu0
      %v2068 = vadd.f32 0.0, %v2067
      %v2069 = vpop.f32.mrf.mxu0
      %v2070 = vadd.f32 0.0, %v2069
      %2071 = vmatmul.bf16.gmra.mxu0 %v1855
      %v2072 = vpop.f32.mrf.mxu0
      %v2073 = vadd.f32 0.0, %v2072
      %v2074 = vpop.f32.mrf.mxu0
      %v2075 = vadd.f32 0.0, %v2074
      %2076 = vmatmul.bf16.gmra.mxu0 %v1858
      %v2077 = vpop.f32.mrf.mxu0
      %v2078 = vadd.f32 0.0, %v2077
      %v2079 = vpop.f32.mrf.mxu0
      %v2080 = vadd.f32 0.0, %v2079
      %2081 = vmatmul.bf16.gmra.mxu0 %v1861
      %v2082 = vpop.f32.mrf.mxu0
      %v2083 = vadd.f32 0.0, %v2082
      %v2084 = vpop.f32.mrf.mxu0
      %v2085 = vadd.f32 0.0, %v2084
      %2086 = vmatmul.bf16.gmra.mxu0 %v1864
      %v2087 = vpop.f32.mrf.mxu0
      %v2088 = vadd.f32 0.0, %v2087
      %v2089 = vpop.f32.mrf.mxu0
      %v2090 = vadd.f32 0.0, %v2089
      %2091 = vmatmul.bf16.gmra.mxu0 %v1867
      %v2092 = vpop.f32.mrf.mxu0
      %v2093 = vadd.f32 0.0, %v2092
      %v2094 = vpop.f32.mrf.mxu0
      %v2095 = vadd.f32 0.0, %v2094
      %2096 = vmatmul.bf16.gmra.mxu0 %v1870
      %v2097 = vpop.f32.mrf.mxu0
      %v2098 = vadd.f32 0.0, %v2097
      %v2099 = vpop.f32.mrf.mxu0
      %v2100 = vadd.f32 0.0, %v2099
      %2101 = vmatmul.bf16.gmra.mxu0 %v1873
      %v2102 = vpop.f32.mrf.mxu0
      %v2103 = vadd.f32 0.0, %v2102
      %v2104 = vpop.f32.mrf.mxu0
      %v2105 = vadd.f32 0.0, %v2104
      %2106 = vmatmul.bf16.gmra.mxu0 %v2020
      %v2107 = vpop.f32.mrf.mxu0
      %v2108 = vadd.f32 0.0, %v2107
      %v2109 = vpop.f32.mrf.mxu0
      %v2110 = vadd.f32 0.0, %v2109
      %2111 = vmatmul.bf16.gmra.mxu0 %v2023
      %v2112 = vpop.f32.mrf.mxu0
      %v2113 = vadd.f32 0.0, %v2112
      %v2114 = vpop.f32.mrf.mxu0
      %v2115 = vadd.f32 0.0, %v2114
      %2116 = vdwg.mxu0
      %v2117 = vadd.f32 %v1970, %v2038
      %v2118 = vadd.f32 %v1971, %v2040
      %v2119 = vadd.f32 %v1972, %v2043
      %v2120 = vadd.f32 %v1973, %v2045
      %v2121 = vadd.f32 %v1974, %v2048
      %v2122 = vadd.f32 %v1975, %v2050
      %v2123 = vadd.f32 %v1976, %v2053
      %v2124 = vadd.f32 %v1977, %v2055
      %v2125 = vadd.f32 %v1978, %v2058
      %v2126 = vadd.f32 %v1979, %v2060
      %v2127 = vadd.f32 %v1980, %v2063
      %v2128 = vadd.f32 %v1981, %v2065
      %v2129 = vadd.f32 %v1982, %v2068
      %v2130 = vadd.f32 %v1983, %v2070
      %v2131 = vadd.f32 %v1984, %v2073
      %v2132 = vadd.f32 %v1985, %v2075
      %v2133 = vadd.f32 %v1986, %v2078
      %v2134 = vadd.f32 %v1987, %v2080
      %v2135 = vadd.f32 %v1988, %v2083
      %v2136 = vadd.f32 %v1989, %v2085
      %v2137 = vadd.f32 %v1990, %v2088
      %v2138 = vadd.f32 %v1991, %v2090
      %v2139 = vadd.f32 %v1992, %v2093
      %v2140 = vadd.f32 %v1993, %v2095
      %v2141 = vadd.f32 %v1994, %v2098
      %v2142 = vadd.f32 %v1995, %v2100
      %v2143 = vadd.f32 %v1996, %v2103
      %v2144 = vadd.f32 %v1997, %v2105
      %v2145 = vadd.f32 %v1998, %v2108
      %v2146 = vadd.f32 %v1999, %v2110
      %v2147 = vadd.f32 %v2000, %v2113
      %v2148 = vadd.f32 %v2001, %v2115
      %s2149 = scalar_lea.vmem %s3, 14
      %v2150 = vld [vmem:[%s2149] sm:$0x3]
      %vm2168 = vcmask 1046528
      %v2169 = vrot.slane %v1521, 1
      %v2170 = vrot.slane %v1522, 1
      %v2171 = vsel %vm2168, %v2169, %v2170
      %v2172 = vrot.slane %v1523, 1
      %v2173 = vsel %vm2168, %v2170, %v2172
      %v2174 = vrot.slane %v1524, 1
      %v2175 = vsel %vm2168, %v2172, %v2174
      %v2176 = vrot.slane %v1525, 1
      %v2177 = vsel %vm2168, %v2174, %v2176
      %v2178 = vrot.slane %v1526, 1
      %v2179 = vsel %vm2168, %v2176, %v2178
      %v2180 = vrot.slane %v1527, 1
      %v2181 = vsel %vm2168, %v2178, %v2180
      %v2182 = vrot.slane %v1528, 1
      %v2183 = vsel %vm2168, %v2180, %v2182
      %v2184 = vrot.slane %v1529, 1
      %v2185 = vsel %vm2168, %v2182, %v2184
      %v2186 = vrot.slane %v1530, 1
      %v2187 = vsel %vm2168, %v2184, %v2186
      %v2188 = vrot.slane %v1531, 1
      %v2189 = vsel %vm2168, %v2186, %v2188
      %v2190 = vrot.slane %v1532, 1
      %v2191 = vsel %vm2168, %v2188, %v2190
      %v2192 = vrot.slane %v1533, 1
      %v2193 = vsel %vm2168, %v2190, %v2192
      %v2194 = vrot.slane %v1534, 1
      %v2195 = vsel %vm2168, %v2192, %v2194
      %v2196 = vrot.slane %v1535, 1
      %v2197 = vsel %vm2168, %v2194, %v2196
      %v2198 = vrot.slane %v2002, 1
      %v2199 = vsel %vm2168, %v2196, %v2198
      %v2200 = vrot.slane %v2003, 1
      %v2201 = vsel %vm2168, %v2198, %v2200
      %v2203 = vsel %vm691, %v2171, 0
      %v2206 = vsel %vm691, %v2173, 0
      %v2209 = vsel %vm691, %v2175, 0
      %v2212 = vsel %vm691, %v2177, 0
      %v2215 = vsel %vm691, %v2179, 0
      %v2218 = vsel %vm691, %v2181, 0
      %v2221 = vsel %vm691, %v2183, 0
      %v2224 = vsel %vm691, %v2185, 0
      %v2227 = vsel %vm691, %v2187, 0
      %v2230 = vsel %vm691, %v2189, 0
      %v2233 = vsel %vm691, %v2191, 0
      %v2236 = vsel %vm691, %v2193, 0
      %v2239 = vsel %vm691, %v2195, 0
      %v2242 = vsel %vm691, %v2197, 0
      %v2245 = vsel %vm691, %v2199, 0
      %v2248 = vsel %vm691, %v2201, 0
      %v2251 = vsel %vm740, %v2150, 0
      %2253 = vmatpush.bf16.msra.mxu0 0
      %2254 = vmatpush.bf16.msra.mxu0 0
      %2255 = vmatpush.bf16.msra.mxu0 0
      %2256 = vmatpush.bf16.msra.mxu0 0
      %2257 = vmatpush.bf16.msra.mxu0 0
      %2258 = vmatpush.bf16.msra.mxu0 0
      %2259 = vmatpush.bf16.msra.mxu0 0
      %2260 = vmatpush.bf16.msra.mxu0 %v2251
      %2261 = vmatmul.bf16.gmra.mxu0 %v2203
      %v2262 = vpop.f32.mrf.mxu0
      %v2263 = vadd.f32 0.0, %v2262
      %v2264 = vpop.f32.mrf.mxu0
      %v2265 = vadd.f32 0.0, %v2264
      %2266 = vmatmul.bf16.gmra.mxu0 %v2206
      %v2267 = vpop.f32.mrf.mxu0
      %v2268 = vadd.f32 0.0, %v2267
      %v2269 = vpop.f32.mrf.mxu0
      %v2270 = vadd.f32 0.0, %v2269
      %2271 = vmatmul.bf16.gmra.mxu0 %v2209
      %v2272 = vpop.f32.mrf.mxu0
      %v2273 = vadd.f32 0.0, %v2272
      %v2274 = vpop.f32.mrf.mxu0
      %v2275 = vadd.f32 0.0, %v2274
      %2276 = vmatmul.bf16.gmra.mxu0 %v2212
      %v2277 = vpop.f32.mrf.mxu0
      %v2278 = vadd.f32 0.0, %v2277
      %v2279 = vpop.f32.mrf.mxu0
      %v2280 = vadd.f32 0.0, %v2279
      %2281 = vmatmul.bf16.gmra.mxu0 %v2215
      %v2282 = vpop.f32.mrf.mxu0
      %v2283 = vadd.f32 0.0, %v2282
      %v2284 = vpop.f32.mrf.mxu0
      %v2285 = vadd.f32 0.0, %v2284
      %2286 = vmatmul.bf16.gmra.mxu0 %v2218
      %v2287 = vpop.f32.mrf.mxu0
      %v2288 = vadd.f32 0.0, %v2287
      %v2289 = vpop.f32.mrf.mxu0
      %v2290 = vadd.f32 0.0, %v2289
      %2291 = vmatmul.bf16.gmra.mxu0 %v2221
      %v2292 = vpop.f32.mrf.mxu0
      %v2293 = vadd.f32 0.0, %v2292
      %v2294 = vpop.f32.mrf.mxu0
      %v2295 = vadd.f32 0.0, %v2294
      %2296 = vmatmul.bf16.gmra.mxu0 %v2224
      %v2297 = vpop.f32.mrf.mxu0
      %v2298 = vadd.f32 0.0, %v2297
      %v2299 = vpop.f32.mrf.mxu0
      %v2300 = vadd.f32 0.0, %v2299
      %2301 = vmatmul.bf16.gmra.mxu0 %v2227
      %v2302 = vpop.f32.mrf.mxu0
      %v2303 = vadd.f32 0.0, %v2302
      %v2304 = vpop.f32.mrf.mxu0
      %v2305 = vadd.f32 0.0, %v2304
      %2306 = vmatmul.bf16.gmra.mxu0 %v2230
      %v2307 = vpop.f32.mrf.mxu0
      %v2308 = vadd.f32 0.0, %v2307
      %v2309 = vpop.f32.mrf.mxu0
      %v2310 = vadd.f32 0.0, %v2309
      %2311 = vmatmul.bf16.gmra.mxu0 %v2233
      %v2312 = vpop.f32.mrf.mxu0
      %v2313 = vadd.f32 0.0, %v2312
      %v2314 = vpop.f32.mrf.mxu0
      %v2315 = vadd.f32 0.0, %v2314
      %2316 = vmatmul.bf16.gmra.mxu0 %v2236
      %v2317 = vpop.f32.mrf.mxu0
      %v2318 = vadd.f32 0.0, %v2317
      %v2319 = vpop.f32.mrf.mxu0
      %v2320 = vadd.f32 0.0, %v2319
      %2321 = vmatmul.bf16.gmra.mxu0 %v2239
      %v2322 = vpop.f32.mrf.mxu0
      %v2323 = vadd.f32 0.0, %v2322
      %v2324 = vpop.f32.mrf.mxu0
      %v2325 = vadd.f32 0.0, %v2324
      %2326 = vmatmul.bf16.gmra.mxu0 %v2242
      %v2327 = vpop.f32.mrf.mxu0
      %v2328 = vadd.f32 0.0, %v2327
      %v2329 = vpop.f32.mrf.mxu0
      %v2330 = vadd.f32 0.0, %v2329
      %2331 = vmatmul.bf16.gmra.mxu0 %v2245
      %v2332 = vpop.f32.mrf.mxu0
      %v2333 = vadd.f32 0.0, %v2332
      %v2334 = vpop.f32.mrf.mxu0
      %v2335 = vadd.f32 0.0, %v2334
      %2336 = vmatmul.bf16.gmra.mxu0 %v2248
      %v2337 = vpop.f32.mrf.mxu0
      %v2338 = vadd.f32 0.0, %v2337
      %v2339 = vpop.f32.mrf.mxu0
      %v2340 = vadd.f32 0.0, %v2339
      %2341 = vdwg.mxu0
      %v2342 = vadd.f32 %v2117, %v2263
      %v2343 = vadd.f32 %v2118, %v2265
      %v2344 = vadd.f32 %v2119, %v2268
      %v2345 = vadd.f32 %v2120, %v2270
      %v2346 = vadd.f32 %v2121, %v2273
      %v2347 = vadd.f32 %v2122, %v2275
      %v2348 = vadd.f32 %v2123, %v2278
      %v2349 = vadd.f32 %v2124, %v2280
      %v2350 = vadd.f32 %v2125, %v2283
      %v2351 = vadd.f32 %v2126, %v2285
      %v2352 = vadd.f32 %v2127, %v2288
      %v2353 = vadd.f32 %v2128, %v2290
      %v2354 = vadd.f32 %v2129, %v2293
      %v2355 = vadd.f32 %v2130, %v2295
      %v2356 = vadd.f32 %v2131, %v2298
      %v2357 = vadd.f32 %v2132, %v2300
      %v2358 = vadd.f32 %v2133, %v2303
      %v2359 = vadd.f32 %v2134, %v2305
      %v2360 = vadd.f32 %v2135, %v2308
      %v2361 = vadd.f32 %v2136, %v2310
      %v2362 = vadd.f32 %v2137, %v2313
      %v2363 = vadd.f32 %v2138, %v2315
      %v2364 = vadd.f32 %v2139, %v2318
      %v2365 = vadd.f32 %v2140, %v2320
      %v2366 = vadd.f32 %v2141, %v2323
      %v2367 = vadd.f32 %v2142, %v2325
      %v2368 = vadd.f32 %v2143, %v2328
      %v2369 = vadd.f32 %v2144, %v2330
      %v2370 = vadd.f32 %v2145, %v2333
      %v2371 = vadd.f32 %v2146, %v2335
      %v2372 = vadd.f32 %v2147, %v2338
      %v2373 = vadd.f32 %v2148, %v2340
      %s2374 = scalar_lea.vmem %s3, 16
      %v2375 = vld [vmem:[%s2374] sm:$0x3]
      %vm2376 = vsmask.f32 6400
      %v2377 = vrot.slane %v1724, 1
      %v2378 = vrot.slane %v1720, 2
      %v2379 = vor.u32 %v2377, %v2378
      %v2380 = vrot.slane %v1731, 1
      %v2381 = vrot.slane %v1727, 2
      %v2382 = vor.u32 %v2380, %v2381
      %v2383 = vsel %vm2376, %v2379, %v2382
      %v2384 = vrot.slane %v1738, 1
      %v2385 = vrot.slane %v1734, 2
      %v2386 = vor.u32 %v2384, %v2385
      %v2387 = vsel %vm2376, %v2382, %v2386
      %v2388 = vrot.slane %v1745, 1
      %v2389 = vrot.slane %v1741, 2
      %v2390 = vor.u32 %v2388, %v2389
      %v2391 = vsel %vm2376, %v2386, %v2390
      %v2392 = vrot.slane %v1752, 1
      %v2393 = vrot.slane %v1748, 2
      %v2394 = vor.u32 %v2392, %v2393
      %v2395 = vsel %vm2376, %v2390, %v2394
      %v2396 = vrot.slane %v1759, 1
      %v2397 = vrot.slane %v1755, 2
      %v2398 = vor.u32 %v2396, %v2397
      %v2399 = vsel %vm2376, %v2394, %v2398
      %v2400 = vrot.slane %v1766, 1
      %v2401 = vrot.slane %v1762, 2
      %v2402 = vor.u32 %v2400, %v2401
      %v2403 = vsel %vm2376, %v2398, %v2402
      %v2404 = vrot.slane %v1773, 1
      %v2405 = vrot.slane %v1769, 2
      %v2406 = vor.u32 %v2404, %v2405
      %v2407 = vsel %vm2376, %v2402, %v2406
      %v2408 = vrot.slane %v1780, 1
      %v2409 = vrot.slane %v1776, 2
      %v2410 = vor.u32 %v2408, %v2409
      %v2411 = vsel %vm2376, %v2406, %v2410
      %v2412 = vrot.slane %v1787, 1
      %v2413 = vrot.slane %v1783, 2
      %v2414 = vor.u32 %v2412, %v2413
      %v2415 = vsel %vm2376, %v2410, %v2414
      %v2416 = vrot.slane %v1794, 1
      %v2417 = vrot.slane %v1790, 2
      %v2418 = vor.u32 %v2416, %v2417
      %v2419 = vsel %vm2376, %v2414, %v2418
      %v2420 = vrot.slane %v1801, 1
      %v2421 = vrot.slane %v1797, 2
      %v2422 = vor.u32 %v2420, %v2421
      %v2423 = vsel %vm2376, %v2418, %v2422
      %v2424 = vrot.slane %v1808, 1
      %v2425 = vrot.slane %v1804, 2
      %v2426 = vor.u32 %v2424, %v2425
      %v2427 = vsel %vm2376, %v2422, %v2426
      %v2428 = vrot.slane %v1815, 1
      %v2429 = vrot.slane %v1811, 2
      %v2430 = vor.u32 %v2428, %v2429
      %v2431 = vsel %vm2376, %v2426, %v2430
      %v2432 = vrot.slane %v1822, 1
      %v2433 = vrot.slane %v1818, 2
      %v2434 = vor.u32 %v2432, %v2433
      %v2435 = vsel %vm2376, %v2430, %v2434
      %v2436 = vrot.slane %v2011, 1
      %v2437 = vrot.slane %v2007, 2
      %v2438 = vor.u32 %v2436, %v2437
      %v2439 = vsel %vm2376, %v2434, %v2438
      %v2440 = vshrl.u32 %v2003, 16
      %v2442 = vrot.slane %v2440, 1
      %v2443 = vrot.slane %v2015, 2
      %v2444 = vor.u32 %v2442, %v2443
      %v2445 = vsel %vm2376, %v2438, %v2444
      %v2447 = vsel %vm691, %v2383, 0
      %v2450 = vsel %vm691, %v2387, 0
      %v2453 = vsel %vm691, %v2391, 0
      %v2456 = vsel %vm691, %v2395, 0
      %v2459 = vsel %vm691, %v2399, 0
      %v2462 = vsel %vm691, %v2403, 0
      %v2465 = vsel %vm691, %v2407, 0
      %v2468 = vsel %vm691, %v2411, 0
      %v2471 = vsel %vm691, %v2415, 0
      %v2474 = vsel %vm691, %v2419, 0
      %v2477 = vsel %vm691, %v2423, 0
      %v2480 = vsel %vm691, %v2427, 0
      %v2483 = vsel %vm691, %v2431, 0
      %v2486 = vsel %vm691, %v2435, 0
      %v2489 = vsel %vm691, %v2439, 0
      %v2492 = vsel %vm691, %v2445, 0
      %v2495 = vsel %vm740, %v2375, 0
      %2497 = vmatpush.bf16.msra.mxu0 0
      %2498 = vmatpush.bf16.msra.mxu0 0
      %2499 = vmatpush.bf16.msra.mxu0 0
      %2500 = vmatpush.bf16.msra.mxu0 0
      %2501 = vmatpush.bf16.msra.mxu0 0
      %2502 = vmatpush.bf16.msra.mxu0 0
      %2503 = vmatpush.bf16.msra.mxu0 0
      %2504 = vmatpush.bf16.msra.mxu0 %v2495
      %2505 = vmatmul.bf16.gmra.mxu0 %v2447
      %v2506 = vpop.f32.mrf.mxu0
      %v2507 = vadd.f32 0.0, %v2506
      %v2508 = vpop.f32.mrf.mxu0
      %v2509 = vadd.f32 0.0, %v2508
      %2510 = vmatmul.bf16.gmra.mxu0 %v2450
      %v2511 = vpop.f32.mrf.mxu0
      %v2512 = vadd.f32 0.0, %v2511
      %v2513 = vpop.f32.mrf.mxu0
      %v2514 = vadd.f32 0.0, %v2513
      %2515 = vmatmul.bf16.gmra.mxu0 %v2453
      %v2516 = vpop.f32.mrf.mxu0
      %v2517 = vadd.f32 0.0, %v2516
      %v2518 = vpop.f32.mrf.mxu0
      %v2519 = vadd.f32 0.0, %v2518
      %2520 = vmatmul.bf16.gmra.mxu0 %v2456
      %v2521 = vpop.f32.mrf.mxu0
      %v2522 = vadd.f32 0.0, %v2521
      %v2523 = vpop.f32.mrf.mxu0
      %v2524 = vadd.f32 0.0, %v2523
      %2525 = vmatmul.bf16.gmra.mxu0 %v2459
      %v2526 = vpop.f32.mrf.mxu0
      %v2527 = vadd.f32 0.0, %v2526
      %v2528 = vpop.f32.mrf.mxu0
      %v2529 = vadd.f32 0.0, %v2528
      %2530 = vmatmul.bf16.gmra.mxu0 %v2462
      %v2531 = vpop.f32.mrf.mxu0
      %v2532 = vadd.f32 0.0, %v2531
      %v2533 = vpop.f32.mrf.mxu0
      %v2534 = vadd.f32 0.0, %v2533
      %2535 = vmatmul.bf16.gmra.mxu0 %v2465
      %v2536 = vpop.f32.mrf.mxu0
      %v2537 = vadd.f32 0.0, %v2536
      %v2538 = vpop.f32.mrf.mxu0
      %v2539 = vadd.f32 0.0, %v2538
      %2540 = vmatmul.bf16.gmra.mxu0 %v2468
      %v2541 = vpop.f32.mrf.mxu0
      %v2542 = vadd.f32 0.0, %v2541
      %v2543 = vpop.f32.mrf.mxu0
      %v2544 = vadd.f32 0.0, %v2543
      %2545 = vmatmul.bf16.gmra.mxu0 %v2471
      %v2546 = vpop.f32.mrf.mxu0
      %v2547 = vadd.f32 0.0, %v2546
      %v2548 = vpop.f32.mrf.mxu0
      %v2549 = vadd.f32 0.0, %v2548
      %2550 = vmatmul.bf16.gmra.mxu0 %v2474
      %v2551 = vpop.f32.mrf.mxu0
      %v2552 = vadd.f32 0.0, %v2551
      %v2553 = vpop.f32.mrf.mxu0
      %v2554 = vadd.f32 0.0, %v2553
      %2555 = vmatmul.bf16.gmra.mxu0 %v2477
      %v2556 = vpop.f32.mrf.mxu0
      %v2557 = vadd.f32 0.0, %v2556
      %v2558 = vpop.f32.mrf.mxu0
      %v2559 = vadd.f32 0.0, %v2558
      %2560 = vmatmul.bf16.gmra.mxu0 %v2480
      %v2561 = vpop.f32.mrf.mxu0
      %v2562 = vadd.f32 0.0, %v2561
      %v2563 = vpop.f32.mrf.mxu0
      %v2564 = vadd.f32 0.0, %v2563
      %2565 = vmatmul.bf16.gmra.mxu0 %v2483
      %v2566 = vpop.f32.mrf.mxu0
      %v2567 = vadd.f32 0.0, %v2566
      %v2568 = vpop.f32.mrf.mxu0
      %v2569 = vadd.f32 0.0, %v2568
      %2570 = vmatmul.bf16.gmra.mxu0 %v2486
      %v2571 = vpop.f32.mrf.mxu0
      %v2572 = vadd.f32 0.0, %v2571
      %v2573 = vpop.f32.mrf.mxu0
      %v2574 = vadd.f32 0.0, %v2573
      %2575 = vmatmul.bf16.gmra.mxu0 %v2489
      %v2576 = vpop.f32.mrf.mxu0
      %v2577 = vadd.f32 0.0, %v2576
      %v2578 = vpop.f32.mrf.mxu0
      %v2579 = vadd.f32 0.0, %v2578
      %2580 = vmatmul.bf16.gmra.mxu0 %v2492
      %v2581 = vpop.f32.mrf.mxu0
      %v2582 = vadd.f32 0.0, %v2581
      %v2583 = vpop.f32.mrf.mxu0
      %v2584 = vadd.f32 0.0, %v2583
      %2585 = vdwg.mxu0
      %v2586 = vadd.f32 %v2342, %v2507
      %v2587 = vadd.f32 %v2343, %v2509
      %v2588 = vadd.f32 %v2344, %v2512
      %v2589 = vadd.f32 %v2345, %v2514
      %v2590 = vadd.f32 %v2346, %v2517
      %v2591 = vadd.f32 %v2347, %v2519
      %v2592 = vadd.f32 %v2348, %v2522
      %v2593 = vadd.f32 %v2349, %v2524
      %v2594 = vadd.f32 %v2350, %v2527
      %v2595 = vadd.f32 %v2351, %v2529
      %v2596 = vadd.f32 %v2352, %v2532
      %v2597 = vadd.f32 %v2353, %v2534
      %v2598 = vadd.f32 %v2354, %v2537
      %v2599 = vadd.f32 %v2355, %v2539
      %v2600 = vadd.f32 %v2356, %v2542
      %v2601 = vadd.f32 %v2357, %v2544
      %v2602 = vadd.f32 %v2358, %v2547
      %v2603 = vadd.f32 %v2359, %v2549
      %v2604 = vadd.f32 %v2360, %v2552
      %v2605 = vadd.f32 %v2361, %v2554
      %v2606 = vadd.f32 %v2362, %v2557
      %v2607 = vadd.f32 %v2363, %v2559
      %v2608 = vadd.f32 %v2364, %v2562
      %v2609 = vadd.f32 %v2365, %v2564
      %v2610 = vadd.f32 %v2366, %v2567
      %v2611 = vadd.f32 %v2367, %v2569
      %v2612 = vadd.f32 %v2368, %v2572
      %v2613 = vadd.f32 %v2369, %v2574
      %v2614 = vadd.f32 %v2370, %v2577
      %v2615 = vadd.f32 %v2371, %v2579
      %v2616 = vadd.f32 %v2372, %v2582
      %v2617 = vadd.f32 %v2373, %v2584
      %v2618 = vld [vmem:[%s407] sm:$0xff]
      %v2619 = vld [vmem:[%s407 + $0x8] sm:$0xff]
      %v2620 = vld [vmem:[%s407 + $0x10] sm:$0xff]
      %v2621 = vld [vmem:[%s407 + $0x18] sm:$0xff]
      %v2622 = vld [vmem:[%s407 + $0x20] sm:$0xff]
      %v2623 = vld [vmem:[%s407 + $0x28] sm:$0xff]
      %v2624 = vld [vmem:[%s407 + $0x30] sm:$0xff]
      %v2625 = vld [vmem:[%s407 + $0x38] sm:$0xff]
      %v2626 = vld [vmem:[%s407 + $0x40] sm:$0xff]
      %v2627 = vld [vmem:[%s407 + $0x48] sm:$0xff]
      %v2628 = vld [vmem:[%s407 + $0x50] sm:$0xff]
      %v2629 = vld [vmem:[%s407 + $0x58] sm:$0xff]
      %v2630 = vld [vmem:[%s407 + $0x60] sm:$0xff]
      %v2631 = vld [vmem:[%s407 + $0x68] sm:$0xff]
      %v2632 = vld [vmem:[%s407 + $0x70] sm:$0xff]
      %v2633 = vld [vmem:[%s407 + $0x78] sm:$0xff]
      %v2634 = vld [vmem:[%s407 + $0x80] sm:$0xff]
      %v2635 = vld [vmem:[%s407 + $0x88] sm:$0xff]
      %v2636 = vld [vmem:[%s407 + $0x90] sm:$0xff]
      %v2637 = vld [vmem:[%s407 + $0x98] sm:$0xff]
      %v2638 = vld [vmem:[%s407 + $0xa0] sm:$0xff]
      %v2639 = vld [vmem:[%s407 + $0xa8] sm:$0xff]
      %v2640 = vld [vmem:[%s407 + $0xb0] sm:$0xff]
      %v2641 = vld [vmem:[%s407 + $0xb8] sm:$0xff]
      %v2642 = vld [vmem:[%s407 + $0xc0] sm:$0xff]
      %v2643 = vld [vmem:[%s407 + $0xc8] sm:$0xff]
      %v2644 = vld [vmem:[%s407 + $0xd0] sm:$0xff]
      %v2645 = vld [vmem:[%s407 + $0xd8] sm:$0xff]
      %v2646 = vld [vmem:[%s407 + $0xe0] sm:$0xff]
      %v2647 = vld [vmem:[%s407 + $0xe8] sm:$0xff]
      %v2648 = vld [vmem:[%s407 + $0xf0] sm:$0xff]
      %v2649 = vld [vmem:[%s407 + $0xf8] sm:$0xff]
      %vm2650 = vcmp.gt.f32.partialorder %v2618, 0.0
      %vm2651 = vcmp.gt.f32.partialorder %v2619, 0.0
      %vm2652 = vcmp.gt.f32.partialorder %v2620, 0.0
      %vm2653 = vcmp.gt.f32.partialorder %v2621, 0.0
      %vm2654 = vcmp.gt.f32.partialorder %v2622, 0.0
      %vm2655 = vcmp.gt.f32.partialorder %v2623, 0.0
      %vm2656 = vcmp.gt.f32.partialorder %v2624, 0.0
      %vm2657 = vcmp.gt.f32.partialorder %v2625, 0.0
      %vm2658 = vcmp.gt.f32.partialorder %v2626, 0.0
      %vm2659 = vcmp.gt.f32.partialorder %v2627, 0.0
      %vm2660 = vcmp.gt.f32.partialorder %v2628, 0.0
      %vm2661 = vcmp.gt.f32.partialorder %v2629, 0.0
      %vm2662 = vcmp.gt.f32.partialorder %v2630, 0.0
      %vm2663 = vcmp.gt.f32.partialorder %v2631, 0.0
      %vm2664 = vcmp.gt.f32.partialorder %v2632, 0.0
      %vm2665 = vcmp.gt.f32.partialorder %v2633, 0.0
      %vm2666 = vcmp.gt.f32.partialorder %v2634, 0.0
      %vm2667 = vcmp.gt.f32.partialorder %v2635, 0.0
      %vm2668 = vcmp.gt.f32.partialorder %v2636, 0.0
      %vm2669 = vcmp.gt.f32.partialorder %v2637, 0.0
      %vm2670 = vcmp.gt.f32.partialorder %v2638, 0.0
      %vm2671 = vcmp.gt.f32.partialorder %v2639, 0.0
      %vm2672 = vcmp.gt.f32.partialorder %v2640, 0.0
      %vm2673 = vcmp.gt.f32.partialorder %v2641, 0.0
      %vm2674 = vcmp.gt.f32.partialorder %v2642, 0.0
      %vm2675 = vcmp.gt.f32.partialorder %v2643, 0.0
      %vm2676 = vcmp.gt.f32.partialorder %v2644, 0.0
      %vm2677 = vcmp.gt.f32.partialorder %v2645, 0.0
      %vm2678 = vcmp.gt.f32.partialorder %v2646, 0.0
      %vm2679 = vcmp.gt.f32.partialorder %v2647, 0.0
      %vm2680 = vcmp.gt.f32.partialorder %v2648, 0.0
      %vm2681 = vcmp.gt.f32.partialorder %v2649, 0.0
      %v2682 = vsel %vm2650, 1, 0
      %v2683 = vsel %vm2651, 1, 0
      %v2684 = vsel %vm2652, 1, 0
      %v2685 = vsel %vm2653, 1, 0
      %v2686 = vsel %vm2654, 1, 0
      %v2687 = vsel %vm2655, 1, 0
      %v2688 = vsel %vm2656, 1, 0
      %v2689 = vsel %vm2657, 1, 0
      %v2690 = vsel %vm2658, 1, 0
      %v2691 = vsel %vm2659, 1, 0
      %v2692 = vsel %vm2660, 1, 0
      %v2693 = vsel %vm2661, 1, 0
      %v2694 = vsel %vm2662, 1, 0
      %v2695 = vsel %vm2663, 1, 0
      %v2696 = vsel %vm2664, 1, 0
      %v2697 = vsel %vm2665, 1, 0
      %v2698 = vsel %vm2666, 1, 0
      %v2699 = vsel %vm2667, 1, 0
      %v2700 = vsel %vm2668, 1, 0
      %v2701 = vsel %vm2669, 1, 0
      %v2702 = vsel %vm2670, 1, 0
      %v2703 = vsel %vm2671, 1, 0
      %v2704 = vsel %vm2672, 1, 0
      %v2705 = vsel %vm2673, 1, 0
      %v2706 = vsel %vm2674, 1, 0
      %v2707 = vsel %vm2675, 1, 0
      %v2708 = vsel %vm2676, 1, 0
      %v2709 = vsel %vm2677, 1, 0
      %v2710 = vsel %vm2678, 1, 0
      %v2711 = vsel %vm2679, 1, 0
      %v2712 = vsel %vm2680, 1, 0
      %v2713 = vsel %vm2681, 1, 0
      %2714 = vset.pattern.permute.xlu0 0
      %2715 = vperm.xlu0 %2714, %v2682
      %v2716 = vpop.permute.xlu0 %2715
      %2717 = vset.pattern.permute.xlu0 0
      %2718 = vperm.xlu0 %2717, %v2683
      %v2719 = vpop.permute.xlu0 %2718
      %2720 = vset.pattern.permute.xlu0 0
      %2721 = vperm.xlu0 %2720, %v2684
      %v2722 = vpop.permute.xlu0 %2721
      %2723 = vset.pattern.permute.xlu0 0
      %2724 = vperm.xlu0 %2723, %v2685
      %v2725 = vpop.permute.xlu0 %2724
      %2726 = vset.pattern.permute.xlu0 0
      %2727 = vperm.xlu0 %2726, %v2686
      %v2728 = vpop.permute.xlu0 %2727
      %2729 = vset.pattern.permute.xlu0 0
      %2730 = vperm.xlu0 %2729, %v2687
      %v2731 = vpop.permute.xlu0 %2730
      %2732 = vset.pattern.permute.xlu0 0
      %2733 = vperm.xlu0 %2732, %v2688
      %v2734 = vpop.permute.xlu0 %2733
      %2735 = vset.pattern.permute.xlu0 0
      %2736 = vperm.xlu0 %2735, %v2689
      %v2737 = vpop.permute.xlu0 %2736
      %2738 = vset.pattern.permute.xlu0 0
      %2739 = vperm.xlu0 %2738, %v2690
      %v2740 = vpop.permute.xlu0 %2739
      %2741 = vset.pattern.permute.xlu0 0
      %2742 = vperm.xlu0 %2741, %v2691
      %v2743 = vpop.permute.xlu0 %2742
      %2744 = vset.pattern.permute.xlu0 0
      %2745 = vperm.xlu0 %2744, %v2692
      %v2746 = vpop.permute.xlu0 %2745
      %2747 = vset.pattern.permute.xlu0 0
      %2748 = vperm.xlu0 %2747, %v2693
      %v2749 = vpop.permute.xlu0 %2748
      %2750 = vset.pattern.permute.xlu0 0
      %2751 = vperm.xlu0 %2750, %v2694
      %v2752 = vpop.permute.xlu0 %2751
      %2753 = vset.pattern.permute.xlu0 0
      %2754 = vperm.xlu0 %2753, %v2695
      %v2755 = vpop.permute.xlu0 %2754
      %2756 = vset.pattern.permute.xlu0 0
      %2757 = vperm.xlu0 %2756, %v2696
      %v2758 = vpop.permute.xlu0 %2757
      %2759 = vset.pattern.permute.xlu0 0
      %2760 = vperm.xlu0 %2759, %v2697
      %v2761 = vpop.permute.xlu0 %2760
      %2762 = vset.pattern.permute.xlu0 0
      %2763 = vperm.xlu0 %2762, %v2698
      %v2764 = vpop.permute.xlu0 %2763
      %2765 = vset.pattern.permute.xlu0 0
      %2766 = vperm.xlu0 %2765, %v2699
      %v2767 = vpop.permute.xlu0 %2766
      %2768 = vset.pattern.permute.xlu0 0
      %2769 = vperm.xlu0 %2768, %v2700
      %v2770 = vpop.permute.xlu0 %2769
      %2771 = vset.pattern.permute.xlu0 0
      %2772 = vperm.xlu0 %2771, %v2701
      %v2773 = vpop.permute.xlu0 %2772
      %2774 = vset.pattern.permute.xlu0 0
      %2775 = vperm.xlu0 %2774, %v2702
      %v2776 = vpop.permute.xlu0 %2775
      %2777 = vset.pattern.permute.xlu0 0
      %2778 = vperm.xlu0 %2777, %v2703
      %v2779 = vpop.permute.xlu0 %2778
      %2780 = vset.pattern.permute.xlu0 0
      %2781 = vperm.xlu0 %2780, %v2704
      %v2782 = vpop.permute.xlu0 %2781
      %2783 = vset.pattern.permute.xlu0 0
      %2784 = vperm.xlu0 %2783, %v2705
      %v2785 = vpop.permute.xlu0 %2784
      %2786 = vset.pattern.permute.xlu0 0
      %2787 = vperm.xlu0 %2786, %v2706
      %v2788 = vpop.permute.xlu0 %2787
      %2789 = vset.pattern.permute.xlu0 0
      %2790 = vperm.xlu0 %2789, %v2707
      %v2791 = vpop.permute.xlu0 %2790
      %2792 = vset.pattern.permute.xlu0 0
      %2793 = vperm.xlu0 %2792, %v2708
      %v2794 = vpop.permute.xlu0 %2793
      %2795 = vset.pattern.permute.xlu0 0
      %2796 = vperm.xlu0 %2795, %v2709
      %v2797 = vpop.permute.xlu0 %2796
      %2798 = vset.pattern.permute.xlu0 0
      %2799 = vperm.xlu0 %2798, %v2710
      %v2800 = vpop.permute.xlu0 %2799
      %2801 = vset.pattern.permute.xlu0 0
      %2802 = vperm.xlu0 %2801, %v2711
      %v2803 = vpop.permute.xlu0 %2802
      %2804 = vset.pattern.permute.xlu0 0
      %2805 = vperm.xlu0 %2804, %v2712
      %v2806 = vpop.permute.xlu0 %2805
      %2807 = vset.pattern.permute.xlu0 0
      %2808 = vperm.xlu0 %2807, %v2713
      %v2809 = vpop.permute.xlu0 %2808
      %vm2810 = vcmp.eq.s32.totalorder %v2716, 1
      %vm2811 = vcmp.eq.s32.totalorder %v2719, 1
      %vm2812 = vcmp.eq.s32.totalorder %v2722, 1
      %vm2813 = vcmp.eq.s32.totalorder %v2725, 1
      %vm2814 = vcmp.eq.s32.totalorder %v2728, 1
      %vm2815 = vcmp.eq.s32.totalorder %v2731, 1
      %vm2816 = vcmp.eq.s32.totalorder %v2734, 1
      %vm2817 = vcmp.eq.s32.totalorder %v2737, 1
      %vm2818 = vcmp.eq.s32.totalorder %v2740, 1
      %vm2819 = vcmp.eq.s32.totalorder %v2743, 1
      %vm2820 = vcmp.eq.s32.totalorder %v2746, 1
      %vm2821 = vcmp.eq.s32.totalorder %v2749, 1
      %vm2822 = vcmp.eq.s32.totalorder %v2752, 1
      %vm2823 = vcmp.eq.s32.totalorder %v2755, 1
      %vm2824 = vcmp.eq.s32.totalorder %v2758, 1
      %vm2825 = vcmp.eq.s32.totalorder %v2761, 1
      %vm2826 = vcmp.eq.s32.totalorder %v2764, 1
      %vm2827 = vcmp.eq.s32.totalorder %v2767, 1
      %vm2828 = vcmp.eq.s32.totalorder %v2770, 1
      %vm2829 = vcmp.eq.s32.totalorder %v2773, 1
      %vm2830 = vcmp.eq.s32.totalorder %v2776, 1
      %vm2831 = vcmp.eq.s32.totalorder %v2779, 1
      %vm2832 = vcmp.eq.s32.totalorder %v2782, 1
      %vm2833 = vcmp.eq.s32.totalorder %v2785, 1
      %vm2834 = vcmp.eq.s32.totalorder %v2788, 1
      %vm2835 = vcmp.eq.s32.totalorder %v2791, 1
      %vm2836 = vcmp.eq.s32.totalorder %v2794, 1
      %vm2837 = vcmp.eq.s32.totalorder %v2797, 1
      %vm2838 = vcmp.eq.s32.totalorder %v2800, 1
      %vm2839 = vcmp.eq.s32.totalorder %v2803, 1
      %vm2840 = vcmp.eq.s32.totalorder %v2806, 1
      %vm2841 = vcmp.eq.s32.totalorder %v2809, 1
      %v2842 = vsel %vm2810, %v2586, 0.0
      %v2843 = vsel %vm2811, %v2587, 0.0
      %v2844 = vsel %vm2812, %v2588, 0.0
      %v2845 = vsel %vm2813, %v2589, 0.0
      %v2846 = vsel %vm2814, %v2590, 0.0
      %v2847 = vsel %vm2815, %v2591, 0.0
      %v2848 = vsel %vm2816, %v2592, 0.0
      %v2849 = vsel %vm2817, %v2593, 0.0
      %v2850 = vsel %vm2818, %v2594, 0.0
      %v2851 = vsel %vm2819, %v2595, 0.0
      %v2852 = vsel %vm2820, %v2596, 0.0
      %v2853 = vsel %vm2821, %v2597, 0.0
      %v2854 = vsel %vm2822, %v2598, 0.0
      %v2855 = vsel %vm2823, %v2599, 0.0
      %v2856 = vsel %vm2824, %v2600, 0.0
      %v2857 = vsel %vm2825, %v2601, 0.0
      %v2858 = vsel %vm2826, %v2602, 0.0
      %v2859 = vsel %vm2827, %v2603, 0.0
      %v2860 = vsel %vm2828, %v2604, 0.0
      %v2861 = vsel %vm2829, %v2605, 0.0
      %v2862 = vsel %vm2830, %v2606, 0.0
      %v2863 = vsel %vm2831, %v2607, 0.0
      %v2864 = vsel %vm2832, %v2608, 0.0
      %v2865 = vsel %vm2833, %v2609, 0.0
      %v2866 = vsel %vm2834, %v2610, 0.0
      %v2867 = vsel %vm2835, %v2611, 0.0
      %v2868 = vsel %vm2836, %v2612, 0.0
      %v2869 = vsel %vm2837, %v2613, 0.0
      %v2870 = vsel %vm2838, %v2614, 0.0
      %v2871 = vsel %vm2839, %v2615, 0.0
      %v2872 = vsel %vm2840, %v2616, 0.0
      %v2873 = vsel %vm2841, %v2617, 0.0
      %v2874 = vpack.c.bf16 %v2586, %v2586
      %v2875 = vpack.c.bf16 %v2587, %v2587
      %v2876 = vpack.c.bf16 %v2588, %v2588
      %v2877 = vpack.c.bf16 %v2589, %v2589
      %v2878 = vpack.c.bf16 %v2590, %v2590
      %v2879 = vpack.c.bf16 %v2591, %v2591
      %v2880 = vpack.c.bf16 %v2592, %v2592
      %v2881 = vpack.c.bf16 %v2593, %v2593
      %v2882 = vpack.c.bf16 %v2594, %v2594
      %v2883 = vpack.c.bf16 %v2595, %v2595
      %v2884 = vpack.c.bf16 %v2596, %v2596
      %v2885 = vpack.c.bf16 %v2597, %v2597
      %v2886 = vpack.c.bf16 %v2598, %v2598
      %v2887 = vpack.c.bf16 %v2599, %v2599
      %v2888 = vpack.c.bf16 %v2600, %v2600
      %v2889 = vpack.c.bf16 %v2601, %v2601
      %v2890 = vpack.c.bf16 %v2602, %v2602
      %v2891 = vpack.c.bf16 %v2603, %v2603
      %v2892 = vpack.c.bf16 %v2604, %v2604
      %v2893 = vpack.c.bf16 %v2605, %v2605
      %v2894 = vpack.c.bf16 %v2606, %v2606
      %v2895 = vpack.c.bf16 %v2607, %v2607
      %v2896 = vpack.c.bf16 %v2608, %v2608
      %v2897 = vpack.c.bf16 %v2609, %v2609
      %v2898 = vpack.c.bf16 %v2610, %v2610
      %v2899 = vpack.c.bf16 %v2611, %v2611
      %v2900 = vpack.c.bf16 %v2612, %v2612
      %v2901 = vpack.c.bf16 %v2613, %v2613
      %v2902 = vpack.c.bf16 %v2614, %v2614
      %v2903 = vpack.c.bf16 %v2615, %v2615
      %v2904 = vpack.c.bf16 %v2616, %v2616
      %v2905 = vpack.c.bf16 %v2617, %v2617
      %2906 = vst [vmem:[%s413] sm:$0xf] %v2874
      %2907 = vst [vmem:[%s413 + $0x4] sm:$0xf] %v2875
      %2908 = vst [vmem:[%s413 + $0x8] sm:$0xf] %v2876
      %2909 = vst [vmem:[%s413 + $0xc] sm:$0xf] %v2877
      %2910 = vst [vmem:[%s413 + $0x10] sm:$0xf] %v2878
      %2911 = vst [vmem:[%s413 + $0x14] sm:$0xf] %v2879
      %2912 = vst [vmem:[%s413 + $0x18] sm:$0xf] %v2880
      %2913 = vst [vmem:[%s413 + $0x1c] sm:$0xf] %v2881
      %2914 = vst [vmem:[%s413 + $0x20] sm:$0xf] %v2882
      %2915 = vst [vmem:[%s413 + $0x24] sm:$0xf] %v2883
      %2916 = vst [vmem:[%s413 + $0x28] sm:$0xf] %v2884
      %2917 = vst [vmem:[%s413 + $0x2c] sm:$0xf] %v2885
      %2918 = vst [vmem:[%s413 + $0x30] sm:$0xf] %v2886
      %2919 = vst [vmem:[%s413 + $0x34] sm:$0xf] %v2887
      %2920 = vst [vmem:[%s413 + $0x38] sm:$0xf] %v2888
      %2921 = vst [vmem:[%s413 + $0x3c] sm:$0xf] %v2889
      %2922 = vst [vmem:[%s413 + $0x40] sm:$0xf] %v2890
      %2923 = vst [vmem:[%s413 + $0x44] sm:$0xf] %v2891
      %2924 = vst [vmem:[%s413 + $0x48] sm:$0xf] %v2892
      %2925 = vst [vmem:[%s413 + $0x4c] sm:$0xf] %v2893
      %2926 = vst [vmem:[%s413 + $0x50] sm:$0xf] %v2894
      %2927 = vst [vmem:[%s413 + $0x54] sm:$0xf] %v2895
      %2928 = vst [vmem:[%s413 + $0x58] sm:$0xf] %v2896
      %2929 = vst [vmem:[%s413 + $0x5c] sm:$0xf] %v2897
      %2930 = vst [vmem:[%s413 + $0x60] sm:$0xf] %v2898
      %2931 = vst [vmem:[%s413 + $0x64] sm:$0xf] %v2899
      %2932 = vst [vmem:[%s413 + $0x68] sm:$0xf] %v2900
      %2933 = vst [vmem:[%s413 + $0x6c] sm:$0xf] %v2901
      %2934 = vst [vmem:[%s413 + $0x70] sm:$0xf] %v2902
      %2935 = vst [vmem:[%s413 + $0x74] sm:$0xf] %v2903
      %2936 = vst [vmem:[%s413 + $0x78] sm:$0xf] %v2904
      %2937 = vst [vmem:[%s413 + $0x7c] sm:$0xf] %v2905
      %v2938 = vadd.f32 %v2842, %v2843
      %v2939 = vadd.f32 %v2938, %v2844
      %v2940 = vadd.f32 %v2939, %v2845
      %v2941 = vadd.f32 %v2940, %v2846
      %v2942 = vadd.f32 %v2941, %v2847
      %v2943 = vadd.f32 %v2942, %v2848
      %v2944 = vadd.f32 %v2943, %v2849
      %v2945 = vadd.f32 %v2944, %v2850
      %v2946 = vadd.f32 %v2945, %v2851
      %v2947 = vadd.f32 %v2946, %v2852
      %v2948 = vadd.f32 %v2947, %v2853
      %v2949 = vadd.f32 %v2948, %v2854
      %v2950 = vadd.f32 %v2949, %v2855
      %v2951 = vadd.f32 %v2950, %v2856
      %v2952 = vadd.f32 %v2951, %v2857
      %v2953 = vadd.f32 %v2952, %v2858
      %v2954 = vadd.f32 %v2953, %v2859
      %v2955 = vadd.f32 %v2954, %v2860
      %v2956 = vadd.f32 %v2955, %v2861
      %v2957 = vadd.f32 %v2956, %v2862
      %v2958 = vadd.f32 %v2957, %v2863
      %v2959 = vadd.f32 %v2958, %v2864
      %v2960 = vadd.f32 %v2959, %v2865
      %v2961 = vadd.f32 %v2960, %v2866
      %v2962 = vadd.f32 %v2961, %v2867
      %v2963 = vadd.f32 %v2962, %v2868
      %v2964 = vadd.f32 %v2963, %v2869
      %v2965 = vadd.f32 %v2964, %v2870
      %v2966 = vadd.f32 %v2965, %v2871
      %v2967 = vadd.f32 %v2966, %v2872
      %v2968 = vadd.f32 %v2967, %v2873
      %v2969 = vrot.slane %v2968, 4
      %v2970 = vadd.f32 %v2968, %v2969
      %v2971 = vrot.slane %v2970, 2
      %v2972 = vadd.f32 %v2970, %v2971
      %v2973 = vrot.slane %v2972, 1
      %v2974 = vadd.f32 %v2972, %v2973
      %2975 = vst [vmem:[%s417] sm:$0x1] %v2974
      %v2976 = vmul.f32 %v2842, %v2842
      %v2977 = vmul.f32 %v2843, %v2843
      %v2978 = vmul.f32 %v2844, %v2844
      %v2979 = vmul.f32 %v2845, %v2845
      %v2980 = vmul.f32 %v2846, %v2846
      %v2981 = vmul.f32 %v2847, %v2847
      %v2982 = vmul.f32 %v2848, %v2848
      %v2983 = vmul.f32 %v2849, %v2849
      %v2984 = vmul.f32 %v2850, %v2850
      %v2985 = vmul.f32 %v2851, %v2851
      %v2986 = vmul.f32 %v2852, %v2852
      %v2987 = vmul.f32 %v2853, %v2853
      %v2988 = vmul.f32 %v2854, %v2854
      %v2989 = vmul.f32 %v2855, %v2855
      %v2990 = vmul.f32 %v2856, %v2856
      %v2991 = vmul.f32 %v2857, %v2857
      %v2992 = vmul.f32 %v2858, %v2858
      %v2993 = vmul.f32 %v2859, %v2859
      %v2994 = vmul.f32 %v2860, %v2860
      %v2995 = vmul.f32 %v2861, %v2861
      %v2996 = vmul.f32 %v2862, %v2862
      %v2997 = vmul.f32 %v2863, %v2863
      %v2998 = vmul.f32 %v2864, %v2864
      %v2999 = vmul.f32 %v2865, %v2865
      %v3000 = vmul.f32 %v2866, %v2866
      %v3001 = vmul.f32 %v2867, %v2867
      %v3002 = vmul.f32 %v2868, %v2868
      %v3003 = vmul.f32 %v2869, %v2869
      %v3004 = vmul.f32 %v2870, %v2870
      %v3005 = vmul.f32 %v2871, %v2871
      %v3006 = vmul.f32 %v2872, %v2872
      %v3007 = vmul.f32 %v2873, %v2873
      %v3008 = vadd.f32 %v2976, %v2977
      %v3009 = vadd.f32 %v3008, %v2978
      %v3010 = vadd.f32 %v3009, %v2979
      %v3011 = vadd.f32 %v3010, %v2980
      %v3012 = vadd.f32 %v3011, %v2981
      %v3013 = vadd.f32 %v3012, %v2982
      %v3014 = vadd.f32 %v3013, %v2983
      %v3015 = vadd.f32 %v3014, %v2984
      %v3016 = vadd.f32 %v3015, %v2985
      %v3017 = vadd.f32 %v3016, %v2986
      %v3018 = vadd.f32 %v3017, %v2987
      %v3019 = vadd.f32 %v3018, %v2988
      %v3020 = vadd.f32 %v3019, %v2989
      %v3021 = vadd.f32 %v3020, %v2990
      %v3022 = vadd.f32 %v3021, %v2991
      %v3023 = vadd.f32 %v3022, %v2992
      %v3024 = vadd.f32 %v3023, %v2993
      %v3025 = vadd.f32 %v3024, %v2994
      %v3026 = vadd.f32 %v3025, %v2995
      %v3027 = vadd.f32 %v3026, %v2996
      %v3028 = vadd.f32 %v3027, %v2997
      %v3029 = vadd.f32 %v3028, %v2998
      %v3030 = vadd.f32 %v3029, %v2999
      %v3031 = vadd.f32 %v3030, %v3000
      %v3032 = vadd.f32 %v3031, %v3001
      %v3033 = vadd.f32 %v3032, %v3002
      %v3034 = vadd.f32 %v3033, %v3003
      %v3035 = vadd.f32 %v3034, %v3004
      %v3036 = vadd.f32 %v3035, %v3005
      %v3037 = vadd.f32 %v3036, %v3006
      %v3038 = vadd.f32 %v3037, %v3007
      %v3039 = vrot.slane %v3038, 4
      %v3040 = vadd.f32 %v3038, %v3039
      %v3041 = vrot.slane %v3040, 2
      %v3042 = vadd.f32 %v3040, %v3041
      %v3043 = vrot.slane %v3042, 1
      %v3044 = vadd.f32 %v3042, %v3043
      %3045 = vst [vmem:[%s420] sm:$0x1] %v3044
      %s3046 = smul.u32 32, %s19
      %p3047 = scmp.lt.s32.totalorder %s3046, 95
      %s3048 = scalar_select %p3047, %s3046, 95
      %s3049 = smul.addr %s3048, 4
      %s3050 = scalar_lea.vmem %s5, %s3049
      %p3051 = scmp.lt.s32.totalorder %s19, 2
      %s3052 = scalar_select %p3051, %s19, 2
      %s3053 = scalar_lea.vmem %s6, %s3052
      %p3054 = scmp.lt.s32.totalorder %s19, 2
      %s3055 = scalar_select %p3054, %s19, 2
      %s3056 = scalar_lea.vmem %s7, %s3055
      // Predicated region
      $region41: #{basic_block_forward.4} parent=39 // pred_check
        %p3057 = pneg %p178
      $region42: #{basic_block_forward.4} parent=39 // pred_check_branch
        %3059 = sbr.rel (%p3057) target = $region44
      $region43: #{basic_block_forward.4} parent=39 // pred_region
        %s3060 = smul.u32 32, %s19
      $region44: #{basic_block_forward.4} parent=39 // pred_fallthru
        _
      // Predicated region
      $region45: #{basic_block_forward.4} parent=39 // pred_check
        %p3061 = pneg %p204
      $region46: #{basic_block_forward.4} parent=39 // pred_check_branch
        %3063 = sbr.rel (%p3061) target = $region48
      $region47: #{basic_block_forward.4} parent=39 // pred_region
        _
      $region48: #{basic_block_forward.4} parent=39 // pred_fallthru
        _
      // Predicated region
      $region49: #{basic_block_forward.4} parent=39 // pred_check
        %p3064 = pneg %p230
      $region50: #{basic_block_forward.4} parent=39 // pred_check_branch
        %3066 = sbr.rel (%p3064) target = $region52
      $region51: #{basic_block_forward.4} parent=39 // pred_region
        _
      $region52: #{basic_block_forward.4} parent=39 // pred_fallthru
        _
    $region40: #{basic_block_forward.4} parent=5 // pred_fallthru
      _
    %p3067 = scmp.le.s32.totalorder 2, %s14
    // Predicated region
    $region53: #{basic_block_forward.4} parent=5 // pred_check
      %p3068 = pneg %p3067
    $region54: #{basic_block_forward.4} parent=5 // pred_check_branch
      %3070 = sbr.rel (%p3068) target = $region56
    $region55: #{basic_block_forward.4} parent=5 // pred_region
      %s3071 = ssub.s32 %s14, 2
      // Predicated region
      $region57: #{basic_block_forward.4} parent=55 // pred_check
        %p3072 = pneg %p184
      $region58: #{basic_block_forward.4} parent=55 // pred_check_branch
        %3074 = sbr.rel (%p3072) target = $region60
      $region59: #{basic_block_forward.4} parent=55 // pred_region
        %s3075 = smul.u32 32, %s20
        %p3076 = scmp.lt.s32.totalorder %s3075, 95
        %s3077 = scalar_select %p3076, %s3075, 95
        %s3078 = smul.addr %s3077, 4
        %s3079 = scalar_lea.vmem %s5, %s3078
      $region60: #{basic_block_forward.4} parent=55 // pred_fallthru
        _
      // Predicated region
      $region61: #{basic_block_forward.4} parent=55 // pred_check
        %p3080 = pneg %p210
      $region62: #{basic_block_forward.4} parent=55 // pred_check_branch
        %3082 = sbr.rel (%p3080) target = $region64
      $region63: #{basic_block_forward.4} parent=55 // pred_region
        %p3083 = scmp.lt.s32.totalorder %s20, 2
        %s3084 = scalar_select %p3083, %s20, 2
        %s3085 = scalar_lea.vmem %s6, %s3084
      $region64: #{basic_block_forward.4} parent=55 // pred_fallthru
        _
      // Predicated region
      $region65: #{basic_block_forward.4} parent=55 // pred_check
        %p3086 = pneg %p236
      $region66: #{basic_block_forward.4} parent=55 // pred_check_branch
        %3088 = sbr.rel (%p3086) target = $region68
      $region67: #{basic_block_forward.4} parent=55 // pred_region
        %p3089 = scmp.lt.s32.totalorder %s20, 2
        %s3090 = scalar_select %p3089, %s20, 2
        %s3091 = scalar_lea.vmem %s7, %s3090
      $region68: #{basic_block_forward.4} parent=55 // pred_fallthru
        _
    $region56: #{basic_block_forward.4} parent=5 // pred_fallthru
      _
  $region6: #{basic_block_forward.4} parent=0 // loop_footer
    %s18 = sadd.s32 1, %s14
  $region7: #{basic_block_forward.4} parent=0 // loop_footer_branch
    %13 = sbr.rel target = $region3
  $region8: #{basic_block_forward.4} parent=0 // loop_exit
    _

</llo_original>
